<compile_context>
chip_gen: v7x
topology: tpu7x:2x2x1
jax: 0.10.0
libtpu: 0.0.40
codegen_flags: <defaults>
</compile_context>

<pallas_src>
import functools
import math

import numpy as np
import jax
import jax.numpy as jnp
from jax.experimental import pallas as pl
from jax.experimental.pallas import tpu as pltpu


# --------------------------------------------------------------------------------------
# Fused per-patch-size kernel:
#   RevIN (channel stats broadcast to rows via a 0/1 indicator matmul)
#   + circular-conv token embedding (shift = block-diagonal permutation matmuls)
#   + positional embedding
#   + per-layer Q/K projection, per-head / per-channel scaled-dot-product softmax,
#     channel-mean accumulated in-register, single output store per (layer, stream).
# --------------------------------------------------------------------------------------
def _dcdetector_patch_kernel(
        xt_ref,                                                    # (1, M, L) raw
        xf_ps_ref, r_ps_ref, sp_ps_ref, sn_ps_ref, w_ps_ref, pe_ps_ref,
        xf_pn_ref, r_pn_ref, sp_pn_ref, sn_pn_ref, w_pn_ref, pe_pn_ref,
        wq_ref, bq_ref, wk_ref, bk_ref,
        *out_refs,
        n_heads, n_layers, channel, t_ps, c_ps, t_pn, c_pn, eps):

    def _dot(a, b):
        return jnp.dot(a, b, preferred_element_type=jnp.float32)

    # ---- RevIN statistics per channel (mean/var over the full window, unbiased=False) ----
    xt = xt_ref[0]                                                 # (M, L)
    mu = jnp.mean(xt, axis=1, keepdims=True)                       # (M, 1)
    var = jnp.mean(jnp.square(xt - mu), axis=1, keepdims=True)     # (M, 1)
    rstd = jax.lax.rsqrt(var + eps)                                # (M, 1)

    d_model = wq_ref.shape[-1]
    head_dim = d_model // n_heads
    scale = 1.0 / math.sqrt(head_dim)
    inv_ch = 1.0 / channel

    def embed(xf_ref, r_ref, sp_ref, sn_ref, w_ref, pe_ref, c_in):
        # xf: (M*T, C) rows grouped channel-major, T rows per channel.
        xf = xf_ref[0]
        r = r_ref[...]                                             # (M*T, M) 0/1 indicator
        mu_rows = _dot(r, mu)                                      # per-row channel mean
        rs_rows = _dot(r, rstd)                                    # per-row channel rstd
        xn = (xf - mu_rows) * rs_rows                              # RevIN 'norm'
        # circular conv (k=3, circular pad) along each channel's own sequence:
        # shifted copies via block-diagonal permutation matmuls (no concat / reshape).
        x_prev = _dot(sp_ref[...], xn)                             # x[t-1] rows
        x_next = _dot(sn_ref[...], xn)                             # x[t+1] rows
        w = w_ref[...]                                             # (3*C, D), kernel-pos major
        emb = (_dot(x_prev, w[0:c_in, :])
               + _dot(xn, w[c_in:2 * c_in, :])
               + _dot(x_next, w[2 * c_in:3 * c_in, :])
               + pe_ref[...])                                      # (M*T, D)
        return emb

    emb_ps = embed(xf_ps_ref, r_ps_ref, sp_ps_ref, sn_ps_ref, w_ps_ref, pe_ps_ref, c_ps)
    emb_pn = embed(xf_pn_ref, r_pn_ref, sp_pn_ref, sn_pn_ref, w_pn_ref, pe_pn_ref, c_pn)

    def attn_channel_mean(emb, t_len, wq, bq, wk, bk, o_ref):
        # channel-batched Q/K projection: one (M*T, D)@(D, D) matmul each.
        q = _dot(emb, wq) + bq                                     # (M*T, D)
        k = _dot(emb, wk) + bk
        for h in range(n_heads):
            qh = q[:, h * head_dim:(h + 1) * head_dim]             # (M*T, E)
            kh = k[:, h * head_dim:(h + 1) * head_dim]
            acc = None
            for m in range(channel):
                qm = qh[m * t_len:(m + 1) * t_len, :]              # (T, E)
                km = kh[m * t_len:(m + 1) * t_len, :]              # (T, E)
                s = jax.lax.dot_general(
                    qm, km, (((1,), (1,)), ((), ())),
                    preferred_element_type=jnp.float32) * scale    # (T, T) per channel
                s = s - jnp.max(s, axis=-1, keepdims=True)
                e = jnp.exp(s)
                sm = e / jnp.sum(e, axis=-1, keepdims=True)        # softmax per channel
                acc = sm if acc is None else acc + sm
            o_ref[0, h] = acc * inv_ch                             # channel mean, stored once

    for l in range(n_layers):
        wq_l, bq_l = wq_ref[l], bq_ref[l]
        wk_l, bk_l = wk_ref[l], bk_ref[l]
        attn_channel_mean(emb_ps, t_ps, wq_l, bq_l, wk_l, bk_l, out_refs[2 * l + 0])
        attn_channel_mean(emb_pn, t_pn, wq_l, bq_l, wk_l, bk_l, out_refs[2 * l + 1])


# --------------------------------------------------------------------------------------
# Constant helper matrices (built once per patch size; constant-folded under jit).
# --------------------------------------------------------------------------------------
def _group_shift_mats(n_channels, t_len):
    eye_t = np.eye(t_len, dtype=np.float32)
    c_prev = np.roll(eye_t, -1, axis=1)     # row t selects (t-1) mod T
    c_next = np.roll(eye_t, 1, axis=1)      # row t selects (t+1) mod T
    eye_m = np.eye(n_channels, dtype=np.float32)
    s_prev = np.kron(eye_m, c_prev)
    s_next = np.kron(eye_m, c_next)
    r = np.repeat(eye_m, t_len, axis=0)     # (M*T, M) row -> channel indicator
    return jnp.asarray(s_prev), jnp.asarray(s_next), jnp.asarray(r)


def positional_embedding(max_len, d_model):
    pos = jnp.arange(max_len, dtype=jnp.float32)[:, None]
    div = jnp.exp(jnp.arange(0, d_model, 2, dtype=jnp.float32)
                  * (-math.log(10000.0) / d_model))
    pe = jnp.zeros((max_len, d_model), jnp.float32)
    pe = pe.at[:, 0::2].set(jnp.sin(pos * div))
    pe = pe.at[:, 1::2].set(jnp.cos(pos * div))
    return pe


def init_params(key, cfg):
    L, D = cfg["win_size"], cfg["d_model"]
    EL = cfg["e_layers"]
    keys = iter(jax.random.split(key, 16))

    def nrm(shape, scale=0.02):
        return (scale * jax.random.normal(next(keys), shape)).astype(jnp.float32)

    return {
        "pe": positional_embedding(L, D),
        # Conv1d(k=3, circular, no bias) flattened kernel-position-major: (3*C_in, D)
        "w_ps": [nrm((3 * p, D)) for p in cfg["patch_size"]],
        "w_pn": [nrm((3 * (L // p), D)) for p in cfg["patch_size"]],
        "wq": nrm((EL, D, D)),
        "bq": nrm((EL, 1, D)),
        "wk": nrm((EL, D, D)),
        "bk": nrm((EL, 1, D)),
    }


# --------------------------------------------------------------------------------------
# Forward pass
# --------------------------------------------------------------------------------------
def dcdetector_forward(x, params, cfg):
    B, L, M = x.shape
    H, D, EL = cfg["n_heads"], cfg["d_model"], cfg["e_layers"]

    xt = jnp.transpose(x, (0, 2, 1))                       # (B, M, L) raw values

    series_list, prior_list = [], []
    for pi, p in enumerate(cfg["patch_size"]):
        n = L // p
        xf_ps = xt.reshape(B, M * n, p)                    # 'b m (n p) -> b (m n) p'
        xf_pn = xt.reshape(B, M * p, n)                    # 'b m (p n) -> b (m p) n'
        sp_ps, sn_ps, r_ps = _group_shift_mats(M, n)
        sp_pn, sn_pn, r_pn = _group_shift_mats(M, p)
        pe_ps = jnp.tile(params["pe"][:n], (M, 1))         # (M*n, D)
        pe_pn = jnp.tile(params["pe"][:p], (M, 1))         # (M*p, D)

        kern = functools.partial(
            _dcdetector_patch_kernel, n_heads=H, n_layers=EL, channel=M,
            t_ps=n, c_ps=p, t_pn=p, c_pn=n, eps=1e-5)

        out_shapes, out_specs = [], []
        for _ in range(EL):
            out_shapes += [jax.ShapeDtypeStruct((B, H, n, n), jnp.float32),
                           jax.ShapeDtypeStruct((B, H, p, p), jnp.float32)]
            out_specs += [pl.BlockSpec((1, H, n, n), lambda b: (b, 0, 0, 0)),
                          pl.BlockSpec((1, H, p, p), lambda b: (b, 0, 0, 0))]

        def const2(shape):
            return pl.BlockSpec(shape, lambda b: (0, 0))

        def const3(shape):
            return pl.BlockSpec(shape, lambda b: (0, 0, 0))

        in_specs = [
            pl.BlockSpec((1, M, L), lambda b: (b, 0, 0)),          # xt (RevIN stats)
            pl.BlockSpec((1, M * n, p), lambda b: (b, 0, 0)),      # series stream
            const2((M * n, M)), const2((M * n, M * n)), const2((M * n, M * n)),
            const2((3 * p, D)), const2((M * n, D)),
            pl.BlockSpec((1, M * p, n), lambda b: (b, 0, 0)),      # prior stream
            const2((M * p, M)), const2((M * p, M * p)), const2((M * p, M * p)),
            const2((3 * n, D)), const2((M * p, D)),
            const3((EL, D, D)), const3((EL, 1, D)),                # wq, bq
            const3((EL, D, D)), const3((EL, 1, D)),                # wk, bk
        ]

        outs = pl.pallas_call(
            kern,
            out_shape=tuple(out_shapes),
            grid=(B,),
            in_specs=in_specs,
            out_specs=tuple(out_specs),
            compiler_params=pltpu.CompilerParams(
                dimension_semantics=("parallel",)),                # v7x: 2 TCs share batches
        )(xt, xf_ps, r_ps, sp_ps, sn_ps, params["w_ps"][pi], pe_ps,
          xf_pn, r_pn, sp_pn, sn_pn, params["w_pn"][pi], pe_pn,
          params["wq"], params["bq"], params["wk"], params["bk"])

        for l in range(EL):
            series_n, prior_p = outs[2 * l], outs[2 * l + 1]
            # einops repeat 'b l m n -> b l (m p) (n p)' == one fused broadcast+reshape
            series = jnp.broadcast_to(series_n[:, :, :, None, :, None],
                                      (B, H, n, p, n, p)).reshape(B, H, L, L)
            # tensor.repeat(1,1,n,n) == whole-map tiling
            prior = jnp.tile(prior_p, (1, 1, n, n))
            series_list.append(series)
            prior_list.append(prior)
    return series_list, prior_list


# --------------------------------------------------------------------------------------
# float64 NumPy reference (mirrors the PyTorch forward semantics)
# --------------------------------------------------------------------------------------
def reference_forward(x, params, cfg):
    x = np.asarray(x, np.float64)
    B, L, M = x.shape
    H, D, EL = cfg["n_heads"], cfg["d_model"], cfg["e_layers"]
    E = D // H
    pe = np.asarray(params["pe"], np.float64)

    mu = x.mean(axis=1, keepdims=True)
    var = ((x - mu) ** 2).mean(axis=1, keepdims=True)
    xn = (x - mu) / np.sqrt(var + 1e-5)
    xt = np.transpose(xn, (0, 2, 1)).reshape(B * M, L)

    def embed(xs, w):
        prev = np.roll(xs, 1, axis=1)
        nxt = np.roll(xs, -1, axis=1)
        xcat = np.concatenate([prev, xs, nxt], axis=-1)
        t_len = xs.shape[1]
        return xcat @ np.asarray(w, np.float64) + pe[None, :t_len, :]

    series_list, prior_list = [], []
    for pi, p in enumerate(cfg["patch_size"]):
        n = L // p
        emb_ps = embed(xt.reshape(B * M, n, p), params["w_ps"][pi])
        emb_pn = embed(xt.reshape(B * M, p, n), params["w_pn"][pi])
        for l in range(EL):
            wq = np.asarray(params["wq"][l], np.float64)
            bq = np.asarray(params["bq"][l], np.float64)
            wk = np.asarray(params["wk"][l], np.float64)
            bk = np.asarray(params["bk"][l], np.float64)

            def attn_mean(emb, t_len):
                q = (emb @ wq + bq).reshape(B * M, t_len, H, E)
                k = (emb @ wk + bk).reshape(B * M, t_len, H, E)
                s = np.einsum('blhe,bshe->bhls', q, k) / math.sqrt(E)
                s = s - s.max(axis=-1, keepdims=True)
                e = np.exp(s)
                sm = e / e.sum(axis=-1, keepdims=True)
                return sm.reshape(B, M, H, t_len, t_len).mean(axis=1)

            series_n = attn_mean(emb_ps, n)
            prior_p = attn_mean(emb_pn, p)
            series_list.append(np.repeat(np.repeat(series_n, p, axis=2), p, axis=3))
            prior_list.append(np.tile(prior_p, (1, 1, n, n)))
    return series_list, prior_list


if __name__ == "__main__":
    cfg = dict(win_size=16, channel=4, enc_in=4, d_model=32, n_heads=2,
               e_layers=1, patch_size=[2, 4], c_out=4, dropout=0.0,
               output_attention=True)

    key = jax.random.PRNGKey(0)
    kx, kp = jax.random.split(key)
    B = 2
    x = jax.random.normal(kx, (B, cfg["win_size"], cfg["channel"]), jnp.float32)
    params = init_params(kp, cfg)

    fwd = jax.jit(functools.partial(dcdetector_forward, cfg=cfg))
    series, prior = fwd(x, params)
    jax.block_until_ready((series, prior))

    n_maps = len(cfg["patch_size"]) * cfg["e_layers"]
    assert len(series) == n_maps and len(prior) == n_maps

    params_np = jax.tree_util.tree_map(np.asarray, params)
    ref_series, ref_prior = reference_forward(np.asarray(x), params_np, cfg)
    for got, ref in zip(series, ref_series):
        assert got.shape == (B, cfg["n_heads"], cfg["win_size"], cfg["win_size"])
        np.testing.assert_allclose(np.asarray(got), ref, rtol=5e-3, atol=5e-3)
    for got, ref in zip(prior, ref_prior):
        assert got.shape == (B, cfg["n_heads"], cfg["win_size"], cfg["win_size"])
        np.testing.assert_allclose(np.asarray(got), ref, rtol=5e-3, atol=5e-3)

    print("KERNEL_OK")
</pallas_src>

<mosaic_0001>
module attributes {stable_mosaic.version = 11 : i64} {
  func.func @_dcdetector_patch_kernel(%arg0: i32, %arg1: memref<1x4x16xf32, #tpu.memory_space<vmem>>, %arg2: memref<1x32x2xf32, #tpu.memory_space<vmem>>, %arg3: memref<32x4xf32, #tpu.memory_space<vmem>>, %arg4: memref<32x32xf32, #tpu.memory_space<vmem>>, %arg5: memref<32x32xf32, #tpu.memory_space<vmem>>, %arg6: memref<6x32xf32, #tpu.memory_space<vmem>>, %arg7: memref<32x32xf32, #tpu.memory_space<vmem>>, %arg8: memref<1x8x8xf32, #tpu.memory_space<vmem>>, %arg9: memref<8x4xf32, #tpu.memory_space<vmem>>, %arg10: memref<8x8xf32, #tpu.memory_space<vmem>>, %arg11: memref<8x8xf32, #tpu.memory_space<vmem>>, %arg12: memref<24x32xf32, #tpu.memory_space<vmem>>, %arg13: memref<8x32xf32, #tpu.memory_space<vmem>>, %arg14: memref<1x32x32xf32, #tpu.memory_space<vmem>>, %arg15: memref<1x1x32xf32, #tpu.memory_space<vmem>>, %arg16: memref<1x32x32xf32, #tpu.memory_space<vmem>>, %arg17: memref<1x1x32xf32, #tpu.memory_space<vmem>>, %arg18: memref<1x2x8x8xf32, #tpu.memory_space<vmem>>, %arg19: memref<1x2x2x2xf32, #tpu.memory_space<vmem>>) attributes {dimension_semantics = [#tpu.dimension_semantics<parallel>], iteration_bounds = array<i64: 2>, scalar_prefetch = 0 : i64, scratch_operands = 0 : i64, tpu.core_type = #tpu.core_type<tc>, window_params = [{transform_indices = @transform_0, window_bounds = array<i64: 1, 4, 16>}, {transform_indices = @transform_1, window_bounds = array<i64: 1, 32, 2>}, {pipeline_mode = #tpu.pipeline_mode<synchronous>, transform_indices = @transform_2, window_bounds = array<i64: 32, 4>}, {pipeline_mode = #tpu.pipeline_mode<synchronous>, transform_indices = @transform_3, window_bounds = array<i64: 32, 32>}, {pipeline_mode = #tpu.pipeline_mode<synchronous>, transform_indices = @transform_4, window_bounds = array<i64: 32, 32>}, {pipeline_mode = #tpu.pipeline_mode<synchronous>, transform_indices = @transform_5, window_bounds = array<i64: 6, 32>}, {pipeline_mode = #tpu.pipeline_mode<synchronous>, transform_indices = @transform_6, window_bounds = array<i64: 32, 32>}, {transform_indices = @transform_7, window_bounds = array<i64: 1, 8, 8>}, {pipeline_mode = #tpu.pipeline_mode<synchronous>, transform_indices = @transform_8, window_bounds = array<i64: 8, 4>}, {pipeline_mode = #tpu.pipeline_mode<synchronous>, transform_indices = @transform_9, window_bounds = array<i64: 8, 8>}, {pipeline_mode = #tpu.pipeline_mode<synchronous>, transform_indices = @transform_10, window_bounds = array<i64: 8, 8>}, {pipeline_mode = #tpu.pipeline_mode<synchronous>, transform_indices = @transform_11, window_bounds = array<i64: 24, 32>}, {pipeline_mode = #tpu.pipeline_mode<synchronous>, transform_indices = @transform_12, window_bounds = array<i64: 8, 32>}, {pipeline_mode = #tpu.pipeline_mode<synchronous>, transform_indices = @transform_13, window_bounds = array<i64: 1, 32, 32>}, {pipeline_mode = #tpu.pipeline_mode<synchronous>, transform_indices = @transform_14, window_bounds = array<i64: 1, 1, 32>}, {pipeline_mode = #tpu.pipeline_mode<synchronous>, transform_indices = @transform_15, window_bounds = array<i64: 1, 32, 32>}, {pipeline_mode = #tpu.pipeline_mode<synchronous>, transform_indices = @transform_16, window_bounds = array<i64: 1, 1, 32>}, {transform_indices = @transform_17, window_bounds = array<i64: 1, 2, 8, 8>}, {transform_indices = @transform_18, window_bounds = array<i64: 1, 2, 2, 2>}]} {
    %c0 = arith.constant 0 : index
    %c0_0 = arith.constant 0 : index
    %c0_1 = arith.constant 0 : index
    %0 = vector.load %arg1[%c0, %c0_0, %c0_1] : memref<1x4x16xf32, #tpu.memory_space<vmem>>, vector<1x4x16xf32>
    %1 = vector.shape_cast %0 : vector<1x4x16xf32> to vector<4x16xf32>
    %cst = arith.constant dense<0.000000e+00> : vector<4xf32>
    %2 = vector.multi_reduction <add>, %1, %cst [1] : vector<4x16xf32> to vector<4xf32>
    %3 = vector.shape_cast %2 : vector<4xf32> to vector<4x1xf32>
    %cst_2 = arith.constant 1.600000e+01 : f32
    %4 = vector.broadcast %cst_2 : f32 to vector<4x1xf32>
    %5 = arith.divf %3, %4 : vector<4x1xf32>
    %6 = vector.broadcast %5 : vector<4x1xf32> to vector<4x16xf32>
    %7 = arith.subf %1, %6 : vector<4x16xf32>
    %8 = arith.mulf %7, %7 : vector<4x16xf32>
    %cst_3 = arith.constant dense<0.000000e+00> : vector<4xf32>
    %9 = vector.multi_reduction <add>, %8, %cst_3 [1] : vector<4x16xf32> to vector<4xf32>
    %10 = vector.shape_cast %9 : vector<4xf32> to vector<4x1xf32>
    %cst_4 = arith.constant 1.600000e+01 : f32
    %11 = vector.broadcast %cst_4 : f32 to vector<4x1xf32>
    %12 = arith.divf %10, %11 : vector<4x1xf32>
    %cst_5 = arith.constant 9.99999974E-6 : f32
    %13 = vector.broadcast %cst_5 : f32 to vector<4x1xf32>
    %14 = arith.addf %12, %13 : vector<4x1xf32>
    %15 = math.rsqrt %14 : vector<4x1xf32>
    %c0_6 = arith.constant 0 : index
    %c0_7 = arith.constant 0 : index
    %c0_8 = arith.constant 0 : index
    %16 = vector.load %arg2[%c0_6, %c0_7, %c0_8] : memref<1x32x2xf32, #tpu.memory_space<vmem>>, vector<1x32x2xf32>
    %17 = vector.shape_cast %16 : vector<1x32x2xf32> to vector<32x2xf32>
    %c0_9 = arith.constant 0 : index
    %c0_10 = arith.constant 0 : index
    %18 = vector.load %arg3[%c0_9, %c0_10] : memref<32x4xf32, #tpu.memory_space<vmem>>, vector<32x4xf32>
    %cst_11 = arith.constant dense<0.000000e+00> : vector<32x1xf32>
    %19 = tpu.matmul %18, %5, %cst_11 {dimension_numbers = #tpu.dot_dimension_numbers<[1], [0], [0], [1], [0, 0, 1, 1], [], []>} : vector<32x4xf32>, vector<4x1xf32>, vector<32x1xf32> -> vector<32x1xf32>
    %cst_12 = arith.constant dense<0.000000e+00> : vector<32x1xf32>
    %20 = tpu.matmul %18, %15, %cst_12 {dimension_numbers = #tpu.dot_dimension_numbers<[1], [0], [0], [1], [0, 0, 1, 1], [], []>} : vector<32x4xf32>, vector<4x1xf32>, vector<32x1xf32> -> vector<32x1xf32>
    %21 = vector.broadcast %19 : vector<32x1xf32> to vector<32x2xf32>
    %22 = arith.subf %17, %21 : vector<32x2xf32>
    %23 = vector.broadcast %20 : vector<32x1xf32> to vector<32x2xf32>
    %24 = arith.mulf %22, %23 : vector<32x2xf32>
    %c0_13 = arith.constant 0 : index
    %c0_14 = arith.constant 0 : index
    %25 = vector.load %arg4[%c0_13, %c0_14] : memref<32x32xf32, #tpu.memory_space<vmem>>, vector<32x32xf32>
    %cst_15 = arith.constant dense<0.000000e+00> : vector<32x2xf32>
    %26 = tpu.matmul %25, %24, %cst_15 {dimension_numbers = #tpu.dot_dimension_numbers<[1], [0], [0], [1], [0, 0, 1, 1], [], []>} : vector<32x32xf32>, vector<32x2xf32>, vector<32x2xf32> -> vector<32x2xf32>
    %c0_16 = arith.constant 0 : index
    %c0_17 = arith.constant 0 : index
    %27 = vector.load %arg5[%c0_16, %c0_17] : memref<32x32xf32, #tpu.memory_space<vmem>>, vector<32x32xf32>
    %cst_18 = arith.constant dense<0.000000e+00> : vector<32x2xf32>
    %28 = tpu.matmul %27, %24, %cst_18 {dimension_numbers = #tpu.dot_dimension_numbers<[1], [0], [0], [1], [0, 0, 1, 1], [], []>} : vector<32x32xf32>, vector<32x2xf32>, vector<32x2xf32> -> vector<32x2xf32>
    %c0_19 = arith.constant 0 : index
    %c0_20 = arith.constant 0 : index
    %29 = vector.load %arg6[%c0_19, %c0_20] : memref<6x32xf32, #tpu.memory_space<vmem>>, vector<6x32xf32>
    %30 = vector.extract_strided_slice %29 {offsets = [0, 0], sizes = [2, 32], strides = [1, 1]} : vector<6x32xf32> to vector<2x32xf32>
    %cst_21 = arith.constant dense<0.000000e+00> : vector<32x32xf32>
    %31 = tpu.matmul %26, %30, %cst_21 {dimension_numbers = #tpu.dot_dimension_numbers<[1], [0], [0], [1], [0, 0, 1, 1], [], []>} : vector<32x2xf32>, vector<2x32xf32>, vector<32x32xf32> -> vector<32x32xf32>
    %32 = vector.extract_strided_slice %29 {offsets = [2, 0], sizes = [2, 32], strides = [1, 1]} : vector<6x32xf32> to vector<2x32xf32>
    %cst_22 = arith.constant dense<0.000000e+00> : vector<32x32xf32>
    %33 = tpu.matmul %24, %32, %cst_22 {dimension_numbers = #tpu.dot_dimension_numbers<[1], [0], [0], [1], [0, 0, 1, 1], [], []>} : vector<32x2xf32>, vector<2x32xf32>, vector<32x32xf32> -> vector<32x32xf32>
    %34 = arith.addf %31, %33 : vector<32x32xf32>
    %35 = vector.extract_strided_slice %29 {offsets = [4, 0], sizes = [2, 32], strides = [1, 1]} : vector<6x32xf32> to vector<2x32xf32>
    %cst_23 = arith.constant dense<0.000000e+00> : vector<32x32xf32>
    %36 = tpu.matmul %28, %35, %cst_23 {dimension_numbers = #tpu.dot_dimension_numbers<[1], [0], [0], [1], [0, 0, 1, 1], [], []>} : vector<32x2xf32>, vector<2x32xf32>, vector<32x32xf32> -> vector<32x32xf32>
    %37 = arith.addf %34, %36 : vector<32x32xf32>
    %c0_24 = arith.constant 0 : index
    %c0_25 = arith.constant 0 : index
    %38 = vector.load %arg7[%c0_24, %c0_25] : memref<32x32xf32, #tpu.memory_space<vmem>>, vector<32x32xf32>
    %39 = arith.addf %37, %38 : vector<32x32xf32>
    %c0_26 = arith.constant 0 : index
    %c0_27 = arith.constant 0 : index
    %c0_28 = arith.constant 0 : index
    %40 = vector.load %arg8[%c0_26, %c0_27, %c0_28] : memref<1x8x8xf32, #tpu.memory_space<vmem>>, vector<1x8x8xf32>
    %41 = vector.shape_cast %40 : vector<1x8x8xf32> to vector<8x8xf32>
    %c0_29 = arith.constant 0 : index
    %c0_30 = arith.constant 0 : index
    %42 = vector.load %arg9[%c0_29, %c0_30] : memref<8x4xf32, #tpu.memory_space<vmem>>, vector<8x4xf32>
    %cst_31 = arith.constant dense<0.000000e+00> : vector<8x1xf32>
    %43 = tpu.matmul %42, %5, %cst_31 {dimension_numbers = #tpu.dot_dimension_numbers<[1], [0], [0], [1], [0, 0, 1, 1], [], []>} : vector<8x4xf32>, vector<4x1xf32>, vector<8x1xf32> -> vector<8x1xf32>
    %cst_32 = arith.constant dense<0.000000e+00> : vector<8x1xf32>
    %44 = tpu.matmul %42, %15, %cst_32 {dimension_numbers = #tpu.dot_dimension_numbers<[1], [0], [0], [1], [0, 0, 1, 1], [], []>} : vector<8x4xf32>, vector<4x1xf32>, vector<8x1xf32> -> vector<8x1xf32>
    %45 = vector.broadcast %43 : vector<8x1xf32> to vector<8x8xf32>
    %46 = arith.subf %41, %45 : vector<8x8xf32>
    %47 = vector.broadcast %44 : vector<8x1xf32> to vector<8x8xf32>
    %48 = arith.mulf %46, %47 : vector<8x8xf32>
    %c0_33 = arith.constant 0 : index
    %c0_34 = arith.constant 0 : index
    %49 = vector.load %arg10[%c0_33, %c0_34] : memref<8x8xf32, #tpu.memory_space<vmem>>, vector<8x8xf32>
    %cst_35 = arith.constant dense<0.000000e+00> : vector<8x8xf32>
    %50 = tpu.matmul %49, %48, %cst_35 {dimension_numbers = #tpu.dot_dimension_numbers<[1], [0], [0], [1], [0, 0, 1, 1], [], []>} : vector<8x8xf32>, vector<8x8xf32>, vector<8x8xf32> -> vector<8x8xf32>
    %c0_36 = arith.constant 0 : index
    %c0_37 = arith.constant 0 : index
    %51 = vector.load %arg11[%c0_36, %c0_37] : memref<8x8xf32, #tpu.memory_space<vmem>>, vector<8x8xf32>
    %cst_38 = arith.constant dense<0.000000e+00> : vector<8x8xf32>
    %52 = tpu.matmul %51, %48, %cst_38 {dimension_numbers = #tpu.dot_dimension_numbers<[1], [0], [0], [1], [0, 0, 1, 1], [], []>} : vector<8x8xf32>, vector<8x8xf32>, vector<8x8xf32> -> vector<8x8xf32>
    %c0_39 = arith.constant 0 : index
    %c0_40 = arith.constant 0 : index
    %53 = vector.load %arg12[%c0_39, %c0_40] : memref<24x32xf32, #tpu.memory_space<vmem>>, vector<24x32xf32>
    %54 = vector.extract_strided_slice %53 {offsets = [0, 0], sizes = [8, 32], strides = [1, 1]} : vector<24x32xf32> to vector<8x32xf32>
    %cst_41 = arith.constant dense<0.000000e+00> : vector<8x32xf32>
    %55 = tpu.matmul %50, %54, %cst_41 {dimension_numbers = #tpu.dot_dimension_numbers<[1], [0], [0], [1], [0, 0, 1, 1], [], []>} : vector<8x8xf32>, vector<8x32xf32>, vector<8x32xf32> -> vector<8x32xf32>
    %56 = vector.extract_strided_slice %53 {offsets = [8, 0], sizes = [8, 32], strides = [1, 1]} : vector<24x32xf32> to vector<8x32xf32>
    %cst_42 = arith.constant dense<0.000000e+00> : vector<8x32xf32>
    %57 = tpu.matmul %48, %56, %cst_42 {dimension_numbers = #tpu.dot_dimension_numbers<[1], [0], [0], [1], [0, 0, 1, 1], [], []>} : vector<8x8xf32>, vector<8x32xf32>, vector<8x32xf32> -> vector<8x32xf32>
    %58 = arith.addf %55, %57 : vector<8x32xf32>
    %59 = vector.extract_strided_slice %53 {offsets = [16, 0], sizes = [8, 32], strides = [1, 1]} : vector<24x32xf32> to vector<8x32xf32>
    %cst_43 = arith.constant dense<0.000000e+00> : vector<8x32xf32>
    %60 = tpu.matmul %52, %59, %cst_43 {dimension_numbers = #tpu.dot_dimension_numbers<[1], [0], [0], [1], [0, 0, 1, 1], [], []>} : vector<8x8xf32>, vector<8x32xf32>, vector<8x32xf32> -> vector<8x32xf32>
    %61 = arith.addf %58, %60 : vector<8x32xf32>
    %c0_44 = arith.constant 0 : index
    %c0_45 = arith.constant 0 : index
    %62 = vector.load %arg13[%c0_44, %c0_45] : memref<8x32xf32, #tpu.memory_space<vmem>>, vector<8x32xf32>
    %63 = arith.addf %61, %62 : vector<8x32xf32>
    %c0_46 = arith.constant 0 : index
    %c0_47 = arith.constant 0 : index
    %c0_48 = arith.constant 0 : index
    %64 = vector.load %arg14[%c0_46, %c0_47, %c0_48] : memref<1x32x32xf32, #tpu.memory_space<vmem>>, vector<1x32x32xf32>
    %65 = vector.shape_cast %64 : vector<1x32x32xf32> to vector<32x32xf32>
    %c0_49 = arith.constant 0 : index
    %c0_50 = arith.constant 0 : index
    %c0_51 = arith.constant 0 : index
    %66 = vector.load %arg15[%c0_49, %c0_50, %c0_51] : memref<1x1x32xf32, #tpu.memory_space<vmem>>, vector<1x1x32xf32>
    %67 = vector.shape_cast %66 : vector<1x1x32xf32> to vector<1x32xf32>
    %c0_52 = arith.constant 0 : index
    %c0_53 = arith.constant 0 : index
    %c0_54 = arith.constant 0 : index
    %68 = vector.load %arg16[%c0_52, %c0_53, %c0_54] : memref<1x32x32xf32, #tpu.memory_space<vmem>>, vector<1x32x32xf32>
    %69 = vector.shape_cast %68 : vector<1x32x32xf32> to vector<32x32xf32>
    %c0_55 = arith.constant 0 : index
    %c0_56 = arith.constant 0 : index
    %c0_57 = arith.constant 0 : index
    %70 = vector.load %arg17[%c0_55, %c0_56, %c0_57] : memref<1x1x32xf32, #tpu.memory_space<vmem>>, vector<1x1x32xf32>
    %71 = vector.shape_cast %70 : vector<1x1x32xf32> to vector<1x32xf32>
    %cst_58 = arith.constant dense<0.000000e+00> : vector<32x32xf32>
    %72 = tpu.matmul %39, %65, %cst_58 {dimension_numbers = #tpu.dot_dimension_numbers<[1], [0], [0], [1], [0, 0, 1, 1], [], []>} : vector<32x32xf32>, vector<32x32xf32>, vector<32x32xf32> -> vector<32x32xf32>
    %73 = vector.broadcast %67 : vector<1x32xf32> to vector<32x32xf32>
    %74 = arith.addf %72, %73 : vector<32x32xf32>
    %cst_59 = arith.constant dense<0.000000e+00> : vector<32x32xf32>
    %75 = tpu.matmul %39, %69, %cst_59 {dimension_numbers = #tpu.dot_dimension_numbers<[1], [0], [0], [1], [0, 0, 1, 1], [], []>} : vector<32x32xf32>, vector<32x32xf32>, vector<32x32xf32> -> vector<32x32xf32>
    %76 = vector.broadcast %71 : vector<1x32xf32> to vector<32x32xf32>
    %77 = arith.addf %75, %76 : vector<32x32xf32>
    %78 = vector.extract_strided_slice %74 {offsets = [0, 0], sizes = [32, 16], strides = [1, 1]} : vector<32x32xf32> to vector<32x16xf32>
    %79 = vector.extract_strided_slice %77 {offsets = [0, 0], sizes = [32, 16], strides = [1, 1]} : vector<32x32xf32> to vector<32x16xf32>
    %80 = vector.extract_strided_slice %78 {offsets = [0, 0], sizes = [8, 16], strides = [1, 1]} : vector<32x16xf32> to vector<8x16xf32>
    %81 = vector.extract_strided_slice %79 {offsets = [0, 0], sizes = [8, 16], strides = [1, 1]} : vector<32x16xf32> to vector<8x16xf32>
    %cst_60 = arith.constant dense<0.000000e+00> : vector<8x8xf32>
    %82 = tpu.matmul %80, %81, %cst_60 {dimension_numbers = #tpu.dot_dimension_numbers<[1], [1], [0], [0], [0, 0, 1, 0], [], []>} : vector<8x16xf32>, vector<8x16xf32>, vector<8x8xf32> -> vector<8x8xf32>
    %cst_61 = arith.constant 2.500000e-01 : f32
    %83 = vector.broadcast %cst_61 : f32 to vector<8x8xf32>
    %84 = arith.mulf %82, %83 : vector<8x8xf32>
    %cst_62 = arith.constant dense<0xFF800000> : vector<8xf32>
    %85 = vector.multi_reduction <maximumf>, %84, %cst_62 [1] : vector<8x8xf32> to vector<8xf32>
    %86 = vector.shape_cast %85 : vector<8xf32> to vector<8x1xf32>
    %87 = vector.broadcast %86 : vector<8x1xf32> to vector<8x8xf32>
    %88 = arith.subf %84, %87 : vector<8x8xf32>
    %89 = math.exp %88 : vector<8x8xf32>
    %cst_63 = arith.constant dense<0.000000e+00> : vector<8xf32>
    %90 = vector.multi_reduction <add>, %89, %cst_63 [1] : vector<8x8xf32> to vector<8xf32>
    %91 = vector.shape_cast %90 : vector<8xf32> to vector<8x1xf32>
    %92 = vector.broadcast %91 : vector<8x1xf32> to vector<8x8xf32>
    %93 = arith.divf %89, %92 : vector<8x8xf32>
    %94 = vector.extract_strided_slice %78 {offsets = [8, 0], sizes = [8, 16], strides = [1, 1]} : vector<32x16xf32> to vector<8x16xf32>
    %95 = vector.extract_strided_slice %79 {offsets = [8, 0], sizes = [8, 16], strides = [1, 1]} : vector<32x16xf32> to vector<8x16xf32>
    %cst_64 = arith.constant dense<0.000000e+00> : vector<8x8xf32>
    %96 = tpu.matmul %94, %95, %cst_64 {dimension_numbers = #tpu.dot_dimension_numbers<[1], [1], [0], [0], [0, 0, 1, 0], [], []>} : vector<8x16xf32>, vector<8x16xf32>, vector<8x8xf32> -> vector<8x8xf32>
    %cst_65 = arith.constant 2.500000e-01 : f32
    %97 = vector.broadcast %cst_65 : f32 to vector<8x8xf32>
    %98 = arith.mulf %96, %97 : vector<8x8xf32>
    %cst_66 = arith.constant dense<0xFF800000> : vector<8xf32>
    %99 = vector.multi_reduction <maximumf>, %98, %cst_66 [1] : vector<8x8xf32> to vector<8xf32>
    %100 = vector.shape_cast %99 : vector<8xf32> to vector<8x1xf32>
    %101 = vector.broadcast %100 : vector<8x1xf32> to vector<8x8xf32>
    %102 = arith.subf %98, %101 : vector<8x8xf32>
    %103 = math.exp %102 : vector<8x8xf32>
    %cst_67 = arith.constant dense<0.000000e+00> : vector<8xf32>
    %104 = vector.multi_reduction <add>, %103, %cst_67 [1] : vector<8x8xf32> to vector<8xf32>
    %105 = vector.shape_cast %104 : vector<8xf32> to vector<8x1xf32>
    %106 = vector.broadcast %105 : vector<8x1xf32> to vector<8x8xf32>
    %107 = arith.divf %103, %106 : vector<8x8xf32>
    %108 = arith.addf %93, %107 : vector<8x8xf32>
    %109 = vector.extract_strided_slice %78 {offsets = [16, 0], sizes = [8, 16], strides = [1, 1]} : vector<32x16xf32> to vector<8x16xf32>
    %110 = vector.extract_strided_slice %79 {offsets = [16, 0], sizes = [8, 16], strides = [1, 1]} : vector<32x16xf32> to vector<8x16xf32>
    %cst_68 = arith.constant dense<0.000000e+00> : vector<8x8xf32>
    %111 = tpu.matmul %109, %110, %cst_68 {dimension_numbers = #tpu.dot_dimension_numbers<[1], [1], [0], [0], [0, 0, 1, 0], [], []>} : vector<8x16xf32>, vector<8x16xf32>, vector<8x8xf32> -> vector<8x8xf32>
    %cst_69 = arith.constant 2.500000e-01 : f32
    %112 = vector.broadcast %cst_69 : f32 to vector<8x8xf32>
    %113 = arith.mulf %111, %112 : vector<8x8xf32>
    %cst_70 = arith.constant dense<0xFF800000> : vector<8xf32>
    %114 = vector.multi_reduction <maximumf>, %113, %cst_70 [1] : vector<8x8xf32> to vector<8xf32>
    %115 = vector.shape_cast %114 : vector<8xf32> to vector<8x1xf32>
    %116 = vector.broadcast %115 : vector<8x1xf32> to vector<8x8xf32>
    %117 = arith.subf %113, %116 : vector<8x8xf32>
    %118 = math.exp %117 : vector<8x8xf32>
    %cst_71 = arith.constant dense<0.000000e+00> : vector<8xf32>
    %119 = vector.multi_reduction <add>, %118, %cst_71 [1] : vector<8x8xf32> to vector<8xf32>
    %120 = vector.shape_cast %119 : vector<8xf32> to vector<8x1xf32>
    %121 = vector.broadcast %120 : vector<8x1xf32> to vector<8x8xf32>
    %122 = arith.divf %118, %121 : vector<8x8xf32>
    %123 = arith.addf %108, %122 : vector<8x8xf32>
    %124 = vector.extract_strided_slice %78 {offsets = [24, 0], sizes = [8, 16], strides = [1, 1]} : vector<32x16xf32> to vector<8x16xf32>
    %125 = vector.extract_strided_slice %79 {offsets = [24, 0], sizes = [8, 16], strides = [1, 1]} : vector<32x16xf32> to vector<8x16xf32>
    %cst_72 = arith.constant dense<0.000000e+00> : vector<8x8xf32>
    %126 = tpu.matmul %124, %125, %cst_72 {dimension_numbers = #tpu.dot_dimension_numbers<[1], [1], [0], [0], [0, 0, 1, 0], [], []>} : vector<8x16xf32>, vector<8x16xf32>, vector<8x8xf32> -> vector<8x8xf32>
    %cst_73 = arith.constant 2.500000e-01 : f32
    %127 = vector.broadcast %cst_73 : f32 to vector<8x8xf32>
    %128 = arith.mulf %126, %127 : vector<8x8xf32>
    %cst_74 = arith.constant dense<0xFF800000> : vector<8xf32>
    %129 = vector.multi_reduction <maximumf>, %128, %cst_74 [1] : vector<8x8xf32> to vector<8xf32>
    %130 = vector.shape_cast %129 : vector<8xf32> to vector<8x1xf32>
    %131 = vector.broadcast %130 : vector<8x1xf32> to vector<8x8xf32>
    %132 = arith.subf %128, %131 : vector<8x8xf32>
    %133 = math.exp %132 : vector<8x8xf32>
    %cst_75 = arith.constant dense<0.000000e+00> : vector<8xf32>
    %134 = vector.multi_reduction <add>, %133, %cst_75 [1] : vector<8x8xf32> to vector<8xf32>
    %135 = vector.shape_cast %134 : vector<8xf32> to vector<8x1xf32>
    %136 = vector.broadcast %135 : vector<8x1xf32> to vector<8x8xf32>
    %137 = arith.divf %133, %136 : vector<8x8xf32>
    %138 = arith.addf %123, %137 : vector<8x8xf32>
    %cst_76 = arith.constant 2.500000e-01 : f32
    %139 = vector.broadcast %cst_76 : f32 to vector<8x8xf32>
    %140 = arith.mulf %138, %139 : vector<8x8xf32>
    %c0_77 = arith.constant 0 : index
    %c0_78 = arith.constant 0 : index
    %c0_79 = arith.constant 0 : index
    %c0_80 = arith.constant 0 : index
    %141 = vector.load %arg18[%c0_77, %c0_78, %c0_79, %c0_80] : memref<1x2x8x8xf32, #tpu.memory_space<vmem>>, vector<1x1x8x8xf32>
    %142 = vector.shape_cast %141 : vector<1x1x8x8xf32> to vector<8x8xf32>
    %143 = vector.shape_cast %140 : vector<8x8xf32> to vector<1x1x8x8xf32>
    tpu.vector_store %arg18[%c0_77, %c0_78, %c0_79, %c0_80], %143 {strides = array<i32>} : memref<1x2x8x8xf32, #tpu.memory_space<vmem>>, vector<1x1x8x8xf32>,
    %144 = vector.extract_strided_slice %74 {offsets = [0, 16], sizes = [32, 16], strides = [1, 1]} : vector<32x32xf32> to vector<32x16xf32>
    %145 = vector.extract_strided_slice %77 {offsets = [0, 16], sizes = [32, 16], strides = [1, 1]} : vector<32x32xf32> to vector<32x16xf32>
    %146 = vector.extract_strided_slice %144 {offsets = [0, 0], sizes = [8, 16], strides = [1, 1]} : vector<32x16xf32> to vector<8x16xf32>
    %147 = vector.extract_strided_slice %145 {offsets = [0, 0], sizes = [8, 16], strides = [1, 1]} : vector<32x16xf32> to vector<8x16xf32>
    %cst_81 = arith.constant dense<0.000000e+00> : vector<8x8xf32>
    %148 = tpu.matmul %146, %147, %cst_81 {dimension_numbers = #tpu.dot_dimension_numbers<[1], [1], [0], [0], [0, 0, 1, 0], [], []>} : vector<8x16xf32>, vector<8x16xf32>, vector<8x8xf32> -> vector<8x8xf32>
    %cst_82 = arith.constant 2.500000e-01 : f32
    %149 = vector.broadcast %cst_82 : f32 to vector<8x8xf32>
    %150 = arith.mulf %148, %149 : vector<8x8xf32>
    %cst_83 = arith.constant dense<0xFF800000> : vector<8xf32>
    %151 = vector.multi_reduction <maximumf>, %150, %cst_83 [1] : vector<8x8xf32> to vector<8xf32>
    %152 = vector.shape_cast %151 : vector<8xf32> to vector<8x1xf32>
    %153 = vector.broadcast %152 : vector<8x1xf32> to vector<8x8xf32>
    %154 = arith.subf %150, %153 : vector<8x8xf32>
    %155 = math.exp %154 : vector<8x8xf32>
    %cst_84 = arith.constant dense<0.000000e+00> : vector<8xf32>
    %156 = vector.multi_reduction <add>, %155, %cst_84 [1] : vector<8x8xf32> to vector<8xf32>
    %157 = vector.shape_cast %156 : vector<8xf32> to vector<8x1xf32>
    %158 = vector.broadcast %157 : vector<8x1xf32> to vector<8x8xf32>
    %159 = arith.divf %155, %158 : vector<8x8xf32>
    %160 = vector.extract_strided_slice %144 {offsets = [8, 0], sizes = [8, 16], strides = [1, 1]} : vector<32x16xf32> to vector<8x16xf32>
    %161 = vector.extract_strided_slice %145 {offsets = [8, 0], sizes = [8, 16], strides = [1, 1]} : vector<32x16xf32> to vector<8x16xf32>
    %cst_85 = arith.constant dense<0.000000e+00> : vector<8x8xf32>
    %162 = tpu.matmul %160, %161, %cst_85 {dimension_numbers = #tpu.dot_dimension_numbers<[1], [1], [0], [0], [0, 0, 1, 0], [], []>} : vector<8x16xf32>, vector<8x16xf32>, vector<8x8xf32> -> vector<8x8xf32>
    %cst_86 = arith.constant 2.500000e-01 : f32
    %163 = vector.broadcast %cst_86 : f32 to vector<8x8xf32>
    %164 = arith.mulf %162, %163 : vector<8x8xf32>
    %cst_87 = arith.constant dense<0xFF800000> : vector<8xf32>
    %165 = vector.multi_reduction <maximumf>, %164, %cst_87 [1] : vector<8x8xf32> to vector<8xf32>
    %166 = vector.shape_cast %165 : vector<8xf32> to vector<8x1xf32>
    %167 = vector.broadcast %166 : vector<8x1xf32> to vector<8x8xf32>
    %168 = arith.subf %164, %167 : vector<8x8xf32>
    %169 = math.exp %168 : vector<8x8xf32>
    %cst_88 = arith.constant dense<0.000000e+00> : vector<8xf32>
    %170 = vector.multi_reduction <add>, %169, %cst_88 [1] : vector<8x8xf32> to vector<8xf32>
    %171 = vector.shape_cast %170 : vector<8xf32> to vector<8x1xf32>
    %172 = vector.broadcast %171 : vector<8x1xf32> to vector<8x8xf32>
    %173 = arith.divf %169, %172 : vector<8x8xf32>
    %174 = arith.addf %159, %173 : vector<8x8xf32>
    %175 = vector.extract_strided_slice %144 {offsets = [16, 0], sizes = [8, 16], strides = [1, 1]} : vector<32x16xf32> to vector<8x16xf32>
    %176 = vector.extract_strided_slice %145 {offsets = [16, 0], sizes = [8, 16], strides = [1, 1]} : vector<32x16xf32> to vector<8x16xf32>
    %cst_89 = arith.constant dense<0.000000e+00> : vector<8x8xf32>
    %177 = tpu.matmul %175, %176, %cst_89 {dimension_numbers = #tpu.dot_dimension_numbers<[1], [1], [0], [0], [0, 0, 1, 0], [], []>} : vector<8x16xf32>, vector<8x16xf32>, vector<8x8xf32> -> vector<8x8xf32>
    %cst_90 = arith.constant 2.500000e-01 : f32
    %178 = vector.broadcast %cst_90 : f32 to vector<8x8xf32>
    %179 = arith.mulf %177, %178 : vector<8x8xf32>
    %cst_91 = arith.constant dense<0xFF800000> : vector<8xf32>
    %180 = vector.multi_reduction <maximumf>, %179, %cst_91 [1] : vector<8x8xf32> to vector<8xf32>
    %181 = vector.shape_cast %180 : vector<8xf32> to vector<8x1xf32>
    %182 = vector.broadcast %181 : vector<8x1xf32> to vector<8x8xf32>
    %183 = arith.subf %179, %182 : vector<8x8xf32>
    %184 = math.exp %183 : vector<8x8xf32>
    %cst_92 = arith.constant dense<0.000000e+00> : vector<8xf32>
    %185 = vector.multi_reduction <add>, %184, %cst_92 [1] : vector<8x8xf32> to vector<8xf32>
    %186 = vector.shape_cast %185 : vector<8xf32> to vector<8x1xf32>
    %187 = vector.broadcast %186 : vector<8x1xf32> to vector<8x8xf32>
    %188 = arith.divf %184, %187 : vector<8x8xf32>
    %189 = arith.addf %174, %188 : vector<8x8xf32>
    %190 = vector.extract_strided_slice %144 {offsets = [24, 0], sizes = [8, 16], strides = [1, 1]} : vector<32x16xf32> to vector<8x16xf32>
    %191 = vector.extract_strided_slice %145 {offsets = [24, 0], sizes = [8, 16], strides = [1, 1]} : vector<32x16xf32> to vector<8x16xf32>
    %cst_93 = arith.constant dense<0.000000e+00> : vector<8x8xf32>
    %192 = tpu.matmul %190, %191, %cst_93 {dimension_numbers = #tpu.dot_dimension_numbers<[1], [1], [0], [0], [0, 0, 1, 0], [], []>} : vector<8x16xf32>, vector<8x16xf32>, vector<8x8xf32> -> vector<8x8xf32>
    %cst_94 = arith.constant 2.500000e-01 : f32
    %193 = vector.broadcast %cst_94 : f32 to vector<8x8xf32>
    %194 = arith.mulf %192, %193 : vector<8x8xf32>
    %cst_95 = arith.constant dense<0xFF800000> : vector<8xf32>
    %195 = vector.multi_reduction <maximumf>, %194, %cst_95 [1] : vector<8x8xf32> to vector<8xf32>
    %196 = vector.shape_cast %195 : vector<8xf32> to vector<8x1xf32>
    %197 = vector.broadcast %196 : vector<8x1xf32> to vector<8x8xf32>
    %198 = arith.subf %194, %197 : vector<8x8xf32>
    %199 = math.exp %198 : vector<8x8xf32>
    %cst_96 = arith.constant dense<0.000000e+00> : vector<8xf32>
    %200 = vector.multi_reduction <add>, %199, %cst_96 [1] : vector<8x8xf32> to vector<8xf32>
    %201 = vector.shape_cast %200 : vector<8xf32> to vector<8x1xf32>
    %202 = vector.broadcast %201 : vector<8x1xf32> to vector<8x8xf32>
    %203 = arith.divf %199, %202 : vector<8x8xf32>
    %204 = arith.addf %189, %203 : vector<8x8xf32>
    %cst_97 = arith.constant 2.500000e-01 : f32
    %205 = vector.broadcast %cst_97 : f32 to vector<8x8xf32>
    %206 = arith.mulf %204, %205 : vector<8x8xf32>
    %c0_98 = arith.constant 0 : index
    %c1 = arith.constant 1 : index
    %c0_99 = arith.constant 0 : index
    %c0_100 = arith.constant 0 : index
    %207 = vector.load %arg18[%c0_98, %c1, %c0_99, %c0_100] : memref<1x2x8x8xf32, #tpu.memory_space<vmem>>, vector<1x1x8x8xf32>
    %208 = vector.shape_cast %207 : vector<1x1x8x8xf32> to vector<8x8xf32>
    %209 = vector.shape_cast %206 : vector<8x8xf32> to vector<1x1x8x8xf32>
    tpu.vector_store %arg18[%c0_98, %c1, %c0_99, %c0_100], %209 {strides = array<i32>} : memref<1x2x8x8xf32, #tpu.memory_space<vmem>>, vector<1x1x8x8xf32>,
    %cst_101 = arith.constant dense<0.000000e+00> : vector<8x32xf32>
    %210 = tpu.matmul %63, %65, %cst_101 {dimension_numbers = #tpu.dot_dimension_numbers<[1], [0], [0], [1], [0, 0, 1, 1], [], []>} : vector<8x32xf32>, vector<32x32xf32>, vector<8x32xf32> -> vector<8x32xf32>
    %211 = vector.broadcast %67 : vector<1x32xf32> to vector<8x32xf32>
    %212 = arith.addf %210, %211 : vector<8x32xf32>
    %cst_102 = arith.constant dense<0.000000e+00> : vector<8x32xf32>
    %213 = tpu.matmul %63, %69, %cst_102 {dimension_numbers = #tpu.dot_dimension_numbers<[1], [0], [0], [1], [0, 0, 1, 1], [], []>} : vector<8x32xf32>, vector<32x32xf32>, vector<8x32xf32> -> vector<8x32xf32>
    %214 = vector.broadcast %71 : vector<1x32xf32> to vector<8x32xf32>
    %215 = arith.addf %213, %214 : vector<8x32xf32>
    %216 = vector.extract_strided_slice %212 {offsets = [0, 0], sizes = [8, 16], strides = [1, 1]} : vector<8x32xf32> to vector<8x16xf32>
    %217 = vector.extract_strided_slice %215 {offsets = [0, 0], sizes = [8, 16], strides = [1, 1]} : vector<8x32xf32> to vector<8x16xf32>
    %218 = vector.extract_strided_slice %216 {offsets = [0, 0], sizes = [2, 16], strides = [1, 1]} : vector<8x16xf32> to vector<2x16xf32>
    %219 = vector.extract_strided_slice %217 {offsets = [0, 0], sizes = [2, 16], strides = [1, 1]} : vector<8x16xf32> to vector<2x16xf32>
    %cst_103 = arith.constant dense<0.000000e+00> : vector<2x2xf32>
    %220 = tpu.matmul %218, %219, %cst_103 {dimension_numbers = #tpu.dot_dimension_numbers<[1], [1], [0], [0], [0, 0, 1, 0], [], []>} : vector<2x16xf32>, vector<2x16xf32>, vector<2x2xf32> -> vector<2x2xf32>
    %cst_104 = arith.constant 2.500000e-01 : f32
    %221 = vector.broadcast %cst_104 : f32 to vector<2x2xf32>
    %222 = arith.mulf %220, %221 : vector<2x2xf32>
    %cst_105 = arith.constant dense<0xFF800000> : vector<2xf32>
    %223 = vector.multi_reduction <maximumf>, %222, %cst_105 [1] : vector<2x2xf32> to vector<2xf32>
    %224 = vector.shape_cast %223 : vector<2xf32> to vector<2x1xf32>
    %225 = vector.broadcast %224 : vector<2x1xf32> to vector<2x2xf32>
    %226 = arith.subf %222, %225 : vector<2x2xf32>
    %227 = math.exp %226 : vector<2x2xf32>
    %cst_106 = arith.constant dense<0.000000e+00> : vector<2xf32>
    %228 = vector.multi_reduction <add>, %227, %cst_106 [1] : vector<2x2xf32> to vector<2xf32>
    %229 = vector.shape_cast %228 : vector<2xf32> to vector<2x1xf32>
    %230 = vector.broadcast %229 : vector<2x1xf32> to vector<2x2xf32>
    %231 = arith.divf %227, %230 : vector<2x2xf32>
    %232 = vector.extract_strided_slice %216 {offsets = [2, 0], sizes = [2, 16], strides = [1, 1]} : vector<8x16xf32> to vector<2x16xf32>
    %233 = vector.extract_strided_slice %217 {offsets = [2, 0], sizes = [2, 16], strides = [1, 1]} : vector<8x16xf32> to vector<2x16xf32>
    %cst_107 = arith.constant dense<0.000000e+00> : vector<2x2xf32>
    %234 = tpu.matmul %232, %233, %cst_107 {dimension_numbers = #tpu.dot_dimension_numbers<[1], [1], [0], [0], [0, 0, 1, 0], [], []>} : vector<2x16xf32>, vector<2x16xf32>, vector<2x2xf32> -> vector<2x2xf32>
    %cst_108 = arith.constant 2.500000e-01 : f32
    %235 = vector.broadcast %cst_108 : f32 to vector<2x2xf32>
    %236 = arith.mulf %234, %235 : vector<2x2xf32>
    %cst_109 = arith.constant dense<0xFF800000> : vector<2xf32>
    %237 = vector.multi_reduction <maximumf>, %236, %cst_109 [1] : vector<2x2xf32> to vector<2xf32>
    %238 = vector.shape_cast %237 : vector<2xf32> to vector<2x1xf32>
    %239 = vector.broadcast %238 : vector<2x1xf32> to vector<2x2xf32>
    %240 = arith.subf %236, %239 : vector<2x2xf32>
    %241 = math.exp %240 : vector<2x2xf32>
    %cst_110 = arith.constant dense<0.000000e+00> : vector<2xf32>
    %242 = vector.multi_reduction <add>, %241, %cst_110 [1] : vector<2x2xf32> to vector<2xf32>
    %243 = vector.shape_cast %242 : vector<2xf32> to vector<2x1xf32>
    %244 = vector.broadcast %243 : vector<2x1xf32> to vector<2x2xf32>
    %245 = arith.divf %241, %244 : vector<2x2xf32>
    %246 = arith.addf %231, %245 : vector<2x2xf32>
    %247 = vector.extract_strided_slice %216 {offsets = [4, 0], sizes = [2, 16], strides = [1, 1]} : vector<8x16xf32> to vector<2x16xf32>
    %248 = vector.extract_strided_slice %217 {offsets = [4, 0], sizes = [2, 16], strides = [1, 1]} : vector<8x16xf32> to vector<2x16xf32>
    %cst_111 = arith.constant dense<0.000000e+00> : vector<2x2xf32>
    %249 = tpu.matmul %247, %248, %cst_111 {dimension_numbers = #tpu.dot_dimension_numbers<[1], [1], [0], [0], [0, 0, 1, 0], [], []>} : vector<2x16xf32>, vector<2x16xf32>, vector<2x2xf32> -> vector<2x2xf32>
    %cst_112 = arith.constant 2.500000e-01 : f32
    %250 = vector.broadcast %cst_112 : f32 to vector<2x2xf32>
    %251 = arith.mulf %249, %250 : vector<2x2xf32>
    %cst_113 = arith.constant dense<0xFF800000> : vector<2xf32>
    %252 = vector.multi_reduction <maximumf>, %251, %cst_113 [1] : vector<2x2xf32> to vector<2xf32>
    %253 = vector.shape_cast %252 : vector<2xf32> to vector<2x1xf32>
    %254 = vector.broadcast %253 : vector<2x1xf32> to vector<2x2xf32>
    %255 = arith.subf %251, %254 : vector<2x2xf32>
    %256 = math.exp %255 : vector<2x2xf32>
    %cst_114 = arith.constant dense<0.000000e+00> : vector<2xf32>
    %257 = vector.multi_reduction <add>, %256, %cst_114 [1] : vector<2x2xf32> to vector<2xf32>
    %258 = vector.shape_cast %257 : vector<2xf32> to vector<2x1xf32>
    %259 = vector.broadcast %258 : vector<2x1xf32> to vector<2x2xf32>
    %260 = arith.divf %256, %259 : vector<2x2xf32>
    %261 = arith.addf %246, %260 : vector<2x2xf32>
    %262 = vector.extract_strided_slice %216 {offsets = [6, 0], sizes = [2, 16], strides = [1, 1]} : vector<8x16xf32> to vector<2x16xf32>
    %263 = vector.extract_strided_slice %217 {offsets = [6, 0], sizes = [2, 16], strides = [1, 1]} : vector<8x16xf32> to vector<2x16xf32>
    %cst_115 = arith.constant dense<0.000000e+00> : vector<2x2xf32>
    %264 = tpu.matmul %262, %263, %cst_115 {dimension_numbers = #tpu.dot_dimension_numbers<[1], [1], [0], [0], [0, 0, 1, 0], [], []>} : vector<2x16xf32>, vector<2x16xf32>, vector<2x2xf32> -> vector<2x2xf32>
    %cst_116 = arith.constant 2.500000e-01 : f32
    %265 = vector.broadcast %cst_116 : f32 to vector<2x2xf32>
    %266 = arith.mulf %264, %265 : vector<2x2xf32>
    %cst_117 = arith.constant dense<0xFF800000> : vector<2xf32>
    %267 = vector.multi_reduction <maximumf>, %266, %cst_117 [1] : vector<2x2xf32> to vector<2xf32>
    %268 = vector.shape_cast %267 : vector<2xf32> to vector<2x1xf32>
    %269 = vector.broadcast %268 : vector<2x1xf32> to vector<2x2xf32>
    %270 = arith.subf %266, %269 : vector<2x2xf32>
    %271 = math.exp %270 : vector<2x2xf32>
    %cst_118 = arith.constant dense<0.000000e+00> : vector<2xf32>
    %272 = vector.multi_reduction <add>, %271, %cst_118 [1] : vector<2x2xf32> to vector<2xf32>
    %273 = vector.shape_cast %272 : vector<2xf32> to vector<2x1xf32>
    %274 = vector.broadcast %273 : vector<2x1xf32> to vector<2x2xf32>
    %275 = arith.divf %271, %274 : vector<2x2xf32>
    %276 = arith.addf %261, %275 : vector<2x2xf32>
    %cst_119 = arith.constant 2.500000e-01 : f32
    %277 = vector.broadcast %cst_119 : f32 to vector<2x2xf32>
    %278 = arith.mulf %276, %277 : vector<2x2xf32>
    %c0_120 = arith.constant 0 : index
    %c0_121 = arith.constant 0 : index
    %c0_122 = arith.constant 0 : index
    %c0_123 = arith.constant 0 : index
    %279 = vector.load %arg19[%c0_120, %c0_121, %c0_122, %c0_123] : memref<1x2x2x2xf32, #tpu.memory_space<vmem>>, vector<1x1x2x2xf32>
    %280 = vector.shape_cast %279 : vector<1x1x2x2xf32> to vector<2x2xf32>
    %281 = vector.shape_cast %278 : vector<2x2xf32> to vector<1x1x2x2xf32>
    tpu.vector_store %arg19[%c0_120, %c0_121, %c0_122, %c0_123], %281 {strides = array<i32>} : memref<1x2x2x2xf32, #tpu.memory_space<vmem>>, vector<1x1x2x2xf32>,
    %282 = vector.extract_strided_slice %212 {offsets = [0, 16], sizes = [8, 16], strides = [1, 1]} : vector<8x32xf32> to vector<8x16xf32>
    %283 = vector.extract_strided_slice %215 {offsets = [0, 16], sizes = [8, 16], strides = [1, 1]} : vector<8x32xf32> to vector<8x16xf32>
    %284 = vector.extract_strided_slice %282 {offsets = [0, 0], sizes = [2, 16], strides = [1, 1]} : vector<8x16xf32> to vector<2x16xf32>
    %285 = vector.extract_strided_slice %283 {offsets = [0, 0], sizes = [2, 16], strides = [1, 1]} : vector<8x16xf32> to vector<2x16xf32>
    %cst_124 = arith.constant dense<0.000000e+00> : vector<2x2xf32>
    %286 = tpu.matmul %284, %285, %cst_124 {dimension_numbers = #tpu.dot_dimension_numbers<[1], [1], [0], [0], [0, 0, 1, 0], [], []>} : vector<2x16xf32>, vector<2x16xf32>, vector<2x2xf32> -> vector<2x2xf32>
    %cst_125 = arith.constant 2.500000e-01 : f32
    %287 = vector.broadcast %cst_125 : f32 to vector<2x2xf32>
    %288 = arith.mulf %286, %287 : vector<2x2xf32>
    %cst_126 = arith.constant dense<0xFF800000> : vector<2xf32>
    %289 = vector.multi_reduction <maximumf>, %288, %cst_126 [1] : vector<2x2xf32> to vector<2xf32>
    %290 = vector.shape_cast %289 : vector<2xf32> to vector<2x1xf32>
    %291 = vector.broadcast %290 : vector<2x1xf32> to vector<2x2xf32>
    %292 = arith.subf %288, %291 : vector<2x2xf32>
    %293 = math.exp %292 : vector<2x2xf32>
    %cst_127 = arith.constant dense<0.000000e+00> : vector<2xf32>
    %294 = vector.multi_reduction <add>, %293, %cst_127 [1] : vector<2x2xf32> to vector<2xf32>
    %295 = vector.shape_cast %294 : vector<2xf32> to vector<2x1xf32>
    %296 = vector.broadcast %295 : vector<2x1xf32> to vector<2x2xf32>
    %297 = arith.divf %293, %296 : vector<2x2xf32>
    %298 = vector.extract_strided_slice %282 {offsets = [2, 0], sizes = [2, 16], strides = [1, 1]} : vector<8x16xf32> to vector<2x16xf32>
    %299 = vector.extract_strided_slice %283 {offsets = [2, 0], sizes = [2, 16], strides = [1, 1]} : vector<8x16xf32> to vector<2x16xf32>
    %cst_128 = arith.constant dense<0.000000e+00> : vector<2x2xf32>
    %300 = tpu.matmul %298, %299, %cst_128 {dimension_numbers = #tpu.dot_dimension_numbers<[1], [1], [0], [0], [0, 0, 1, 0], [], []>} : vector<2x16xf32>, vector<2x16xf32>, vector<2x2xf32> -> vector<2x2xf32>
    %cst_129 = arith.constant 2.500000e-01 : f32
    %301 = vector.broadcast %cst_129 : f32 to vector<2x2xf32>
    %302 = arith.mulf %300, %301 : vector<2x2xf32>
    %cst_130 = arith.constant dense<0xFF800000> : vector<2xf32>
    %303 = vector.multi_reduction <maximumf>, %302, %cst_130 [1] : vector<2x2xf32> to vector<2xf32>
    %304 = vector.shape_cast %303 : vector<2xf32> to vector<2x1xf32>
    %305 = vector.broadcast %304 : vector<2x1xf32> to vector<2x2xf32>
    %306 = arith.subf %302, %305 : vector<2x2xf32>
    %307 = math.exp %306 : vector<2x2xf32>
    %cst_131 = arith.constant dense<0.000000e+00> : vector<2xf32>
    %308 = vector.multi_reduction <add>, %307, %cst_131 [1] : vector<2x2xf32> to vector<2xf32>
    %309 = vector.shape_cast %308 : vector<2xf32> to vector<2x1xf32>
    %310 = vector.broadcast %309 : vector<2x1xf32> to vector<2x2xf32>
    %311 = arith.divf %307, %310 : vector<2x2xf32>
    %312 = arith.addf %297, %311 : vector<2x2xf32>
    %313 = vector.extract_strided_slice %282 {offsets = [4, 0], sizes = [2, 16], strides = [1, 1]} : vector<8x16xf32> to vector<2x16xf32>
    %314 = vector.extract_strided_slice %283 {offsets = [4, 0], sizes = [2, 16], strides = [1, 1]} : vector<8x16xf32> to vector<2x16xf32>
    %cst_132 = arith.constant dense<0.000000e+00> : vector<2x2xf32>
    %315 = tpu.matmul %313, %314, %cst_132 {dimension_numbers = #tpu.dot_dimension_numbers<[1], [1], [0], [0], [0, 0, 1, 0], [], []>} : vector<2x16xf32>, vector<2x16xf32>, vector<2x2xf32> -> vector<2x2xf32>
    %cst_133 = arith.constant 2.500000e-01 : f32
    %316 = vector.broadcast %cst_133 : f32 to vector<2x2xf32>
    %317 = arith.mulf %315, %316 : vector<2x2xf32>
    %cst_134 = arith.constant dense<0xFF800000> : vector<2xf32>
    %318 = vector.multi_reduction <maximumf>, %317, %cst_134 [1] : vector<2x2xf32> to vector<2xf32>
    %319 = vector.shape_cast %318 : vector<2xf32> to vector<2x1xf32>
    %320 = vector.broadcast %319 : vector<2x1xf32> to vector<2x2xf32>
    %321 = arith.subf %317, %320 : vector<2x2xf32>
    %322 = math.exp %321 : vector<2x2xf32>
    %cst_135 = arith.constant dense<0.000000e+00> : vector<2xf32>
    %323 = vector.multi_reduction <add>, %322, %cst_135 [1] : vector<2x2xf32> to vector<2xf32>
    %324 = vector.shape_cast %323 : vector<2xf32> to vector<2x1xf32>
    %325 = vector.broadcast %324 : vector<2x1xf32> to vector<2x2xf32>
    %326 = arith.divf %322, %325 : vector<2x2xf32>
    %327 = arith.addf %312, %326 : vector<2x2xf32>
    %328 = vector.extract_strided_slice %282 {offsets = [6, 0], sizes = [2, 16], strides = [1, 1]} : vector<8x16xf32> to vector<2x16xf32>
    %329 = vector.extract_strided_slice %283 {offsets = [6, 0], sizes = [2, 16], strides = [1, 1]} : vector<8x16xf32> to vector<2x16xf32>
    %cst_136 = arith.constant dense<0.000000e+00> : vector<2x2xf32>
    %330 = tpu.matmul %328, %329, %cst_136 {dimension_numbers = #tpu.dot_dimension_numbers<[1], [1], [0], [0], [0, 0, 1, 0], [], []>} : vector<2x16xf32>, vector<2x16xf32>, vector<2x2xf32> -> vector<2x2xf32>
    %cst_137 = arith.constant 2.500000e-01 : f32
    %331 = vector.broadcast %cst_137 : f32 to vector<2x2xf32>
    %332 = arith.mulf %330, %331 : vector<2x2xf32>
    %cst_138 = arith.constant dense<0xFF800000> : vector<2xf32>
    %333 = vector.multi_reduction <maximumf>, %332, %cst_138 [1] : vector<2x2xf32> to vector<2xf32>
    %334 = vector.shape_cast %333 : vector<2xf32> to vector<2x1xf32>
    %335 = vector.broadcast %334 : vector<2x1xf32> to vector<2x2xf32>
    %336 = arith.subf %332, %335 : vector<2x2xf32>
    %337 = math.exp %336 : vector<2x2xf32>
    %cst_139 = arith.constant dense<0.000000e+00> : vector<2xf32>
    %338 = vector.multi_reduction <add>, %337, %cst_139 [1] : vector<2x2xf32> to vector<2xf32>
    %339 = vector.shape_cast %338 : vector<2xf32> to vector<2x1xf32>
    %340 = vector.broadcast %339 : vector<2x1xf32> to vector<2x2xf32>
    %341 = arith.divf %337, %340 : vector<2x2xf32>
    %342 = arith.addf %327, %341 : vector<2x2xf32>
    %cst_140 = arith.constant 2.500000e-01 : f32
    %343 = vector.broadcast %cst_140 : f32 to vector<2x2xf32>
    %344 = arith.mulf %342, %343 : vector<2x2xf32>
    %c0_141 = arith.constant 0 : index
    %c1_142 = arith.constant 1 : index
    %c0_143 = arith.constant 0 : index
    %c0_144 = arith.constant 0 : index
    %345 = vector.load %arg19[%c0_141, %c1_142, %c0_143, %c0_144] : memref<1x2x2x2xf32, #tpu.memory_space<vmem>>, vector<1x1x2x2xf32>
    %346 = vector.shape_cast %345 : vector<1x1x2x2xf32> to vector<2x2xf32>
    %347 = vector.shape_cast %344 : vector<2x2xf32> to vector<1x1x2x2xf32>
    tpu.vector_store %arg19[%c0_141, %c1_142, %c0_143, %c0_144], %347 {strides = array<i32>} : memref<1x2x2x2xf32, #tpu.memory_space<vmem>>, vector<1x1x2x2xf32>,
    return
  }
  func.func @transform_0(%arg0: i32) -> (i32, i32, i32) {
    %c0_i32 = arith.constant 0 : i32
    %c0_i32_0 = arith.constant 0 : i32
    %c0_i32_1 = arith.constant 0 : i32
    return %arg0, %c0_i32, %c0_i32_0 : i32, i32, i32
  }
  func.func @transform_1(%arg0: i32) -> (i32, i32, i32) {
    %c0_i32 = arith.constant 0 : i32
    %c0_i32_0 = arith.constant 0 : i32
    %c0_i32_1 = arith.constant 0 : i32
    return %arg0, %c0_i32, %c0_i32_0 : i32, i32, i32
  }
  func.func @transform_2(%arg0: i32) -> (i32, i32) {
    %c0_i32 = arith.constant 0 : i32
    %c0_i32_0 = arith.constant 0 : i32
    %c0_i32_1 = arith.constant 0 : i32
    return %c0_i32, %c0_i32_0 : i32, i32
  }
  func.func @transform_3(%arg0: i32) -> (i32, i32) {
    %c0_i32 = arith.constant 0 : i32
    %c0_i32_0 = arith.constant 0 : i32
    %c0_i32_1 = arith.constant 0 : i32
    return %c0_i32, %c0_i32_0 : i32, i32
  }
  func.func @transform_4(%arg0: i32) -> (i32, i32) {
    %c0_i32 = arith.constant 0 : i32
    %c0_i32_0 = arith.constant 0 : i32
    %c0_i32_1 = arith.constant 0 : i32
    return %c0_i32, %c0_i32_0 : i32, i32
  }
  func.func @transform_5(%arg0: i32) -> (i32, i32) {
    %c0_i32 = arith.constant 0 : i32
    %c0_i32_0 = arith.constant 0 : i32
    %c0_i32_1 = arith.constant 0 : i32
    return %c0_i32, %c0_i32_0 : i32, i32
  }
  func.func @transform_6(%arg0: i32) -> (i32, i32) {
    %c0_i32 = arith.constant 0 : i32
    %c0_i32_0 = arith.constant 0 : i32
    %c0_i32_1 = arith.constant 0 : i32
    return %c0_i32, %c0_i32_0 : i32, i32
  }
  func.func @transform_7(%arg0: i32) -> (i32, i32, i32) {
    %c0_i32 = arith.constant 0 : i32
    %c0_i32_0 = arith.constant 0 : i32
    %c0_i32_1 = arith.constant 0 : i32
    return %arg0, %c0_i32, %c0_i32_0 : i32, i32, i32
  }
  func.func @transform_8(%arg0: i32) -> (i32, i32) {
    %c0_i32 = arith.constant 0 : i32
    %c0_i32_0 = arith.constant 0 : i32
    %c0_i32_1 = arith.constant 0 : i32
    return %c0_i32, %c0_i32_0 : i32, i32
  }
  func.func @transform_9(%arg0: i32) -> (i32, i32) {
    %c0_i32 = arith.constant 0 : i32
    %c0_i32_0 = arith.constant 0 : i32
    %c0_i32_1 = arith.constant 0 : i32
    return %c0_i32, %c0_i32_0 : i32, i32
  }
  func.func @transform_10(%arg0: i32) -> (i32, i32) {
    %c0_i32 = arith.constant 0 : i32
    %c0_i32_0 = arith.constant 0 : i32
    %c0_i32_1 = arith.constant 0 : i32
    return %c0_i32, %c0_i32_0 : i32, i32
  }
  func.func @transform_11(%arg0: i32) -> (i32, i32) {
    %c0_i32 = arith.constant 0 : i32
    %c0_i32_0 = arith.constant 0 : i32
    %c0_i32_1 = arith.constant 0 : i32
    return %c0_i32, %c0_i32_0 : i32, i32
  }
  func.func @transform_12(%arg0: i32) -> (i32, i32) {
    %c0_i32 = arith.constant 0 : i32
    %c0_i32_0 = arith.constant 0 : i32
    %c0_i32_1 = arith.constant 0 : i32
    return %c0_i32, %c0_i32_0 : i32, i32
  }
  func.func @transform_13(%arg0: i32) -> (i32, i32, i32) {
    %c0_i32 = arith.constant 0 : i32
    %c0_i32_0 = arith.constant 0 : i32
    %c0_i32_1 = arith.constant 0 : i32
    %c0_i32_2 = arith.constant 0 : i32
    return %c0_i32, %c0_i32_0, %c0_i32_1 : i32, i32, i32
  }
  func.func @transform_14(%arg0: i32) -> (i32, i32, i32) {
    %c0_i32 = arith.constant 0 : i32
    %c0_i32_0 = arith.constant 0 : i32
    %c0_i32_1 = arith.constant 0 : i32
    %c0_i32_2 = arith.constant 0 : i32
    return %c0_i32, %c0_i32_0, %c0_i32_1 : i32, i32, i32
  }
  func.func @transform_15(%arg0: i32) -> (i32, i32, i32) {
    %c0_i32 = arith.constant 0 : i32
    %c0_i32_0 = arith.constant 0 : i32
    %c0_i32_1 = arith.constant 0 : i32
    %c0_i32_2 = arith.constant 0 : i32
    return %c0_i32, %c0_i32_0, %c0_i32_1 : i32, i32, i32
  }
  func.func @transform_16(%arg0: i32) -> (i32, i32, i32) {
    %c0_i32 = arith.constant 0 : i32
    %c0_i32_0 = arith.constant 0 : i32
    %c0_i32_1 = arith.constant 0 : i32
    %c0_i32_2 = arith.constant 0 : i32
    return %c0_i32, %c0_i32_0, %c0_i32_1 : i32, i32, i32
  }
  func.func @transform_17(%arg0: i32) -> (i32, i32, i32, i32) {
    %c0_i32 = arith.constant 0 : i32
    %c0_i32_0 = arith.constant 0 : i32
    %c0_i32_1 = arith.constant 0 : i32
    %c0_i32_2 = arith.constant 0 : i32
    return %arg0, %c0_i32, %c0_i32_0, %c0_i32_1 : i32, i32, i32, i32
  }
  func.func @transform_18(%arg0: i32) -> (i32, i32, i32, i32) {
    %c0_i32 = arith.constant 0 : i32
    %c0_i32_0 = arith.constant 0 : i32
    %c0_i32_1 = arith.constant 0 : i32
    %c0_i32_2 = arith.constant 0 : i32
    return %arg0, %c0_i32, %c0_i32_0, %c0_i32_1 : i32, i32, i32, i32
  }
}

module attributes {stable_mosaic.version = 11 : i64} {
  func.func @_dcdetector_patch_kernel(%arg0: i32, %arg1: memref<1x4x16xf32, #tpu.memory_space<vmem>>, %arg2: memref<1x16x4xf32, #tpu.memory_space<vmem>>, %arg3: memref<16x4xf32, #tpu.memory_space<vmem>>, %arg4: memref<16x16xf32, #tpu.memory_space<vmem>>, %arg5: memref<16x16xf32, #tpu.memory_space<vmem>>, %arg6: memref<12x32xf32, #tpu.memory_space<vmem>>, %arg7: memref<16x32xf32, #tpu.memory_space<vmem>>, %arg8: memref<1x16x4xf32, #tpu.memory_space<vmem>>, %arg9: memref<16x4xf32, #tpu.memory_space<vmem>>, %arg10: memref<16x16xf32, #tpu.memory_space<vmem>>, %arg11: memref<16x16xf32, #tpu.memory_space<vmem>>, %arg12: memref<12x32xf32, #tpu.memory_space<vmem>>, %arg13: memref<16x32xf32, #tpu.memory_space<vmem>>, %arg14: memref<1x32x32xf32, #tpu.memory_space<vmem>>, %arg15: memref<1x1x32xf32, #tpu.memory_space<vmem>>, %arg16: memref<1x32x32xf32, #tpu.memory_space<vmem>>, %arg17: memref<1x1x32xf32, #tpu.memory_space<vmem>>, %arg18: memref<1x2x4x4xf32, #tpu.memory_space<vmem>>, %arg19: memref<1x2x4x4xf32, #tpu.memory_space<vmem>>) attributes {dimension_semantics = [#tpu.dimension_semantics<parallel>], iteration_bounds = array<i64: 2>, scalar_prefetch = 0 : i64, scratch_operands = 0 : i64, tpu.core_type = #tpu.core_type<tc>, window_params = [{transform_indices = @transform_0, window_bounds = array<i64: 1, 4, 16>}, {transform_indices = @transform_1, window_bounds = array<i64: 1, 16, 4>}, {pipeline_mode = #tpu.pipeline_mode<synchronous>, transform_indices = @transform_2, window_bounds = array<i64: 16, 4>}, {pipeline_mode = #tpu.pipeline_mode<synchronous>, transform_indices = @transform_3, window_bounds = array<i64: 16, 16>}, {pipeline_mode = #tpu.pipeline_mode<synchronous>, transform_indices = @transform_4, window_bounds = array<i64: 16, 16>}, {pipeline_mode = #tpu.pipeline_mode<synchronous>, transform_indices = @transform_5, window_bounds = array<i64: 12, 32>}, {pipeline_mode = #tpu.pipeline_mode<synchronous>, transform_indices = @transform_6, window_bounds = array<i64: 16, 32>}, {transform_indices = @transform_7, window_bounds = array<i64: 1, 16, 4>}, {pipeline_mode = #tpu.pipeline_mode<synchronous>, transform_indices = @transform_8, window_bounds = array<i64: 16, 4>}, {pipeline_mode = #tpu.pipeline_mode<synchronous>, transform_indices = @transform_9, window_bounds = array<i64: 16, 16>}, {pipeline_mode = #tpu.pipeline_mode<synchronous>, transform_indices = @transform_10, window_bounds = array<i64: 16, 16>}, {pipeline_mode = #tpu.pipeline_mode<synchronous>, transform_indices = @transform_11, window_bounds = array<i64: 12, 32>}, {pipeline_mode = #tpu.pipeline_mode<synchronous>, transform_indices = @transform_12, window_bounds = array<i64: 16, 32>}, {pipeline_mode = #tpu.pipeline_mode<synchronous>, transform_indices = @transform_13, window_bounds = array<i64: 1, 32, 32>}, {pipeline_mode = #tpu.pipeline_mode<synchronous>, transform_indices = @transform_14, window_bounds = array<i64: 1, 1, 32>}, {pipeline_mode = #tpu.pipeline_mode<synchronous>, transform_indices = @transform_15, window_bounds = array<i64: 1, 32, 32>}, {pipeline_mode = #tpu.pipeline_mode<synchronous>, transform_indices = @transform_16, window_bounds = array<i64: 1, 1, 32>}, {transform_indices = @transform_17, window_bounds = array<i64: 1, 2, 4, 4>}, {transform_indices = @transform_18, window_bounds = array<i64: 1, 2, 4, 4>}]} {
    %c0 = arith.constant 0 : index
    %c0_0 = arith.constant 0 : index
    %c0_1 = arith.constant 0 : index
    %0 = vector.load %arg1[%c0, %c0_0, %c0_1] : memref<1x4x16xf32, #tpu.memory_space<vmem>>, vector<1x4x16xf32>
    %1 = vector.shape_cast %0 : vector<1x4x16xf32> to vector<4x16xf32>
    %cst = arith.constant dense<0.000000e+00> : vector<4xf32>
    %2 = vector.multi_reduction <add>, %1, %cst [1] : vector<4x16xf32> to vector<4xf32>
    %3 = vector.shape_cast %2 : vector<4xf32> to vector<4x1xf32>
    %cst_2 = arith.constant 1.600000e+01 : f32
    %4 = vector.broadcast %cst_2 : f32 to vector<4x1xf32>
    %5 = arith.divf %3, %4 : vector<4x1xf32>
    %6 = vector.broadcast %5 : vector<4x1xf32> to vector<4x16xf32>
    %7 = arith.subf %1, %6 : vector<4x16xf32>
    %8 = arith.mulf %7, %7 : vector<4x16xf32>
    %cst_3 = arith.constant dense<0.000000e+00> : vector<4xf32>
    %9 = vector.multi_reduction <add>, %8, %cst_3 [1] : vector<4x16xf32> to vector<4xf32>
    %10 = vector.shape_cast %9 : vector<4xf32> to vector<4x1xf32>
    %cst_4 = arith.constant 1.600000e+01 : f32
    %11 = vector.broadcast %cst_4 : f32 to vector<4x1xf32>
    %12 = arith.divf %10, %11 : vector<4x1xf32>
    %cst_5 = arith.constant 9.99999974E-6 : f32
    %13 = vector.broadcast %cst_5 : f32 to vector<4x1xf32>
    %14 = arith.addf %12, %13 : vector<4x1xf32>
    %15 = math.rsqrt %14 : vector<4x1xf32>
    %c0_6 = arith.constant 0 : index
    %c0_7 = arith.constant 0 : index
    %c0_8 = arith.constant 0 : index
    %16 = vector.load %arg2[%c0_6, %c0_7, %c0_8] : memref<1x16x4xf32, #tpu.memory_space<vmem>>, vector<1x16x4xf32>
    %17 = vector.shape_cast %16 : vector<1x16x4xf32> to vector<16x4xf32>
    %c0_9 = arith.constant 0 : index
    %c0_10 = arith.constant 0 : index
    %18 = vector.load %arg3[%c0_9, %c0_10] : memref<16x4xf32, #tpu.memory_space<vmem>>, vector<16x4xf32>
    %cst_11 = arith.constant dense<0.000000e+00> : vector<16x1xf32>
    %19 = tpu.matmul %18, %5, %cst_11 {dimension_numbers = #tpu.dot_dimension_numbers<[1], [0], [0], [1], [0, 0, 1, 1], [], []>} : vector<16x4xf32>, vector<4x1xf32>, vector<16x1xf32> -> vector<16x1xf32>
    %cst_12 = arith.constant dense<0.000000e+00> : vector<16x1xf32>
    %20 = tpu.matmul %18, %15, %cst_12 {dimension_numbers = #tpu.dot_dimension_numbers<[1], [0], [0], [1], [0, 0, 1, 1], [], []>} : vector<16x4xf32>, vector<4x1xf32>, vector<16x1xf32> -> vector<16x1xf32>
    %21 = vector.broadcast %19 : vector<16x1xf32> to vector<16x4xf32>
    %22 = arith.subf %17, %21 : vector<16x4xf32>
    %23 = vector.broadcast %20 : vector<16x1xf32> to vector<16x4xf32>
    %24 = arith.mulf %22, %23 : vector<16x4xf32>
    %c0_13 = arith.constant 0 : index
    %c0_14 = arith.constant 0 : index
    %25 = vector.load %arg4[%c0_13, %c0_14] : memref<16x16xf32, #tpu.memory_space<vmem>>, vector<16x16xf32>
    %cst_15 = arith.constant dense<0.000000e+00> : vector<16x4xf32>
    %26 = tpu.matmul %25, %24, %cst_15 {dimension_numbers = #tpu.dot_dimension_numbers<[1], [0], [0], [1], [0, 0, 1, 1], [], []>} : vector<16x16xf32>, vector<16x4xf32>, vector<16x4xf32> -> vector<16x4xf32>
    %c0_16 = arith.constant 0 : index
    %c0_17 = arith.constant 0 : index
    %27 = vector.load %arg5[%c0_16, %c0_17] : memref<16x16xf32, #tpu.memory_space<vmem>>, vector<16x16xf32>
    %cst_18 = arith.constant dense<0.000000e+00> : vector<16x4xf32>
    %28 = tpu.matmul %27, %24, %cst_18 {dimension_numbers = #tpu.dot_dimension_numbers<[1], [0], [0], [1], [0, 0, 1, 1], [], []>} : vector<16x16xf32>, vector<16x4xf32>, vector<16x4xf32> -> vector<16x4xf32>
    %c0_19 = arith.constant 0 : index
    %c0_20 = arith.constant 0 : index
    %29 = vector.load %arg6[%c0_19, %c0_20] : memref<12x32xf32, #tpu.memory_space<vmem>>, vector<12x32xf32>
    %30 = vector.extract_strided_slice %29 {offsets = [0, 0], sizes = [4, 32], strides = [1, 1]} : vector<12x32xf32> to vector<4x32xf32>
    %cst_21 = arith.constant dense<0.000000e+00> : vector<16x32xf32>
    %31 = tpu.matmul %26, %30, %cst_21 {dimension_numbers = #tpu.dot_dimension_numbers<[1], [0], [0], [1], [0, 0, 1, 1], [], []>} : vector<16x4xf32>, vector<4x32xf32>, vector<16x32xf32> -> vector<16x32xf32>
    %32 = vector.extract_strided_slice %29 {offsets = [4, 0], sizes = [4, 32], strides = [1, 1]} : vector<12x32xf32> to vector<4x32xf32>
    %cst_22 = arith.constant dense<0.000000e+00> : vector<16x32xf32>
    %33 = tpu.matmul %24, %32, %cst_22 {dimension_numbers = #tpu.dot_dimension_numbers<[1], [0], [0], [1], [0, 0, 1, 1], [], []>} : vector<16x4xf32>, vector<4x32xf32>, vector<16x32xf32> -> vector<16x32xf32>
    %34 = arith.addf %31, %33 : vector<16x32xf32>
    %35 = vector.extract_strided_slice %29 {offsets = [8, 0], sizes = [4, 32], strides = [1, 1]} : vector<12x32xf32> to vector<4x32xf32>
    %cst_23 = arith.constant dense<0.000000e+00> : vector<16x32xf32>
    %36 = tpu.matmul %28, %35, %cst_23 {dimension_numbers = #tpu.dot_dimension_numbers<[1], [0], [0], [1], [0, 0, 1, 1], [], []>} : vector<16x4xf32>, vector<4x32xf32>, vector<16x32xf32> -> vector<16x32xf32>
    %37 = arith.addf %34, %36 : vector<16x32xf32>
    %c0_24 = arith.constant 0 : index
    %c0_25 = arith.constant 0 : index
    %38 = vector.load %arg7[%c0_24, %c0_25] : memref<16x32xf32, #tpu.memory_space<vmem>>, vector<16x32xf32>
    %39 = arith.addf %37, %38 : vector<16x32xf32>
    %c0_26 = arith.constant 0 : index
    %c0_27 = arith.constant 0 : index
    %c0_28 = arith.constant 0 : index
    %40 = vector.load %arg8[%c0_26, %c0_27, %c0_28] : memref<1x16x4xf32, #tpu.memory_space<vmem>>, vector<1x16x4xf32>
    %41 = vector.shape_cast %40 : vector<1x16x4xf32> to vector<16x4xf32>
    %c0_29 = arith.constant 0 : index
    %c0_30 = arith.constant 0 : index
    %42 = vector.load %arg9[%c0_29, %c0_30] : memref<16x4xf32, #tpu.memory_space<vmem>>, vector<16x4xf32>
    %cst_31 = arith.constant dense<0.000000e+00> : vector<16x1xf32>
    %43 = tpu.matmul %42, %5, %cst_31 {dimension_numbers = #tpu.dot_dimension_numbers<[1], [0], [0], [1], [0, 0, 1, 1], [], []>} : vector<16x4xf32>, vector<4x1xf32>, vector<16x1xf32> -> vector<16x1xf32>
    %cst_32 = arith.constant dense<0.000000e+00> : vector<16x1xf32>
    %44 = tpu.matmul %42, %15, %cst_32 {dimension_numbers = #tpu.dot_dimension_numbers<[1], [0], [0], [1], [0, 0, 1, 1], [], []>} : vector<16x4xf32>, vector<4x1xf32>, vector<16x1xf32> -> vector<16x1xf32>
    %45 = vector.broadcast %43 : vector<16x1xf32> to vector<16x4xf32>
    %46 = arith.subf %41, %45 : vector<16x4xf32>
    %47 = vector.broadcast %44 : vector<16x1xf32> to vector<16x4xf32>
    %48 = arith.mulf %46, %47 : vector<16x4xf32>
    %c0_33 = arith.constant 0 : index
    %c0_34 = arith.constant 0 : index
    %49 = vector.load %arg10[%c0_33, %c0_34] : memref<16x16xf32, #tpu.memory_space<vmem>>, vector<16x16xf32>
    %cst_35 = arith.constant dense<0.000000e+00> : vector<16x4xf32>
    %50 = tpu.matmul %49, %48, %cst_35 {dimension_numbers = #tpu.dot_dimension_numbers<[1], [0], [0], [1], [0, 0, 1, 1], [], []>} : vector<16x16xf32>, vector<16x4xf32>, vector<16x4xf32> -> vector<16x4xf32>
    %c0_36 = arith.constant 0 : index
    %c0_37 = arith.constant 0 : index
    %51 = vector.load %arg11[%c0_36, %c0_37] : memref<16x16xf32, #tpu.memory_space<vmem>>, vector<16x16xf32>
    %cst_38 = arith.constant dense<0.000000e+00> : vector<16x4xf32>
    %52 = tpu.matmul %51, %48, %cst_38 {dimension_numbers = #tpu.dot_dimension_numbers<[1], [0], [0], [1], [0, 0, 1, 1], [], []>} : vector<16x16xf32>, vector<16x4xf32>, vector<16x4xf32> -> vector<16x4xf32>
    %c0_39 = arith.constant 0 : index
    %c0_40 = arith.constant 0 : index
    %53 = vector.load %arg12[%c0_39, %c0_40] : memref<12x32xf32, #tpu.memory_space<vmem>>, vector<12x32xf32>
    %54 = vector.extract_strided_slice %53 {offsets = [0, 0], sizes = [4, 32], strides = [1, 1]} : vector<12x32xf32> to vector<4x32xf32>
    %cst_41 = arith.constant dense<0.000000e+00> : vector<16x32xf32>
    %55 = tpu.matmul %50, %54, %cst_41 {dimension_numbers = #tpu.dot_dimension_numbers<[1], [0], [0], [1], [0, 0, 1, 1], [], []>} : vector<16x4xf32>, vector<4x32xf32>, vector<16x32xf32> -> vector<16x32xf32>
    %56 = vector.extract_strided_slice %53 {offsets = [4, 0], sizes = [4, 32], strides = [1, 1]} : vector<12x32xf32> to vector<4x32xf32>
    %cst_42 = arith.constant dense<0.000000e+00> : vector<16x32xf32>
    %57 = tpu.matmul %48, %56, %cst_42 {dimension_numbers = #tpu.dot_dimension_numbers<[1], [0], [0], [1], [0, 0, 1, 1], [], []>} : vector<16x4xf32>, vector<4x32xf32>, vector<16x32xf32> -> vector<16x32xf32>
    %58 = arith.addf %55, %57 : vector<16x32xf32>
    %59 = vector.extract_strided_slice %53 {offsets = [8, 0], sizes = [4, 32], strides = [1, 1]} : vector<12x32xf32> to vector<4x32xf32>
    %cst_43 = arith.constant dense<0.000000e+00> : vector<16x32xf32>
    %60 = tpu.matmul %52, %59, %cst_43 {dimension_numbers = #tpu.dot_dimension_numbers<[1], [0], [0], [1], [0, 0, 1, 1], [], []>} : vector<16x4xf32>, vector<4x32xf32>, vector<16x32xf32> -> vector<16x32xf32>
    %61 = arith.addf %58, %60 : vector<16x32xf32>
    %c0_44 = arith.constant 0 : index
    %c0_45 = arith.constant 0 : index
    %62 = vector.load %arg13[%c0_44, %c0_45] : memref<16x32xf32, #tpu.memory_space<vmem>>, vector<16x32xf32>
    %63 = arith.addf %61, %62 : vector<16x32xf32>
    %c0_46 = arith.constant 0 : index
    %c0_47 = arith.constant 0 : index
    %c0_48 = arith.constant 0 : index
    %64 = vector.load %arg14[%c0_46, %c0_47, %c0_48] : memref<1x32x32xf32, #tpu.memory_space<vmem>>, vector<1x32x32xf32>
    %65 = vector.shape_cast %64 : vector<1x32x32xf32> to vector<32x32xf32>
    %c0_49 = arith.constant 0 : index
    %c0_50 = arith.constant 0 : index
    %c0_51 = arith.constant 0 : index
    %66 = vector.load %arg15[%c0_49, %c0_50, %c0_51] : memref<1x1x32xf32, #tpu.memory_space<vmem>>, vector<1x1x32xf32>
    %67 = vector.shape_cast %66 : vector<1x1x32xf32> to vector<1x32xf32>
    %c0_52 = arith.constant 0 : index
    %c0_53 = arith.constant 0 : index
    %c0_54 = arith.constant 0 : index
    %68 = vector.load %arg16[%c0_52, %c0_53, %c0_54] : memref<1x32x32xf32, #tpu.memory_space<vmem>>, vector<1x32x32xf32>
    %69 = vector.shape_cast %68 : vector<1x32x32xf32> to vector<32x32xf32>
    %c0_55 = arith.constant 0 : index
    %c0_56 = arith.constant 0 : index
    %c0_57 = arith.constant 0 : index
    %70 = vector.load %arg17[%c0_55, %c0_56, %c0_57] : memref<1x1x32xf32, #tpu.memory_space<vmem>>, vector<1x1x32xf32>
    %71 = vector.shape_cast %70 : vector<1x1x32xf32> to vector<1x32xf32>
    %cst_58 = arith.constant dense<0.000000e+00> : vector<16x32xf32>
    %72 = tpu.matmul %39, %65, %cst_58 {dimension_numbers = #tpu.dot_dimension_numbers<[1], [0], [0], [1], [0, 0, 1, 1], [], []>} : vector<16x32xf32>, vector<32x32xf32>, vector<16x32xf32> -> vector<16x32xf32>
    %73 = vector.broadcast %67 : vector<1x32xf32> to vector<16x32xf32>
    %74 = arith.addf %72, %73 : vector<16x32xf32>
    %cst_59 = arith.constant dense<0.000000e+00> : vector<16x32xf32>
    %75 = tpu.matmul %39, %69, %cst_59 {dimension_numbers = #tpu.dot_dimension_numbers<[1], [0], [0], [1], [0, 0, 1, 1], [], []>} : vector<16x32xf32>, vector<32x32xf32>, vector<16x32xf32> -> vector<16x32xf32>
    %76 = vector.broadcast %71 : vector<1x32xf32> to vector<16x32xf32>
    %77 = arith.addf %75, %76 : vector<16x32xf32>
    %78 = vector.extract_strided_slice %74 {offsets = [0, 0], sizes = [16, 16], strides = [1, 1]} : vector<16x32xf32> to vector<16x16xf32>
    %79 = vector.extract_strided_slice %77 {offsets = [0, 0], sizes = [16, 16], strides = [1, 1]} : vector<16x32xf32> to vector<16x16xf32>
    %80 = vector.extract_strided_slice %78 {offsets = [0, 0], sizes = [4, 16], strides = [1, 1]} : vector<16x16xf32> to vector<4x16xf32>
    %81 = vector.extract_strided_slice %79 {offsets = [0, 0], sizes = [4, 16], strides = [1, 1]} : vector<16x16xf32> to vector<4x16xf32>
    %cst_60 = arith.constant dense<0.000000e+00> : vector<4x4xf32>
    %82 = tpu.matmul %80, %81, %cst_60 {dimension_numbers = #tpu.dot_dimension_numbers<[1], [1], [0], [0], [0, 0, 1, 0], [], []>} : vector<4x16xf32>, vector<4x16xf32>, vector<4x4xf32> -> vector<4x4xf32>
    %cst_61 = arith.constant 2.500000e-01 : f32
    %83 = vector.broadcast %cst_61 : f32 to vector<4x4xf32>
    %84 = arith.mulf %82, %83 : vector<4x4xf32>
    %cst_62 = arith.constant dense<0xFF800000> : vector<4xf32>
    %85 = vector.multi_reduction <maximumf>, %84, %cst_62 [1] : vector<4x4xf32> to vector<4xf32>
    %86 = vector.shape_cast %85 : vector<4xf32> to vector<4x1xf32>
    %87 = vector.broadcast %86 : vector<4x1xf32> to vector<4x4xf32>
    %88 = arith.subf %84, %87 : vector<4x4xf32>
    %89 = math.exp %88 : vector<4x4xf32>
    %cst_63 = arith.constant dense<0.000000e+00> : vector<4xf32>
    %90 = vector.multi_reduction <add>, %89, %cst_63 [1] : vector<4x4xf32> to vector<4xf32>
    %91 = vector.shape_cast %90 : vector<4xf32> to vector<4x1xf32>
    %92 = vector.broadcast %91 : vector<4x1xf32> to vector<4x4xf32>
    %93 = arith.divf %89, %92 : vector<4x4xf32>
    %94 = vector.extract_strided_slice %78 {offsets = [4, 0], sizes = [4, 16], strides = [1, 1]} : vector<16x16xf32> to vector<4x16xf32>
    %95 = vector.extract_strided_slice %79 {offsets = [4, 0], sizes = [4, 16], strides = [1, 1]} : vector<16x16xf32> to vector<4x16xf32>
    %cst_64 = arith.constant dense<0.000000e+00> : vector<4x4xf32>
    %96 = tpu.matmul %94, %95, %cst_64 {dimension_numbers = #tpu.dot_dimension_numbers<[1], [1], [0], [0], [0, 0, 1, 0], [], []>} : vector<4x16xf32>, vector<4x16xf32>, vector<4x4xf32> -> vector<4x4xf32>
    %cst_65 = arith.constant 2.500000e-01 : f32
    %97 = vector.broadcast %cst_65 : f32 to vector<4x4xf32>
    %98 = arith.mulf %96, %97 : vector<4x4xf32>
    %cst_66 = arith.constant dense<0xFF800000> : vector<4xf32>
    %99 = vector.multi_reduction <maximumf>, %98, %cst_66 [1] : vector<4x4xf32> to vector<4xf32>
    %100 = vector.shape_cast %99 : vector<4xf32> to vector<4x1xf32>
    %101 = vector.broadcast %100 : vector<4x1xf32> to vector<4x4xf32>
    %102 = arith.subf %98, %101 : vector<4x4xf32>
    %103 = math.exp %102 : vector<4x4xf32>
    %cst_67 = arith.constant dense<0.000000e+00> : vector<4xf32>
    %104 = vector.multi_reduction <add>, %103, %cst_67 [1] : vector<4x4xf32> to vector<4xf32>
    %105 = vector.shape_cast %104 : vector<4xf32> to vector<4x1xf32>
    %106 = vector.broadcast %105 : vector<4x1xf32> to vector<4x4xf32>
    %107 = arith.divf %103, %106 : vector<4x4xf32>
    %108 = arith.addf %93, %107 : vector<4x4xf32>
    %109 = vector.extract_strided_slice %78 {offsets = [8, 0], sizes = [4, 16], strides = [1, 1]} : vector<16x16xf32> to vector<4x16xf32>
    %110 = vector.extract_strided_slice %79 {offsets = [8, 0], sizes = [4, 16], strides = [1, 1]} : vector<16x16xf32> to vector<4x16xf32>
    %cst_68 = arith.constant dense<0.000000e+00> : vector<4x4xf32>
    %111 = tpu.matmul %109, %110, %cst_68 {dimension_numbers = #tpu.dot_dimension_numbers<[1], [1], [0], [0], [0, 0, 1, 0], [], []>} : vector<4x16xf32>, vector<4x16xf32>, vector<4x4xf32> -> vector<4x4xf32>
    %cst_69 = arith.constant 2.500000e-01 : f32
    %112 = vector.broadcast %cst_69 : f32 to vector<4x4xf32>
    %113 = arith.mulf %111, %112 : vector<4x4xf32>
    %cst_70 = arith.constant dense<0xFF800000> : vector<4xf32>
    %114 = vector.multi_reduction <maximumf>, %113, %cst_70 [1] : vector<4x4xf32> to vector<4xf32>
    %115 = vector.shape_cast %114 : vector<4xf32> to vector<4x1xf32>
    %116 = vector.broadcast %115 : vector<4x1xf32> to vector<4x4xf32>
    %117 = arith.subf %113, %116 : vector<4x4xf32>
    %118 = math.exp %117 : vector<4x4xf32>
    %cst_71 = arith.constant dense<0.000000e+00> : vector<4xf32>
    %119 = vector.multi_reduction <add>, %118, %cst_71 [1] : vector<4x4xf32> to vector<4xf32>
    %120 = vector.shape_cast %119 : vector<4xf32> to vector<4x1xf32>
    %121 = vector.broadcast %120 : vector<4x1xf32> to vector<4x4xf32>
    %122 = arith.divf %118, %121 : vector<4x4xf32>
    %123 = arith.addf %108, %122 : vector<4x4xf32>
    %124 = vector.extract_strided_slice %78 {offsets = [12, 0], sizes = [4, 16], strides = [1, 1]} : vector<16x16xf32> to vector<4x16xf32>
    %125 = vector.extract_strided_slice %79 {offsets = [12, 0], sizes = [4, 16], strides = [1, 1]} : vector<16x16xf32> to vector<4x16xf32>
    %cst_72 = arith.constant dense<0.000000e+00> : vector<4x4xf32>
    %126 = tpu.matmul %124, %125, %cst_72 {dimension_numbers = #tpu.dot_dimension_numbers<[1], [1], [0], [0], [0, 0, 1, 0], [], []>} : vector<4x16xf32>, vector<4x16xf32>, vector<4x4xf32> -> vector<4x4xf32>
    %cst_73 = arith.constant 2.500000e-01 : f32
    %127 = vector.broadcast %cst_73 : f32 to vector<4x4xf32>
    %128 = arith.mulf %126, %127 : vector<4x4xf32>
    %cst_74 = arith.constant dense<0xFF800000> : vector<4xf32>
    %129 = vector.multi_reduction <maximumf>, %128, %cst_74 [1] : vector<4x4xf32> to vector<4xf32>
    %130 = vector.shape_cast %129 : vector<4xf32> to vector<4x1xf32>
    %131 = vector.broadcast %130 : vector<4x1xf32> to vector<4x4xf32>
    %132 = arith.subf %128, %131 : vector<4x4xf32>
    %133 = math.exp %132 : vector<4x4xf32>
    %cst_75 = arith.constant dense<0.000000e+00> : vector<4xf32>
    %134 = vector.multi_reduction <add>, %133, %cst_75 [1] : vector<4x4xf32> to vector<4xf32>
    %135 = vector.shape_cast %134 : vector<4xf32> to vector<4x1xf32>
    %136 = vector.broadcast %135 : vector<4x1xf32> to vector<4x4xf32>
    %137 = arith.divf %133, %136 : vector<4x4xf32>
    %138 = arith.addf %123, %137 : vector<4x4xf32>
    %cst_76 = arith.constant 2.500000e-01 : f32
    %139 = vector.broadcast %cst_76 : f32 to vector<4x4xf32>
    %140 = arith.mulf %138, %139 : vector<4x4xf32>
    %c0_77 = arith.constant 0 : index
    %c0_78 = arith.constant 0 : index
    %c0_79 = arith.constant 0 : index
    %c0_80 = arith.constant 0 : index
    %141 = vector.load %arg18[%c0_77, %c0_78, %c0_79, %c0_80] : memref<1x2x4x4xf32, #tpu.memory_space<vmem>>, vector<1x1x4x4xf32>
    %142 = vector.shape_cast %141 : vector<1x1x4x4xf32> to vector<4x4xf32>
    %143 = vector.shape_cast %140 : vector<4x4xf32> to vector<1x1x4x4xf32>
    tpu.vector_store %arg18[%c0_77, %c0_78, %c0_79, %c0_80], %143 {strides = array<i32>} : memref<1x2x4x4xf32, #tpu.memory_space<vmem>>, vector<1x1x4x4xf32>,
    %144 = vector.extract_strided_slice %74 {offsets = [0, 16], sizes = [16, 16], strides = [1, 1]} : vector<16x32xf32> to vector<16x16xf32>
    %145 = vector.extract_strided_slice %77 {offsets = [0, 16], sizes = [16, 16], strides = [1, 1]} : vector<16x32xf32> to vector<16x16xf32>
    %146 = vector.extract_strided_slice %144 {offsets = [0, 0], sizes = [4, 16], strides = [1, 1]} : vector<16x16xf32> to vector<4x16xf32>
    %147 = vector.extract_strided_slice %145 {offsets = [0, 0], sizes = [4, 16], strides = [1, 1]} : vector<16x16xf32> to vector<4x16xf32>
    %cst_81 = arith.constant dense<0.000000e+00> : vector<4x4xf32>
    %148 = tpu.matmul %146, %147, %cst_81 {dimension_numbers = #tpu.dot_dimension_numbers<[1], [1], [0], [0], [0, 0, 1, 0], [], []>} : vector<4x16xf32>, vector<4x16xf32>, vector<4x4xf32> -> vector<4x4xf32>
    %cst_82 = arith.constant 2.500000e-01 : f32
    %149 = vector.broadcast %cst_82 : f32 to vector<4x4xf32>
    %150 = arith.mulf %148, %149 : vector<4x4xf32>
    %cst_83 = arith.constant dense<0xFF800000> : vector<4xf32>
    %151 = vector.multi_reduction <maximumf>, %150, %cst_83 [1] : vector<4x4xf32> to vector<4xf32>
    %152 = vector.shape_cast %151 : vector<4xf32> to vector<4x1xf32>
    %153 = vector.broadcast %152 : vector<4x1xf32> to vector<4x4xf32>
    %154 = arith.subf %150, %153 : vector<4x4xf32>
    %155 = math.exp %154 : vector<4x4xf32>
    %cst_84 = arith.constant dense<0.000000e+00> : vector<4xf32>
    %156 = vector.multi_reduction <add>, %155, %cst_84 [1] : vector<4x4xf32> to vector<4xf32>
    %157 = vector.shape_cast %156 : vector<4xf32> to vector<4x1xf32>
    %158 = vector.broadcast %157 : vector<4x1xf32> to vector<4x4xf32>
    %159 = arith.divf %155, %158 : vector<4x4xf32>
    %160 = vector.extract_strided_slice %144 {offsets = [4, 0], sizes = [4, 16], strides = [1, 1]} : vector<16x16xf32> to vector<4x16xf32>
    %161 = vector.extract_strided_slice %145 {offsets = [4, 0], sizes = [4, 16], strides = [1, 1]} : vector<16x16xf32> to vector<4x16xf32>
    %cst_85 = arith.constant dense<0.000000e+00> : vector<4x4xf32>
    %162 = tpu.matmul %160, %161, %cst_85 {dimension_numbers = #tpu.dot_dimension_numbers<[1], [1], [0], [0], [0, 0, 1, 0], [], []>} : vector<4x16xf32>, vector<4x16xf32>, vector<4x4xf32> -> vector<4x4xf32>
    %cst_86 = arith.constant 2.500000e-01 : f32
    %163 = vector.broadcast %cst_86 : f32 to vector<4x4xf32>
    %164 = arith.mulf %162, %163 : vector<4x4xf32>
    %cst_87 = arith.constant dense<0xFF800000> : vector<4xf32>
    %165 = vector.multi_reduction <maximumf>, %164, %cst_87 [1] : vector<4x4xf32> to vector<4xf32>
    %166 = vector.shape_cast %165 : vector<4xf32> to vector<4x1xf32>
    %167 = vector.broadcast %166 : vector<4x1xf32> to vector<4x4xf32>
    %168 = arith.subf %164, %167 : vector<4x4xf32>
    %169 = math.exp %168 : vector<4x4xf32>
    %cst_88 = arith.constant dense<0.000000e+00> : vector<4xf32>
    %170 = vector.multi_reduction <add>, %169, %cst_88 [1] : vector<4x4xf32> to vector<4xf32>
    %171 = vector.shape_cast %170 : vector<4xf32> to vector<4x1xf32>
    %172 = vector.broadcast %171 : vector<4x1xf32> to vector<4x4xf32>
    %173 = arith.divf %169, %172 : vector<4x4xf32>
    %174 = arith.addf %159, %173 : vector<4x4xf32>
    %175 = vector.extract_strided_slice %144 {offsets = [8, 0], sizes = [4, 16], strides = [1, 1]} : vector<16x16xf32> to vector<4x16xf32>
    %176 = vector.extract_strided_slice %145 {offsets = [8, 0], sizes = [4, 16], strides = [1, 1]} : vector<16x16xf32> to vector<4x16xf32>
    %cst_89 = arith.constant dense<0.000000e+00> : vector<4x4xf32>
    %177 = tpu.matmul %175, %176, %cst_89 {dimension_numbers = #tpu.dot_dimension_numbers<[1], [1], [0], [0], [0, 0, 1, 0], [], []>} : vector<4x16xf32>, vector<4x16xf32>, vector<4x4xf32> -> vector<4x4xf32>
    %cst_90 = arith.constant 2.500000e-01 : f32
    %178 = vector.broadcast %cst_90 : f32 to vector<4x4xf32>
    %179 = arith.mulf %177, %178 : vector<4x4xf32>
    %cst_91 = arith.constant dense<0xFF800000> : vector<4xf32>
    %180 = vector.multi_reduction <maximumf>, %179, %cst_91 [1] : vector<4x4xf32> to vector<4xf32>
    %181 = vector.shape_cast %180 : vector<4xf32> to vector<4x1xf32>
    %182 = vector.broadcast %181 : vector<4x1xf32> to vector<4x4xf32>
    %183 = arith.subf %179, %182 : vector<4x4xf32>
    %184 = math.exp %183 : vector<4x4xf32>
    %cst_92 = arith.constant dense<0.000000e+00> : vector<4xf32>
    %185 = vector.multi_reduction <add>, %184, %cst_92 [1] : vector<4x4xf32> to vector<4xf32>
    %186 = vector.shape_cast %185 : vector<4xf32> to vector<4x1xf32>
    %187 = vector.broadcast %186 : vector<4x1xf32> to vector<4x4xf32>
    %188 = arith.divf %184, %187 : vector<4x4xf32>
    %189 = arith.addf %174, %188 : vector<4x4xf32>
    %190 = vector.extract_strided_slice %144 {offsets = [12, 0], sizes = [4, 16], strides = [1, 1]} : vector<16x16xf32> to vector<4x16xf32>
    %191 = vector.extract_strided_slice %145 {offsets = [12, 0], sizes = [4, 16], strides = [1, 1]} : vector<16x16xf32> to vector<4x16xf32>
    %cst_93 = arith.constant dense<0.000000e+00> : vector<4x4xf32>
    %192 = tpu.matmul %190, %191, %cst_93 {dimension_numbers = #tpu.dot_dimension_numbers<[1], [1], [0], [0], [0, 0, 1, 0], [], []>} : vector<4x16xf32>, vector<4x16xf32>, vector<4x4xf32> -> vector<4x4xf32>
    %cst_94 = arith.constant 2.500000e-01 : f32
    %193 = vector.broadcast %cst_94 : f32 to vector<4x4xf32>
    %194 = arith.mulf %192, %193 : vector<4x4xf32>
    %cst_95 = arith.constant dense<0xFF800000> : vector<4xf32>
    %195 = vector.multi_reduction <maximumf>, %194, %cst_95 [1] : vector<4x4xf32> to vector<4xf32>
    %196 = vector.shape_cast %195 : vector<4xf32> to vector<4x1xf32>
    %197 = vector.broadcast %196 : vector<4x1xf32> to vector<4x4xf32>
    %198 = arith.subf %194, %197 : vector<4x4xf32>
    %199 = math.exp %198 : vector<4x4xf32>
    %cst_96 = arith.constant dense<0.000000e+00> : vector<4xf32>
    %200 = vector.multi_reduction <add>, %199, %cst_96 [1] : vector<4x4xf32> to vector<4xf32>
    %201 = vector.shape_cast %200 : vector<4xf32> to vector<4x1xf32>
    %202 = vector.broadcast %201 : vector<4x1xf32> to vector<4x4xf32>
    %203 = arith.divf %199, %202 : vector<4x4xf32>
    %204 = arith.addf %189, %203 : vector<4x4xf32>
    %cst_97 = arith.constant 2.500000e-01 : f32
    %205 = vector.broadcast %cst_97 : f32 to vector<4x4xf32>
    %206 = arith.mulf %204, %205 : vector<4x4xf32>
    %c0_98 = arith.constant 0 : index
    %c1 = arith.constant 1 : index
    %c0_99 = arith.constant 0 : index
    %c0_100 = arith.constant 0 : index
    %207 = vector.load %arg18[%c0_98, %c1, %c0_99, %c0_100] : memref<1x2x4x4xf32, #tpu.memory_space<vmem>>, vector<1x1x4x4xf32>
    %208 = vector.shape_cast %207 : vector<1x1x4x4xf32> to vector<4x4xf32>
    %209 = vector.shape_cast %206 : vector<4x4xf32> to vector<1x1x4x4xf32>
    tpu.vector_store %arg18[%c0_98, %c1, %c0_99, %c0_100], %209 {strides = array<i32>} : memref<1x2x4x4xf32, #tpu.memory_space<vmem>>, vector<1x1x4x4xf32>,
    %cst_101 = arith.constant dense<0.000000e+00> : vector<16x32xf32>
    %210 = tpu.matmul %63, %65, %cst_101 {dimension_numbers = #tpu.dot_dimension_numbers<[1], [0], [0], [1], [0, 0, 1, 1], [], []>} : vector<16x32xf32>, vector<32x32xf32>, vector<16x32xf32> -> vector<16x32xf32>
    %211 = vector.broadcast %67 : vector<1x32xf32> to vector<16x32xf32>
    %212 = arith.addf %210, %211 : vector<16x32xf32>
    %cst_102 = arith.constant dense<0.000000e+00> : vector<16x32xf32>
    %213 = tpu.matmul %63, %69, %cst_102 {dimension_numbers = #tpu.dot_dimension_numbers<[1], [0], [0], [1], [0, 0, 1, 1], [], []>} : vector<16x32xf32>, vector<32x32xf32>, vector<16x32xf32> -> vector<16x32xf32>
    %214 = vector.broadcast %71 : vector<1x32xf32> to vector<16x32xf32>
    %215 = arith.addf %213, %214 : vector<16x32xf32>
    %216 = vector.extract_strided_slice %212 {offsets = [0, 0], sizes = [16, 16], strides = [1, 1]} : vector<16x32xf32> to vector<16x16xf32>
    %217 = vector.extract_strided_slice %215 {offsets = [0, 0], sizes = [16, 16], strides = [1, 1]} : vector<16x32xf32> to vector<16x16xf32>
    %218 = vector.extract_strided_slice %216 {offsets = [0, 0], sizes = [4, 16], strides = [1, 1]} : vector<16x16xf32> to vector<4x16xf32>
    %219 = vector.extract_strided_slice %217 {offsets = [0, 0], sizes = [4, 16], strides = [1, 1]} : vector<16x16xf32> to vector<4x16xf32>
    %cst_103 = arith.constant dense<0.000000e+00> : vector<4x4xf32>
    %220 = tpu.matmul %218, %219, %cst_103 {dimension_numbers = #tpu.dot_dimension_numbers<[1], [1], [0], [0], [0, 0, 1, 0], [], []>} : vector<4x16xf32>, vector<4x16xf32>, vector<4x4xf32> -> vector<4x4xf32>
    %cst_104 = arith.constant 2.500000e-01 : f32
    %221 = vector.broadcast %cst_104 : f32 to vector<4x4xf32>
    %222 = arith.mulf %220, %221 : vector<4x4xf32>
    %cst_105 = arith.constant dense<0xFF800000> : vector<4xf32>
    %223 = vector.multi_reduction <maximumf>, %222, %cst_105 [1] : vector<4x4xf32> to vector<4xf32>
    %224 = vector.shape_cast %223 : vector<4xf32> to vector<4x1xf32>
    %225 = vector.broadcast %224 : vector<4x1xf32> to vector<4x4xf32>
    %226 = arith.subf %222, %225 : vector<4x4xf32>
    %227 = math.exp %226 : vector<4x4xf32>
    %cst_106 = arith.constant dense<0.000000e+00> : vector<4xf32>
    %228 = vector.multi_reduction <add>, %227, %cst_106 [1] : vector<4x4xf32> to vector<4xf32>
    %229 = vector.shape_cast %228 : vector<4xf32> to vector<4x1xf32>
    %230 = vector.broadcast %229 : vector<4x1xf32> to vector<4x4xf32>
    %231 = arith.divf %227, %230 : vector<4x4xf32>
    %232 = vector.extract_strided_slice %216 {offsets = [4, 0], sizes = [4, 16], strides = [1, 1]} : vector<16x16xf32> to vector<4x16xf32>
    %233 = vector.extract_strided_slice %217 {offsets = [4, 0], sizes = [4, 16], strides = [1, 1]} : vector<16x16xf32> to vector<4x16xf32>
    %cst_107 = arith.constant dense<0.000000e+00> : vector<4x4xf32>
    %234 = tpu.matmul %232, %233, %cst_107 {dimension_numbers = #tpu.dot_dimension_numbers<[1], [1], [0], [0], [0, 0, 1, 0], [], []>} : vector<4x16xf32>, vector<4x16xf32>, vector<4x4xf32> -> vector<4x4xf32>
    %cst_108 = arith.constant 2.500000e-01 : f32
    %235 = vector.broadcast %cst_108 : f32 to vector<4x4xf32>
    %236 = arith.mulf %234, %235 : vector<4x4xf32>
    %cst_109 = arith.constant dense<0xFF800000> : vector<4xf32>
    %237 = vector.multi_reduction <maximumf>, %236, %cst_109 [1] : vector<4x4xf32> to vector<4xf32>
    %238 = vector.shape_cast %237 : vector<4xf32> to vector<4x1xf32>
    %239 = vector.broadcast %238 : vector<4x1xf32> to vector<4x4xf32>
    %240 = arith.subf %236, %239 : vector<4x4xf32>
    %241 = math.exp %240 : vector<4x4xf32>
    %cst_110 = arith.constant dense<0.000000e+00> : vector<4xf32>
    %242 = vector.multi_reduction <add>, %241, %cst_110 [1] : vector<4x4xf32> to vector<4xf32>
    %243 = vector.shape_cast %242 : vector<4xf32> to vector<4x1xf32>
    %244 = vector.broadcast %243 : vector<4x1xf32> to vector<4x4xf32>
    %245 = arith.divf %241, %244 : vector<4x4xf32>
    %246 = arith.addf %231, %245 : vector<4x4xf32>
    %247 = vector.extract_strided_slice %216 {offsets = [8, 0], sizes = [4, 16], strides = [1, 1]} : vector<16x16xf32> to vector<4x16xf32>
    %248 = vector.extract_strided_slice %217 {offsets = [8, 0], sizes = [4, 16], strides = [1, 1]} : vector<16x16xf32> to vector<4x16xf32>
    %cst_111 = arith.constant dense<0.000000e+00> : vector<4x4xf32>
    %249 = tpu.matmul %247, %248, %cst_111 {dimension_numbers = #tpu.dot_dimension_numbers<[1], [1], [0], [0], [0, 0, 1, 0], [], []>} : vector<4x16xf32>, vector<4x16xf32>, vector<4x4xf32> -> vector<4x4xf32>
    %cst_112 = arith.constant 2.500000e-01 : f32
    %250 = vector.broadcast %cst_112 : f32 to vector<4x4xf32>
    %251 = arith.mulf %249, %250 : vector<4x4xf32>
    %cst_113 = arith.constant dense<0xFF800000> : vector<4xf32>
    %252 = vector.multi_reduction <maximumf>, %251, %cst_113 [1] : vector<4x4xf32> to vector<4xf32>
    %253 = vector.shape_cast %252 : vector<4xf32> to vector<4x1xf32>
    %254 = vector.broadcast %253 : vector<4x1xf32> to vector<4x4xf32>
    %255 = arith.subf %251, %254 : vector<4x4xf32>
    %256 = math.exp %255 : vector<4x4xf32>
    %cst_114 = arith.constant dense<0.000000e+00> : vector<4xf32>
    %257 = vector.multi_reduction <add>, %256, %cst_114 [1] : vector<4x4xf32> to vector<4xf32>
    %258 = vector.shape_cast %257 : vector<4xf32> to vector<4x1xf32>
    %259 = vector.broadcast %258 : vector<4x1xf32> to vector<4x4xf32>
    %260 = arith.divf %256, %259 : vector<4x4xf32>
    %261 = arith.addf %246, %260 : vector<4x4xf32>
    %262 = vector.extract_strided_slice %216 {offsets = [12, 0], sizes = [4, 16], strides = [1, 1]} : vector<16x16xf32> to vector<4x16xf32>
    %263 = vector.extract_strided_slice %217 {offsets = [12, 0], sizes = [4, 16], strides = [1, 1]} : vector<16x16xf32> to vector<4x16xf32>
    %cst_115 = arith.constant dense<0.000000e+00> : vector<4x4xf32>
    %264 = tpu.matmul %262, %263, %cst_115 {dimension_numbers = #tpu.dot_dimension_numbers<[1], [1], [0], [0], [0, 0, 1, 0], [], []>} : vector<4x16xf32>, vector<4x16xf32>, vector<4x4xf32> -> vector<4x4xf32>
    %cst_116 = arith.constant 2.500000e-01 : f32
    %265 = vector.broadcast %cst_116 : f32 to vector<4x4xf32>
    %266 = arith.mulf %264, %265 : vector<4x4xf32>
    %cst_117 = arith.constant dense<0xFF800000> : vector<4xf32>
    %267 = vector.multi_reduction <maximumf>, %266, %cst_117 [1] : vector<4x4xf32> to vector<4xf32>
    %268 = vector.shape_cast %267 : vector<4xf32> to vector<4x1xf32>
    %269 = vector.broadcast %268 : vector<4x1xf32> to vector<4x4xf32>
    %270 = arith.subf %266, %269 : vector<4x4xf32>
    %271 = math.exp %270 : vector<4x4xf32>
    %cst_118 = arith.constant dense<0.000000e+00> : vector<4xf32>
    %272 = vector.multi_reduction <add>, %271, %cst_118 [1] : vector<4x4xf32> to vector<4xf32>
    %273 = vector.shape_cast %272 : vector<4xf32> to vector<4x1xf32>
    %274 = vector.broadcast %273 : vector<4x1xf32> to vector<4x4xf32>
    %275 = arith.divf %271, %274 : vector<4x4xf32>
    %276 = arith.addf %261, %275 : vector<4x4xf32>
    %cst_119 = arith.constant 2.500000e-01 : f32
    %277 = vector.broadcast %cst_119 : f32 to vector<4x4xf32>
    %278 = arith.mulf %276, %277 : vector<4x4xf32>
    %c0_120 = arith.constant 0 : index
    %c0_121 = arith.constant 0 : index
    %c0_122 = arith.constant 0 : index
    %c0_123 = arith.constant 0 : index
    %279 = vector.load %arg19[%c0_120, %c0_121, %c0_122, %c0_123] : memref<1x2x4x4xf32, #tpu.memory_space<vmem>>, vector<1x1x4x4xf32>
    %280 = vector.shape_cast %279 : vector<1x1x4x4xf32> to vector<4x4xf32>
    %281 = vector.shape_cast %278 : vector<4x4xf32> to vector<1x1x4x4xf32>
    tpu.vector_store %arg19[%c0_120, %c0_121, %c0_122, %c0_123], %281 {strides = array<i32>} : memref<1x2x4x4xf32, #tpu.memory_space<vmem>>, vector<1x1x4x4xf32>,
    %282 = vector.extract_strided_slice %212 {offsets = [0, 16], sizes = [16, 16], strides = [1, 1]} : vector<16x32xf32> to vector<16x16xf32>
    %283 = vector.extract_strided_slice %215 {offsets = [0, 16], sizes = [16, 16], strides = [1, 1]} : vector<16x32xf32> to vector<16x16xf32>
    %284 = vector.extract_strided_slice %282 {offsets = [0, 0], sizes = [4, 16], strides = [1, 1]} : vector<16x16xf32> to vector<4x16xf32>
    %285 = vector.extract_strided_slice %283 {offsets = [0, 0], sizes = [4, 16], strides = [1, 1]} : vector<16x16xf32> to vector<4x16xf32>
    %cst_124 = arith.constant dense<0.000000e+00> : vector<4x4xf32>
    %286 = tpu.matmul %284, %285, %cst_124 {dimension_numbers = #tpu.dot_dimension_numbers<[1], [1], [0], [0], [0, 0, 1, 0], [], []>} : vector<4x16xf32>, vector<4x16xf32>, vector<4x4xf32> -> vector<4x4xf32>
    %cst_125 = arith.constant 2.500000e-01 : f32
    %287 = vector.broadcast %cst_125 : f32 to vector<4x4xf32>
    %288 = arith.mulf %286, %287 : vector<4x4xf32>
    %cst_126 = arith.constant dense<0xFF800000> : vector<4xf32>
    %289 = vector.multi_reduction <maximumf>, %288, %cst_126 [1] : vector<4x4xf32> to vector<4xf32>
    %290 = vector.shape_cast %289 : vector<4xf32> to vector<4x1xf32>
    %291 = vector.broadcast %290 : vector<4x1xf32> to vector<4x4xf32>
    %292 = arith.subf %288, %291 : vector<4x4xf32>
    %293 = math.exp %292 : vector<4x4xf32>
    %cst_127 = arith.constant dense<0.000000e+00> : vector<4xf32>
    %294 = vector.multi_reduction <add>, %293, %cst_127 [1] : vector<4x4xf32> to vector<4xf32>
    %295 = vector.shape_cast %294 : vector<4xf32> to vector<4x1xf32>
    %296 = vector.broadcast %295 : vector<4x1xf32> to vector<4x4xf32>
    %297 = arith.divf %293, %296 : vector<4x4xf32>
    %298 = vector.extract_strided_slice %282 {offsets = [4, 0], sizes = [4, 16], strides = [1, 1]} : vector<16x16xf32> to vector<4x16xf32>
    %299 = vector.extract_strided_slice %283 {offsets = [4, 0], sizes = [4, 16], strides = [1, 1]} : vector<16x16xf32> to vector<4x16xf32>
    %cst_128 = arith.constant dense<0.000000e+00> : vector<4x4xf32>
    %300 = tpu.matmul %298, %299, %cst_128 {dimension_numbers = #tpu.dot_dimension_numbers<[1], [1], [0], [0], [0, 0, 1, 0], [], []>} : vector<4x16xf32>, vector<4x16xf32>, vector<4x4xf32> -> vector<4x4xf32>
    %cst_129 = arith.constant 2.500000e-01 : f32
    %301 = vector.broadcast %cst_129 : f32 to vector<4x4xf32>
    %302 = arith.mulf %300, %301 : vector<4x4xf32>
    %cst_130 = arith.constant dense<0xFF800000> : vector<4xf32>
    %303 = vector.multi_reduction <maximumf>, %302, %cst_130 [1] : vector<4x4xf32> to vector<4xf32>
    %304 = vector.shape_cast %303 : vector<4xf32> to vector<4x1xf32>
    %305 = vector.broadcast %304 : vector<4x1xf32> to vector<4x4xf32>
    %306 = arith.subf %302, %305 : vector<4x4xf32>
    %307 = math.exp %306 : vector<4x4xf32>
    %cst_131 = arith.constant dense<0.000000e+00> : vector<4xf32>
    %308 = vector.multi_reduction <add>, %307, %cst_131 [1] : vector<4x4xf32> to vector<4xf32>
    %309 = vector.shape_cast %308 : vector<4xf32> to vector<4x1xf32>
    %310 = vector.broadcast %309 : vector<4x1xf32> to vector<4x4xf32>
    %311 = arith.divf %307, %310 : vector<4x4xf32>
    %312 = arith.addf %297, %311 : vector<4x4xf32>
    %313 = vector.extract_strided_slice %282 {offsets = [8, 0], sizes = [4, 16], strides = [1, 1]} : vector<16x16xf32> to vector<4x16xf32>
    %314 = vector.extract_strided_slice %283 {offsets = [8, 0], sizes = [4, 16], strides = [1, 1]} : vector<16x16xf32> to vector<4x16xf32>
    %cst_132 = arith.constant dense<0.000000e+00> : vector<4x4xf32>
    %315 = tpu.matmul %313, %314, %cst_132 {dimension_numbers = #tpu.dot_dimension_numbers<[1], [1], [0], [0], [0, 0, 1, 0], [], []>} : vector<4x16xf32>, vector<4x16xf32>, vector<4x4xf32> -> vector<4x4xf32>
    %cst_133 = arith.constant 2.500000e-01 : f32
    %316 = vector.broadcast %cst_133 : f32 to vector<4x4xf32>
    %317 = arith.mulf %315, %316 : vector<4x4xf32>
    %cst_134 = arith.constant dense<0xFF800000> : vector<4xf32>
    %318 = vector.multi_reduction <maximumf>, %317, %cst_134 [1] : vector<4x4xf32> to vector<4xf32>
    %319 = vector.shape_cast %318 : vector<4xf32> to vector<4x1xf32>
    %320 = vector.broadcast %319 : vector<4x1xf32> to vector<4x4xf32>
    %321 = arith.subf %317, %320 : vector<4x4xf32>
    %322 = math.exp %321 : vector<4x4xf32>
    %cst_135 = arith.constant dense<0.000000e+00> : vector<4xf32>
    %323 = vector.multi_reduction <add>, %322, %cst_135 [1] : vector<4x4xf32> to vector<4xf32>
    %324 = vector.shape_cast %323 : vector<4xf32> to vector<4x1xf32>
    %325 = vector.broadcast %324 : vector<4x1xf32> to vector<4x4xf32>
    %326 = arith.divf %322, %325 : vector<4x4xf32>
    %327 = arith.addf %312, %326 : vector<4x4xf32>
    %328 = vector.extract_strided_slice %282 {offsets = [12, 0], sizes = [4, 16], strides = [1, 1]} : vector<16x16xf32> to vector<4x16xf32>
    %329 = vector.extract_strided_slice %283 {offsets = [12, 0], sizes = [4, 16], strides = [1, 1]} : vector<16x16xf32> to vector<4x16xf32>
    %cst_136 = arith.constant dense<0.000000e+00> : vector<4x4xf32>
    %330 = tpu.matmul %328, %329, %cst_136 {dimension_numbers = #tpu.dot_dimension_numbers<[1], [1], [0], [0], [0, 0, 1, 0], [], []>} : vector<4x16xf32>, vector<4x16xf32>, vector<4x4xf32> -> vector<4x4xf32>
    %cst_137 = arith.constant 2.500000e-01 : f32
    %331 = vector.broadcast %cst_137 : f32 to vector<4x4xf32>
    %332 = arith.mulf %330, %331 : vector<4x4xf32>
    %cst_138 = arith.constant dense<0xFF800000> : vector<4xf32>
    %333 = vector.multi_reduction <maximumf>, %332, %cst_138 [1] : vector<4x4xf32> to vector<4xf32>
    %334 = vector.shape_cast %333 : vector<4xf32> to vector<4x1xf32>
    %335 = vector.broadcast %334 : vector<4x1xf32> to vector<4x4xf32>
    %336 = arith.subf %332, %335 : vector<4x4xf32>
    %337 = math.exp %336 : vector<4x4xf32>
    %cst_139 = arith.constant dense<0.000000e+00> : vector<4xf32>
    %338 = vector.multi_reduction <add>, %337, %cst_139 [1] : vector<4x4xf32> to vector<4xf32>
    %339 = vector.shape_cast %338 : vector<4xf32> to vector<4x1xf32>
    %340 = vector.broadcast %339 : vector<4x1xf32> to vector<4x4xf32>
    %341 = arith.divf %337, %340 : vector<4x4xf32>
    %342 = arith.addf %327, %341 : vector<4x4xf32>
    %cst_140 = arith.constant 2.500000e-01 : f32
    %343 = vector.broadcast %cst_140 : f32 to vector<4x4xf32>
    %344 = arith.mulf %342, %343 : vector<4x4xf32>
    %c0_141 = arith.constant 0 : index
    %c1_142 = arith.constant 1 : index
    %c0_143 = arith.constant 0 : index
    %c0_144 = arith.constant 0 : index
    %345 = vector.load %arg19[%c0_141, %c1_142, %c0_143, %c0_144] : memref<1x2x4x4xf32, #tpu.memory_space<vmem>>, vector<1x1x4x4xf32>
    %346 = vector.shape_cast %345 : vector<1x1x4x4xf32> to vector<4x4xf32>
    %347 = vector.shape_cast %344 : vector<4x4xf32> to vector<1x1x4x4xf32>
    tpu.vector_store %arg19[%c0_141, %c1_142, %c0_143, %c0_144], %347 {strides = array<i32>} : memref<1x2x4x4xf32, #tpu.memory_space<vmem>>, vector<1x1x4x4xf32>,
    return
  }
  func.func @transform_0(%arg0: i32) -> (i32, i32, i32) {
    %c0_i32 = arith.constant 0 : i32
    %c0_i32_0 = arith.constant 0 : i32
    %c0_i32_1 = arith.constant 0 : i32
    return %arg0, %c0_i32, %c0_i32_0 : i32, i32, i32
  }
  func.func @transform_1(%arg0: i32) -> (i32, i32, i32) {
    %c0_i32 = arith.constant 0 : i32
    %c0_i32_0 = arith.constant 0 : i32
    %c0_i32_1 = arith.constant 0 : i32
    return %arg0, %c0_i32, %c0_i32_0 : i32, i32, i32
  }
  func.func @transform_2(%arg0: i32) -> (i32, i32) {
    %c0_i32 = arith.constant 0 : i32
    %c0_i32_0 = arith.constant 0 : i32
    %c0_i32_1 = arith.constant 0 : i32
    return %c0_i32, %c0_i32_0 : i32, i32
  }
  func.func @transform_3(%arg0: i32) -> (i32, i32) {
    %c0_i32 = arith.constant 0 : i32
    %c0_i32_0 = arith.constant 0 : i32
    %c0_i32_1 = arith.constant 0 : i32
    return %c0_i32, %c0_i32_0 : i32, i32
  }
  func.func @transform_4(%arg0: i32) -> (i32, i32) {
    %c0_i32 = arith.constant 0 : i32
    %c0_i32_0 = arith.constant 0 : i32
    %c0_i32_1 = arith.constant 0 : i32
    return %c0_i32, %c0_i32_0 : i32, i32
  }
  func.func @transform_5(%arg0: i32) -> (i32, i32) {
    %c0_i32 = arith.constant 0 : i32
    %c0_i32_0 = arith.constant 0 : i32
    %c0_i32_1 = arith.constant 0 : i32
    return %c0_i32, %c0_i32_0 : i32, i32
  }
  func.func @transform_6(%arg0: i32) -> (i32, i32) {
    %c0_i32 = arith.constant 0 : i32
    %c0_i32_0 = arith.constant 0 : i32
    %c0_i32_1 = arith.constant 0 : i32
    return %c0_i32, %c0_i32_0 : i32, i32
  }
  func.func @transform_7(%arg0: i32) -> (i32, i32, i32) {
    %c0_i32 = arith.constant 0 : i32
    %c0_i32_0 = arith.constant 0 : i32
    %c0_i32_1 = arith.constant 0 : i32
    return %arg0, %c0_i32, %c0_i32_0 : i32, i32, i32
  }
  func.func @transform_8(%arg0: i32) -> (i32, i32) {
    %c0_i32 = arith.constant 0 : i32
    %c0_i32_0 = arith.constant 0 : i32
    %c0_i32_1 = arith.constant 0 : i32
    return %c0_i32, %c0_i32_0 : i32, i32
  }
  func.func @transform_9(%arg0: i32) -> (i32, i32) {
    %c0_i32 = arith.constant 0 : i32
    %c0_i32_0 = arith.constant 0 : i32
    %c0_i32_1 = arith.constant 0 : i32
    return %c0_i32, %c0_i32_0 : i32, i32
  }
  func.func @transform_10(%arg0: i32) -> (i32, i32) {
    %c0_i32 = arith.constant 0 : i32
    %c0_i32_0 = arith.constant 0 : i32
    %c0_i32_1 = arith.constant 0 : i32
    return %c0_i32, %c0_i32_0 : i32, i32
  }
  func.func @transform_11(%arg0: i32) -> (i32, i32) {
    %c0_i32 = arith.constant 0 : i32
    %c0_i32_0 = arith.constant 0 : i32
    %c0_i32_1 = arith.constant 0 : i32
    return %c0_i32, %c0_i32_0 : i32, i32
  }
  func.func @transform_12(%arg0: i32) -> (i32, i32) {
    %c0_i32 = arith.constant 0 : i32
    %c0_i32_0 = arith.constant 0 : i32
    %c0_i32_1 = arith.constant 0 : i32
    return %c0_i32, %c0_i32_0 : i32, i32
  }
  func.func @transform_13(%arg0: i32) -> (i32, i32, i32) {
    %c0_i32 = arith.constant 0 : i32
    %c0_i32_0 = arith.constant 0 : i32
    %c0_i32_1 = arith.constant 0 : i32
    %c0_i32_2 = arith.constant 0 : i32
    return %c0_i32, %c0_i32_0, %c0_i32_1 : i32, i32, i32
  }
  func.func @transform_14(%arg0: i32) -> (i32, i32, i32) {
    %c0_i32 = arith.constant 0 : i32
    %c0_i32_0 = arith.constant 0 : i32
    %c0_i32_1 = arith.constant 0 : i32
    %c0_i32_2 = arith.constant 0 : i32
    return %c0_i32, %c0_i32_0, %c0_i32_1 : i32, i32, i32
  }
  func.func @transform_15(%arg0: i32) -> (i32, i32, i32) {
    %c0_i32 = arith.constant 0 : i32
    %c0_i32_0 = arith.constant 0 : i32
    %c0_i32_1 = arith.constant 0 : i32
    %c0_i32_2 = arith.constant 0 : i32
    return %c0_i32, %c0_i32_0, %c0_i32_1 : i32, i32, i32
  }
  func.func @transform_16(%arg0: i32) -> (i32, i32, i32) {
    %c0_i32 = arith.constant 0 : i32
    %c0_i32_0 = arith.constant 0 : i32
    %c0_i32_1 = arith.constant 0 : i32
    %c0_i32_2 = arith.constant 0 : i32
    return %c0_i32, %c0_i32_0, %c0_i32_1 : i32, i32, i32
  }
  func.func @transform_17(%arg0: i32) -> (i32, i32, i32, i32) {
    %c0_i32 = arith.constant 0 : i32
    %c0_i32_0 = arith.constant 0 : i32
    %c0_i32_1 = arith.constant 0 : i32
    %c0_i32_2 = arith.constant 0 : i32
    return %arg0, %c0_i32, %c0_i32_0, %c0_i32_1 : i32, i32, i32, i32
  }
  func.func @transform_18(%arg0: i32) -> (i32, i32, i32, i32) {
    %c0_i32 = arith.constant 0 : i32
    %c0_i32_0 = arith.constant 0 : i32
    %c0_i32_1 = arith.constant 0 : i32
    %c0_i32_2 = arith.constant 0 : i32
    return %arg0, %c0_i32, %c0_i32_0, %c0_i32_1 : i32, i32, i32, i32
  }
}

</mosaic_0001>

<llo_original>
// kernel: dcdetector_forward.2
$region0: #{dcdetector_forward.2}
  #allocation0 [shape = 'u32[]', space=smem, size = 0x4, offset = 0x4, fixed_abs, tag = 'smem constant byte address 0x4 - core index']
  #allocation1 [shape = 'u32[144,128]{1,0:T(1,128)}', space=vmem, size = 0x12000, scoped, tag = 'internal scratch']
  %s0 = inlined_call_operand.vmem [shape: f32[2,4,16], index: 0, kind: input, shape index: {}]
  %s1 = inlined_call_operand.vmem [shape: f32[2,32,2], index: 1, kind: input, shape index: {}]
  %s2 = inlined_call_operand.vmem [shape: f32[32,4], index: 2, kind: input, shape index: {}]
  %s3 = inlined_call_operand.vmem [shape: f32[32,32], index: 3, kind: input, shape index: {}]
  %s4 = inlined_call_operand.vmem [shape: f32[32,32], index: 4, kind: input, shape index: {}]
  %s5 = inlined_call_operand.hbm [shape: f32[6,32], index: 5, kind: input, shape index: {}]
  %s6 = inlined_call_operand.vmem [shape: f32[32,32], index: 6, kind: input, shape index: {}]
  %s7 = inlined_call_operand.vmem [shape: f32[2,8,8], index: 7, kind: input, shape index: {}]
  %s8 = inlined_call_operand.vmem [shape: f32[8,4], index: 8, kind: input, shape index: {}]
  %s9 = inlined_call_operand.vmem [shape: f32[8,8], index: 9, kind: input, shape index: {}, may-alias: {9,10}]
  %s10 = inlined_call_operand.vmem [shape: f32[8,8], index: 10, kind: input, shape index: {}, may-alias: {9,10}]
  %s11 = inlined_call_operand.vmem [shape: f32[24,32], index: 11, kind: input, shape index: {}]
  %s12 = inlined_call_operand.vmem [shape: f32[8,32], index: 12, kind: input, shape index: {}]
  %s13 = inlined_call_operand.vmem [shape: f32[1,32,32], index: 13, kind: input, shape index: {}]
  %s14 = inlined_call_operand.vmem [shape: f32[1,1,32], index: 14, kind: input, shape index: {}]
  %s15 = inlined_call_operand.vmem [shape: f32[1,32,32], index: 15, kind: input, shape index: {}]
  %s16 = inlined_call_operand.hbm [shape: f32[1,1,32], index: 16, kind: input, shape index: {}]
  %s17 = inlined_call_operand.vmem [shape: f32[2,2,8,8], index: 17, kind: output, shape index: {0}]
  %s18 = inlined_call_operand.vmem [shape: f32[2,2,2,2], index: 18, kind: output, shape index: {1}]
  %19 = xla_tuple %s17, %s18
  %s20 = sld [smem:[#allocation0]]
  $region117: #{dcdetector_forward.2} parent=0
    _
  %s22 = ssub.s32 1, %s20
  %s23 = scalar_select 0, %s22, %s20
  $region1: #{dcdetector_forward.2} parent=0
    #allocation2 [shape = 'u8[4096]{0}', space=vmem, size = 0x1000, scoped, tag = 'input window, operand 5, single buffered']
    #allocation3 [shape = 's32[2]{0}', space=sflag, size = 0x8, scoped, tag = 'scoped memory for dcdetector_forward.2']
    #allocation4 [shape = 'u8[512]{0}', space=vmem, size = 0x400, scoped, tag = 'input window, operand 16, single buffered']
    #allocation5 [shape = 's32[1]{0}', space=sflag, size = 0x4, scoped, tag = 'scoped memory for dcdetector_forward.2']
    %24 = vsyncpa [#allocation3], 0
    %25 = vsyncpa [#allocation5], 0
    loop: start=0, step=1, limit=4
    $region2: #{dcdetector_forward.2} parent=1 // loop_pre_header
      _
    $region3: #{dcdetector_forward.2} parent=1 // loop_header
      %s27 = sphi 0, %s31
      %p28 = scmp.ge.s32.totalorder %s27, 4
      %s37 = sphi 0, %s39
      %s40 = sphi 0, %s37
      %s41 = sphi 0, %s40
      %s57 = sphi 0, %s41
      %s63 = sphi 0, %s65
      %s66 = sphi 0, %s63
      %s67 = sphi 0, %s66
      %s83 = sphi 0, %s67
      %s87 = sphi 0, %s87
      %s89 = sphi 0, %s87
      %s90 = sphi 0, %s89
      %s104 = sphi 0, %s90
      %s108 = sphi 0, %s108
      %s110 = sphi 0, %s108
      %s111 = sphi 0, %s110
      %s125 = sphi 0, %s111
      %s129 = sphi 0, %s129
      %s131 = sphi 0, %s129
      %s132 = sphi 0, %s131
      %s146 = sphi 0, %s132
      %s150 = sphi 0, %s150
      %s152 = sphi 0, %s150
      %s153 = sphi 0, %s152
      %s167 = sphi 0, %s153
      %s171 = sphi 0, %s171
      %s173 = sphi 0, %s171
      %s174 = sphi 0, %s173
      %s188 = sphi 0, %s174
      %s194 = sphi 0, %s196
      %s197 = sphi 0, %s194
      %s198 = sphi 0, %s197
      %s214 = sphi 0, %s198
      %s218 = sphi 0, %s218
      %s220 = sphi 0, %s218
      %s221 = sphi 0, %s220
      %s235 = sphi 0, %s221
      %s239 = sphi 0, %s239
      %s241 = sphi 0, %s239
      %s242 = sphi 0, %s241
      %s256 = sphi 0, %s242
      %s260 = sphi 0, %s260
      %s262 = sphi 0, %s260
      %s263 = sphi 0, %s262
      %s277 = sphi 0, %s263
      %s281 = sphi 0, %s281
      %s283 = sphi 0, %s281
      %s284 = sphi 0, %s283
      %s298 = sphi 0, %s284
      %s302 = sphi 0, %s302
      %s304 = sphi 0, %s302
      %s305 = sphi 0, %s304
      %s319 = sphi 0, %s305
      %s323 = sphi 0, %s323
      %s325 = sphi 0, %s323
      %s326 = sphi 0, %s325
      %s340 = sphi 0, %s326
      %s344 = sphi 0, %s344
      %s346 = sphi 0, %s344
      %s347 = sphi 0, %s346
      %s361 = sphi 0, %s347
      %s365 = sphi 0, %s365
      %s367 = sphi 0, %s365
      %s368 = sphi 0, %s367
      %s382 = sphi 0, %s368
      %s386 = sphi 0, %s386
      %s388 = sphi 0, %s386
      %s389 = sphi 0, %s388
      %s403 = sphi 0, %s389
      %s409 = sphi 0, %s411
      %s412 = sphi 0, %s409
      %s413 = sphi 0, %s412
      %s429 = sphi 0, %s413
      %s435 = sphi 0, %s437
      %s438 = sphi 0, %s435
      %s439 = sphi 0, %s438
      %s455 = sphi 0, %s439
    $region4: #{dcdetector_forward.2} parent=1 // loop_header_branch
      %30 = sbr.rel (%p28) target = $region8
    $region5: #{dcdetector_forward.2} parent=1 // loop_body
      %s32 = ssub.s32 %s27, 1
      %s33 = ssub.s32 %s27, 2
      %s34 = sadd.s32 %s27, 1
      %s35 = ssub.s32 %s27, %s34
      %p36 = scmp.eq.s32.totalorder %s35, 0
      %s38 = sadd.s32 %s37, 1
      %s39 = scalar_select %p36, %s37, %s38
      %p42 = pneg %p36
      %p43 = scmp.eq.s32.totalorder %s27, 1
      %p44 = por %p42, %p43
      %p45 = scmp.ne.s32.totalorder %s37, %s40
      %p46 = scmp.eq.s32.totalorder %s27, 0
      %p47 = por %p45, %p46
      %p48 = scmp.ne.s32.totalorder %s37, %s40
      %p49 = scmp.eq.s32.totalorder %s32, 1
      %p50 = por %p48, %p49
      %p51 = scmp.ne.s32.totalorder %s40, %s41
      %p52 = scmp.eq.s32.totalorder %s32, 0
      %p53 = por %p51, %p52
      %p54 = scmp.ne.s32.totalorder %s40, %s41
      %p55 = scmp.eq.s32.totalorder %s33, 1
      %p56 = por %p54, %p55
      %p58 = scmp.ne.s32.totalorder %s41, %s57
      %p59 = scmp.eq.s32.totalorder %s33, 0
      %p60 = por %p58, %p59
      %s61 = ssub.s32 %s27, %s34
      %p62 = scmp.eq.s32.totalorder %s61, 0
      %s64 = sadd.s32 %s63, 1
      %s65 = scalar_select %p62, %s63, %s64
      %p68 = pneg %p62
      %p69 = scmp.eq.s32.totalorder %s27, 1
      %p70 = por %p68, %p69
      %p71 = scmp.ne.s32.totalorder %s63, %s66
      %p72 = scmp.eq.s32.totalorder %s27, 0
      %p73 = por %p71, %p72
      %p74 = scmp.ne.s32.totalorder %s63, %s66
      %p75 = scmp.eq.s32.totalorder %s32, 1
      %p76 = por %p74, %p75
      %p77 = scmp.ne.s32.totalorder %s66, %s67
      %p78 = scmp.eq.s32.totalorder %s32, 0
      %p79 = por %p77, %p78
      %p80 = scmp.ne.s32.totalorder %s66, %s67
      %p81 = scmp.eq.s32.totalorder %s33, 1
      %p82 = por %p80, %p81
      %p84 = scmp.ne.s32.totalorder %s67, %s83
      %p85 = scmp.eq.s32.totalorder %s33, 0
      %p86 = por %p84, %p85
      %s88 = sadd.s32 %s87, 1
      %p91 = scmp.eq.s32.totalorder %s27, 1
      %p92 = scmp.ne.s32.totalorder %s87, %s89
      %p93 = scmp.eq.s32.totalorder %s27, 0
      %p94 = por %p92, %p93
      %p95 = scmp.ne.s32.totalorder %s87, %s89
      %p96 = scmp.eq.s32.totalorder %s32, 1
      %p97 = por %p95, %p96
      %p98 = scmp.ne.s32.totalorder %s89, %s90
      %p99 = scmp.eq.s32.totalorder %s32, 0
      %p100 = por %p98, %p99
      %p101 = scmp.ne.s32.totalorder %s89, %s90
      %p102 = scmp.eq.s32.totalorder %s33, 1
      %p103 = por %p101, %p102
      %p105 = scmp.ne.s32.totalorder %s90, %s104
      %p106 = scmp.eq.s32.totalorder %s33, 0
      %p107 = por %p105, %p106
      %s109 = sadd.s32 %s108, 1
      %p112 = scmp.eq.s32.totalorder %s27, 1
      %p113 = scmp.ne.s32.totalorder %s108, %s110
      %p114 = scmp.eq.s32.totalorder %s27, 0
      %p115 = por %p113, %p114
      %p116 = scmp.ne.s32.totalorder %s108, %s110
      %p117 = scmp.eq.s32.totalorder %s32, 1
      %p118 = por %p116, %p117
      %p119 = scmp.ne.s32.totalorder %s110, %s111
      %p120 = scmp.eq.s32.totalorder %s32, 0
      %p121 = por %p119, %p120
      %p122 = scmp.ne.s32.totalorder %s110, %s111
      %p123 = scmp.eq.s32.totalorder %s33, 1
      %p124 = por %p122, %p123
      %p126 = scmp.ne.s32.totalorder %s111, %s125
      %p127 = scmp.eq.s32.totalorder %s33, 0
      %p128 = por %p126, %p127
      %s130 = sadd.s32 %s129, 1
      %p133 = scmp.eq.s32.totalorder %s27, 1
      %p134 = scmp.ne.s32.totalorder %s129, %s131
      %p135 = scmp.eq.s32.totalorder %s27, 0
      %p136 = por %p134, %p135
      %p137 = scmp.ne.s32.totalorder %s129, %s131
      %p138 = scmp.eq.s32.totalorder %s32, 1
      %p139 = por %p137, %p138
      %p140 = scmp.ne.s32.totalorder %s131, %s132
      %p141 = scmp.eq.s32.totalorder %s32, 0
      %p142 = por %p140, %p141
      %p143 = scmp.ne.s32.totalorder %s131, %s132
      %p144 = scmp.eq.s32.totalorder %s33, 1
      %p145 = por %p143, %p144
      %p147 = scmp.ne.s32.totalorder %s132, %s146
      %p148 = scmp.eq.s32.totalorder %s33, 0
      %p149 = por %p147, %p148
      %s151 = sadd.s32 %s150, 1
      %p154 = scmp.eq.s32.totalorder %s27, 1
      %p155 = scmp.ne.s32.totalorder %s150, %s152
      %p156 = scmp.eq.s32.totalorder %s27, 0
      %p157 = por %p155, %p156
      %p158 = scmp.ne.s32.totalorder %s150, %s152
      %p159 = scmp.eq.s32.totalorder %s32, 1
      %p160 = por %p158, %p159
      %p161 = scmp.ne.s32.totalorder %s152, %s153
      %p162 = scmp.eq.s32.totalorder %s32, 0
      %p163 = por %p161, %p162
      %p164 = scmp.ne.s32.totalorder %s152, %s153
      %p165 = scmp.eq.s32.totalorder %s33, 1
      %p166 = por %p164, %p165
      %p168 = scmp.ne.s32.totalorder %s153, %s167
      %p169 = scmp.eq.s32.totalorder %s33, 0
      %p170 = por %p168, %p169
      %s172 = sadd.s32 %s171, 1
      %p175 = scmp.eq.s32.totalorder %s27, 1
      %p176 = scmp.ne.s32.totalorder %s171, %s173
      %p177 = scmp.eq.s32.totalorder %s27, 0
      %p178 = por %p176, %p177
      %p179 = scmp.ne.s32.totalorder %s171, %s173
      %p180 = scmp.eq.s32.totalorder %s32, 1
      %p181 = por %p179, %p180
      %p182 = scmp.ne.s32.totalorder %s173, %s174
      %p183 = scmp.eq.s32.totalorder %s32, 0
      %p184 = por %p182, %p183
      %p185 = scmp.ne.s32.totalorder %s173, %s174
      %p186 = scmp.eq.s32.totalorder %s33, 1
      %p187 = por %p185, %p186
      %p189 = scmp.ne.s32.totalorder %s174, %s188
      %p190 = scmp.eq.s32.totalorder %s33, 0
      %p191 = por %p189, %p190
      %s192 = ssub.s32 %s27, %s34
      %p193 = scmp.eq.s32.totalorder %s192, 0
      %s195 = sadd.s32 %s194, 1
      %s196 = scalar_select %p193, %s194, %s195
      %p199 = pneg %p193
      %p200 = scmp.eq.s32.totalorder %s27, 1
      %p201 = por %p199, %p200
      %p202 = scmp.ne.s32.totalorder %s194, %s197
      %p203 = scmp.eq.s32.totalorder %s27, 0
      %p204 = por %p202, %p203
      %p205 = scmp.ne.s32.totalorder %s194, %s197
      %p206 = scmp.eq.s32.totalorder %s32, 1
      %p207 = por %p205, %p206
      %p208 = scmp.ne.s32.totalorder %s197, %s198
      %p209 = scmp.eq.s32.totalorder %s32, 0
      %p210 = por %p208, %p209
      %p211 = scmp.ne.s32.totalorder %s197, %s198
      %p212 = scmp.eq.s32.totalorder %s33, 1
      %p213 = por %p211, %p212
      %p215 = scmp.ne.s32.totalorder %s198, %s214
      %p216 = scmp.eq.s32.totalorder %s33, 0
      %p217 = por %p215, %p216
      %s219 = sadd.s32 %s218, 1
      %p222 = scmp.eq.s32.totalorder %s27, 1
      %p223 = scmp.ne.s32.totalorder %s218, %s220
      %p224 = scmp.eq.s32.totalorder %s27, 0
      %p225 = por %p223, %p224
      %p226 = scmp.ne.s32.totalorder %s218, %s220
      %p227 = scmp.eq.s32.totalorder %s32, 1
      %p228 = por %p226, %p227
      %p229 = scmp.ne.s32.totalorder %s220, %s221
      %p230 = scmp.eq.s32.totalorder %s32, 0
      %p231 = por %p229, %p230
      %p232 = scmp.ne.s32.totalorder %s220, %s221
      %p233 = scmp.eq.s32.totalorder %s33, 1
      %p234 = por %p232, %p233
      %p236 = scmp.ne.s32.totalorder %s221, %s235
      %p237 = scmp.eq.s32.totalorder %s33, 0
      %p238 = por %p236, %p237
      %s240 = sadd.s32 %s239, 1
      %p243 = scmp.eq.s32.totalorder %s27, 1
      %p244 = scmp.ne.s32.totalorder %s239, %s241
      %p245 = scmp.eq.s32.totalorder %s27, 0
      %p246 = por %p244, %p245
      %p247 = scmp.ne.s32.totalorder %s239, %s241
      %p248 = scmp.eq.s32.totalorder %s32, 1
      %p249 = por %p247, %p248
      %p250 = scmp.ne.s32.totalorder %s241, %s242
      %p251 = scmp.eq.s32.totalorder %s32, 0
      %p252 = por %p250, %p251
      %p253 = scmp.ne.s32.totalorder %s241, %s242
      %p254 = scmp.eq.s32.totalorder %s33, 1
      %p255 = por %p253, %p254
      %p257 = scmp.ne.s32.totalorder %s242, %s256
      %p258 = scmp.eq.s32.totalorder %s33, 0
      %p259 = por %p257, %p258
      %s261 = sadd.s32 %s260, 1
      %p264 = scmp.eq.s32.totalorder %s27, 1
      %p265 = scmp.ne.s32.totalorder %s260, %s262
      %p266 = scmp.eq.s32.totalorder %s27, 0
      %p267 = por %p265, %p266
      %p268 = scmp.ne.s32.totalorder %s260, %s262
      %p269 = scmp.eq.s32.totalorder %s32, 1
      %p270 = por %p268, %p269
      %p271 = scmp.ne.s32.totalorder %s262, %s263
      %p272 = scmp.eq.s32.totalorder %s32, 0
      %p273 = por %p271, %p272
      %p274 = scmp.ne.s32.totalorder %s262, %s263
      %p275 = scmp.eq.s32.totalorder %s33, 1
      %p276 = por %p274, %p275
      %p278 = scmp.ne.s32.totalorder %s263, %s277
      %p279 = scmp.eq.s32.totalorder %s33, 0
      %p280 = por %p278, %p279
      %s282 = sadd.s32 %s281, 1
      %p285 = scmp.eq.s32.totalorder %s27, 1
      %p286 = scmp.ne.s32.totalorder %s281, %s283
      %p287 = scmp.eq.s32.totalorder %s27, 0
      %p288 = por %p286, %p287
      %p289 = scmp.ne.s32.totalorder %s281, %s283
      %p290 = scmp.eq.s32.totalorder %s32, 1
      %p291 = por %p289, %p290
      %p292 = scmp.ne.s32.totalorder %s283, %s284
      %p293 = scmp.eq.s32.totalorder %s32, 0
      %p294 = por %p292, %p293
      %p295 = scmp.ne.s32.totalorder %s283, %s284
      %p296 = scmp.eq.s32.totalorder %s33, 1
      %p297 = por %p295, %p296
      %p299 = scmp.ne.s32.totalorder %s284, %s298
      %p300 = scmp.eq.s32.totalorder %s33, 0
      %p301 = por %p299, %p300
      %s303 = sadd.s32 %s302, 1
      %p306 = scmp.eq.s32.totalorder %s27, 1
      %p307 = scmp.ne.s32.totalorder %s302, %s304
      %p308 = scmp.eq.s32.totalorder %s27, 0
      %p309 = por %p307, %p308
      %p310 = scmp.ne.s32.totalorder %s302, %s304
      %p311 = scmp.eq.s32.totalorder %s32, 1
      %p312 = por %p310, %p311
      %p313 = scmp.ne.s32.totalorder %s304, %s305
      %p314 = scmp.eq.s32.totalorder %s32, 0
      %p315 = por %p313, %p314
      %p316 = scmp.ne.s32.totalorder %s304, %s305
      %p317 = scmp.eq.s32.totalorder %s33, 1
      %p318 = por %p316, %p317
      %p320 = scmp.ne.s32.totalorder %s305, %s319
      %p321 = scmp.eq.s32.totalorder %s33, 0
      %p322 = por %p320, %p321
      %s324 = sadd.s32 %s323, 1
      %p327 = scmp.eq.s32.totalorder %s27, 1
      %p328 = scmp.ne.s32.totalorder %s323, %s325
      %p329 = scmp.eq.s32.totalorder %s27, 0
      %p330 = por %p328, %p329
      %p331 = scmp.ne.s32.totalorder %s323, %s325
      %p332 = scmp.eq.s32.totalorder %s32, 1
      %p333 = por %p331, %p332
      %p334 = scmp.ne.s32.totalorder %s325, %s326
      %p335 = scmp.eq.s32.totalorder %s32, 0
      %p336 = por %p334, %p335
      %p337 = scmp.ne.s32.totalorder %s325, %s326
      %p338 = scmp.eq.s32.totalorder %s33, 1
      %p339 = por %p337, %p338
      %p341 = scmp.ne.s32.totalorder %s326, %s340
      %p342 = scmp.eq.s32.totalorder %s33, 0
      %p343 = por %p341, %p342
      %s345 = sadd.s32 %s344, 1
      %p348 = scmp.eq.s32.totalorder %s27, 1
      %p349 = scmp.ne.s32.totalorder %s344, %s346
      %p350 = scmp.eq.s32.totalorder %s27, 0
      %p351 = por %p349, %p350
      %p352 = scmp.ne.s32.totalorder %s344, %s346
      %p353 = scmp.eq.s32.totalorder %s32, 1
      %p354 = por %p352, %p353
      %p355 = scmp.ne.s32.totalorder %s346, %s347
      %p356 = scmp.eq.s32.totalorder %s32, 0
      %p357 = por %p355, %p356
      %p358 = scmp.ne.s32.totalorder %s346, %s347
      %p359 = scmp.eq.s32.totalorder %s33, 1
      %p360 = por %p358, %p359
      %p362 = scmp.ne.s32.totalorder %s347, %s361
      %p363 = scmp.eq.s32.totalorder %s33, 0
      %p364 = por %p362, %p363
      %s366 = sadd.s32 %s365, 1
      %p369 = scmp.eq.s32.totalorder %s27, 1
      %p370 = scmp.ne.s32.totalorder %s365, %s367
      %p371 = scmp.eq.s32.totalorder %s27, 0
      %p372 = por %p370, %p371
      %p373 = scmp.ne.s32.totalorder %s365, %s367
      %p374 = scmp.eq.s32.totalorder %s32, 1
      %p375 = por %p373, %p374
      %p376 = scmp.ne.s32.totalorder %s367, %s368
      %p377 = scmp.eq.s32.totalorder %s32, 0
      %p378 = por %p376, %p377
      %p379 = scmp.ne.s32.totalorder %s367, %s368
      %p380 = scmp.eq.s32.totalorder %s33, 1
      %p381 = por %p379, %p380
      %p383 = scmp.ne.s32.totalorder %s368, %s382
      %p384 = scmp.eq.s32.totalorder %s33, 0
      %p385 = por %p383, %p384
      %s387 = sadd.s32 %s386, 1
      %p390 = scmp.eq.s32.totalorder %s27, 1
      %p391 = scmp.ne.s32.totalorder %s386, %s388
      %p392 = scmp.eq.s32.totalorder %s27, 0
      %p393 = por %p391, %p392
      %p394 = scmp.ne.s32.totalorder %s386, %s388
      %p395 = scmp.eq.s32.totalorder %s32, 1
      %p396 = por %p394, %p395
      %p397 = scmp.ne.s32.totalorder %s388, %s389
      %p398 = scmp.eq.s32.totalorder %s32, 0
      %p399 = por %p397, %p398
      %p400 = scmp.ne.s32.totalorder %s388, %s389
      %p401 = scmp.eq.s32.totalorder %s33, 1
      %p402 = por %p400, %p401
      %p404 = scmp.ne.s32.totalorder %s389, %s403
      %p405 = scmp.eq.s32.totalorder %s33, 0
      %p406 = por %p404, %p405
      %s407 = ssub.s32 %s27, %s34
      %p408 = scmp.eq.s32.totalorder %s407, 0
      %s410 = sadd.s32 %s409, 1
      %s411 = scalar_select %p408, %s409, %s410
      %p414 = pneg %p408
      %p415 = scmp.eq.s32.totalorder %s27, 1
      %p416 = por %p414, %p415
      %p417 = scmp.ne.s32.totalorder %s409, %s412
      %p418 = scmp.eq.s32.totalorder %s27, 0
      %p419 = por %p417, %p418
      %p420 = scmp.ne.s32.totalorder %s409, %s412
      %p421 = scmp.eq.s32.totalorder %s32, 1
      %p422 = por %p420, %p421
      %p423 = scmp.ne.s32.totalorder %s412, %s413
      %p424 = scmp.eq.s32.totalorder %s32, 0
      %p425 = por %p423, %p424
      %p426 = scmp.ne.s32.totalorder %s412, %s413
      %p427 = scmp.eq.s32.totalorder %s33, 1
      %p428 = por %p426, %p427
      %p430 = scmp.ne.s32.totalorder %s413, %s429
      %p431 = scmp.eq.s32.totalorder %s33, 0
      %p432 = por %p430, %p431
      %s433 = ssub.s32 %s27, %s34
      %p434 = scmp.eq.s32.totalorder %s433, 0
      %s436 = sadd.s32 %s435, 1
      %s437 = scalar_select %p434, %s435, %s436
      %p440 = pneg %p434
      %p441 = scmp.eq.s32.totalorder %s27, 1
      %p442 = por %p440, %p441
      %p443 = scmp.ne.s32.totalorder %s435, %s438
      %p444 = scmp.eq.s32.totalorder %s27, 0
      %p445 = por %p443, %p444
      %p446 = scmp.ne.s32.totalorder %s435, %s438
      %p447 = scmp.eq.s32.totalorder %s32, 1
      %p448 = por %p446, %p447
      %p449 = scmp.ne.s32.totalorder %s438, %s439
      %p450 = scmp.eq.s32.totalorder %s32, 0
      %p451 = por %p449, %p450
      %p452 = scmp.ne.s32.totalorder %s438, %s439
      %p453 = scmp.eq.s32.totalorder %s33, 1
      %p454 = por %p452, %p453
      %p456 = scmp.ne.s32.totalorder %s439, %s455
      %p457 = scmp.eq.s32.totalorder %s33, 0
      %p458 = por %p456, %p457
      %p459 = scmp.le.s32.totalorder 1, %s27
      %p460 = scmp.lt.s32.totalorder %s27, 3
      %p461 = pnand %p459, %p460
      %p462 = pneg %p461
      // Predicated region
      $region9: #{dcdetector_forward.2} parent=5 // pred_check
        _
      $region10: #{dcdetector_forward.2} parent=5 // pred_check_branch
        %464 = sbr.rel (%p461) target = $region12
      $region11: #{dcdetector_forward.2} parent=5 // pred_region
        %s465 = ssub.s32 %s27, 1
        // Predicated region
        $region13: #{dcdetector_forward.2} parent=11 // pred_check
          %p466 = pneg %p100
        $region14: #{dcdetector_forward.2} parent=11 // pred_check_branch
          %468 = sbr.rel (%p466) target = $region16
        $region15: #{dcdetector_forward.2} parent=11 // pred_region
          _
        $region16: #{dcdetector_forward.2} parent=11 // pred_fallthru
          _
        // Predicated region
        $region17: #{dcdetector_forward.2} parent=11 // pred_check
          %p469 = pneg %p121
        $region18: #{dcdetector_forward.2} parent=11 // pred_check_branch
          %471 = sbr.rel (%p469) target = $region20
        $region19: #{dcdetector_forward.2} parent=11 // pred_region
          _
        $region20: #{dcdetector_forward.2} parent=11 // pred_fallthru
          _
        // Predicated region
        $region21: #{dcdetector_forward.2} parent=11 // pred_check
          %p472 = pneg %p142
        $region22: #{dcdetector_forward.2} parent=11 // pred_check_branch
          %474 = sbr.rel (%p472) target = $region24
        $region23: #{dcdetector_forward.2} parent=11 // pred_region
          _
        $region24: #{dcdetector_forward.2} parent=11 // pred_fallthru
          _
        // Predicated region
        $region25: #{dcdetector_forward.2} parent=11 // pred_check
          %p475 = pneg %p163
        $region26: #{dcdetector_forward.2} parent=11 // pred_check_branch
          %477 = sbr.rel (%p475) target = $region28
        $region27: #{dcdetector_forward.2} parent=11 // pred_region
          %s479 = ssub.s32 128, 128
          %480 = vsyncadd [#allocation3], %s479
          %s482 = sshll.u32 [#allocation2], 4
          %s483 = int_to_ptr.vmem [resolvable:$true] %s482
          %485 = dma.hbm_to_vmem [thread:$0]  %s5, 128, %s483, [#allocation3]
        $region28: #{dcdetector_forward.2} parent=11 // pred_fallthru
          _
        // Predicated region
        $region29: #{dcdetector_forward.2} parent=11 // pred_check
          %p486 = pneg %p184
        $region30: #{dcdetector_forward.2} parent=11 // pred_check_branch
          %488 = sbr.rel (%p486) target = $region32
        $region31: #{dcdetector_forward.2} parent=11 // pred_region
          _
        $region32: #{dcdetector_forward.2} parent=11 // pred_fallthru
          _
        // Predicated region
        $region33: #{dcdetector_forward.2} parent=11 // pred_check
          %p489 = pneg %p231
        $region34: #{dcdetector_forward.2} parent=11 // pred_check_branch
          %491 = sbr.rel (%p489) target = $region36
        $region35: #{dcdetector_forward.2} parent=11 // pred_region
          _
        $region36: #{dcdetector_forward.2} parent=11 // pred_fallthru
          _
        // Predicated region
        $region37: #{dcdetector_forward.2} parent=11 // pred_check
          %p492 = pneg %p252
        $region38: #{dcdetector_forward.2} parent=11 // pred_check_branch
          %494 = sbr.rel (%p492) target = $region40
        $region39: #{dcdetector_forward.2} parent=11 // pred_region
          _
        $region40: #{dcdetector_forward.2} parent=11 // pred_fallthru
          _
        // Predicated region
        $region41: #{dcdetector_forward.2} parent=11 // pred_check
          %p495 = pneg %p273
        $region42: #{dcdetector_forward.2} parent=11 // pred_check_branch
          %497 = sbr.rel (%p495) target = $region44
        $region43: #{dcdetector_forward.2} parent=11 // pred_region
          _
        $region44: #{dcdetector_forward.2} parent=11 // pred_fallthru
          _
        // Predicated region
        $region45: #{dcdetector_forward.2} parent=11 // pred_check
          %p498 = pneg %p294
        $region46: #{dcdetector_forward.2} parent=11 // pred_check_branch
          %500 = sbr.rel (%p498) target = $region48
        $region47: #{dcdetector_forward.2} parent=11 // pred_region
          _
        $region48: #{dcdetector_forward.2} parent=11 // pred_fallthru
          _
        // Predicated region
        $region49: #{dcdetector_forward.2} parent=11 // pred_check
          %p501 = pneg %p315
        $region50: #{dcdetector_forward.2} parent=11 // pred_check_branch
          %503 = sbr.rel (%p501) target = $region52
        $region51: #{dcdetector_forward.2} parent=11 // pred_region
          _
        $region52: #{dcdetector_forward.2} parent=11 // pred_fallthru
          _
        // Predicated region
        $region53: #{dcdetector_forward.2} parent=11 // pred_check
          %p504 = pneg %p336
        $region54: #{dcdetector_forward.2} parent=11 // pred_check_branch
          %506 = sbr.rel (%p504) target = $region56
        $region55: #{dcdetector_forward.2} parent=11 // pred_region
          _
        $region56: #{dcdetector_forward.2} parent=11 // pred_fallthru
          _
        // Predicated region
        $region57: #{dcdetector_forward.2} parent=11 // pred_check
          %p507 = pneg %p357
        $region58: #{dcdetector_forward.2} parent=11 // pred_check_branch
          %509 = sbr.rel (%p507) target = $region60
        $region59: #{dcdetector_forward.2} parent=11 // pred_region
          _
        $region60: #{dcdetector_forward.2} parent=11 // pred_fallthru
          _
        // Predicated region
        $region61: #{dcdetector_forward.2} parent=11 // pred_check
          %p510 = pneg %p378
        $region62: #{dcdetector_forward.2} parent=11 // pred_check_branch
          %512 = sbr.rel (%p510) target = $region64
        $region63: #{dcdetector_forward.2} parent=11 // pred_region
          _
        $region64: #{dcdetector_forward.2} parent=11 // pred_fallthru
          _
        // Predicated region
        $region65: #{dcdetector_forward.2} parent=11 // pred_check
          %p513 = pneg %p399
        $region66: #{dcdetector_forward.2} parent=11 // pred_check_branch
          %515 = sbr.rel (%p513) target = $region68
        $region67: #{dcdetector_forward.2} parent=11 // pred_region
          %s517 = ssub.s32 16, 16
          %518 = vsyncadd [#allocation5], %s517
          %s520 = sshll.u32 [#allocation4], 4
          %s521 = int_to_ptr.vmem [resolvable:$true] %s520
          %523 = dma.hbm_to_vmem [thread:$0]  %s16, 16, %s521, [#allocation5]
        $region68: #{dcdetector_forward.2} parent=11 // pred_fallthru
          _
      $region12: #{dcdetector_forward.2} parent=5 // pred_fallthru
        _
      %p524 = scmp.lt.s32.totalorder %s27, 2
      // Predicated region
      $region69: #{dcdetector_forward.2} parent=5 // pred_check
        %p525 = pneg %p524
      $region70: #{dcdetector_forward.2} parent=5 // pred_check_branch
        %527 = sbr.rel (%p525) target = $region72
      $region71: #{dcdetector_forward.2} parent=5 // pred_region
        // Predicated region
        $region73: #{dcdetector_forward.2} parent=71 // pred_check
          %p528 = pneg %p47
        $region74: #{dcdetector_forward.2} parent=71 // pred_check_branch
          %530 = sbr.rel (%p528) target = $region76
        $region75: #{dcdetector_forward.2} parent=71 // pred_region
          %p531 = scmp.lt.s32.totalorder %s27, 1
          %s532 = scalar_select %p531, %s27, 1
          %s533 = smul.addr %s532, 4
          %s534 = scalar_lea.vmem %s0, %s533
        $region76: #{dcdetector_forward.2} parent=71 // pred_fallthru
          _
        // Predicated region
        $region77: #{dcdetector_forward.2} parent=71 // pred_check
          %p535 = pneg %p73
        $region78: #{dcdetector_forward.2} parent=71 // pred_check_branch
          %537 = sbr.rel (%p535) target = $region80
        $region79: #{dcdetector_forward.2} parent=71 // pred_region
          %p538 = scmp.lt.s32.totalorder %s27, 1
          %s539 = scalar_select %p538, %s27, 1
          %s540 = smul.addr %s539, 4
          %s541 = smul.addr %s540, 8
          %s542 = scalar_lea.vmem %s1, %s541
        $region80: #{dcdetector_forward.2} parent=71 // pred_fallthru
          _
        // Predicated region
        $region81: #{dcdetector_forward.2} parent=71 // pred_check
          %p543 = pneg %p204
        $region82: #{dcdetector_forward.2} parent=71 // pred_check_branch
          %545 = sbr.rel (%p543) target = $region84
        $region83: #{dcdetector_forward.2} parent=71 // pred_region
          %p546 = scmp.lt.s32.totalorder %s27, 1
          %s547 = scalar_select %p546, %s27, 1
          %s548 = smul.addr %s547, 8
          %s549 = scalar_lea.vmem %s7, %s548
        $region84: #{dcdetector_forward.2} parent=71 // pred_fallthru
          _
      $region72: #{dcdetector_forward.2} parent=5 // pred_fallthru
        _
      %p550 = scmp.le.s32.totalorder 1, %s27
      %p551 = scmp.lt.s32.totalorder %s27, 3
      %p552 = pnand %p550, %p551
      %p553 = pneg %p552
      // Predicated region
      $region85: #{dcdetector_forward.2} parent=5 // pred_check
        _
      $region86: #{dcdetector_forward.2} parent=5 // pred_check_branch
        %555 = sbr.rel (%p552) target = $region88
      $region87: #{dcdetector_forward.2} parent=5 // pred_region
        %s556 = ssub.s32 %s27, 1
        // Predicated region
        $region89: #{dcdetector_forward.2} parent=87 // pred_check
          %p557 = pneg %p163
        $region90: #{dcdetector_forward.2} parent=87 // pred_check_branch
          %559 = sbr.rel (%p557) target = $region92
        $region91: #{dcdetector_forward.2} parent=87 // pred_region
          %560 = dma.done [#allocation3], 128
        $region92: #{dcdetector_forward.2} parent=87 // pred_fallthru
          _
        // Predicated region
        $region93: #{dcdetector_forward.2} parent=87 // pred_check
          %p561 = pneg %p399
        $region94: #{dcdetector_forward.2} parent=87 // pred_check_branch
          %563 = sbr.rel (%p561) target = $region96
        $region95: #{dcdetector_forward.2} parent=87 // pred_region
          %564 = dma.done [#allocation5], 16
        $region96: #{dcdetector_forward.2} parent=87 // pred_fallthru
          _
        %p565 = scmp.lt.s32.totalorder %s32, 1
        %s566 = scalar_select %p565, %s32, 1
        %s567 = smul.addr %s566, 4
        %s568 = scalar_lea.vmem %s0, %s567
        %p569 = pneg %p53
        %p570 = pneg %p50
        %p571 = scmp.lt.s32.totalorder %s32, 1
        %s572 = scalar_select %p571, %s32, 1
        %s573 = smul.addr %s572, 4
        %s574 = smul.addr %s573, 8
        %s575 = scalar_lea.vmem %s1, %s574
        %p576 = pneg %p79
        %p577 = pneg %p76
        %p578 = pneg %p100
        %p579 = pneg %p97
        %p580 = pneg %p121
        %p581 = pneg %p118
        %p582 = pneg %p142
        %p583 = pneg %p139
        %p584 = pneg %p163
        %p585 = pneg %p160
        %p586 = pneg %p184
        %p587 = pneg %p181
        %p588 = scmp.lt.s32.totalorder %s32, 1
        %s589 = scalar_select %p588, %s32, 1
        %s590 = smul.addr %s589, 8
        %s591 = scalar_lea.vmem %s7, %s590
        %p592 = pneg %p210
        %p593 = pneg %p207
        %p594 = pneg %p231
        %p595 = pneg %p228
        %p596 = pneg %p252
        %p597 = pneg %p249
        %p598 = pneg %p273
        %p599 = pneg %p270
        %p600 = pneg %p294
        %p601 = pneg %p291
        %p602 = pneg %p315
        %p603 = pneg %p312
        %p604 = pneg %p336
        %p605 = pneg %p333
        %p606 = pneg %p357
        %p607 = pneg %p354
        %p608 = pneg %p378
        %p609 = pneg %p375
        %p610 = pneg %p399
        %p611 = pneg %p396
        %p612 = pneg %p425
        %p613 = pneg %p422
        %p614 = scmp.lt.s32.totalorder %s32, 1
        %s615 = scalar_select %p614, %s32, 1
        %s616 = smul.addr %s615, 2
        %s617 = smul.addr %s616, 8
        %s618 = scalar_lea.vmem %s17, %s617
        %p619 = pneg %p451
        %p620 = pneg %p448
        %p621 = scmp.lt.s32.totalorder %s32, 1
        %s622 = scalar_select %p621, %s32, 1
        %s623 = smul.addr %s622, 2
        %s624 = smul.addr %s623, 2
        %s625 = scalar_lea.vmem %s18, %s624
        %p626 = scmp.lt.s32.totalorder %s32, 1
        %s627 = scalar_select %p626, %s32, 1
        %s628 = smul.addr %s627, 4
        %s629 = scalar_lea.vmem %s0, %s628
        %p630 = scmp.lt.s32.totalorder %s32, 1
        %s631 = scalar_select %p630, %s32, 1
        %s632 = smul.addr %s631, 4
        %s633 = smul.addr %s632, 8
        %s634 = scalar_lea.vmem %s1, %s633
        %p635 = scmp.lt.s32.totalorder %s32, 1
        %s636 = scalar_select %p635, %s32, 1
        %s637 = smul.addr %s636, 8
        %s638 = scalar_lea.vmem %s7, %s637
        %p639 = scmp.lt.s32.totalorder %s32, 1
        %s640 = scalar_select %p639, %s32, 1
        %s641 = smul.addr %s640, 2
        %s642 = smul.addr %s641, 8
        %s643 = scalar_lea.vmem %s17, %s642
        %p644 = scmp.lt.s32.totalorder %s32, 1
        %s645 = scalar_select %p644, %s32, 1
        %s646 = smul.addr %s645, 2
        %s647 = smul.addr %s646, 2
        %s648 = scalar_lea.vmem %s18, %s647
        %v649 = vld [vmem:[%s629] sm:$0xf]
        %vm650 = vcmask 125952
        %v651 = vsel %vm650, %v649, 0.0
        %652 = vadd.xlane.f32.xlu0 %v651
        %v653 = vpop.xlane.xlu0 %652
        %v654 = vrcp.pop 16.0
        %v655 = vmul.f32 %v653, %v654
        %v656 = vsub.f32 %v649, %v655
        %v657 = vmul.f32 %v656, %v656
        %v658 = vsel %vm650, %v657, 0.0
        %659 = vadd.xlane.f32.xlu0 %v658
        %v660 = vpop.xlane.xlu0 %659
        %v661 = vmul.f32 %v660, %v654
        %v662 = vadd.f32 %v661, 1e-05
        %v663 = vrsqrt.pop %v662
        %v664 = vld [vmem:[%s634] sm:$0xff]
        %v665 = vld [vmem:[%s634 + $0x8] sm:$0xff]
        %v666 = vld [vmem:[%s634 + $0x10] sm:$0xff]
        %v667 = vld [vmem:[%s634 + $0x18] sm:$0xff]
        %v668 = vld [vmem:[%s2] sm:$0xff]
        %v669 = vld [vmem:[%s2 + $0x8] sm:$0xff]
        %v670 = vld [vmem:[%s2 + $0x10] sm:$0xff]
        %v671 = vld [vmem:[%s2 + $0x18] sm:$0xff]
        %vm672 = vcmask 31744
        %v674 = vsel %vm672, %v668, 0
        %v677 = vsel %vm672, %v669, 0
        %v680 = vsel %vm672, %v670, 0
        %v683 = vsel %vm672, %v671, 0
        %vm685 = vcmask 1043456
        %v687 = vsel %vm685, %v655, 0
        %689 = vmatprep.subr.mxu0 0.0
        %690 = vmatpush1.msra.mxu0 %v687
        %691 = vmatprep.subr.mxu0 0.0
        %692 = vmatpush1.msra.mxu0 0.0
        %693 = vmatprep.subr.mxu0 0.0
        %694 = vmatpush1.msra.mxu0 0.0
        %695 = vmatprep.subr.mxu0 0.0
        %696 = vmatpush1.msra.mxu0 0.0
        %697 = vmatprep.subr.mxu0 0.0
        %698 = vmatpush1.msra.mxu0 0.0
        %699 = vmatprep.subr.mxu0 0.0
        %700 = vmatpush1.msra.mxu0 0.0
        %701 = vmatprep.subr.mxu0 0.0
        %702 = vmatpush1.msra.mxu0 0.0
        %703 = vmatprep.subr.mxu0 0.0
        %704 = vmatpush1.msra.mxu0 0.0
        %705 = vmatprep.subr.mxu0 0.0
        %706 = vmatpush1.msra.mxu0 0.0
        %707 = vmatprep.subr.mxu0 0.0
        %708 = vmatpush1.msra.mxu0 0.0
        %709 = vmatprep.subr.mxu0 0.0
        %710 = vmatpush1.msra.mxu0 0.0
        %711 = vmatprep.subr.mxu0 0.0
        %712 = vmatpush1.msra.mxu0 0.0
        %713 = vmatprep.subr.mxu0 0.0
        %714 = vmatpush1.msra.mxu0 0.0
        %715 = vmatprep.subr.mxu0 0.0
        %716 = vmatpush1.msra.mxu0 0.0
        %717 = vmatprep.subr.mxu0 0.0
        %718 = vmatpush1.msra.mxu0 0.0
        %719 = vmatprep.subr.mxu0 0.0
        %720 = vmatpush1.msra.mxu0 0.0
        %721 = vmatprep.subr.mxu0 0.0
        %722 = vmatpush1.msra.mxu0 0.0
        %723 = vmatprep.subr.mxu0 0.0
        %724 = vmatpush1.msra.mxu0 0.0
        %725 = vmatprep.subr.mxu0 0.0
        %726 = vmatpush1.msra.mxu0 0.0
        %727 = vmatprep.subr.mxu0 0.0
        %728 = vmatpush1.msra.mxu0 0.0
        %729 = vmatprep.subr.mxu0 0.0
        %730 = vmatpush1.msra.mxu0 0.0
        %731 = vmatprep.subr.mxu0 0.0
        %732 = vmatpush1.msra.mxu0 0.0
        %733 = vmatprep.subr.mxu0 0.0
        %734 = vmatpush1.msra.mxu0 0.0
        %735 = vmatprep.subr.mxu0 0.0
        %736 = vmatpush1.msra.mxu0 0.0
        %737 = vmatprep.subr.mxu0 0.0
        %738 = vmatpush1.msra.mxu0 0.0
        %739 = vmatprep.subr.mxu0 0.0
        %740 = vmatpush1.msra.mxu0 0.0
        %741 = vmatprep.subr.mxu0 0.0
        %742 = vmatpush1.msra.mxu0 0.0
        %743 = vmatprep.subr.mxu0 0.0
        %744 = vmatpush1.msra.mxu0 0.0
        %745 = vmatprep.subr.mxu0 0.0
        %746 = vmatpush1.msra.mxu0 0.0
        %747 = vmatprep.subr.mxu0 0.0
        %748 = vmatpush1.msra.mxu0 0.0
        %749 = vmatprep.subr.mxu0 0.0
        %750 = vmatpush1.msra.mxu0 0.0
        %751 = vmatprep.subr.mxu0 0.0
        %752 = vmatpush1.msra.mxu0 0.0
        %753 = vmatprep.mubr.f32.mxu0 0.0
        %754 = vmatmul.mubr.f32.gmra.mrb[0].mxu0 %v674
        %v755 = vpop.f32.mrb[0].mxu0
        %v756 = vadd.f32 0.0, %v755
        %v757 = vpop.f32.mrb[0].mxu0
        %758 = vmatprep.mubr.f32.mxu0 0.0
        %759 = vmatmul.mubr.f32.gmra.mrb[0].mxu0 %v677
        %v760 = vpop.f32.mrb[0].mxu0
        %v761 = vadd.f32 0.0, %v760
        %v762 = vpop.f32.mrb[0].mxu0
        %763 = vmatprep.mubr.f32.mxu0 0.0
        %764 = vmatmul.mubr.f32.gmra.mrb[0].mxu0 %v680
        %v765 = vpop.f32.mrb[0].mxu0
        %v766 = vadd.f32 0.0, %v765
        %v767 = vpop.f32.mrb[0].mxu0
        %768 = vmatprep.mubr.f32.mxu0 0.0
        %769 = vmatmul.mubr.f32.gmra.mrb[0].mxu0 %v683
        %v770 = vpop.f32.mrb[0].mxu0
        %v771 = vadd.f32 0.0, %v770
        %v772 = vpop.f32.mrb[0].mxu0
        %773 = vdwg.mxu0
        %v775 = vsel %vm685, %v663, 0
        %777 = vmatprep.subr.mxu0 0.0
        %778 = vmatpush1.msra.mxu0 %v775
        %779 = vmatprep.subr.mxu0 0.0
        %780 = vmatpush1.msra.mxu0 0.0
        %781 = vmatprep.subr.mxu0 0.0
        %782 = vmatpush1.msra.mxu0 0.0
        %783 = vmatprep.subr.mxu0 0.0
        %784 = vmatpush1.msra.mxu0 0.0
        %785 = vmatprep.subr.mxu0 0.0
        %786 = vmatpush1.msra.mxu0 0.0
        %787 = vmatprep.subr.mxu0 0.0
        %788 = vmatpush1.msra.mxu0 0.0
        %789 = vmatprep.subr.mxu0 0.0
        %790 = vmatpush1.msra.mxu0 0.0
        %791 = vmatprep.subr.mxu0 0.0
        %792 = vmatpush1.msra.mxu0 0.0
        %793 = vmatprep.subr.mxu0 0.0
        %794 = vmatpush1.msra.mxu0 0.0
        %795 = vmatprep.subr.mxu0 0.0
        %796 = vmatpush1.msra.mxu0 0.0
        %797 = vmatprep.subr.mxu0 0.0
        %798 = vmatpush1.msra.mxu0 0.0
        %799 = vmatprep.subr.mxu0 0.0
        %800 = vmatpush1.msra.mxu0 0.0
        %801 = vmatprep.subr.mxu0 0.0
        %802 = vmatpush1.msra.mxu0 0.0
        %803 = vmatprep.subr.mxu0 0.0
        %804 = vmatpush1.msra.mxu0 0.0
        %805 = vmatprep.subr.mxu0 0.0
        %806 = vmatpush1.msra.mxu0 0.0
        %807 = vmatprep.subr.mxu0 0.0
        %808 = vmatpush1.msra.mxu0 0.0
        %809 = vmatprep.subr.mxu0 0.0
        %810 = vmatpush1.msra.mxu0 0.0
        %811 = vmatprep.subr.mxu0 0.0
        %812 = vmatpush1.msra.mxu0 0.0
        %813 = vmatprep.subr.mxu0 0.0
        %814 = vmatpush1.msra.mxu0 0.0
        %815 = vmatprep.subr.mxu0 0.0
        %816 = vmatpush1.msra.mxu0 0.0
        %817 = vmatprep.subr.mxu0 0.0
        %818 = vmatpush1.msra.mxu0 0.0
        %819 = vmatprep.subr.mxu0 0.0
        %820 = vmatpush1.msra.mxu0 0.0
        %821 = vmatprep.subr.mxu0 0.0
        %822 = vmatpush1.msra.mxu0 0.0
        %823 = vmatprep.subr.mxu0 0.0
        %824 = vmatpush1.msra.mxu0 0.0
        %825 = vmatprep.subr.mxu0 0.0
        %826 = vmatpush1.msra.mxu0 0.0
        %827 = vmatprep.subr.mxu0 0.0
        %828 = vmatpush1.msra.mxu0 0.0
        %829 = vmatprep.subr.mxu0 0.0
        %830 = vmatpush1.msra.mxu0 0.0
        %831 = vmatprep.subr.mxu0 0.0
        %832 = vmatpush1.msra.mxu0 0.0
        %833 = vmatprep.subr.mxu0 0.0
        %834 = vmatpush1.msra.mxu0 0.0
        %835 = vmatprep.subr.mxu0 0.0
        %836 = vmatpush1.msra.mxu0 0.0
        %837 = vmatprep.subr.mxu0 0.0
        %838 = vmatpush1.msra.mxu0 0.0
        %839 = vmatprep.subr.mxu0 0.0
        %840 = vmatpush1.msra.mxu0 0.0
        %841 = vmatprep.mubr.f32.mxu0 0.0
        %842 = vmatmul.mubr.f32.gmra.mrb[0].mxu0 %v674
        %v843 = vpop.f32.mrb[0].mxu0
        %v844 = vadd.f32 0.0, %v843
        %v845 = vpop.f32.mrb[0].mxu0
        %846 = vmatprep.mubr.f32.mxu0 0.0
        %847 = vmatmul.mubr.f32.gmra.mrb[0].mxu0 %v677
        %v848 = vpop.f32.mrb[0].mxu0
        %v849 = vadd.f32 0.0, %v848
        %v850 = vpop.f32.mrb[0].mxu0
        %851 = vmatprep.mubr.f32.mxu0 0.0
        %852 = vmatmul.mubr.f32.gmra.mrb[0].mxu0 %v680
        %v853 = vpop.f32.mrb[0].mxu0
        %v854 = vadd.f32 0.0, %v853
        %v855 = vpop.f32.mrb[0].mxu0
        %856 = vmatprep.mubr.f32.mxu0 0.0
        %857 = vmatmul.mubr.f32.gmra.mrb[0].mxu0 %v683
        %v858 = vpop.f32.mrb[0].mxu0
        %v859 = vadd.f32 0.0, %v858
        %v860 = vpop.f32.mrb[0].mxu0
        %861 = vdwg.mxu0
        %863 = vset.pattern.permute.xlu0 0
        %864 = vperm.xlu0 %863, %v756
        %v865 = vpop.permute.xlu0 %864
        %868 = vset.pattern.permute.xlu0 0
        %869 = vperm.xlu0 %868, %v761
        %v870 = vpop.permute.xlu0 %869
        %873 = vset.pattern.permute.xlu0 0
        %874 = vperm.xlu0 %873, %v766
        %v875 = vpop.permute.xlu0 %874
        %878 = vset.pattern.permute.xlu0 0
        %879 = vperm.xlu0 %878, %v771
        %v880 = vpop.permute.xlu0 %879
        %v882 = vsub.f32 %v664, %v865
        %v883 = vsub.f32 %v665, %v870
        %v884 = vsub.f32 %v666, %v875
        %v885 = vsub.f32 %v667, %v880
        %887 = vset.pattern.permute.xlu0 0
        %888 = vperm.xlu0 %887, %v844
        %v889 = vpop.permute.xlu0 %888
        %892 = vset.pattern.permute.xlu0 0
        %893 = vperm.xlu0 %892, %v849
        %v894 = vpop.permute.xlu0 %893
        %897 = vset.pattern.permute.xlu0 0
        %898 = vperm.xlu0 %897, %v854
        %v899 = vpop.permute.xlu0 %898
        %902 = vset.pattern.permute.xlu0 0
        %903 = vperm.xlu0 %902, %v859
        %v904 = vpop.permute.xlu0 %903
        %v906 = vmul.f32 %v882, %v889
        %v907 = vmul.f32 %v883, %v894
        %v908 = vmul.f32 %v884, %v899
        %v909 = vmul.f32 %v885, %v904
        %v910 = vld [vmem:[%s3] sm:$0xff]
        %v911 = vld [vmem:[%s3 + $0x8] sm:$0xff]
        %v912 = vld [vmem:[%s3 + $0x10] sm:$0xff]
        %v913 = vld [vmem:[%s3 + $0x18] sm:$0xff]
        %vm914 = vcmask 261120
        %v916 = vsel %vm914, %v910, 0
        %v919 = vsel %vm914, %v911, 0
        %v922 = vsel %vm914, %v912, 0
        %v925 = vsel %vm914, %v913, 0
        %927 = vmatprep.subr.mxu0 0.0
        %928 = vmatpush1.msra.mxu0 %v906
        %929 = vmatprep.subr.mxu0 0.0
        %930 = vmatpush1.msra.mxu0 %v907
        %931 = vmatprep.subr.mxu0 0.0
        %932 = vmatpush1.msra.mxu0 %v908
        %933 = vmatprep.subr.mxu0 0.0
        %934 = vmatpush1.msra.mxu0 %v909
        %935 = vmatprep.subr.mxu0 0.0
        %936 = vmatpush1.msra.mxu0 0.0
        %937 = vmatprep.subr.mxu0 0.0
        %938 = vmatpush1.msra.mxu0 0.0
        %939 = vmatprep.subr.mxu0 0.0
        %940 = vmatpush1.msra.mxu0 0.0
        %941 = vmatprep.subr.mxu0 0.0
        %942 = vmatpush1.msra.mxu0 0.0
        %943 = vmatprep.subr.mxu0 0.0
        %944 = vmatpush1.msra.mxu0 0.0
        %945 = vmatprep.subr.mxu0 0.0
        %946 = vmatpush1.msra.mxu0 0.0
        %947 = vmatprep.subr.mxu0 0.0
        %948 = vmatpush1.msra.mxu0 0.0
        %949 = vmatprep.subr.mxu0 0.0
        %950 = vmatpush1.msra.mxu0 0.0
        %951 = vmatprep.subr.mxu0 0.0
        %952 = vmatpush1.msra.mxu0 0.0
        %953 = vmatprep.subr.mxu0 0.0
        %954 = vmatpush1.msra.mxu0 0.0
        %955 = vmatprep.subr.mxu0 0.0
        %956 = vmatpush1.msra.mxu0 0.0
        %957 = vmatprep.subr.mxu0 0.0
        %958 = vmatpush1.msra.mxu0 0.0
        %959 = vmatprep.subr.mxu0 0.0
        %960 = vmatpush1.msra.mxu0 0.0
        %961 = vmatprep.subr.mxu0 0.0
        %962 = vmatpush1.msra.mxu0 0.0
        %963 = vmatprep.subr.mxu0 0.0
        %964 = vmatpush1.msra.mxu0 0.0
        %965 = vmatprep.subr.mxu0 0.0
        %966 = vmatpush1.msra.mxu0 0.0
        %967 = vmatprep.subr.mxu0 0.0
        %968 = vmatpush1.msra.mxu0 0.0
        %969 = vmatprep.subr.mxu0 0.0
        %970 = vmatpush1.msra.mxu0 0.0
        %971 = vmatprep.subr.mxu0 0.0
        %972 = vmatpush1.msra.mxu0 0.0
        %973 = vmatprep.subr.mxu0 0.0
        %974 = vmatpush1.msra.mxu0 0.0
        %975 = vmatprep.subr.mxu0 0.0
        %976 = vmatpush1.msra.mxu0 0.0
        %977 = vmatprep.subr.mxu0 0.0
        %978 = vmatpush1.msra.mxu0 0.0
        %979 = vmatprep.subr.mxu0 0.0
        %980 = vmatpush1.msra.mxu0 0.0
        %981 = vmatprep.subr.mxu0 0.0
        %982 = vmatpush1.msra.mxu0 0.0
        %983 = vmatprep.subr.mxu0 0.0
        %984 = vmatpush1.msra.mxu0 0.0
        %985 = vmatprep.subr.mxu0 0.0
        %986 = vmatpush1.msra.mxu0 0.0
        %987 = vmatprep.subr.mxu0 0.0
        %988 = vmatpush1.msra.mxu0 0.0
        %989 = vmatprep.subr.mxu0 0.0
        %990 = vmatpush1.msra.mxu0 0.0
        %991 = vmatprep.mubr.f32.mxu0 0.0
        %992 = vmatmul.mubr.f32.gmra.mrb[0].mxu0 %v916
        %v993 = vpop.f32.mrb[0].mxu0
        %v994 = vadd.f32 0.0, %v993
        %v995 = vpop.f32.mrb[0].mxu0
        %996 = vmatprep.mubr.f32.mxu0 0.0
        %997 = vmatmul.mubr.f32.gmra.mrb[0].mxu0 %v919
        %v998 = vpop.f32.mrb[0].mxu0
        %v999 = vadd.f32 0.0, %v998
        %v1000 = vpop.f32.mrb[0].mxu0
        %1001 = vmatprep.mubr.f32.mxu0 0.0
        %1002 = vmatmul.mubr.f32.gmra.mrb[0].mxu0 %v922
        %v1003 = vpop.f32.mrb[0].mxu0
        %v1004 = vadd.f32 0.0, %v1003
        %v1005 = vpop.f32.mrb[0].mxu0
        %1006 = vmatprep.mubr.f32.mxu0 0.0
        %1007 = vmatmul.mubr.f32.gmra.mrb[0].mxu0 %v925
        %v1008 = vpop.f32.mrb[0].mxu0
        %v1009 = vadd.f32 0.0, %v1008
        %v1010 = vpop.f32.mrb[0].mxu0
        %1011 = vdwg.mxu0
        %v1012 = vld [vmem:[%s4] sm:$0xff]
        %v1013 = vld [vmem:[%s4 + $0x8] sm:$0xff]
        %v1014 = vld [vmem:[%s4 + $0x10] sm:$0xff]
        %v1015 = vld [vmem:[%s4 + $0x18] sm:$0xff]
        %v1017 = vsel %vm914, %v1012, 0
        %v1020 = vsel %vm914, %v1013, 0
        %v1023 = vsel %vm914, %v1014, 0
        %v1026 = vsel %vm914, %v1015, 0
        %1028 = vmatprep.subr.mxu0 0.0
        %1029 = vmatpush1.msra.mxu0 %v906
        %1030 = vmatprep.subr.mxu0 0.0
        %1031 = vmatpush1.msra.mxu0 %v907
        %1032 = vmatprep.subr.mxu0 0.0
        %1033 = vmatpush1.msra.mxu0 %v908
        %1034 = vmatprep.subr.mxu0 0.0
        %1035 = vmatpush1.msra.mxu0 %v909
        %1036 = vmatprep.subr.mxu0 0.0
        %1037 = vmatpush1.msra.mxu0 0.0
        %1038 = vmatprep.subr.mxu0 0.0
        %1039 = vmatpush1.msra.mxu0 0.0
        %1040 = vmatprep.subr.mxu0 0.0
        %1041 = vmatpush1.msra.mxu0 0.0
        %1042 = vmatprep.subr.mxu0 0.0
        %1043 = vmatpush1.msra.mxu0 0.0
        %1044 = vmatprep.subr.mxu0 0.0
        %1045 = vmatpush1.msra.mxu0 0.0
        %1046 = vmatprep.subr.mxu0 0.0
        %1047 = vmatpush1.msra.mxu0 0.0
        %1048 = vmatprep.subr.mxu0 0.0
        %1049 = vmatpush1.msra.mxu0 0.0
        %1050 = vmatprep.subr.mxu0 0.0
        %1051 = vmatpush1.msra.mxu0 0.0
        %1052 = vmatprep.subr.mxu0 0.0
        %1053 = vmatpush1.msra.mxu0 0.0
        %1054 = vmatprep.subr.mxu0 0.0
        %1055 = vmatpush1.msra.mxu0 0.0
        %1056 = vmatprep.subr.mxu0 0.0
        %1057 = vmatpush1.msra.mxu0 0.0
        %1058 = vmatprep.subr.mxu0 0.0
        %1059 = vmatpush1.msra.mxu0 0.0
        %1060 = vmatprep.subr.mxu0 0.0
        %1061 = vmatpush1.msra.mxu0 0.0
        %1062 = vmatprep.subr.mxu0 0.0
        %1063 = vmatpush1.msra.mxu0 0.0
        %1064 = vmatprep.subr.mxu0 0.0
        %1065 = vmatpush1.msra.mxu0 0.0
        %1066 = vmatprep.subr.mxu0 0.0
        %1067 = vmatpush1.msra.mxu0 0.0
        %1068 = vmatprep.subr.mxu0 0.0
        %1069 = vmatpush1.msra.mxu0 0.0
        %1070 = vmatprep.subr.mxu0 0.0
        %1071 = vmatpush1.msra.mxu0 0.0
        %1072 = vmatprep.subr.mxu0 0.0
        %1073 = vmatpush1.msra.mxu0 0.0
        %1074 = vmatprep.subr.mxu0 0.0
        %1075 = vmatpush1.msra.mxu0 0.0
        %1076 = vmatprep.subr.mxu0 0.0
        %1077 = vmatpush1.msra.mxu0 0.0
        %1078 = vmatprep.subr.mxu0 0.0
        %1079 = vmatpush1.msra.mxu0 0.0
        %1080 = vmatprep.subr.mxu0 0.0
        %1081 = vmatpush1.msra.mxu0 0.0
        %1082 = vmatprep.subr.mxu0 0.0
        %1083 = vmatpush1.msra.mxu0 0.0
        %1084 = vmatprep.subr.mxu0 0.0
        %1085 = vmatpush1.msra.mxu0 0.0
        %1086 = vmatprep.subr.mxu0 0.0
        %1087 = vmatpush1.msra.mxu0 0.0
        %1088 = vmatprep.subr.mxu0 0.0
        %1089 = vmatpush1.msra.mxu0 0.0
        %1090 = vmatprep.subr.mxu0 0.0
        %1091 = vmatpush1.msra.mxu0 0.0
        %1092 = vmatprep.mubr.f32.mxu0 0.0
        %1093 = vmatmul.mubr.f32.gmra.mrb[0].mxu0 %v1017
        %v1094 = vpop.f32.mrb[0].mxu0
        %v1095 = vadd.f32 0.0, %v1094
        %v1096 = vpop.f32.mrb[0].mxu0
        %1097 = vmatprep.mubr.f32.mxu0 0.0
        %1098 = vmatmul.mubr.f32.gmra.mrb[0].mxu0 %v1020
        %v1099 = vpop.f32.mrb[0].mxu0
        %v1100 = vadd.f32 0.0, %v1099
        %v1101 = vpop.f32.mrb[0].mxu0
        %1102 = vmatprep.mubr.f32.mxu0 0.0
        %1103 = vmatmul.mubr.f32.gmra.mrb[0].mxu0 %v1023
        %v1104 = vpop.f32.mrb[0].mxu0
        %v1105 = vadd.f32 0.0, %v1104
        %v1106 = vpop.f32.mrb[0].mxu0
        %1107 = vmatprep.mubr.f32.mxu0 0.0
        %1108 = vmatmul.mubr.f32.gmra.mrb[0].mxu0 %v1026
        %v1109 = vpop.f32.mrb[0].mxu0
        %v1110 = vadd.f32 0.0, %v1109
        %v1111 = vpop.f32.mrb[0].mxu0
        %1112 = vdwg.mxu0
        %v1113 = vld [vmem:[#allocation2] sm:$0x3f]
        %v1115 = vrot.slane %v1113, 2
        %vm1116 = vcmask 15360
        %v1118 = vsel %vm1116, %v906, 0
        %v1121 = vsel %vm1116, %v907, 0
        %v1124 = vsel %vm1116, %v908, 0
        %v1127 = vsel %vm1116, %v909, 0
        %vm1129 = vcmask 1041408
        %v1130 = vsel %vm1129, %v1115, 0
        %1132 = vmatprep.subr.mxu0 0.0
        %1133 = vmatpush1.msra.mxu0 %v1130
        %1134 = vmatprep.subr.mxu0 0.0
        %1135 = vmatpush1.msra.mxu0 0.0
        %1136 = vmatprep.subr.mxu0 0.0
        %1137 = vmatpush1.msra.mxu0 0.0
        %1138 = vmatprep.subr.mxu0 0.0
        %1139 = vmatpush1.msra.mxu0 0.0
        %1140 = vmatprep.subr.mxu0 0.0
        %1141 = vmatpush1.msra.mxu0 0.0
        %1142 = vmatprep.subr.mxu0 0.0
        %1143 = vmatpush1.msra.mxu0 0.0
        %1144 = vmatprep.subr.mxu0 0.0
        %1145 = vmatpush1.msra.mxu0 0.0
        %1146 = vmatprep.subr.mxu0 0.0
        %1147 = vmatpush1.msra.mxu0 0.0
        %1148 = vmatprep.subr.mxu0 0.0
        %1149 = vmatpush1.msra.mxu0 0.0
        %1150 = vmatprep.subr.mxu0 0.0
        %1151 = vmatpush1.msra.mxu0 0.0
        %1152 = vmatprep.subr.mxu0 0.0
        %1153 = vmatpush1.msra.mxu0 0.0
        %1154 = vmatprep.subr.mxu0 0.0
        %1155 = vmatpush1.msra.mxu0 0.0
        %1156 = vmatprep.subr.mxu0 0.0
        %1157 = vmatpush1.msra.mxu0 0.0
        %1158 = vmatprep.subr.mxu0 0.0
        %1159 = vmatpush1.msra.mxu0 0.0
        %1160 = vmatprep.subr.mxu0 0.0
        %1161 = vmatpush1.msra.mxu0 0.0
        %1162 = vmatprep.subr.mxu0 0.0
        %1163 = vmatpush1.msra.mxu0 0.0
        %1164 = vmatprep.subr.mxu0 0.0
        %1165 = vmatpush1.msra.mxu0 0.0
        %1166 = vmatprep.subr.mxu0 0.0
        %1167 = vmatpush1.msra.mxu0 0.0
        %1168 = vmatprep.subr.mxu0 0.0
        %1169 = vmatpush1.msra.mxu0 0.0
        %1170 = vmatprep.subr.mxu0 0.0
        %1171 = vmatpush1.msra.mxu0 0.0
        %1172 = vmatprep.subr.mxu0 0.0
        %1173 = vmatpush1.msra.mxu0 0.0
        %1174 = vmatprep.subr.mxu0 0.0
        %1175 = vmatpush1.msra.mxu0 0.0
        %1176 = vmatprep.subr.mxu0 0.0
        %1177 = vmatpush1.msra.mxu0 0.0
        %1178 = vmatprep.subr.mxu0 0.0
        %1179 = vmatpush1.msra.mxu0 0.0
        %1180 = vmatprep.subr.mxu0 0.0
        %1181 = vmatpush1.msra.mxu0 0.0
        %1182 = vmatprep.subr.mxu0 0.0
        %1183 = vmatpush1.msra.mxu0 0.0
        %1184 = vmatprep.subr.mxu0 0.0
        %1185 = vmatpush1.msra.mxu0 0.0
        %1186 = vmatprep.subr.mxu0 0.0
        %1187 = vmatpush1.msra.mxu0 0.0
        %1188 = vmatprep.subr.mxu0 0.0
        %1189 = vmatpush1.msra.mxu0 0.0
        %1190 = vmatprep.subr.mxu0 0.0
        %1191 = vmatpush1.msra.mxu0 0.0
        %1192 = vmatprep.subr.mxu0 0.0
        %1193 = vmatpush1.msra.mxu0 0.0
        %1194 = vmatprep.subr.mxu0 0.0
        %1195 = vmatpush1.msra.mxu0 0.0
        %1196 = vmatprep.mubr.f32.mxu0 0.0
        %1197 = vmatmul.mubr.f32.gmra.mrb[0].mxu0 %v1118
        %v1198 = vpop.f32.mrb[0].mxu0
        %v1199 = vadd.f32 0.0, %v1198
        %v1200 = vpop.f32.mrb[0].mxu0
        %1201 = vmatprep.mubr.f32.mxu0 0.0
        %1202 = vmatmul.mubr.f32.gmra.mrb[0].mxu0 %v1121
        %v1203 = vpop.f32.mrb[0].mxu0
        %v1204 = vadd.f32 0.0, %v1203
        %v1205 = vpop.f32.mrb[0].mxu0
        %1206 = vmatprep.mubr.f32.mxu0 0.0
        %1207 = vmatmul.mubr.f32.gmra.mrb[0].mxu0 %v1124
        %v1208 = vpop.f32.mrb[0].mxu0
        %v1209 = vadd.f32 0.0, %v1208
        %v1210 = vpop.f32.mrb[0].mxu0
        %1211 = vmatprep.mubr.f32.mxu0 0.0
        %1212 = vmatmul.mubr.f32.gmra.mrb[0].mxu0 %v1127
        %v1213 = vpop.f32.mrb[0].mxu0
        %v1214 = vadd.f32 0.0, %v1213
        %v1215 = vpop.f32.mrb[0].mxu0
        %1216 = vdwg.mxu0
        %v1218 = vsel %vm1116, %v994, 0
        %v1221 = vsel %vm1116, %v999, 0
        %v1224 = vsel %vm1116, %v1004, 0
        %v1227 = vsel %vm1116, %v1009, 0
        %v1229 = vsel %vm1129, %v1113, 0
        %1231 = vmatprep.subr.mxu0 0.0
        %1232 = vmatpush1.msra.mxu0 %v1229
        %1233 = vmatprep.subr.mxu0 0.0
        %1234 = vmatpush1.msra.mxu0 0.0
        %1235 = vmatprep.subr.mxu0 0.0
        %1236 = vmatpush1.msra.mxu0 0.0
        %1237 = vmatprep.subr.mxu0 0.0
        %1238 = vmatpush1.msra.mxu0 0.0
        %1239 = vmatprep.subr.mxu0 0.0
        %1240 = vmatpush1.msra.mxu0 0.0
        %1241 = vmatprep.subr.mxu0 0.0
        %1242 = vmatpush1.msra.mxu0 0.0
        %1243 = vmatprep.subr.mxu0 0.0
        %1244 = vmatpush1.msra.mxu0 0.0
        %1245 = vmatprep.subr.mxu0 0.0
        %1246 = vmatpush1.msra.mxu0 0.0
        %1247 = vmatprep.subr.mxu0 0.0
        %1248 = vmatpush1.msra.mxu0 0.0
        %1249 = vmatprep.subr.mxu0 0.0
        %1250 = vmatpush1.msra.mxu0 0.0
        %1251 = vmatprep.subr.mxu0 0.0
        %1252 = vmatpush1.msra.mxu0 0.0
        %1253 = vmatprep.subr.mxu0 0.0
        %1254 = vmatpush1.msra.mxu0 0.0
        %1255 = vmatprep.subr.mxu0 0.0
        %1256 = vmatpush1.msra.mxu0 0.0
        %1257 = vmatprep.subr.mxu0 0.0
        %1258 = vmatpush1.msra.mxu0 0.0
        %1259 = vmatprep.subr.mxu0 0.0
        %1260 = vmatpush1.msra.mxu0 0.0
        %1261 = vmatprep.subr.mxu0 0.0
        %1262 = vmatpush1.msra.mxu0 0.0
        %1263 = vmatprep.subr.mxu0 0.0
        %1264 = vmatpush1.msra.mxu0 0.0
        %1265 = vmatprep.subr.mxu0 0.0
        %1266 = vmatpush1.msra.mxu0 0.0
        %1267 = vmatprep.subr.mxu0 0.0
        %1268 = vmatpush1.msra.mxu0 0.0
        %1269 = vmatprep.subr.mxu0 0.0
        %1270 = vmatpush1.msra.mxu0 0.0
        %1271 = vmatprep.subr.mxu0 0.0
        %1272 = vmatpush1.msra.mxu0 0.0
        %1273 = vmatprep.subr.mxu0 0.0
        %1274 = vmatpush1.msra.mxu0 0.0
        %1275 = vmatprep.subr.mxu0 0.0
        %1276 = vmatpush1.msra.mxu0 0.0
        %1277 = vmatprep.subr.mxu0 0.0
        %1278 = vmatpush1.msra.mxu0 0.0
        %1279 = vmatprep.subr.mxu0 0.0
        %1280 = vmatpush1.msra.mxu0 0.0
        %1281 = vmatprep.subr.mxu0 0.0
        %1282 = vmatpush1.msra.mxu0 0.0
        %1283 = vmatprep.subr.mxu0 0.0
        %1284 = vmatpush1.msra.mxu0 0.0
        %1285 = vmatprep.subr.mxu0 0.0
        %1286 = vmatpush1.msra.mxu0 0.0
        %1287 = vmatprep.subr.mxu0 0.0
        %1288 = vmatpush1.msra.mxu0 0.0
        %1289 = vmatprep.subr.mxu0 0.0
        %1290 = vmatpush1.msra.mxu0 0.0
        %1291 = vmatprep.subr.mxu0 0.0
        %1292 = vmatpush1.msra.mxu0 0.0
        %1293 = vmatprep.subr.mxu0 0.0
        %1294 = vmatpush1.msra.mxu0 0.0
        %1295 = vmatprep.mubr.f32.mxu0 0.0
        %1296 = vmatmul.mubr.f32.gmra.mrb[0].mxu0 %v1218
        %v1297 = vpop.f32.mrb[0].mxu0
        %v1298 = vadd.f32 %v1199, %v1297
        %v1299 = vpop.f32.mrb[0].mxu0
        %1300 = vmatprep.mubr.f32.mxu0 0.0
        %1301 = vmatmul.mubr.f32.gmra.mrb[0].mxu0 %v1221
        %v1302 = vpop.f32.mrb[0].mxu0
        %v1303 = vadd.f32 %v1204, %v1302
        %v1304 = vpop.f32.mrb[0].mxu0
        %1305 = vmatprep.mubr.f32.mxu0 0.0
        %1306 = vmatmul.mubr.f32.gmra.mrb[0].mxu0 %v1224
        %v1307 = vpop.f32.mrb[0].mxu0
        %v1308 = vadd.f32 %v1209, %v1307
        %v1309 = vpop.f32.mrb[0].mxu0
        %1310 = vmatprep.mubr.f32.mxu0 0.0
        %1311 = vmatmul.mubr.f32.gmra.mrb[0].mxu0 %v1227
        %v1312 = vpop.f32.mrb[0].mxu0
        %v1313 = vadd.f32 %v1214, %v1312
        %v1314 = vpop.f32.mrb[0].mxu0
        %1315 = vdwg.mxu0
        %v1316 = vrot.slane %v1113, 4
        %v1318 = vsel %vm1116, %v1095, 0
        %v1321 = vsel %vm1116, %v1100, 0
        %v1324 = vsel %vm1116, %v1105, 0
        %v1327 = vsel %vm1116, %v1110, 0
        %v1329 = vsel %vm1129, %v1316, 0
        %1331 = vmatprep.subr.mxu0 0.0
        %1332 = vmatpush1.msra.mxu0 %v1329
        %1333 = vmatprep.subr.mxu0 0.0
        %1334 = vmatpush1.msra.mxu0 0.0
        %1335 = vmatprep.subr.mxu0 0.0
        %1336 = vmatpush1.msra.mxu0 0.0
        %1337 = vmatprep.subr.mxu0 0.0
        %1338 = vmatpush1.msra.mxu0 0.0
        %1339 = vmatprep.subr.mxu0 0.0
        %1340 = vmatpush1.msra.mxu0 0.0
        %1341 = vmatprep.subr.mxu0 0.0
        %1342 = vmatpush1.msra.mxu0 0.0
        %1343 = vmatprep.subr.mxu0 0.0
        %1344 = vmatpush1.msra.mxu0 0.0
        %1345 = vmatprep.subr.mxu0 0.0
        %1346 = vmatpush1.msra.mxu0 0.0
        %1347 = vmatprep.subr.mxu0 0.0
        %1348 = vmatpush1.msra.mxu0 0.0
        %1349 = vmatprep.subr.mxu0 0.0
        %1350 = vmatpush1.msra.mxu0 0.0
        %1351 = vmatprep.subr.mxu0 0.0
        %1352 = vmatpush1.msra.mxu0 0.0
        %1353 = vmatprep.subr.mxu0 0.0
        %1354 = vmatpush1.msra.mxu0 0.0
        %1355 = vmatprep.subr.mxu0 0.0
        %1356 = vmatpush1.msra.mxu0 0.0
        %1357 = vmatprep.subr.mxu0 0.0
        %1358 = vmatpush1.msra.mxu0 0.0
        %1359 = vmatprep.subr.mxu0 0.0
        %1360 = vmatpush1.msra.mxu0 0.0
        %1361 = vmatprep.subr.mxu0 0.0
        %1362 = vmatpush1.msra.mxu0 0.0
        %1363 = vmatprep.subr.mxu0 0.0
        %1364 = vmatpush1.msra.mxu0 0.0
        %1365 = vmatprep.subr.mxu0 0.0
        %1366 = vmatpush1.msra.mxu0 0.0
        %1367 = vmatprep.subr.mxu0 0.0
        %1368 = vmatpush1.msra.mxu0 0.0
        %1369 = vmatprep.subr.mxu0 0.0
        %1370 = vmatpush1.msra.mxu0 0.0
        %1371 = vmatprep.subr.mxu0 0.0
        %1372 = vmatpush1.msra.mxu0 0.0
        %1373 = vmatprep.subr.mxu0 0.0
        %1374 = vmatpush1.msra.mxu0 0.0
        %1375 = vmatprep.subr.mxu0 0.0
        %1376 = vmatpush1.msra.mxu0 0.0
        %1377 = vmatprep.subr.mxu0 0.0
        %1378 = vmatpush1.msra.mxu0 0.0
        %1379 = vmatprep.subr.mxu0 0.0
        %1380 = vmatpush1.msra.mxu0 0.0
        %1381 = vmatprep.subr.mxu0 0.0
        %1382 = vmatpush1.msra.mxu0 0.0
        %1383 = vmatprep.subr.mxu0 0.0
        %1384 = vmatpush1.msra.mxu0 0.0
        %1385 = vmatprep.subr.mxu0 0.0
        %1386 = vmatpush1.msra.mxu0 0.0
        %1387 = vmatprep.subr.mxu0 0.0
        %1388 = vmatpush1.msra.mxu0 0.0
        %1389 = vmatprep.subr.mxu0 0.0
        %1390 = vmatpush1.msra.mxu0 0.0
        %1391 = vmatprep.subr.mxu0 0.0
        %1392 = vmatpush1.msra.mxu0 0.0
        %1393 = vmatprep.subr.mxu0 0.0
        %1394 = vmatpush1.msra.mxu0 0.0
        %1395 = vmatprep.mubr.f32.mxu0 0.0
        %1396 = vmatmul.mubr.f32.gmra.mrb[0].mxu0 %v1318
        %v1397 = vpop.f32.mrb[0].mxu0
        %v1398 = vadd.f32 0.0, %v1397
        %v1399 = vpop.f32.mrb[0].mxu0
        %1400 = vmatprep.mubr.f32.mxu0 0.0
        %1401 = vmatmul.mubr.f32.gmra.mrb[0].mxu0 %v1321
        %v1402 = vpop.f32.mrb[0].mxu0
        %v1403 = vadd.f32 0.0, %v1402
        %v1404 = vpop.f32.mrb[0].mxu0
        %1405 = vmatprep.mubr.f32.mxu0 0.0
        %1406 = vmatmul.mubr.f32.gmra.mrb[0].mxu0 %v1324
        %v1407 = vpop.f32.mrb[0].mxu0
        %v1408 = vadd.f32 0.0, %v1407
        %v1409 = vpop.f32.mrb[0].mxu0
        %1410 = vmatprep.mubr.f32.mxu0 0.0
        %1411 = vmatmul.mubr.f32.gmra.mrb[0].mxu0 %v1327
        %v1412 = vpop.f32.mrb[0].mxu0
        %v1413 = vadd.f32 0.0, %v1412
        %v1414 = vpop.f32.mrb[0].mxu0
        %1415 = vdwg.mxu0
        %v1416 = vadd.f32 %v1298, %v1398
        %v1417 = vadd.f32 %v1303, %v1403
        %v1418 = vadd.f32 %v1308, %v1408
        %v1419 = vadd.f32 %v1313, %v1413
        %v1420 = vld [vmem:[%s6] sm:$0xff]
        %v1421 = vld [vmem:[%s6 + $0x8] sm:$0xff]
        %v1422 = vld [vmem:[%s6 + $0x10] sm:$0xff]
        %v1423 = vld [vmem:[%s6 + $0x18] sm:$0xff]
        %v1424 = vadd.f32 %v1416, %v1420
        %v1425 = vadd.f32 %v1417, %v1421
        %v1426 = vadd.f32 %v1418, %v1422
        %v1427 = vadd.f32 %v1419, %v1423
        %v1428 = vld [vmem:[%s638] sm:$0xff]
        %v1429 = vld [vmem:[%s8] sm:$0xff]
        %v1431 = vsel %vm672, %v1429, 0
        %1433 = vmatprep.subr.mxu0 0.0
        %1434 = vmatpush1.msra.mxu0 %v687
        %1435 = vmatprep.subr.mxu0 0.0
        %1436 = vmatpush1.msra.mxu0 0.0
        %1437 = vmatprep.subr.mxu0 0.0
        %1438 = vmatpush1.msra.mxu0 0.0
        %1439 = vmatprep.subr.mxu0 0.0
        %1440 = vmatpush1.msra.mxu0 0.0
        %1441 = vmatprep.subr.mxu0 0.0
        %1442 = vmatpush1.msra.mxu0 0.0
        %1443 = vmatprep.subr.mxu0 0.0
        %1444 = vmatpush1.msra.mxu0 0.0
        %1445 = vmatprep.subr.mxu0 0.0
        %1446 = vmatpush1.msra.mxu0 0.0
        %1447 = vmatprep.subr.mxu0 0.0
        %1448 = vmatpush1.msra.mxu0 0.0
        %1449 = vmatprep.subr.mxu0 0.0
        %1450 = vmatpush1.msra.mxu0 0.0
        %1451 = vmatprep.subr.mxu0 0.0
        %1452 = vmatpush1.msra.mxu0 0.0
        %1453 = vmatprep.subr.mxu0 0.0
        %1454 = vmatpush1.msra.mxu0 0.0
        %1455 = vmatprep.subr.mxu0 0.0
        %1456 = vmatpush1.msra.mxu0 0.0
        %1457 = vmatprep.subr.mxu0 0.0
        %1458 = vmatpush1.msra.mxu0 0.0
        %1459 = vmatprep.subr.mxu0 0.0
        %1460 = vmatpush1.msra.mxu0 0.0
        %1461 = vmatprep.subr.mxu0 0.0
        %1462 = vmatpush1.msra.mxu0 0.0
        %1463 = vmatprep.subr.mxu0 0.0
        %1464 = vmatpush1.msra.mxu0 0.0
        %1465 = vmatprep.subr.mxu0 0.0
        %1466 = vmatpush1.msra.mxu0 0.0
        %1467 = vmatprep.subr.mxu0 0.0
        %1468 = vmatpush1.msra.mxu0 0.0
        %1469 = vmatprep.subr.mxu0 0.0
        %1470 = vmatpush1.msra.mxu0 0.0
        %1471 = vmatprep.subr.mxu0 0.0
        %1472 = vmatpush1.msra.mxu0 0.0
        %1473 = vmatprep.subr.mxu0 0.0
        %1474 = vmatpush1.msra.mxu0 0.0
        %1475 = vmatprep.subr.mxu0 0.0
        %1476 = vmatpush1.msra.mxu0 0.0
        %1477 = vmatprep.subr.mxu0 0.0
        %1478 = vmatpush1.msra.mxu0 0.0
        %1479 = vmatprep.subr.mxu0 0.0
        %1480 = vmatpush1.msra.mxu0 0.0
        %1481 = vmatprep.subr.mxu0 0.0
        %1482 = vmatpush1.msra.mxu0 0.0
        %1483 = vmatprep.subr.mxu0 0.0
        %1484 = vmatpush1.msra.mxu0 0.0
        %1485 = vmatprep.subr.mxu0 0.0
        %1486 = vmatpush1.msra.mxu0 0.0
        %1487 = vmatprep.subr.mxu0 0.0
        %1488 = vmatpush1.msra.mxu0 0.0
        %1489 = vmatprep.subr.mxu0 0.0
        %1490 = vmatpush1.msra.mxu0 0.0
        %1491 = vmatprep.subr.mxu0 0.0
        %1492 = vmatpush1.msra.mxu0 0.0
        %1493 = vmatprep.subr.mxu0 0.0
        %1494 = vmatpush1.msra.mxu0 0.0
        %1495 = vmatprep.subr.mxu0 0.0
        %1496 = vmatpush1.msra.mxu0 0.0
        %1497 = vmatprep.mubr.f32.mxu0 0.0
        %1498 = vmatmul.mubr.f32.gmra.mrb[0].mxu0 %v1431
        %v1499 = vpop.f32.mrb[0].mxu0
        %v1500 = vadd.f32 0.0, %v1499
        %v1501 = vpop.f32.mrb[0].mxu0
        %1502 = vdwg.mxu0
        %1503 = vmatprep.subr.mxu0 0.0
        %1504 = vmatpush1.msra.mxu0 %v775
        %1505 = vmatprep.subr.mxu0 0.0
        %1506 = vmatpush1.msra.mxu0 0.0
        %1507 = vmatprep.subr.mxu0 0.0
        %1508 = vmatpush1.msra.mxu0 0.0
        %1509 = vmatprep.subr.mxu0 0.0
        %1510 = vmatpush1.msra.mxu0 0.0
        %1511 = vmatprep.subr.mxu0 0.0
        %1512 = vmatpush1.msra.mxu0 0.0
        %1513 = vmatprep.subr.mxu0 0.0
        %1514 = vmatpush1.msra.mxu0 0.0
        %1515 = vmatprep.subr.mxu0 0.0
        %1516 = vmatpush1.msra.mxu0 0.0
        %1517 = vmatprep.subr.mxu0 0.0
        %1518 = vmatpush1.msra.mxu0 0.0
        %1519 = vmatprep.subr.mxu0 0.0
        %1520 = vmatpush1.msra.mxu0 0.0
        %1521 = vmatprep.subr.mxu0 0.0
        %1522 = vmatpush1.msra.mxu0 0.0
        %1523 = vmatprep.subr.mxu0 0.0
        %1524 = vmatpush1.msra.mxu0 0.0
        %1525 = vmatprep.subr.mxu0 0.0
        %1526 = vmatpush1.msra.mxu0 0.0
        %1527 = vmatprep.subr.mxu0 0.0
        %1528 = vmatpush1.msra.mxu0 0.0
        %1529 = vmatprep.subr.mxu0 0.0
        %1530 = vmatpush1.msra.mxu0 0.0
        %1531 = vmatprep.subr.mxu0 0.0
        %1532 = vmatpush1.msra.mxu0 0.0
        %1533 = vmatprep.subr.mxu0 0.0
        %1534 = vmatpush1.msra.mxu0 0.0
        %1535 = vmatprep.subr.mxu0 0.0
        %1536 = vmatpush1.msra.mxu0 0.0
        %1537 = vmatprep.subr.mxu0 0.0
        %1538 = vmatpush1.msra.mxu0 0.0
        %1539 = vmatprep.subr.mxu0 0.0
        %1540 = vmatpush1.msra.mxu0 0.0
        %1541 = vmatprep.subr.mxu0 0.0
        %1542 = vmatpush1.msra.mxu0 0.0
        %1543 = vmatprep.subr.mxu0 0.0
        %1544 = vmatpush1.msra.mxu0 0.0
        %1545 = vmatprep.subr.mxu0 0.0
        %1546 = vmatpush1.msra.mxu0 0.0
        %1547 = vmatprep.subr.mxu0 0.0
        %1548 = vmatpush1.msra.mxu0 0.0
        %1549 = vmatprep.subr.mxu0 0.0
        %1550 = vmatpush1.msra.mxu0 0.0
        %1551 = vmatprep.subr.mxu0 0.0
        %1552 = vmatpush1.msra.mxu0 0.0
        %1553 = vmatprep.subr.mxu0 0.0
        %1554 = vmatpush1.msra.mxu0 0.0
        %1555 = vmatprep.subr.mxu0 0.0
        %1556 = vmatpush1.msra.mxu0 0.0
        %1557 = vmatprep.subr.mxu0 0.0
        %1558 = vmatpush1.msra.mxu0 0.0
        %1559 = vmatprep.subr.mxu0 0.0
        %1560 = vmatpush1.msra.mxu0 0.0
        %1561 = vmatprep.subr.mxu0 0.0
        %1562 = vmatpush1.msra.mxu0 0.0
        %1563 = vmatprep.subr.mxu0 0.0
        %1564 = vmatpush1.msra.mxu0 0.0
        %1565 = vmatprep.subr.mxu0 0.0
        %1566 = vmatpush1.msra.mxu0 0.0
        %1567 = vmatprep.mubr.f32.mxu0 0.0
        %1568 = vmatmul.mubr.f32.gmra.mrb[0].mxu0 %v1431
        %v1569 = vpop.f32.mrb[0].mxu0
        %v1570 = vadd.f32 0.0, %v1569
        %v1571 = vpop.f32.mrb[0].mxu0
        %1572 = vdwg.mxu0
        %1574 = vset.pattern.permute.xlu0 0
        %1575 = vperm.xlu0 %1574, %v1500
        %v1576 = vpop.permute.xlu0 %1575
        %v1578 = vsub.f32 %v1428, %v1576
        %1580 = vset.pattern.permute.xlu0 0
        %1581 = vperm.xlu0 %1580, %v1570
        %v1582 = vpop.permute.xlu0 %1581
        %v1584 = vmul.f32 %v1578, %v1582
        %v1585 = vld [vmem:[%s9] sm:$0xff]
        %vm1586 = vcmask 64512
        %v1588 = vsel %vm1586, %v1585, 0
        %1590 = vmatprep.subr.mxu0 0.0
        %1591 = vmatpush1.msra.mxu0 %v1584
        %1592 = vmatprep.subr.mxu0 0.0
        %1593 = vmatpush1.msra.mxu0 0.0
        %1594 = vmatprep.subr.mxu0 0.0
        %1595 = vmatpush1.msra.mxu0 0.0
        %1596 = vmatprep.subr.mxu0 0.0
        %1597 = vmatpush1.msra.mxu0 0.0
        %1598 = vmatprep.subr.mxu0 0.0
        %1599 = vmatpush1.msra.mxu0 0.0
        %1600 = vmatprep.subr.mxu0 0.0
        %1601 = vmatpush1.msra.mxu0 0.0
        %1602 = vmatprep.subr.mxu0 0.0
        %1603 = vmatpush1.msra.mxu0 0.0
        %1604 = vmatprep.subr.mxu0 0.0
        %1605 = vmatpush1.msra.mxu0 0.0
        %1606 = vmatprep.subr.mxu0 0.0
        %1607 = vmatpush1.msra.mxu0 0.0
        %1608 = vmatprep.subr.mxu0 0.0
        %1609 = vmatpush1.msra.mxu0 0.0
        %1610 = vmatprep.subr.mxu0 0.0
        %1611 = vmatpush1.msra.mxu0 0.0
        %1612 = vmatprep.subr.mxu0 0.0
        %1613 = vmatpush1.msra.mxu0 0.0
        %1614 = vmatprep.subr.mxu0 0.0
        %1615 = vmatpush1.msra.mxu0 0.0
        %1616 = vmatprep.subr.mxu0 0.0
        %1617 = vmatpush1.msra.mxu0 0.0
        %1618 = vmatprep.subr.mxu0 0.0
        %1619 = vmatpush1.msra.mxu0 0.0
        %1620 = vmatprep.subr.mxu0 0.0
        %1621 = vmatpush1.msra.mxu0 0.0
        %1622 = vmatprep.subr.mxu0 0.0
        %1623 = vmatpush1.msra.mxu0 0.0
        %1624 = vmatprep.subr.mxu0 0.0
        %1625 = vmatpush1.msra.mxu0 0.0
        %1626 = vmatprep.subr.mxu0 0.0
        %1627 = vmatpush1.msra.mxu0 0.0
        %1628 = vmatprep.subr.mxu0 0.0
        %1629 = vmatpush1.msra.mxu0 0.0
        %1630 = vmatprep.subr.mxu0 0.0
        %1631 = vmatpush1.msra.mxu0 0.0
        %1632 = vmatprep.subr.mxu0 0.0
        %1633 = vmatpush1.msra.mxu0 0.0
        %1634 = vmatprep.subr.mxu0 0.0
        %1635 = vmatpush1.msra.mxu0 0.0
        %1636 = vmatprep.subr.mxu0 0.0
        %1637 = vmatpush1.msra.mxu0 0.0
        %1638 = vmatprep.subr.mxu0 0.0
        %1639 = vmatpush1.msra.mxu0 0.0
        %1640 = vmatprep.subr.mxu0 0.0
        %1641 = vmatpush1.msra.mxu0 0.0
        %1642 = vmatprep.subr.mxu0 0.0
        %1643 = vmatpush1.msra.mxu0 0.0
        %1644 = vmatprep.subr.mxu0 0.0
        %1645 = vmatpush1.msra.mxu0 0.0
        %1646 = vmatprep.subr.mxu0 0.0
        %1647 = vmatpush1.msra.mxu0 0.0
        %1648 = vmatprep.subr.mxu0 0.0
        %1649 = vmatpush1.msra.mxu0 0.0
        %1650 = vmatprep.subr.mxu0 0.0
        %1651 = vmatpush1.msra.mxu0 0.0
        %1652 = vmatprep.subr.mxu0 0.0
        %1653 = vmatpush1.msra.mxu0 0.0
        %1654 = vmatprep.mubr.f32.mxu0 0.0
        %1655 = vmatmul.mubr.f32.gmra.mrb[0].mxu0 %v1588
        %v1656 = vpop.f32.mrb[0].mxu0
        %v1657 = vadd.f32 0.0, %v1656
        %v1658 = vpop.f32.mrb[0].mxu0
        %1659 = vdwg.mxu0
        %v1660 = vld [vmem:[%s10] sm:$0xff]
        %v1662 = vsel %vm1586, %v1660, 0
        %1664 = vmatprep.subr.mxu0 0.0
        %1665 = vmatpush1.msra.mxu0 %v1584
        %1666 = vmatprep.subr.mxu0 0.0
        %1667 = vmatpush1.msra.mxu0 0.0
        %1668 = vmatprep.subr.mxu0 0.0
        %1669 = vmatpush1.msra.mxu0 0.0
        %1670 = vmatprep.subr.mxu0 0.0
        %1671 = vmatpush1.msra.mxu0 0.0
        %1672 = vmatprep.subr.mxu0 0.0
        %1673 = vmatpush1.msra.mxu0 0.0
        %1674 = vmatprep.subr.mxu0 0.0
        %1675 = vmatpush1.msra.mxu0 0.0
        %1676 = vmatprep.subr.mxu0 0.0
        %1677 = vmatpush1.msra.mxu0 0.0
        %1678 = vmatprep.subr.mxu0 0.0
        %1679 = vmatpush1.msra.mxu0 0.0
        %1680 = vmatprep.subr.mxu0 0.0
        %1681 = vmatpush1.msra.mxu0 0.0
        %1682 = vmatprep.subr.mxu0 0.0
        %1683 = vmatpush1.msra.mxu0 0.0
        %1684 = vmatprep.subr.mxu0 0.0
        %1685 = vmatpush1.msra.mxu0 0.0
        %1686 = vmatprep.subr.mxu0 0.0
        %1687 = vmatpush1.msra.mxu0 0.0
        %1688 = vmatprep.subr.mxu0 0.0
        %1689 = vmatpush1.msra.mxu0 0.0
        %1690 = vmatprep.subr.mxu0 0.0
        %1691 = vmatpush1.msra.mxu0 0.0
        %1692 = vmatprep.subr.mxu0 0.0
        %1693 = vmatpush1.msra.mxu0 0.0
        %1694 = vmatprep.subr.mxu0 0.0
        %1695 = vmatpush1.msra.mxu0 0.0
        %1696 = vmatprep.subr.mxu0 0.0
        %1697 = vmatpush1.msra.mxu0 0.0
        %1698 = vmatprep.subr.mxu0 0.0
        %1699 = vmatpush1.msra.mxu0 0.0
        %1700 = vmatprep.subr.mxu0 0.0
        %1701 = vmatpush1.msra.mxu0 0.0
        %1702 = vmatprep.subr.mxu0 0.0
        %1703 = vmatpush1.msra.mxu0 0.0
        %1704 = vmatprep.subr.mxu0 0.0
        %1705 = vmatpush1.msra.mxu0 0.0
        %1706 = vmatprep.subr.mxu0 0.0
        %1707 = vmatpush1.msra.mxu0 0.0
        %1708 = vmatprep.subr.mxu0 0.0
        %1709 = vmatpush1.msra.mxu0 0.0
        %1710 = vmatprep.subr.mxu0 0.0
        %1711 = vmatpush1.msra.mxu0 0.0
        %1712 = vmatprep.subr.mxu0 0.0
        %1713 = vmatpush1.msra.mxu0 0.0
        %1714 = vmatprep.subr.mxu0 0.0
        %1715 = vmatpush1.msra.mxu0 0.0
        %1716 = vmatprep.subr.mxu0 0.0
        %1717 = vmatpush1.msra.mxu0 0.0
        %1718 = vmatprep.subr.mxu0 0.0
        %1719 = vmatpush1.msra.mxu0 0.0
        %1720 = vmatprep.subr.mxu0 0.0
        %1721 = vmatpush1.msra.mxu0 0.0
        %1722 = vmatprep.subr.mxu0 0.0
        %1723 = vmatpush1.msra.mxu0 0.0
        %1724 = vmatprep.subr.mxu0 0.0
        %1725 = vmatpush1.msra.mxu0 0.0
        %1726 = vmatprep.subr.mxu0 0.0
        %1727 = vmatpush1.msra.mxu0 0.0
        %1728 = vmatprep.mubr.f32.mxu0 0.0
        %1729 = vmatmul.mubr.f32.gmra.mrb[0].mxu0 %v1662
        %v1730 = vpop.f32.mrb[0].mxu0
        %v1731 = vadd.f32 0.0, %v1730
        %v1732 = vpop.f32.mrb[0].mxu0
        %1733 = vdwg.mxu0
        %v1734 = vld [vmem:[%s11] sm:$0xff]
        %v1735 = vld [vmem:[%s11 + $0x8] sm:$0xff]
        %v1736 = vld [vmem:[%s11 + $0x10] sm:$0xff]
        %v1738 = vsel %vm1586, %v1584, 0
        %1740 = vmatprep.subr.mxu0 0.0
        %1741 = vmatpush1.msra.mxu0 %v1735
        %1742 = vmatprep.subr.mxu0 0.0
        %1743 = vmatpush1.msra.mxu0 0.0
        %1744 = vmatprep.subr.mxu0 0.0
        %1745 = vmatpush1.msra.mxu0 0.0
        %1746 = vmatprep.subr.mxu0 0.0
        %1747 = vmatpush1.msra.mxu0 0.0
        %1748 = vmatprep.subr.mxu0 0.0
        %1749 = vmatpush1.msra.mxu0 0.0
        %1750 = vmatprep.subr.mxu0 0.0
        %1751 = vmatpush1.msra.mxu0 0.0
        %1752 = vmatprep.subr.mxu0 0.0
        %1753 = vmatpush1.msra.mxu0 0.0
        %1754 = vmatprep.subr.mxu0 0.0
        %1755 = vmatpush1.msra.mxu0 0.0
        %1756 = vmatprep.subr.mxu0 0.0
        %1757 = vmatpush1.msra.mxu0 0.0
        %1758 = vmatprep.subr.mxu0 0.0
        %1759 = vmatpush1.msra.mxu0 0.0
        %1760 = vmatprep.subr.mxu0 0.0
        %1761 = vmatpush1.msra.mxu0 0.0
        %1762 = vmatprep.subr.mxu0 0.0
        %1763 = vmatpush1.msra.mxu0 0.0
        %1764 = vmatprep.subr.mxu0 0.0
        %1765 = vmatpush1.msra.mxu0 0.0
        %1766 = vmatprep.subr.mxu0 0.0
        %1767 = vmatpush1.msra.mxu0 0.0
        %1768 = vmatprep.subr.mxu0 0.0
        %1769 = vmatpush1.msra.mxu0 0.0
        %1770 = vmatprep.subr.mxu0 0.0
        %1771 = vmatpush1.msra.mxu0 0.0
        %1772 = vmatprep.subr.mxu0 0.0
        %1773 = vmatpush1.msra.mxu0 0.0
        %1774 = vmatprep.subr.mxu0 0.0
        %1775 = vmatpush1.msra.mxu0 0.0
        %1776 = vmatprep.subr.mxu0 0.0
        %1777 = vmatpush1.msra.mxu0 0.0
        %1778 = vmatprep.subr.mxu0 0.0
        %1779 = vmatpush1.msra.mxu0 0.0
        %1780 = vmatprep.subr.mxu0 0.0
        %1781 = vmatpush1.msra.mxu0 0.0
        %1782 = vmatprep.subr.mxu0 0.0
        %1783 = vmatpush1.msra.mxu0 0.0
        %1784 = vmatprep.subr.mxu0 0.0
        %1785 = vmatpush1.msra.mxu0 0.0
        %1786 = vmatprep.subr.mxu0 0.0
        %1787 = vmatpush1.msra.mxu0 0.0
        %1788 = vmatprep.subr.mxu0 0.0
        %1789 = vmatpush1.msra.mxu0 0.0
        %1790 = vmatprep.subr.mxu0 0.0
        %1791 = vmatpush1.msra.mxu0 0.0
        %1792 = vmatprep.subr.mxu0 0.0
        %1793 = vmatpush1.msra.mxu0 0.0
        %1794 = vmatprep.subr.mxu0 0.0
        %1795 = vmatpush1.msra.mxu0 0.0
        %1796 = vmatprep.subr.mxu0 0.0
        %1797 = vmatpush1.msra.mxu0 0.0
        %1798 = vmatprep.subr.mxu0 0.0
        %1799 = vmatpush1.msra.mxu0 0.0
        %1800 = vmatprep.subr.mxu0 0.0
        %1801 = vmatpush1.msra.mxu0 0.0
        %1802 = vmatprep.subr.mxu0 0.0
        %1803 = vmatpush1.msra.mxu0 0.0
        %1804 = vmatprep.mubr.f32.mxu0 0.0
        %1805 = vmatmul.mubr.f32.gmra.mrb[0].mxu0 %v1738
        %v1806 = vpop.f32.mrb[0].mxu0
        %v1807 = vadd.f32 0.0, %v1806
        %v1808 = vpop.f32.mrb[0].mxu0
        %1809 = vdwg.mxu0
        %v1811 = vsel %vm1586, %v1657, 0
        %1813 = vmatprep.subr.mxu0 0.0
        %1814 = vmatpush1.msra.mxu0 %v1734
        %1815 = vmatprep.subr.mxu0 0.0
        %1816 = vmatpush1.msra.mxu0 0.0
        %1817 = vmatprep.subr.mxu0 0.0
        %1818 = vmatpush1.msra.mxu0 0.0
        %1819 = vmatprep.subr.mxu0 0.0
        %1820 = vmatpush1.msra.mxu0 0.0
        %1821 = vmatprep.subr.mxu0 0.0
        %1822 = vmatpush1.msra.mxu0 0.0
        %1823 = vmatprep.subr.mxu0 0.0
        %1824 = vmatpush1.msra.mxu0 0.0
        %1825 = vmatprep.subr.mxu0 0.0
        %1826 = vmatpush1.msra.mxu0 0.0
        %1827 = vmatprep.subr.mxu0 0.0
        %1828 = vmatpush1.msra.mxu0 0.0
        %1829 = vmatprep.subr.mxu0 0.0
        %1830 = vmatpush1.msra.mxu0 0.0
        %1831 = vmatprep.subr.mxu0 0.0
        %1832 = vmatpush1.msra.mxu0 0.0
        %1833 = vmatprep.subr.mxu0 0.0
        %1834 = vmatpush1.msra.mxu0 0.0
        %1835 = vmatprep.subr.mxu0 0.0
        %1836 = vmatpush1.msra.mxu0 0.0
        %1837 = vmatprep.subr.mxu0 0.0
        %1838 = vmatpush1.msra.mxu0 0.0
        %1839 = vmatprep.subr.mxu0 0.0
        %1840 = vmatpush1.msra.mxu0 0.0
        %1841 = vmatprep.subr.mxu0 0.0
        %1842 = vmatpush1.msra.mxu0 0.0
        %1843 = vmatprep.subr.mxu0 0.0
        %1844 = vmatpush1.msra.mxu0 0.0
        %1845 = vmatprep.subr.mxu0 0.0
        %1846 = vmatpush1.msra.mxu0 0.0
        %1847 = vmatprep.subr.mxu0 0.0
        %1848 = vmatpush1.msra.mxu0 0.0
        %1849 = vmatprep.subr.mxu0 0.0
        %1850 = vmatpush1.msra.mxu0 0.0
        %1851 = vmatprep.subr.mxu0 0.0
        %1852 = vmatpush1.msra.mxu0 0.0
        %1853 = vmatprep.subr.mxu0 0.0
        %1854 = vmatpush1.msra.mxu0 0.0
        %1855 = vmatprep.subr.mxu0 0.0
        %1856 = vmatpush1.msra.mxu0 0.0
        %1857 = vmatprep.subr.mxu0 0.0
        %1858 = vmatpush1.msra.mxu0 0.0
        %1859 = vmatprep.subr.mxu0 0.0
        %1860 = vmatpush1.msra.mxu0 0.0
        %1861 = vmatprep.subr.mxu0 0.0
        %1862 = vmatpush1.msra.mxu0 0.0
        %1863 = vmatprep.subr.mxu0 0.0
        %1864 = vmatpush1.msra.mxu0 0.0
        %1865 = vmatprep.subr.mxu0 0.0
        %1866 = vmatpush1.msra.mxu0 0.0
        %1867 = vmatprep.subr.mxu0 0.0
        %1868 = vmatpush1.msra.mxu0 0.0
        %1869 = vmatprep.subr.mxu0 0.0
        %1870 = vmatpush1.msra.mxu0 0.0
        %1871 = vmatprep.subr.mxu0 0.0
        %1872 = vmatpush1.msra.mxu0 0.0
        %1873 = vmatprep.subr.mxu0 0.0
        %1874 = vmatpush1.msra.mxu0 0.0
        %1875 = vmatprep.subr.mxu0 0.0
        %1876 = vmatpush1.msra.mxu0 0.0
        %1877 = vmatprep.mubr.f32.mxu0 0.0
        %1878 = vmatmul.mubr.f32.gmra.mrb[0].mxu0 %v1811
        %v1879 = vpop.f32.mrb[0].mxu0
        %v1880 = vadd.f32 %v1807, %v1879
        %v1881 = vpop.f32.mrb[0].mxu0
        %1882 = vdwg.mxu0
        %v1884 = vsel %vm1586, %v1731, 0
        %1886 = vmatprep.subr.mxu0 0.0
        %1887 = vmatpush1.msra.mxu0 %v1736
        %1888 = vmatprep.subr.mxu0 0.0
        %1889 = vmatpush1.msra.mxu0 0.0
        %1890 = vmatprep.subr.mxu0 0.0
        %1891 = vmatpush1.msra.mxu0 0.0
        %1892 = vmatprep.subr.mxu0 0.0
        %1893 = vmatpush1.msra.mxu0 0.0
        %1894 = vmatprep.subr.mxu0 0.0
        %1895 = vmatpush1.msra.mxu0 0.0
        %1896 = vmatprep.subr.mxu0 0.0
        %1897 = vmatpush1.msra.mxu0 0.0
        %1898 = vmatprep.subr.mxu0 0.0
        %1899 = vmatpush1.msra.mxu0 0.0
        %1900 = vmatprep.subr.mxu0 0.0
        %1901 = vmatpush1.msra.mxu0 0.0
        %1902 = vmatprep.subr.mxu0 0.0
        %1903 = vmatpush1.msra.mxu0 0.0
        %1904 = vmatprep.subr.mxu0 0.0
        %1905 = vmatpush1.msra.mxu0 0.0
        %1906 = vmatprep.subr.mxu0 0.0
        %1907 = vmatpush1.msra.mxu0 0.0
        %1908 = vmatprep.subr.mxu0 0.0
        %1909 = vmatpush1.msra.mxu0 0.0
        %1910 = vmatprep.subr.mxu0 0.0
        %1911 = vmatpush1.msra.mxu0 0.0
        %1912 = vmatprep.subr.mxu0 0.0
        %1913 = vmatpush1.msra.mxu0 0.0
        %1914 = vmatprep.subr.mxu0 0.0
        %1915 = vmatpush1.msra.mxu0 0.0
        %1916 = vmatprep.subr.mxu0 0.0
        %1917 = vmatpush1.msra.mxu0 0.0
        %1918 = vmatprep.subr.mxu0 0.0
        %1919 = vmatpush1.msra.mxu0 0.0
        %1920 = vmatprep.subr.mxu0 0.0
        %1921 = vmatpush1.msra.mxu0 0.0
        %1922 = vmatprep.subr.mxu0 0.0
        %1923 = vmatpush1.msra.mxu0 0.0
        %1924 = vmatprep.subr.mxu0 0.0
        %1925 = vmatpush1.msra.mxu0 0.0
        %1926 = vmatprep.subr.mxu0 0.0
        %1927 = vmatpush1.msra.mxu0 0.0
        %1928 = vmatprep.subr.mxu0 0.0
        %1929 = vmatpush1.msra.mxu0 0.0
        %1930 = vmatprep.subr.mxu0 0.0
        %1931 = vmatpush1.msra.mxu0 0.0
        %1932 = vmatprep.subr.mxu0 0.0
        %1933 = vmatpush1.msra.mxu0 0.0
        %1934 = vmatprep.subr.mxu0 0.0
        %1935 = vmatpush1.msra.mxu0 0.0
        %1936 = vmatprep.subr.mxu0 0.0
        %1937 = vmatpush1.msra.mxu0 0.0
        %1938 = vmatprep.subr.mxu0 0.0
        %1939 = vmatpush1.msra.mxu0 0.0
        %1940 = vmatprep.subr.mxu0 0.0
        %1941 = vmatpush1.msra.mxu0 0.0
        %1942 = vmatprep.subr.mxu0 0.0
        %1943 = vmatpush1.msra.mxu0 0.0
        %1944 = vmatprep.subr.mxu0 0.0
        %1945 = vmatpush1.msra.mxu0 0.0
        %1946 = vmatprep.subr.mxu0 0.0
        %1947 = vmatpush1.msra.mxu0 0.0
        %1948 = vmatprep.subr.mxu0 0.0
        %1949 = vmatpush1.msra.mxu0 0.0
        %1950 = vmatprep.mubr.f32.mxu0 0.0
        %1951 = vmatmul.mubr.f32.gmra.mrb[0].mxu0 %v1884
        %v1952 = vpop.f32.mrb[0].mxu0
        %v1953 = vadd.f32 0.0, %v1952
        %v1954 = vpop.f32.mrb[0].mxu0
        %1955 = vdwg.mxu0
        %v1956 = vadd.f32 %v1880, %v1953
        %v1957 = vld [vmem:[%s12] sm:$0xff]
        %v1958 = vadd.f32 %v1956, %v1957
        %v1959 = vld [vmem:[%s13] sm:$0xff]
        %v1960 = vld [vmem:[%s13 + $0x8] sm:$0xff]
        %v1961 = vld [vmem:[%s13 + $0x10] sm:$0xff]
        %v1962 = vld [vmem:[%s13 + $0x18] sm:$0xff]
        %v1963 = vld [vmem:[%s14] sm:$0x1]
        %v1964 = vld [vmem:[%s15] sm:$0xff]
        %v1965 = vld [vmem:[%s15 + $0x8] sm:$0xff]
        %v1966 = vld [vmem:[%s15 + $0x10] sm:$0xff]
        %v1967 = vld [vmem:[%s15 + $0x18] sm:$0xff]
        %v1968 = vld [vmem:[#allocation4] sm:$0x1]
        %v1970 = vlaneseq
        %v1971 = vshrl.u32 %v1970, 7
        %v1972 = vsub.s32 0, %v1971
        %v1973 = vrot.slane %v1963, %v1972
        %v1976 = vsel %vm914, %v1424, 0
        %v1979 = vsel %vm914, %v1425, 0
        %v1982 = vsel %vm914, %v1426, 0
        %v1985 = vsel %vm914, %v1427, 0
        %1987 = vmatprep.subr.mxu0 0.0
        %1988 = vmatpush1.msra.mxu0 %v1959
        %1989 = vmatprep.subr.mxu0 0.0
        %1990 = vmatpush1.msra.mxu0 %v1960
        %1991 = vmatprep.subr.mxu0 0.0
        %1992 = vmatpush1.msra.mxu0 %v1961
        %1993 = vmatprep.subr.mxu0 0.0
        %1994 = vmatpush1.msra.mxu0 %v1962
        %1995 = vmatprep.subr.mxu0 0.0
        %1996 = vmatpush1.msra.mxu0 0.0
        %1997 = vmatprep.subr.mxu0 0.0
        %1998 = vmatpush1.msra.mxu0 0.0
        %1999 = vmatprep.subr.mxu0 0.0
        %2000 = vmatpush1.msra.mxu0 0.0
        %2001 = vmatprep.subr.mxu0 0.0
        %2002 = vmatpush1.msra.mxu0 0.0
        %2003 = vmatprep.subr.mxu0 0.0
        %2004 = vmatpush1.msra.mxu0 0.0
        %2005 = vmatprep.subr.mxu0 0.0
        %2006 = vmatpush1.msra.mxu0 0.0
        %2007 = vmatprep.subr.mxu0 0.0
        %2008 = vmatpush1.msra.mxu0 0.0
        %2009 = vmatprep.subr.mxu0 0.0
        %2010 = vmatpush1.msra.mxu0 0.0
        %2011 = vmatprep.subr.mxu0 0.0
        %2012 = vmatpush1.msra.mxu0 0.0
        %2013 = vmatprep.subr.mxu0 0.0
        %2014 = vmatpush1.msra.mxu0 0.0
        %2015 = vmatprep.subr.mxu0 0.0
        %2016 = vmatpush1.msra.mxu0 0.0
        %2017 = vmatprep.subr.mxu0 0.0
        %2018 = vmatpush1.msra.mxu0 0.0
        %2019 = vmatprep.subr.mxu0 0.0
        %2020 = vmatpush1.msra.mxu0 0.0
        %2021 = vmatprep.subr.mxu0 0.0
        %2022 = vmatpush1.msra.mxu0 0.0
        %2023 = vmatprep.subr.mxu0 0.0
        %2024 = vmatpush1.msra.mxu0 0.0
        %2025 = vmatprep.subr.mxu0 0.0
        %2026 = vmatpush1.msra.mxu0 0.0
        %2027 = vmatprep.subr.mxu0 0.0
        %2028 = vmatpush1.msra.mxu0 0.0
        %2029 = vmatprep.subr.mxu0 0.0
        %2030 = vmatpush1.msra.mxu0 0.0
        %2031 = vmatprep.subr.mxu0 0.0
        %2032 = vmatpush1.msra.mxu0 0.0
        %2033 = vmatprep.subr.mxu0 0.0
        %2034 = vmatpush1.msra.mxu0 0.0
        %2035 = vmatprep.subr.mxu0 0.0
        %2036 = vmatpush1.msra.mxu0 0.0
        %2037 = vmatprep.subr.mxu0 0.0
        %2038 = vmatpush1.msra.mxu0 0.0
        %2039 = vmatprep.subr.mxu0 0.0
        %2040 = vmatpush1.msra.mxu0 0.0
        %2041 = vmatprep.subr.mxu0 0.0
        %2042 = vmatpush1.msra.mxu0 0.0
        %2043 = vmatprep.subr.mxu0 0.0
        %2044 = vmatpush1.msra.mxu0 0.0
        %2045 = vmatprep.subr.mxu0 0.0
        %2046 = vmatpush1.msra.mxu0 0.0
        %2047 = vmatprep.subr.mxu0 0.0
        %2048 = vmatpush1.msra.mxu0 0.0
        %2049 = vmatprep.subr.mxu0 0.0
        %2050 = vmatpush1.msra.mxu0 0.0
        %2051 = vmatprep.mubr.f32.mxu0 0.0
        %2052 = vmatmul.mubr.f32.gmra.mrb[0].mxu0 %v1976
        %v2053 = vpop.f32.mrb[0].mxu0
        %v2054 = vadd.f32 %v1973, %v2053
        %v2055 = vpop.f32.mrb[0].mxu0
        %2056 = vmatprep.mubr.f32.mxu0 0.0
        %2057 = vmatmul.mubr.f32.gmra.mrb[0].mxu0 %v1979
        %v2058 = vpop.f32.mrb[0].mxu0
        %v2059 = vadd.f32 %v1973, %v2058
        %v2060 = vpop.f32.mrb[0].mxu0
        %2061 = vmatprep.mubr.f32.mxu0 0.0
        %2062 = vmatmul.mubr.f32.gmra.mrb[0].mxu0 %v1982
        %v2063 = vpop.f32.mrb[0].mxu0
        %v2064 = vadd.f32 %v1973, %v2063
        %v2065 = vpop.f32.mrb[0].mxu0
        %2066 = vmatprep.mubr.f32.mxu0 0.0
        %2067 = vmatmul.mubr.f32.gmra.mrb[0].mxu0 %v1985
        %v2068 = vpop.f32.mrb[0].mxu0
        %v2069 = vadd.f32 %v1973, %v2068
        %v2070 = vpop.f32.mrb[0].mxu0
        %2071 = vdwg.mxu0
        %v2073 = vlaneseq
        %v2074 = vshrl.u32 %v2073, 7
        %v2075 = vsub.s32 0, %v2074
        %v2076 = vrot.slane %v1968, %v2075
        %2078 = vmatprep.subr.mxu0 0.0
        %2079 = vmatpush1.msra.mxu0 %v1964
        %2080 = vmatprep.subr.mxu0 0.0
        %2081 = vmatpush1.msra.mxu0 %v1965
        %2082 = vmatprep.subr.mxu0 0.0
        %2083 = vmatpush1.msra.mxu0 %v1966
        %2084 = vmatprep.subr.mxu0 0.0
        %2085 = vmatpush1.msra.mxu0 %v1967
        %2086 = vmatprep.subr.mxu0 0.0
        %2087 = vmatpush1.msra.mxu0 0.0
        %2088 = vmatprep.subr.mxu0 0.0
        %2089 = vmatpush1.msra.mxu0 0.0
        %2090 = vmatprep.subr.mxu0 0.0
        %2091 = vmatpush1.msra.mxu0 0.0
        %2092 = vmatprep.subr.mxu0 0.0
        %2093 = vmatpush1.msra.mxu0 0.0
        %2094 = vmatprep.subr.mxu0 0.0
        %2095 = vmatpush1.msra.mxu0 0.0
        %2096 = vmatprep.subr.mxu0 0.0
        %2097 = vmatpush1.msra.mxu0 0.0
        %2098 = vmatprep.subr.mxu0 0.0
        %2099 = vmatpush1.msra.mxu0 0.0
        %2100 = vmatprep.subr.mxu0 0.0
        %2101 = vmatpush1.msra.mxu0 0.0
        %2102 = vmatprep.subr.mxu0 0.0
        %2103 = vmatpush1.msra.mxu0 0.0
        %2104 = vmatprep.subr.mxu0 0.0
        %2105 = vmatpush1.msra.mxu0 0.0
        %2106 = vmatprep.subr.mxu0 0.0
        %2107 = vmatpush1.msra.mxu0 0.0
        %2108 = vmatprep.subr.mxu0 0.0
        %2109 = vmatpush1.msra.mxu0 0.0
        %2110 = vmatprep.subr.mxu0 0.0
        %2111 = vmatpush1.msra.mxu0 0.0
        %2112 = vmatprep.subr.mxu0 0.0
        %2113 = vmatpush1.msra.mxu0 0.0
        %2114 = vmatprep.subr.mxu0 0.0
        %2115 = vmatpush1.msra.mxu0 0.0
        %2116 = vmatprep.subr.mxu0 0.0
        %2117 = vmatpush1.msra.mxu0 0.0
        %2118 = vmatprep.subr.mxu0 0.0
        %2119 = vmatpush1.msra.mxu0 0.0
        %2120 = vmatprep.subr.mxu0 0.0
        %2121 = vmatpush1.msra.mxu0 0.0
        %2122 = vmatprep.subr.mxu0 0.0
        %2123 = vmatpush1.msra.mxu0 0.0
        %2124 = vmatprep.subr.mxu0 0.0
        %2125 = vmatpush1.msra.mxu0 0.0
        %2126 = vmatprep.subr.mxu0 0.0
        %2127 = vmatpush1.msra.mxu0 0.0
        %2128 = vmatprep.subr.mxu0 0.0
        %2129 = vmatpush1.msra.mxu0 0.0
        %2130 = vmatprep.subr.mxu0 0.0
        %2131 = vmatpush1.msra.mxu0 0.0
        %2132 = vmatprep.subr.mxu0 0.0
        %2133 = vmatpush1.msra.mxu0 0.0
        %2134 = vmatprep.subr.mxu0 0.0
        %2135 = vmatpush1.msra.mxu0 0.0
        %2136 = vmatprep.subr.mxu0 0.0
        %2137 = vmatpush1.msra.mxu0 0.0
        %2138 = vmatprep.subr.mxu0 0.0
        %2139 = vmatpush1.msra.mxu0 0.0
        %2140 = vmatprep.subr.mxu0 0.0
        %2141 = vmatpush1.msra.mxu0 0.0
        %2142 = vmatprep.mubr.f32.mxu0 0.0
        %2143 = vmatmul.mubr.f32.gmra.mrb[0].mxu0 %v1976
        %v2144 = vpop.f32.mrb[0].mxu0
        %v2145 = vadd.f32 %v2076, %v2144
        %v2146 = vpop.f32.mrb[0].mxu0
        %2147 = vmatprep.mubr.f32.mxu0 0.0
        %2148 = vmatmul.mubr.f32.gmra.mrb[0].mxu0 %v1979
        %v2149 = vpop.f32.mrb[0].mxu0
        %v2150 = vadd.f32 %v2076, %v2149
        %v2151 = vpop.f32.mrb[0].mxu0
        %2152 = vmatprep.mubr.f32.mxu0 0.0
        %2153 = vmatmul.mubr.f32.gmra.mrb[0].mxu0 %v1982
        %v2154 = vpop.f32.mrb[0].mxu0
        %v2155 = vadd.f32 %v2076, %v2154
        %v2156 = vpop.f32.mrb[0].mxu0
        %2157 = vmatprep.mubr.f32.mxu0 0.0
        %2158 = vmatmul.mubr.f32.gmra.mrb[0].mxu0 %v1985
        %v2159 = vpop.f32.mrb[0].mxu0
        %v2160 = vadd.f32 %v2076, %v2159
        %v2161 = vpop.f32.mrb[0].mxu0
        %2162 = vdwg.mxu0
        %vm2163 = vcmask 130048
        %v2165 = vsel %vm2163, %v2054, 0
        %v2168 = vsel %vm2163, %v2145, 0
        %2170 = vmatprep.subr.mxu0 0.0
        %2171 = vmatpush1.xpose.msra.mxu0 %v2168
        %2172 = vmatprep.subr.mxu0 0.0
        %2173 = vmatpush1.xpose.msra.mxu0 0.0
        %2174 = vmatprep.subr.mxu0 0.0
        %2175 = vmatpush1.xpose.msra.mxu0 0.0
        %2176 = vmatprep.subr.mxu0 0.0
        %2177 = vmatpush1.xpose.msra.mxu0 0.0
        %2178 = vmatprep.subr.mxu0 0.0
        %2179 = vmatpush1.xpose.msra.mxu0 0.0
        %2180 = vmatprep.subr.mxu0 0.0
        %2181 = vmatpush1.xpose.msra.mxu0 0.0
        %2182 = vmatprep.subr.mxu0 0.0
        %2183 = vmatpush1.xpose.msra.mxu0 0.0
        %2184 = vmatprep.subr.mxu0 0.0
        %2185 = vmatpush1.xpose.msra.mxu0 0.0
        %2186 = vmatprep.subr.mxu0 0.0
        %2187 = vmatpush1.xpose.msra.mxu0 0.0
        %2188 = vmatprep.subr.mxu0 0.0
        %2189 = vmatpush1.xpose.msra.mxu0 0.0
        %2190 = vmatprep.subr.mxu0 0.0
        %2191 = vmatpush1.xpose.msra.mxu0 0.0
        %2192 = vmatprep.subr.mxu0 0.0
        %2193 = vmatpush1.xpose.msra.mxu0 0.0
        %2194 = vmatprep.subr.mxu0 0.0
        %2195 = vmatpush1.xpose.msra.mxu0 0.0
        %2196 = vmatprep.subr.mxu0 0.0
        %2197 = vmatpush1.xpose.msra.mxu0 0.0
        %2198 = vmatprep.subr.mxu0 0.0
        %2199 = vmatpush1.xpose.msra.mxu0 0.0
        %2200 = vmatprep.subr.mxu0 0.0
        %2201 = vmatpush1.xpose.msra.mxu0 0.0
        %2202 = vmatprep.subr.mxu0 0.0
        %2203 = vmatpush1.xpose.msra.mxu0 0.0
        %2204 = vmatprep.subr.mxu0 0.0
        %2205 = vmatpush1.xpose.msra.mxu0 0.0
        %2206 = vmatprep.subr.mxu0 0.0
        %2207 = vmatpush1.xpose.msra.mxu0 0.0
        %2208 = vmatprep.subr.mxu0 0.0
        %2209 = vmatpush1.xpose.msra.mxu0 0.0
        %2210 = vmatprep.subr.mxu0 0.0
        %2211 = vmatpush1.xpose.msra.mxu0 0.0
        %2212 = vmatprep.subr.mxu0 0.0
        %2213 = vmatpush1.xpose.msra.mxu0 0.0
        %2214 = vmatprep.subr.mxu0 0.0
        %2215 = vmatpush1.xpose.msra.mxu0 0.0
        %2216 = vmatprep.subr.mxu0 0.0
        %2217 = vmatpush1.xpose.msra.mxu0 0.0
        %2218 = vmatprep.subr.mxu0 0.0
        %2219 = vmatpush1.xpose.msra.mxu0 0.0
        %2220 = vmatprep.subr.mxu0 0.0
        %2221 = vmatpush1.xpose.msra.mxu0 0.0
        %2222 = vmatprep.subr.mxu0 0.0
        %2223 = vmatpush1.xpose.msra.mxu0 0.0
        %2224 = vmatprep.subr.mxu0 0.0
        %2225 = vmatpush1.xpose.msra.mxu0 0.0
        %2226 = vmatprep.subr.mxu0 0.0
        %2227 = vmatpush1.xpose.msra.mxu0 0.0
        %2228 = vmatprep.subr.mxu0 0.0
        %2229 = vmatpush1.xpose.msra.mxu0 0.0
        %2230 = vmatprep.subr.mxu0 0.0
        %2231 = vmatpush1.xpose.msra.mxu0 0.0
        %2232 = vmatprep.subr.mxu0 0.0
        %2233 = vmatpush1.xpose.msra.mxu0 0.0
        %2234 = vmatprep.mubr.f32.mxu0 0.0
        %2235 = vmatmul.mubr.f32.gmra.mrb[0].mxu0 %v2165
        %v2236 = vpop.f32.mrb[0].mxu0
        %v2237 = vadd.f32 0.0, %v2236
        %v2238 = vpop.f32.mrb[0].mxu0
        %2239 = vdwg.mxu0
        %v2240 = vmul.f32 %v2237, 0.25
        %v2241 = vsel %vm1586, %v2240, -inf
        %2242 = vmax.xlane.f32.xlu0 %v2241
        %v2243 = vpop.xlane.xlu0 %2242
        %v2244 = vsub.f32 %v2240, %v2243
        %v2245 = vmul.f32 %v2244, 1.442695
        %v2246 = vpow.pop %v2245
        %v2247 = vsel %vm1586, %v2246, 0.0
        %2248 = vadd.xlane.f32.xlu0 %v2247
        %v2249 = vpop.xlane.xlu0 %2248
        %v2250 = vrcp.pop %v2249
        %v2251 = vmul.f32 %v2246, %v2250
        %v2253 = vsel %vm2163, %v2059, 0
        %v2256 = vsel %vm2163, %v2150, 0
        %2258 = vmatprep.subr.mxu0 0.0
        %2259 = vmatpush1.xpose.msra.mxu0 %v2256
        %2260 = vmatprep.subr.mxu0 0.0
        %2261 = vmatpush1.xpose.msra.mxu0 0.0
        %2262 = vmatprep.subr.mxu0 0.0
        %2263 = vmatpush1.xpose.msra.mxu0 0.0
        %2264 = vmatprep.subr.mxu0 0.0
        %2265 = vmatpush1.xpose.msra.mxu0 0.0
        %2266 = vmatprep.subr.mxu0 0.0
        %2267 = vmatpush1.xpose.msra.mxu0 0.0
        %2268 = vmatprep.subr.mxu0 0.0
        %2269 = vmatpush1.xpose.msra.mxu0 0.0
        %2270 = vmatprep.subr.mxu0 0.0
        %2271 = vmatpush1.xpose.msra.mxu0 0.0
        %2272 = vmatprep.subr.mxu0 0.0
        %2273 = vmatpush1.xpose.msra.mxu0 0.0
        %2274 = vmatprep.subr.mxu0 0.0
        %2275 = vmatpush1.xpose.msra.mxu0 0.0
        %2276 = vmatprep.subr.mxu0 0.0
        %2277 = vmatpush1.xpose.msra.mxu0 0.0
        %2278 = vmatprep.subr.mxu0 0.0
        %2279 = vmatpush1.xpose.msra.mxu0 0.0
        %2280 = vmatprep.subr.mxu0 0.0
        %2281 = vmatpush1.xpose.msra.mxu0 0.0
        %2282 = vmatprep.subr.mxu0 0.0
        %2283 = vmatpush1.xpose.msra.mxu0 0.0
        %2284 = vmatprep.subr.mxu0 0.0
        %2285 = vmatpush1.xpose.msra.mxu0 0.0
        %2286 = vmatprep.subr.mxu0 0.0
        %2287 = vmatpush1.xpose.msra.mxu0 0.0
        %2288 = vmatprep.subr.mxu0 0.0
        %2289 = vmatpush1.xpose.msra.mxu0 0.0
        %2290 = vmatprep.subr.mxu0 0.0
        %2291 = vmatpush1.xpose.msra.mxu0 0.0
        %2292 = vmatprep.subr.mxu0 0.0
        %2293 = vmatpush1.xpose.msra.mxu0 0.0
        %2294 = vmatprep.subr.mxu0 0.0
        %2295 = vmatpush1.xpose.msra.mxu0 0.0
        %2296 = vmatprep.subr.mxu0 0.0
        %2297 = vmatpush1.xpose.msra.mxu0 0.0
        %2298 = vmatprep.subr.mxu0 0.0
        %2299 = vmatpush1.xpose.msra.mxu0 0.0
        %2300 = vmatprep.subr.mxu0 0.0
        %2301 = vmatpush1.xpose.msra.mxu0 0.0
        %2302 = vmatprep.subr.mxu0 0.0
        %2303 = vmatpush1.xpose.msra.mxu0 0.0
        %2304 = vmatprep.subr.mxu0 0.0
        %2305 = vmatpush1.xpose.msra.mxu0 0.0
        %2306 = vmatprep.subr.mxu0 0.0
        %2307 = vmatpush1.xpose.msra.mxu0 0.0
        %2308 = vmatprep.subr.mxu0 0.0
        %2309 = vmatpush1.xpose.msra.mxu0 0.0
        %2310 = vmatprep.subr.mxu0 0.0
        %2311 = vmatpush1.xpose.msra.mxu0 0.0
        %2312 = vmatprep.subr.mxu0 0.0
        %2313 = vmatpush1.xpose.msra.mxu0 0.0
        %2314 = vmatprep.subr.mxu0 0.0
        %2315 = vmatpush1.xpose.msra.mxu0 0.0
        %2316 = vmatprep.subr.mxu0 0.0
        %2317 = vmatpush1.xpose.msra.mxu0 0.0
        %2318 = vmatprep.subr.mxu0 0.0
        %2319 = vmatpush1.xpose.msra.mxu0 0.0
        %2320 = vmatprep.subr.mxu0 0.0
        %2321 = vmatpush1.xpose.msra.mxu0 0.0
        %2322 = vmatprep.mubr.f32.mxu0 0.0
        %2323 = vmatmul.mubr.f32.gmra.mrb[0].mxu0 %v2253
        %v2324 = vpop.f32.mrb[0].mxu0
        %v2325 = vadd.f32 0.0, %v2324
        %v2326 = vpop.f32.mrb[0].mxu0
        %2327 = vdwg.mxu0
        %v2328 = vmul.f32 %v2325, 0.25
        %v2329 = vsel %vm1586, %v2328, -inf
        %2330 = vmax.xlane.f32.xlu0 %v2329
        %v2331 = vpop.xlane.xlu0 %2330
        %v2332 = vsub.f32 %v2328, %v2331
        %v2333 = vmul.f32 %v2332, 1.442695
        %v2334 = vpow.pop %v2333
        %v2335 = vsel %vm1586, %v2334, 0.0
        %2336 = vadd.xlane.f32.xlu0 %v2335
        %v2337 = vpop.xlane.xlu0 %2336
        %v2338 = vrcp.pop %v2337
        %v2339 = vmul.f32 %v2334, %v2338
        %v2340 = vadd.f32 %v2251, %v2339
        %v2342 = vsel %vm2163, %v2064, 0
        %v2345 = vsel %vm2163, %v2155, 0
        %2347 = vmatprep.subr.mxu0 0.0
        %2348 = vmatpush1.xpose.msra.mxu0 %v2345
        %2349 = vmatprep.subr.mxu0 0.0
        %2350 = vmatpush1.xpose.msra.mxu0 0.0
        %2351 = vmatprep.subr.mxu0 0.0
        %2352 = vmatpush1.xpose.msra.mxu0 0.0
        %2353 = vmatprep.subr.mxu0 0.0
        %2354 = vmatpush1.xpose.msra.mxu0 0.0
        %2355 = vmatprep.subr.mxu0 0.0
        %2356 = vmatpush1.xpose.msra.mxu0 0.0
        %2357 = vmatprep.subr.mxu0 0.0
        %2358 = vmatpush1.xpose.msra.mxu0 0.0
        %2359 = vmatprep.subr.mxu0 0.0
        %2360 = vmatpush1.xpose.msra.mxu0 0.0
        %2361 = vmatprep.subr.mxu0 0.0
        %2362 = vmatpush1.xpose.msra.mxu0 0.0
        %2363 = vmatprep.subr.mxu0 0.0
        %2364 = vmatpush1.xpose.msra.mxu0 0.0
        %2365 = vmatprep.subr.mxu0 0.0
        %2366 = vmatpush1.xpose.msra.mxu0 0.0
        %2367 = vmatprep.subr.mxu0 0.0
        %2368 = vmatpush1.xpose.msra.mxu0 0.0
        %2369 = vmatprep.subr.mxu0 0.0
        %2370 = vmatpush1.xpose.msra.mxu0 0.0
        %2371 = vmatprep.subr.mxu0 0.0
        %2372 = vmatpush1.xpose.msra.mxu0 0.0
        %2373 = vmatprep.subr.mxu0 0.0
        %2374 = vmatpush1.xpose.msra.mxu0 0.0
        %2375 = vmatprep.subr.mxu0 0.0
        %2376 = vmatpush1.xpose.msra.mxu0 0.0
        %2377 = vmatprep.subr.mxu0 0.0
        %2378 = vmatpush1.xpose.msra.mxu0 0.0
        %2379 = vmatprep.subr.mxu0 0.0
        %2380 = vmatpush1.xpose.msra.mxu0 0.0
        %2381 = vmatprep.subr.mxu0 0.0
        %2382 = vmatpush1.xpose.msra.mxu0 0.0
        %2383 = vmatprep.subr.mxu0 0.0
        %2384 = vmatpush1.xpose.msra.mxu0 0.0
        %2385 = vmatprep.subr.mxu0 0.0
        %2386 = vmatpush1.xpose.msra.mxu0 0.0
        %2387 = vmatprep.subr.mxu0 0.0
        %2388 = vmatpush1.xpose.msra.mxu0 0.0
        %2389 = vmatprep.subr.mxu0 0.0
        %2390 = vmatpush1.xpose.msra.mxu0 0.0
        %2391 = vmatprep.subr.mxu0 0.0
        %2392 = vmatpush1.xpose.msra.mxu0 0.0
        %2393 = vmatprep.subr.mxu0 0.0
        %2394 = vmatpush1.xpose.msra.mxu0 0.0
        %2395 = vmatprep.subr.mxu0 0.0
        %2396 = vmatpush1.xpose.msra.mxu0 0.0
        %2397 = vmatprep.subr.mxu0 0.0
        %2398 = vmatpush1.xpose.msra.mxu0 0.0
        %2399 = vmatprep.subr.mxu0 0.0
        %2400 = vmatpush1.xpose.msra.mxu0 0.0
        %2401 = vmatprep.subr.mxu0 0.0
        %2402 = vmatpush1.xpose.msra.mxu0 0.0
        %2403 = vmatprep.subr.mxu0 0.0
        %2404 = vmatpush1.xpose.msra.mxu0 0.0
        %2405 = vmatprep.subr.mxu0 0.0
        %2406 = vmatpush1.xpose.msra.mxu0 0.0
        %2407 = vmatprep.subr.mxu0 0.0
        %2408 = vmatpush1.xpose.msra.mxu0 0.0
        %2409 = vmatprep.subr.mxu0 0.0
        %2410 = vmatpush1.xpose.msra.mxu0 0.0
        %2411 = vmatprep.mubr.f32.mxu0 0.0
        %2412 = vmatmul.mubr.f32.gmra.mrb[0].mxu0 %v2342
        %v2413 = vpop.f32.mrb[0].mxu0
        %v2414 = vadd.f32 0.0, %v2413
        %v2415 = vpop.f32.mrb[0].mxu0
        %2416 = vdwg.mxu0
        %v2417 = vmul.f32 %v2414, 0.25
        %v2418 = vsel %vm1586, %v2417, -inf
        %2419 = vmax.xlane.f32.xlu0 %v2418
        %v2420 = vpop.xlane.xlu0 %2419
        %v2421 = vsub.f32 %v2417, %v2420
        %v2422 = vmul.f32 %v2421, 1.442695
        %v2423 = vpow.pop %v2422
        %v2424 = vsel %vm1586, %v2423, 0.0
        %2425 = vadd.xlane.f32.xlu0 %v2424
        %v2426 = vpop.xlane.xlu0 %2425
        %v2427 = vrcp.pop %v2426
        %v2428 = vmul.f32 %v2423, %v2427
        %v2429 = vadd.f32 %v2340, %v2428
        %v2431 = vsel %vm2163, %v2069, 0
        %v2434 = vsel %vm2163, %v2160, 0
        %2436 = vmatprep.subr.mxu0 0.0
        %2437 = vmatpush1.xpose.msra.mxu0 %v2434
        %2438 = vmatprep.subr.mxu0 0.0
        %2439 = vmatpush1.xpose.msra.mxu0 0.0
        %2440 = vmatprep.subr.mxu0 0.0
        %2441 = vmatpush1.xpose.msra.mxu0 0.0
        %2442 = vmatprep.subr.mxu0 0.0
        %2443 = vmatpush1.xpose.msra.mxu0 0.0
        %2444 = vmatprep.subr.mxu0 0.0
        %2445 = vmatpush1.xpose.msra.mxu0 0.0
        %2446 = vmatprep.subr.mxu0 0.0
        %2447 = vmatpush1.xpose.msra.mxu0 0.0
        %2448 = vmatprep.subr.mxu0 0.0
        %2449 = vmatpush1.xpose.msra.mxu0 0.0
        %2450 = vmatprep.subr.mxu0 0.0
        %2451 = vmatpush1.xpose.msra.mxu0 0.0
        %2452 = vmatprep.subr.mxu0 0.0
        %2453 = vmatpush1.xpose.msra.mxu0 0.0
        %2454 = vmatprep.subr.mxu0 0.0
        %2455 = vmatpush1.xpose.msra.mxu0 0.0
        %2456 = vmatprep.subr.mxu0 0.0
        %2457 = vmatpush1.xpose.msra.mxu0 0.0
        %2458 = vmatprep.subr.mxu0 0.0
        %2459 = vmatpush1.xpose.msra.mxu0 0.0
        %2460 = vmatprep.subr.mxu0 0.0
        %2461 = vmatpush1.xpose.msra.mxu0 0.0
        %2462 = vmatprep.subr.mxu0 0.0
        %2463 = vmatpush1.xpose.msra.mxu0 0.0
        %2464 = vmatprep.subr.mxu0 0.0
        %2465 = vmatpush1.xpose.msra.mxu0 0.0
        %2466 = vmatprep.subr.mxu0 0.0
        %2467 = vmatpush1.xpose.msra.mxu0 0.0
        %2468 = vmatprep.subr.mxu0 0.0
        %2469 = vmatpush1.xpose.msra.mxu0 0.0
        %2470 = vmatprep.subr.mxu0 0.0
        %2471 = vmatpush1.xpose.msra.mxu0 0.0
        %2472 = vmatprep.subr.mxu0 0.0
        %2473 = vmatpush1.xpose.msra.mxu0 0.0
        %2474 = vmatprep.subr.mxu0 0.0
        %2475 = vmatpush1.xpose.msra.mxu0 0.0
        %2476 = vmatprep.subr.mxu0 0.0
        %2477 = vmatpush1.xpose.msra.mxu0 0.0
        %2478 = vmatprep.subr.mxu0 0.0
        %2479 = vmatpush1.xpose.msra.mxu0 0.0
        %2480 = vmatprep.subr.mxu0 0.0
        %2481 = vmatpush1.xpose.msra.mxu0 0.0
        %2482 = vmatprep.subr.mxu0 0.0
        %2483 = vmatpush1.xpose.msra.mxu0 0.0
        %2484 = vmatprep.subr.mxu0 0.0
        %2485 = vmatpush1.xpose.msra.mxu0 0.0
        %2486 = vmatprep.subr.mxu0 0.0
        %2487 = vmatpush1.xpose.msra.mxu0 0.0
        %2488 = vmatprep.subr.mxu0 0.0
        %2489 = vmatpush1.xpose.msra.mxu0 0.0
        %2490 = vmatprep.subr.mxu0 0.0
        %2491 = vmatpush1.xpose.msra.mxu0 0.0
        %2492 = vmatprep.subr.mxu0 0.0
        %2493 = vmatpush1.xpose.msra.mxu0 0.0
        %2494 = vmatprep.subr.mxu0 0.0
        %2495 = vmatpush1.xpose.msra.mxu0 0.0
        %2496 = vmatprep.subr.mxu0 0.0
        %2497 = vmatpush1.xpose.msra.mxu0 0.0
        %2498 = vmatprep.subr.mxu0 0.0
        %2499 = vmatpush1.xpose.msra.mxu0 0.0
        %2500 = vmatprep.mubr.f32.mxu0 0.0
        %2501 = vmatmul.mubr.f32.gmra.mrb[0].mxu0 %v2431
        %v2502 = vpop.f32.mrb[0].mxu0
        %v2503 = vadd.f32 0.0, %v2502
        %v2504 = vpop.f32.mrb[0].mxu0
        %2505 = vdwg.mxu0
        %v2506 = vmul.f32 %v2503, 0.25
        %v2507 = vsel %vm1586, %v2506, -inf
        %2508 = vmax.xlane.f32.xlu0 %v2507
        %v2509 = vpop.xlane.xlu0 %2508
        %v2510 = vsub.f32 %v2506, %v2509
        %v2511 = vmul.f32 %v2510, 1.442695
        %v2512 = vpow.pop %v2511
        %v2513 = vsel %vm1586, %v2512, 0.0
        %2514 = vadd.xlane.f32.xlu0 %v2513
        %v2515 = vpop.xlane.xlu0 %2514
        %v2516 = vrcp.pop %v2515
        %v2517 = vmul.f32 %v2512, %v2516
        %v2518 = vadd.f32 %v2429, %v2517
        %v2519 = vmul.f32 %v2518, 0.25
        %2520 = vst.msk [vmem:[%s643] sm:$0xff] %vm1586, %v2519
        %2521 = vrot.lane.b32.xlu0 %v2054, 112
        %v2522 = vpop.permute.xlu0 %2521
        %2523 = vrot.lane.b32.xlu0 %v2145, 112
        %v2524 = vpop.permute.xlu0 %2523
        %v2525 = vsel %vm2163, %v2522, 0
        %v2527 = vsel %vm2163, %v2524, 0
        %2529 = vmatprep.subr.mxu0 0.0
        %2530 = vmatpush1.xpose.msra.mxu0 %v2527
        %2531 = vmatprep.subr.mxu0 0.0
        %2532 = vmatpush1.xpose.msra.mxu0 0.0
        %2533 = vmatprep.subr.mxu0 0.0
        %2534 = vmatpush1.xpose.msra.mxu0 0.0
        %2535 = vmatprep.subr.mxu0 0.0
        %2536 = vmatpush1.xpose.msra.mxu0 0.0
        %2537 = vmatprep.subr.mxu0 0.0
        %2538 = vmatpush1.xpose.msra.mxu0 0.0
        %2539 = vmatprep.subr.mxu0 0.0
        %2540 = vmatpush1.xpose.msra.mxu0 0.0
        %2541 = vmatprep.subr.mxu0 0.0
        %2542 = vmatpush1.xpose.msra.mxu0 0.0
        %2543 = vmatprep.subr.mxu0 0.0
        %2544 = vmatpush1.xpose.msra.mxu0 0.0
        %2545 = vmatprep.subr.mxu0 0.0
        %2546 = vmatpush1.xpose.msra.mxu0 0.0
        %2547 = vmatprep.subr.mxu0 0.0
        %2548 = vmatpush1.xpose.msra.mxu0 0.0
        %2549 = vmatprep.subr.mxu0 0.0
        %2550 = vmatpush1.xpose.msra.mxu0 0.0
        %2551 = vmatprep.subr.mxu0 0.0
        %2552 = vmatpush1.xpose.msra.mxu0 0.0
        %2553 = vmatprep.subr.mxu0 0.0
        %2554 = vmatpush1.xpose.msra.mxu0 0.0
        %2555 = vmatprep.subr.mxu0 0.0
        %2556 = vmatpush1.xpose.msra.mxu0 0.0
        %2557 = vmatprep.subr.mxu0 0.0
        %2558 = vmatpush1.xpose.msra.mxu0 0.0
        %2559 = vmatprep.subr.mxu0 0.0
        %2560 = vmatpush1.xpose.msra.mxu0 0.0
        %2561 = vmatprep.subr.mxu0 0.0
        %2562 = vmatpush1.xpose.msra.mxu0 0.0
        %2563 = vmatprep.subr.mxu0 0.0
        %2564 = vmatpush1.xpose.msra.mxu0 0.0
        %2565 = vmatprep.subr.mxu0 0.0
        %2566 = vmatpush1.xpose.msra.mxu0 0.0
        %2567 = vmatprep.subr.mxu0 0.0
        %2568 = vmatpush1.xpose.msra.mxu0 0.0
        %2569 = vmatprep.subr.mxu0 0.0
        %2570 = vmatpush1.xpose.msra.mxu0 0.0
        %2571 = vmatprep.subr.mxu0 0.0
        %2572 = vmatpush1.xpose.msra.mxu0 0.0
        %2573 = vmatprep.subr.mxu0 0.0
        %2574 = vmatpush1.xpose.msra.mxu0 0.0
        %2575 = vmatprep.subr.mxu0 0.0
        %2576 = vmatpush1.xpose.msra.mxu0 0.0
        %2577 = vmatprep.subr.mxu0 0.0
        %2578 = vmatpush1.xpose.msra.mxu0 0.0
        %2579 = vmatprep.subr.mxu0 0.0
        %2580 = vmatpush1.xpose.msra.mxu0 0.0
        %2581 = vmatprep.subr.mxu0 0.0
        %2582 = vmatpush1.xpose.msra.mxu0 0.0
        %2583 = vmatprep.subr.mxu0 0.0
        %2584 = vmatpush1.xpose.msra.mxu0 0.0
        %2585 = vmatprep.subr.mxu0 0.0
        %2586 = vmatpush1.xpose.msra.mxu0 0.0
        %2587 = vmatprep.subr.mxu0 0.0
        %2588 = vmatpush1.xpose.msra.mxu0 0.0
        %2589 = vmatprep.subr.mxu0 0.0
        %2590 = vmatpush1.xpose.msra.mxu0 0.0
        %2591 = vmatprep.subr.mxu0 0.0
        %2592 = vmatpush1.xpose.msra.mxu0 0.0
        %2593 = vmatprep.mubr.f32.mxu0 0.0
        %2594 = vmatmul.mubr.f32.gmra.mrb[0].mxu0 %v2525
        %v2595 = vpop.f32.mrb[0].mxu0
        %v2596 = vadd.f32 0.0, %v2595
        %v2597 = vpop.f32.mrb[0].mxu0
        %2598 = vdwg.mxu0
        %v2599 = vmul.f32 %v2596, 0.25
        %v2600 = vsel %vm1586, %v2599, -inf
        %2601 = vmax.xlane.f32.xlu0 %v2600
        %v2602 = vpop.xlane.xlu0 %2601
        %v2603 = vsub.f32 %v2599, %v2602
        %v2604 = vmul.f32 %v2603, 1.442695
        %v2605 = vpow.pop %v2604
        %v2606 = vsel %vm1586, %v2605, 0.0
        %2607 = vadd.xlane.f32.xlu0 %v2606
        %v2608 = vpop.xlane.xlu0 %2607
        %v2609 = vrcp.pop %v2608
        %v2610 = vmul.f32 %v2605, %v2609
        %2611 = vrot.lane.b32.xlu0 %v2059, 112
        %v2612 = vpop.permute.xlu0 %2611
        %2613 = vrot.lane.b32.xlu0 %v2150, 112
        %v2614 = vpop.permute.xlu0 %2613
        %v2615 = vsel %vm2163, %v2612, 0
        %v2617 = vsel %vm2163, %v2614, 0
        %2619 = vmatprep.subr.mxu0 0.0
        %2620 = vmatpush1.xpose.msra.mxu0 %v2617
        %2621 = vmatprep.subr.mxu0 0.0
        %2622 = vmatpush1.xpose.msra.mxu0 0.0
        %2623 = vmatprep.subr.mxu0 0.0
        %2624 = vmatpush1.xpose.msra.mxu0 0.0
        %2625 = vmatprep.subr.mxu0 0.0
        %2626 = vmatpush1.xpose.msra.mxu0 0.0
        %2627 = vmatprep.subr.mxu0 0.0
        %2628 = vmatpush1.xpose.msra.mxu0 0.0
        %2629 = vmatprep.subr.mxu0 0.0
        %2630 = vmatpush1.xpose.msra.mxu0 0.0
        %2631 = vmatprep.subr.mxu0 0.0
        %2632 = vmatpush1.xpose.msra.mxu0 0.0
        %2633 = vmatprep.subr.mxu0 0.0
        %2634 = vmatpush1.xpose.msra.mxu0 0.0
        %2635 = vmatprep.subr.mxu0 0.0
        %2636 = vmatpush1.xpose.msra.mxu0 0.0
        %2637 = vmatprep.subr.mxu0 0.0
        %2638 = vmatpush1.xpose.msra.mxu0 0.0
        %2639 = vmatprep.subr.mxu0 0.0
        %2640 = vmatpush1.xpose.msra.mxu0 0.0
        %2641 = vmatprep.subr.mxu0 0.0
        %2642 = vmatpush1.xpose.msra.mxu0 0.0
        %2643 = vmatprep.subr.mxu0 0.0
        %2644 = vmatpush1.xpose.msra.mxu0 0.0
        %2645 = vmatprep.subr.mxu0 0.0
        %2646 = vmatpush1.xpose.msra.mxu0 0.0
        %2647 = vmatprep.subr.mxu0 0.0
        %2648 = vmatpush1.xpose.msra.mxu0 0.0
        %2649 = vmatprep.subr.mxu0 0.0
        %2650 = vmatpush1.xpose.msra.mxu0 0.0
        %2651 = vmatprep.subr.mxu0 0.0
        %2652 = vmatpush1.xpose.msra.mxu0 0.0
        %2653 = vmatprep.subr.mxu0 0.0
        %2654 = vmatpush1.xpose.msra.mxu0 0.0
        %2655 = vmatprep.subr.mxu0 0.0
        %2656 = vmatpush1.xpose.msra.mxu0 0.0
        %2657 = vmatprep.subr.mxu0 0.0
        %2658 = vmatpush1.xpose.msra.mxu0 0.0
        %2659 = vmatprep.subr.mxu0 0.0
        %2660 = vmatpush1.xpose.msra.mxu0 0.0
        %2661 = vmatprep.subr.mxu0 0.0
        %2662 = vmatpush1.xpose.msra.mxu0 0.0
        %2663 = vmatprep.subr.mxu0 0.0
        %2664 = vmatpush1.xpose.msra.mxu0 0.0
        %2665 = vmatprep.subr.mxu0 0.0
        %2666 = vmatpush1.xpose.msra.mxu0 0.0
        %2667 = vmatprep.subr.mxu0 0.0
        %2668 = vmatpush1.xpose.msra.mxu0 0.0
        %2669 = vmatprep.subr.mxu0 0.0
        %2670 = vmatpush1.xpose.msra.mxu0 0.0
        %2671 = vmatprep.subr.mxu0 0.0
        %2672 = vmatpush1.xpose.msra.mxu0 0.0
        %2673 = vmatprep.subr.mxu0 0.0
        %2674 = vmatpush1.xpose.msra.mxu0 0.0
        %2675 = vmatprep.subr.mxu0 0.0
        %2676 = vmatpush1.xpose.msra.mxu0 0.0
        %2677 = vmatprep.subr.mxu0 0.0
        %2678 = vmatpush1.xpose.msra.mxu0 0.0
        %2679 = vmatprep.subr.mxu0 0.0
        %2680 = vmatpush1.xpose.msra.mxu0 0.0
        %2681 = vmatprep.subr.mxu0 0.0
        %2682 = vmatpush1.xpose.msra.mxu0 0.0
        %2683 = vmatprep.mubr.f32.mxu0 0.0
        %2684 = vmatmul.mubr.f32.gmra.mrb[0].mxu0 %v2615
        %v2685 = vpop.f32.mrb[0].mxu0
        %v2686 = vadd.f32 0.0, %v2685
        %v2687 = vpop.f32.mrb[0].mxu0
        %2688 = vdwg.mxu0
        %v2689 = vmul.f32 %v2686, 0.25
        %v2690 = vsel %vm1586, %v2689, -inf
        %2691 = vmax.xlane.f32.xlu0 %v2690
        %v2692 = vpop.xlane.xlu0 %2691
        %v2693 = vsub.f32 %v2689, %v2692
        %v2694 = vmul.f32 %v2693, 1.442695
        %v2695 = vpow.pop %v2694
        %v2696 = vsel %vm1586, %v2695, 0.0
        %2697 = vadd.xlane.f32.xlu0 %v2696
        %v2698 = vpop.xlane.xlu0 %2697
        %v2699 = vrcp.pop %v2698
        %v2700 = vmul.f32 %v2695, %v2699
        %v2701 = vadd.f32 %v2610, %v2700
        %2702 = vrot.lane.b32.xlu0 %v2064, 112
        %v2703 = vpop.permute.xlu0 %2702
        %2704 = vrot.lane.b32.xlu0 %v2155, 112
        %v2705 = vpop.permute.xlu0 %2704
        %v2706 = vsel %vm2163, %v2703, 0
        %v2708 = vsel %vm2163, %v2705, 0
        %2710 = vmatprep.subr.mxu0 0.0
        %2711 = vmatpush1.xpose.msra.mxu0 %v2708
        %2712 = vmatprep.subr.mxu0 0.0
        %2713 = vmatpush1.xpose.msra.mxu0 0.0
        %2714 = vmatprep.subr.mxu0 0.0
        %2715 = vmatpush1.xpose.msra.mxu0 0.0
        %2716 = vmatprep.subr.mxu0 0.0
        %2717 = vmatpush1.xpose.msra.mxu0 0.0
        %2718 = vmatprep.subr.mxu0 0.0
        %2719 = vmatpush1.xpose.msra.mxu0 0.0
        %2720 = vmatprep.subr.mxu0 0.0
        %2721 = vmatpush1.xpose.msra.mxu0 0.0
        %2722 = vmatprep.subr.mxu0 0.0
        %2723 = vmatpush1.xpose.msra.mxu0 0.0
        %2724 = vmatprep.subr.mxu0 0.0
        %2725 = vmatpush1.xpose.msra.mxu0 0.0
        %2726 = vmatprep.subr.mxu0 0.0
        %2727 = vmatpush1.xpose.msra.mxu0 0.0
        %2728 = vmatprep.subr.mxu0 0.0
        %2729 = vmatpush1.xpose.msra.mxu0 0.0
        %2730 = vmatprep.subr.mxu0 0.0
        %2731 = vmatpush1.xpose.msra.mxu0 0.0
        %2732 = vmatprep.subr.mxu0 0.0
        %2733 = vmatpush1.xpose.msra.mxu0 0.0
        %2734 = vmatprep.subr.mxu0 0.0
        %2735 = vmatpush1.xpose.msra.mxu0 0.0
        %2736 = vmatprep.subr.mxu0 0.0
        %2737 = vmatpush1.xpose.msra.mxu0 0.0
        %2738 = vmatprep.subr.mxu0 0.0
        %2739 = vmatpush1.xpose.msra.mxu0 0.0
        %2740 = vmatprep.subr.mxu0 0.0
        %2741 = vmatpush1.xpose.msra.mxu0 0.0
        %2742 = vmatprep.subr.mxu0 0.0
        %2743 = vmatpush1.xpose.msra.mxu0 0.0
        %2744 = vmatprep.subr.mxu0 0.0
        %2745 = vmatpush1.xpose.msra.mxu0 0.0
        %2746 = vmatprep.subr.mxu0 0.0
        %2747 = vmatpush1.xpose.msra.mxu0 0.0
        %2748 = vmatprep.subr.mxu0 0.0
        %2749 = vmatpush1.xpose.msra.mxu0 0.0
        %2750 = vmatprep.subr.mxu0 0.0
        %2751 = vmatpush1.xpose.msra.mxu0 0.0
        %2752 = vmatprep.subr.mxu0 0.0
        %2753 = vmatpush1.xpose.msra.mxu0 0.0
        %2754 = vmatprep.subr.mxu0 0.0
        %2755 = vmatpush1.xpose.msra.mxu0 0.0
        %2756 = vmatprep.subr.mxu0 0.0
        %2757 = vmatpush1.xpose.msra.mxu0 0.0
        %2758 = vmatprep.subr.mxu0 0.0
        %2759 = vmatpush1.xpose.msra.mxu0 0.0
        %2760 = vmatprep.subr.mxu0 0.0
        %2761 = vmatpush1.xpose.msra.mxu0 0.0
        %2762 = vmatprep.subr.mxu0 0.0
        %2763 = vmatpush1.xpose.msra.mxu0 0.0
        %2764 = vmatprep.subr.mxu0 0.0
        %2765 = vmatpush1.xpose.msra.mxu0 0.0
        %2766 = vmatprep.subr.mxu0 0.0
        %2767 = vmatpush1.xpose.msra.mxu0 0.0
        %2768 = vmatprep.subr.mxu0 0.0
        %2769 = vmatpush1.xpose.msra.mxu0 0.0
        %2770 = vmatprep.subr.mxu0 0.0
        %2771 = vmatpush1.xpose.msra.mxu0 0.0
        %2772 = vmatprep.subr.mxu0 0.0
        %2773 = vmatpush1.xpose.msra.mxu0 0.0
        %2774 = vmatprep.mubr.f32.mxu0 0.0
        %2775 = vmatmul.mubr.f32.gmra.mrb[0].mxu0 %v2706
        %v2776 = vpop.f32.mrb[0].mxu0
        %v2777 = vadd.f32 0.0, %v2776
        %v2778 = vpop.f32.mrb[0].mxu0
        %2779 = vdwg.mxu0
        %v2780 = vmul.f32 %v2777, 0.25
        %v2781 = vsel %vm1586, %v2780, -inf
        %2782 = vmax.xlane.f32.xlu0 %v2781
        %v2783 = vpop.xlane.xlu0 %2782
        %v2784 = vsub.f32 %v2780, %v2783
        %v2785 = vmul.f32 %v2784, 1.442695
        %v2786 = vpow.pop %v2785
        %v2787 = vsel %vm1586, %v2786, 0.0
        %2788 = vadd.xlane.f32.xlu0 %v2787
        %v2789 = vpop.xlane.xlu0 %2788
        %v2790 = vrcp.pop %v2789
        %v2791 = vmul.f32 %v2786, %v2790
        %v2792 = vadd.f32 %v2701, %v2791
        %2793 = vrot.lane.b32.xlu0 %v2069, 112
        %v2794 = vpop.permute.xlu0 %2793
        %2795 = vrot.lane.b32.xlu0 %v2160, 112
        %v2796 = vpop.permute.xlu0 %2795
        %v2797 = vsel %vm2163, %v2794, 0
        %v2799 = vsel %vm2163, %v2796, 0
        %2801 = vmatprep.subr.mxu0 0.0
        %2802 = vmatpush1.xpose.msra.mxu0 %v2799
        %2803 = vmatprep.subr.mxu0 0.0
        %2804 = vmatpush1.xpose.msra.mxu0 0.0
        %2805 = vmatprep.subr.mxu0 0.0
        %2806 = vmatpush1.xpose.msra.mxu0 0.0
        %2807 = vmatprep.subr.mxu0 0.0
        %2808 = vmatpush1.xpose.msra.mxu0 0.0
        %2809 = vmatprep.subr.mxu0 0.0
        %2810 = vmatpush1.xpose.msra.mxu0 0.0
        %2811 = vmatprep.subr.mxu0 0.0
        %2812 = vmatpush1.xpose.msra.mxu0 0.0
        %2813 = vmatprep.subr.mxu0 0.0
        %2814 = vmatpush1.xpose.msra.mxu0 0.0
        %2815 = vmatprep.subr.mxu0 0.0
        %2816 = vmatpush1.xpose.msra.mxu0 0.0
        %2817 = vmatprep.subr.mxu0 0.0
        %2818 = vmatpush1.xpose.msra.mxu0 0.0
        %2819 = vmatprep.subr.mxu0 0.0
        %2820 = vmatpush1.xpose.msra.mxu0 0.0
        %2821 = vmatprep.subr.mxu0 0.0
        %2822 = vmatpush1.xpose.msra.mxu0 0.0
        %2823 = vmatprep.subr.mxu0 0.0
        %2824 = vmatpush1.xpose.msra.mxu0 0.0
        %2825 = vmatprep.subr.mxu0 0.0
        %2826 = vmatpush1.xpose.msra.mxu0 0.0
        %2827 = vmatprep.subr.mxu0 0.0
        %2828 = vmatpush1.xpose.msra.mxu0 0.0
        %2829 = vmatprep.subr.mxu0 0.0
        %2830 = vmatpush1.xpose.msra.mxu0 0.0
        %2831 = vmatprep.subr.mxu0 0.0
        %2832 = vmatpush1.xpose.msra.mxu0 0.0
        %2833 = vmatprep.subr.mxu0 0.0
        %2834 = vmatpush1.xpose.msra.mxu0 0.0
        %2835 = vmatprep.subr.mxu0 0.0
        %2836 = vmatpush1.xpose.msra.mxu0 0.0
        %2837 = vmatprep.subr.mxu0 0.0
        %2838 = vmatpush1.xpose.msra.mxu0 0.0
        %2839 = vmatprep.subr.mxu0 0.0
        %2840 = vmatpush1.xpose.msra.mxu0 0.0
        %2841 = vmatprep.subr.mxu0 0.0
        %2842 = vmatpush1.xpose.msra.mxu0 0.0
        %2843 = vmatprep.subr.mxu0 0.0
        %2844 = vmatpush1.xpose.msra.mxu0 0.0
        %2845 = vmatprep.subr.mxu0 0.0
        %2846 = vmatpush1.xpose.msra.mxu0 0.0
        %2847 = vmatprep.subr.mxu0 0.0
        %2848 = vmatpush1.xpose.msra.mxu0 0.0
        %2849 = vmatprep.subr.mxu0 0.0
        %2850 = vmatpush1.xpose.msra.mxu0 0.0
        %2851 = vmatprep.subr.mxu0 0.0
        %2852 = vmatpush1.xpose.msra.mxu0 0.0
        %2853 = vmatprep.subr.mxu0 0.0
        %2854 = vmatpush1.xpose.msra.mxu0 0.0
        %2855 = vmatprep.subr.mxu0 0.0
        %2856 = vmatpush1.xpose.msra.mxu0 0.0
        %2857 = vmatprep.subr.mxu0 0.0
        %2858 = vmatpush1.xpose.msra.mxu0 0.0
        %2859 = vmatprep.subr.mxu0 0.0
        %2860 = vmatpush1.xpose.msra.mxu0 0.0
        %2861 = vmatprep.subr.mxu0 0.0
        %2862 = vmatpush1.xpose.msra.mxu0 0.0
        %2863 = vmatprep.subr.mxu0 0.0
        %2864 = vmatpush1.xpose.msra.mxu0 0.0
        %2865 = vmatprep.mubr.f32.mxu0 0.0
        %2866 = vmatmul.mubr.f32.gmra.mrb[0].mxu0 %v2797
        %v2867 = vpop.f32.mrb[0].mxu0
        %v2868 = vadd.f32 0.0, %v2867
        %v2869 = vpop.f32.mrb[0].mxu0
        %2870 = vdwg.mxu0
        %v2871 = vmul.f32 %v2868, 0.25
        %v2872 = vsel %vm1586, %v2871, -inf
        %2873 = vmax.xlane.f32.xlu0 %v2872
        %v2874 = vpop.xlane.xlu0 %2873
        %v2875 = vsub.f32 %v2871, %v2874
        %v2876 = vmul.f32 %v2875, 1.442695
        %v2877 = vpow.pop %v2876
        %v2878 = vsel %vm1586, %v2877, 0.0
        %2879 = vadd.xlane.f32.xlu0 %v2878
        %v2880 = vpop.xlane.xlu0 %2879
        %v2881 = vrcp.pop %v2880
        %v2882 = vmul.f32 %v2877, %v2881
        %v2883 = vadd.f32 %v2792, %v2882
        %v2884 = vmul.f32 %v2883, 0.25
        %s2885 = scalar_lea.vmem %s643, 8
        %2886 = vst.msk [vmem:[%s2885] sm:$0xff] %vm1586, %v2884
        %v2888 = vsel %vm914, %v1958, 0
        %2890 = vmatprep.subr.mxu0 0.0
        %2891 = vmatpush1.msra.mxu0 %v1959
        %2892 = vmatprep.subr.mxu0 0.0
        %2893 = vmatpush1.msra.mxu0 %v1960
        %2894 = vmatprep.subr.mxu0 0.0
        %2895 = vmatpush1.msra.mxu0 %v1961
        %2896 = vmatprep.subr.mxu0 0.0
        %2897 = vmatpush1.msra.mxu0 %v1962
        %2898 = vmatprep.subr.mxu0 0.0
        %2899 = vmatpush1.msra.mxu0 0.0
        %2900 = vmatprep.subr.mxu0 0.0
        %2901 = vmatpush1.msra.mxu0 0.0
        %2902 = vmatprep.subr.mxu0 0.0
        %2903 = vmatpush1.msra.mxu0 0.0
        %2904 = vmatprep.subr.mxu0 0.0
        %2905 = vmatpush1.msra.mxu0 0.0
        %2906 = vmatprep.subr.mxu0 0.0
        %2907 = vmatpush1.msra.mxu0 0.0
        %2908 = vmatprep.subr.mxu0 0.0
        %2909 = vmatpush1.msra.mxu0 0.0
        %2910 = vmatprep.subr.mxu0 0.0
        %2911 = vmatpush1.msra.mxu0 0.0
        %2912 = vmatprep.subr.mxu0 0.0
        %2913 = vmatpush1.msra.mxu0 0.0
        %2914 = vmatprep.subr.mxu0 0.0
        %2915 = vmatpush1.msra.mxu0 0.0
        %2916 = vmatprep.subr.mxu0 0.0
        %2917 = vmatpush1.msra.mxu0 0.0
        %2918 = vmatprep.subr.mxu0 0.0
        %2919 = vmatpush1.msra.mxu0 0.0
        %2920 = vmatprep.subr.mxu0 0.0
        %2921 = vmatpush1.msra.mxu0 0.0
        %2922 = vmatprep.subr.mxu0 0.0
        %2923 = vmatpush1.msra.mxu0 0.0
        %2924 = vmatprep.subr.mxu0 0.0
        %2925 = vmatpush1.msra.mxu0 0.0
        %2926 = vmatprep.subr.mxu0 0.0
        %2927 = vmatpush1.msra.mxu0 0.0
        %2928 = vmatprep.subr.mxu0 0.0
        %2929 = vmatpush1.msra.mxu0 0.0
        %2930 = vmatprep.subr.mxu0 0.0
        %2931 = vmatpush1.msra.mxu0 0.0
        %2932 = vmatprep.subr.mxu0 0.0
        %2933 = vmatpush1.msra.mxu0 0.0
        %2934 = vmatprep.subr.mxu0 0.0
        %2935 = vmatpush1.msra.mxu0 0.0
        %2936 = vmatprep.subr.mxu0 0.0
        %2937 = vmatpush1.msra.mxu0 0.0
        %2938 = vmatprep.subr.mxu0 0.0
        %2939 = vmatpush1.msra.mxu0 0.0
        %2940 = vmatprep.subr.mxu0 0.0
        %2941 = vmatpush1.msra.mxu0 0.0
        %2942 = vmatprep.subr.mxu0 0.0
        %2943 = vmatpush1.msra.mxu0 0.0
        %2944 = vmatprep.subr.mxu0 0.0
        %2945 = vmatpush1.msra.mxu0 0.0
        %2946 = vmatprep.subr.mxu0 0.0
        %2947 = vmatpush1.msra.mxu0 0.0
        %2948 = vmatprep.subr.mxu0 0.0
        %2949 = vmatpush1.msra.mxu0 0.0
        %2950 = vmatprep.subr.mxu0 0.0
        %2951 = vmatpush1.msra.mxu0 0.0
        %2952 = vmatprep.subr.mxu0 0.0
        %2953 = vmatpush1.msra.mxu0 0.0
        %2954 = vmatprep.mubr.f32.mxu0 0.0
        %2955 = vmatmul.mubr.f32.gmra.mrb[0].mxu0 %v2888
        %v2956 = vpop.f32.mrb[0].mxu0
        %v2957 = vadd.f32 %v1973, %v2956
        %v2958 = vpop.f32.mrb[0].mxu0
        %2959 = vdwg.mxu0
        %2960 = vmatprep.subr.mxu0 0.0
        %2961 = vmatpush1.msra.mxu0 %v1964
        %2962 = vmatprep.subr.mxu0 0.0
        %2963 = vmatpush1.msra.mxu0 %v1965
        %2964 = vmatprep.subr.mxu0 0.0
        %2965 = vmatpush1.msra.mxu0 %v1966
        %2966 = vmatprep.subr.mxu0 0.0
        %2967 = vmatpush1.msra.mxu0 %v1967
        %2968 = vmatprep.subr.mxu0 0.0
        %2969 = vmatpush1.msra.mxu0 0.0
        %2970 = vmatprep.subr.mxu0 0.0
        %2971 = vmatpush1.msra.mxu0 0.0
        %2972 = vmatprep.subr.mxu0 0.0
        %2973 = vmatpush1.msra.mxu0 0.0
        %2974 = vmatprep.subr.mxu0 0.0
        %2975 = vmatpush1.msra.mxu0 0.0
        %2976 = vmatprep.subr.mxu0 0.0
        %2977 = vmatpush1.msra.mxu0 0.0
        %2978 = vmatprep.subr.mxu0 0.0
        %2979 = vmatpush1.msra.mxu0 0.0
        %2980 = vmatprep.subr.mxu0 0.0
        %2981 = vmatpush1.msra.mxu0 0.0
        %2982 = vmatprep.subr.mxu0 0.0
        %2983 = vmatpush1.msra.mxu0 0.0
        %2984 = vmatprep.subr.mxu0 0.0
        %2985 = vmatpush1.msra.mxu0 0.0
        %2986 = vmatprep.subr.mxu0 0.0
        %2987 = vmatpush1.msra.mxu0 0.0
        %2988 = vmatprep.subr.mxu0 0.0
        %2989 = vmatpush1.msra.mxu0 0.0
        %2990 = vmatprep.subr.mxu0 0.0
        %2991 = vmatpush1.msra.mxu0 0.0
        %2992 = vmatprep.subr.mxu0 0.0
        %2993 = vmatpush1.msra.mxu0 0.0
        %2994 = vmatprep.subr.mxu0 0.0
        %2995 = vmatpush1.msra.mxu0 0.0
        %2996 = vmatprep.subr.mxu0 0.0
        %2997 = vmatpush1.msra.mxu0 0.0
        %2998 = vmatprep.subr.mxu0 0.0
        %2999 = vmatpush1.msra.mxu0 0.0
        %3000 = vmatprep.subr.mxu0 0.0
        %3001 = vmatpush1.msra.mxu0 0.0
        %3002 = vmatprep.subr.mxu0 0.0
        %3003 = vmatpush1.msra.mxu0 0.0
        %3004 = vmatprep.subr.mxu0 0.0
        %3005 = vmatpush1.msra.mxu0 0.0
        %3006 = vmatprep.subr.mxu0 0.0
        %3007 = vmatpush1.msra.mxu0 0.0
        %3008 = vmatprep.subr.mxu0 0.0
        %3009 = vmatpush1.msra.mxu0 0.0
        %3010 = vmatprep.subr.mxu0 0.0
        %3011 = vmatpush1.msra.mxu0 0.0
        %3012 = vmatprep.subr.mxu0 0.0
        %3013 = vmatpush1.msra.mxu0 0.0
        %3014 = vmatprep.subr.mxu0 0.0
        %3015 = vmatpush1.msra.mxu0 0.0
        %3016 = vmatprep.subr.mxu0 0.0
        %3017 = vmatpush1.msra.mxu0 0.0
        %3018 = vmatprep.subr.mxu0 0.0
        %3019 = vmatpush1.msra.mxu0 0.0
        %3020 = vmatprep.subr.mxu0 0.0
        %3021 = vmatpush1.msra.mxu0 0.0
        %3022 = vmatprep.subr.mxu0 0.0
        %3023 = vmatpush1.msra.mxu0 0.0
        %3024 = vmatprep.mubr.f32.mxu0 0.0
        %3025 = vmatmul.mubr.f32.gmra.mrb[0].mxu0 %v2888
        %v3026 = vpop.f32.mrb[0].mxu0
        %v3027 = vadd.f32 %v2076, %v3026
        %v3028 = vpop.f32.mrb[0].mxu0
        %3029 = vdwg.mxu0
        %v3031 = vsel %vm2163, %v2957, 0
        %v3034 = vsel %vm2163, %v3027, 0
        %3036 = vmatprep.subr.mxu0 0.0
        %3037 = vmatpush1.xpose.msra.mxu0 %v3034
        %3038 = vmatprep.subr.mxu0 0.0
        %3039 = vmatpush1.xpose.msra.mxu0 0.0
        %3040 = vmatprep.subr.mxu0 0.0
        %3041 = vmatpush1.xpose.msra.mxu0 0.0
        %3042 = vmatprep.subr.mxu0 0.0
        %3043 = vmatpush1.xpose.msra.mxu0 0.0
        %3044 = vmatprep.subr.mxu0 0.0
        %3045 = vmatpush1.xpose.msra.mxu0 0.0
        %3046 = vmatprep.subr.mxu0 0.0
        %3047 = vmatpush1.xpose.msra.mxu0 0.0
        %3048 = vmatprep.subr.mxu0 0.0
        %3049 = vmatpush1.xpose.msra.mxu0 0.0
        %3050 = vmatprep.subr.mxu0 0.0
        %3051 = vmatpush1.xpose.msra.mxu0 0.0
        %3052 = vmatprep.subr.mxu0 0.0
        %3053 = vmatpush1.xpose.msra.mxu0 0.0
        %3054 = vmatprep.subr.mxu0 0.0
        %3055 = vmatpush1.xpose.msra.mxu0 0.0
        %3056 = vmatprep.subr.mxu0 0.0
        %3057 = vmatpush1.xpose.msra.mxu0 0.0
        %3058 = vmatprep.subr.mxu0 0.0
        %3059 = vmatpush1.xpose.msra.mxu0 0.0
        %3060 = vmatprep.subr.mxu0 0.0
        %3061 = vmatpush1.xpose.msra.mxu0 0.0
        %3062 = vmatprep.subr.mxu0 0.0
        %3063 = vmatpush1.xpose.msra.mxu0 0.0
        %3064 = vmatprep.subr.mxu0 0.0
        %3065 = vmatpush1.xpose.msra.mxu0 0.0
        %3066 = vmatprep.subr.mxu0 0.0
        %3067 = vmatpush1.xpose.msra.mxu0 0.0
        %3068 = vmatprep.subr.mxu0 0.0
        %3069 = vmatpush1.xpose.msra.mxu0 0.0
        %3070 = vmatprep.subr.mxu0 0.0
        %3071 = vmatpush1.xpose.msra.mxu0 0.0
        %3072 = vmatprep.subr.mxu0 0.0
        %3073 = vmatpush1.xpose.msra.mxu0 0.0
        %3074 = vmatprep.subr.mxu0 0.0
        %3075 = vmatpush1.xpose.msra.mxu0 0.0
        %3076 = vmatprep.subr.mxu0 0.0
        %3077 = vmatpush1.xpose.msra.mxu0 0.0
        %3078 = vmatprep.subr.mxu0 0.0
        %3079 = vmatpush1.xpose.msra.mxu0 0.0
        %3080 = vmatprep.subr.mxu0 0.0
        %3081 = vmatpush1.xpose.msra.mxu0 0.0
        %3082 = vmatprep.subr.mxu0 0.0
        %3083 = vmatpush1.xpose.msra.mxu0 0.0
        %3084 = vmatprep.subr.mxu0 0.0
        %3085 = vmatpush1.xpose.msra.mxu0 0.0
        %3086 = vmatprep.subr.mxu0 0.0
        %3087 = vmatpush1.xpose.msra.mxu0 0.0
        %3088 = vmatprep.subr.mxu0 0.0
        %3089 = vmatpush1.xpose.msra.mxu0 0.0
        %3090 = vmatprep.subr.mxu0 0.0
        %3091 = vmatpush1.xpose.msra.mxu0 0.0
        %3092 = vmatprep.subr.mxu0 0.0
        %3093 = vmatpush1.xpose.msra.mxu0 0.0
        %3094 = vmatprep.subr.mxu0 0.0
        %3095 = vmatpush1.xpose.msra.mxu0 0.0
        %3096 = vmatprep.subr.mxu0 0.0
        %3097 = vmatpush1.xpose.msra.mxu0 0.0
        %3098 = vmatprep.subr.mxu0 0.0
        %3099 = vmatpush1.xpose.msra.mxu0 0.0
        %3100 = vmatprep.mubr.f32.mxu0 0.0
        %3101 = vmatmul.mubr.f32.gmra.mrb[0].mxu0 %v3031
        %v3102 = vpop.f32.mrb[0].mxu0
        %v3103 = vadd.f32 0.0, %v3102
        %v3104 = vpop.f32.mrb[0].mxu0
        %3105 = vdwg.mxu0
        %v3106 = vmul.f32 %v3103, 0.25
        %vm3107 = vcmask 9216
        %v3108 = vsel %vm3107, %v3106, -inf
        %3109 = vmax.xlane.f32.xlu0 %v3108
        %v3110 = vpop.xlane.xlu0 %3109
        %v3111 = vsub.f32 %v3106, %v3110
        %v3112 = vmul.f32 %v3111, 1.442695
        %v3113 = vpow.pop %v3112
        %v3114 = vsel %vm3107, %v3113, 0.0
        %3115 = vadd.xlane.f32.xlu0 %v3114
        %v3116 = vpop.xlane.xlu0 %3115
        %v3117 = vrcp.pop %v3116
        %v3118 = vmul.f32 %v3113, %v3117
        %v3119 = vrot.slane %v2957, 2
        %v3120 = vrot.slane %v3027, 2
        %v3121 = vsel %vm2163, %v3119, 0
        %v3123 = vsel %vm2163, %v3120, 0
        %3125 = vmatprep.subr.mxu0 0.0
        %3126 = vmatpush1.xpose.msra.mxu0 %v3123
        %3127 = vmatprep.subr.mxu0 0.0
        %3128 = vmatpush1.xpose.msra.mxu0 0.0
        %3129 = vmatprep.subr.mxu0 0.0
        %3130 = vmatpush1.xpose.msra.mxu0 0.0
        %3131 = vmatprep.subr.mxu0 0.0
        %3132 = vmatpush1.xpose.msra.mxu0 0.0
        %3133 = vmatprep.subr.mxu0 0.0
        %3134 = vmatpush1.xpose.msra.mxu0 0.0
        %3135 = vmatprep.subr.mxu0 0.0
        %3136 = vmatpush1.xpose.msra.mxu0 0.0
        %3137 = vmatprep.subr.mxu0 0.0
        %3138 = vmatpush1.xpose.msra.mxu0 0.0
        %3139 = vmatprep.subr.mxu0 0.0
        %3140 = vmatpush1.xpose.msra.mxu0 0.0
        %3141 = vmatprep.subr.mxu0 0.0
        %3142 = vmatpush1.xpose.msra.mxu0 0.0
        %3143 = vmatprep.subr.mxu0 0.0
        %3144 = vmatpush1.xpose.msra.mxu0 0.0
        %3145 = vmatprep.subr.mxu0 0.0
        %3146 = vmatpush1.xpose.msra.mxu0 0.0
        %3147 = vmatprep.subr.mxu0 0.0
        %3148 = vmatpush1.xpose.msra.mxu0 0.0
        %3149 = vmatprep.subr.mxu0 0.0
        %3150 = vmatpush1.xpose.msra.mxu0 0.0
        %3151 = vmatprep.subr.mxu0 0.0
        %3152 = vmatpush1.xpose.msra.mxu0 0.0
        %3153 = vmatprep.subr.mxu0 0.0
        %3154 = vmatpush1.xpose.msra.mxu0 0.0
        %3155 = vmatprep.subr.mxu0 0.0
        %3156 = vmatpush1.xpose.msra.mxu0 0.0
        %3157 = vmatprep.subr.mxu0 0.0
        %3158 = vmatpush1.xpose.msra.mxu0 0.0
        %3159 = vmatprep.subr.mxu0 0.0
        %3160 = vmatpush1.xpose.msra.mxu0 0.0
        %3161 = vmatprep.subr.mxu0 0.0
        %3162 = vmatpush1.xpose.msra.mxu0 0.0
        %3163 = vmatprep.subr.mxu0 0.0
        %3164 = vmatpush1.xpose.msra.mxu0 0.0
        %3165 = vmatprep.subr.mxu0 0.0
        %3166 = vmatpush1.xpose.msra.mxu0 0.0
        %3167 = vmatprep.subr.mxu0 0.0
        %3168 = vmatpush1.xpose.msra.mxu0 0.0
        %3169 = vmatprep.subr.mxu0 0.0
        %3170 = vmatpush1.xpose.msra.mxu0 0.0
        %3171 = vmatprep.subr.mxu0 0.0
        %3172 = vmatpush1.xpose.msra.mxu0 0.0
        %3173 = vmatprep.subr.mxu0 0.0
        %3174 = vmatpush1.xpose.msra.mxu0 0.0
        %3175 = vmatprep.subr.mxu0 0.0
        %3176 = vmatpush1.xpose.msra.mxu0 0.0
        %3177 = vmatprep.subr.mxu0 0.0
        %3178 = vmatpush1.xpose.msra.mxu0 0.0
        %3179 = vmatprep.subr.mxu0 0.0
        %3180 = vmatpush1.xpose.msra.mxu0 0.0
        %3181 = vmatprep.subr.mxu0 0.0
        %3182 = vmatpush1.xpose.msra.mxu0 0.0
        %3183 = vmatprep.subr.mxu0 0.0
        %3184 = vmatpush1.xpose.msra.mxu0 0.0
        %3185 = vmatprep.subr.mxu0 0.0
        %3186 = vmatpush1.xpose.msra.mxu0 0.0
        %3187 = vmatprep.subr.mxu0 0.0
        %3188 = vmatpush1.xpose.msra.mxu0 0.0
        %3189 = vmatprep.mubr.f32.mxu0 0.0
        %3190 = vmatmul.mubr.f32.gmra.mrb[0].mxu0 %v3121
        %v3191 = vpop.f32.mrb[0].mxu0
        %v3192 = vadd.f32 0.0, %v3191
        %v3193 = vpop.f32.mrb[0].mxu0
        %3194 = vdwg.mxu0
        %v3195 = vmul.f32 %v3192, 0.25
        %v3196 = vsel %vm3107, %v3195, -inf
        %3197 = vmax.xlane.f32.xlu0 %v3196
        %v3198 = vpop.xlane.xlu0 %3197
        %v3199 = vsub.f32 %v3195, %v3198
        %v3200 = vmul.f32 %v3199, 1.442695
        %v3201 = vpow.pop %v3200
        %v3202 = vsel %vm3107, %v3201, 0.0
        %3203 = vadd.xlane.f32.xlu0 %v3202
        %v3204 = vpop.xlane.xlu0 %3203
        %v3205 = vrcp.pop %v3204
        %v3206 = vmul.f32 %v3201, %v3205
        %v3207 = vadd.f32 %v3118, %v3206
        %v3208 = vrot.slane %v2957, 4
        %v3209 = vrot.slane %v3027, 4
        %v3210 = vsel %vm2163, %v3208, 0
        %v3212 = vsel %vm2163, %v3209, 0
        %3214 = vmatprep.subr.mxu0 0.0
        %3215 = vmatpush1.xpose.msra.mxu0 %v3212
        %3216 = vmatprep.subr.mxu0 0.0
        %3217 = vmatpush1.xpose.msra.mxu0 0.0
        %3218 = vmatprep.subr.mxu0 0.0
        %3219 = vmatpush1.xpose.msra.mxu0 0.0
        %3220 = vmatprep.subr.mxu0 0.0
        %3221 = vmatpush1.xpose.msra.mxu0 0.0
        %3222 = vmatprep.subr.mxu0 0.0
        %3223 = vmatpush1.xpose.msra.mxu0 0.0
        %3224 = vmatprep.subr.mxu0 0.0
        %3225 = vmatpush1.xpose.msra.mxu0 0.0
        %3226 = vmatprep.subr.mxu0 0.0
        %3227 = vmatpush1.xpose.msra.mxu0 0.0
        %3228 = vmatprep.subr.mxu0 0.0
        %3229 = vmatpush1.xpose.msra.mxu0 0.0
        %3230 = vmatprep.subr.mxu0 0.0
        %3231 = vmatpush1.xpose.msra.mxu0 0.0
        %3232 = vmatprep.subr.mxu0 0.0
        %3233 = vmatpush1.xpose.msra.mxu0 0.0
        %3234 = vmatprep.subr.mxu0 0.0
        %3235 = vmatpush1.xpose.msra.mxu0 0.0
        %3236 = vmatprep.subr.mxu0 0.0
        %3237 = vmatpush1.xpose.msra.mxu0 0.0
        %3238 = vmatprep.subr.mxu0 0.0
        %3239 = vmatpush1.xpose.msra.mxu0 0.0
        %3240 = vmatprep.subr.mxu0 0.0
        %3241 = vmatpush1.xpose.msra.mxu0 0.0
        %3242 = vmatprep.subr.mxu0 0.0
        %3243 = vmatpush1.xpose.msra.mxu0 0.0
        %3244 = vmatprep.subr.mxu0 0.0
        %3245 = vmatpush1.xpose.msra.mxu0 0.0
        %3246 = vmatprep.subr.mxu0 0.0
        %3247 = vmatpush1.xpose.msra.mxu0 0.0
        %3248 = vmatprep.subr.mxu0 0.0
        %3249 = vmatpush1.xpose.msra.mxu0 0.0
        %3250 = vmatprep.subr.mxu0 0.0
        %3251 = vmatpush1.xpose.msra.mxu0 0.0
        %3252 = vmatprep.subr.mxu0 0.0
        %3253 = vmatpush1.xpose.msra.mxu0 0.0
        %3254 = vmatprep.subr.mxu0 0.0
        %3255 = vmatpush1.xpose.msra.mxu0 0.0
        %3256 = vmatprep.subr.mxu0 0.0
        %3257 = vmatpush1.xpose.msra.mxu0 0.0
        %3258 = vmatprep.subr.mxu0 0.0
        %3259 = vmatpush1.xpose.msra.mxu0 0.0
        %3260 = vmatprep.subr.mxu0 0.0
        %3261 = vmatpush1.xpose.msra.mxu0 0.0
        %3262 = vmatprep.subr.mxu0 0.0
        %3263 = vmatpush1.xpose.msra.mxu0 0.0
        %3264 = vmatprep.subr.mxu0 0.0
        %3265 = vmatpush1.xpose.msra.mxu0 0.0
        %3266 = vmatprep.subr.mxu0 0.0
        %3267 = vmatpush1.xpose.msra.mxu0 0.0
        %3268 = vmatprep.subr.mxu0 0.0
        %3269 = vmatpush1.xpose.msra.mxu0 0.0
        %3270 = vmatprep.subr.mxu0 0.0
        %3271 = vmatpush1.xpose.msra.mxu0 0.0
        %3272 = vmatprep.subr.mxu0 0.0
        %3273 = vmatpush1.xpose.msra.mxu0 0.0
        %3274 = vmatprep.subr.mxu0 0.0
        %3275 = vmatpush1.xpose.msra.mxu0 0.0
        %3276 = vmatprep.subr.mxu0 0.0
        %3277 = vmatpush1.xpose.msra.mxu0 0.0
        %3278 = vmatprep.mubr.f32.mxu0 0.0
        %3279 = vmatmul.mubr.f32.gmra.mrb[0].mxu0 %v3210
        %v3280 = vpop.f32.mrb[0].mxu0
        %v3281 = vadd.f32 0.0, %v3280
        %v3282 = vpop.f32.mrb[0].mxu0
        %3283 = vdwg.mxu0
        %v3284 = vmul.f32 %v3281, 0.25
        %v3285 = vsel %vm3107, %v3284, -inf
        %3286 = vmax.xlane.f32.xlu0 %v3285
        %v3287 = vpop.xlane.xlu0 %3286
        %v3288 = vsub.f32 %v3284, %v3287
        %v3289 = vmul.f32 %v3288, 1.442695
        %v3290 = vpow.pop %v3289
        %v3291 = vsel %vm3107, %v3290, 0.0
        %3292 = vadd.xlane.f32.xlu0 %v3291
        %v3293 = vpop.xlane.xlu0 %3292
        %v3294 = vrcp.pop %v3293
        %v3295 = vmul.f32 %v3290, %v3294
        %v3296 = vadd.f32 %v3207, %v3295
        %v3297 = vrot.slane %v2957, 6
        %v3298 = vrot.slane %v3027, 6
        %v3299 = vsel %vm2163, %v3297, 0
        %v3301 = vsel %vm2163, %v3298, 0
        %3303 = vmatprep.subr.mxu0 0.0
        %3304 = vmatpush1.xpose.msra.mxu0 %v3301
        %3305 = vmatprep.subr.mxu0 0.0
        %3306 = vmatpush1.xpose.msra.mxu0 0.0
        %3307 = vmatprep.subr.mxu0 0.0
        %3308 = vmatpush1.xpose.msra.mxu0 0.0
        %3309 = vmatprep.subr.mxu0 0.0
        %3310 = vmatpush1.xpose.msra.mxu0 0.0
        %3311 = vmatprep.subr.mxu0 0.0
        %3312 = vmatpush1.xpose.msra.mxu0 0.0
        %3313 = vmatprep.subr.mxu0 0.0
        %3314 = vmatpush1.xpose.msra.mxu0 0.0
        %3315 = vmatprep.subr.mxu0 0.0
        %3316 = vmatpush1.xpose.msra.mxu0 0.0
        %3317 = vmatprep.subr.mxu0 0.0
        %3318 = vmatpush1.xpose.msra.mxu0 0.0
        %3319 = vmatprep.subr.mxu0 0.0
        %3320 = vmatpush1.xpose.msra.mxu0 0.0
        %3321 = vmatprep.subr.mxu0 0.0
        %3322 = vmatpush1.xpose.msra.mxu0 0.0
        %3323 = vmatprep.subr.mxu0 0.0
        %3324 = vmatpush1.xpose.msra.mxu0 0.0
        %3325 = vmatprep.subr.mxu0 0.0
        %3326 = vmatpush1.xpose.msra.mxu0 0.0
        %3327 = vmatprep.subr.mxu0 0.0
        %3328 = vmatpush1.xpose.msra.mxu0 0.0
        %3329 = vmatprep.subr.mxu0 0.0
        %3330 = vmatpush1.xpose.msra.mxu0 0.0
        %3331 = vmatprep.subr.mxu0 0.0
        %3332 = vmatpush1.xpose.msra.mxu0 0.0
        %3333 = vmatprep.subr.mxu0 0.0
        %3334 = vmatpush1.xpose.msra.mxu0 0.0
        %3335 = vmatprep.subr.mxu0 0.0
        %3336 = vmatpush1.xpose.msra.mxu0 0.0
        %3337 = vmatprep.subr.mxu0 0.0
        %3338 = vmatpush1.xpose.msra.mxu0 0.0
        %3339 = vmatprep.subr.mxu0 0.0
        %3340 = vmatpush1.xpose.msra.mxu0 0.0
        %3341 = vmatprep.subr.mxu0 0.0
        %3342 = vmatpush1.xpose.msra.mxu0 0.0
        %3343 = vmatprep.subr.mxu0 0.0
        %3344 = vmatpush1.xpose.msra.mxu0 0.0
        %3345 = vmatprep.subr.mxu0 0.0
        %3346 = vmatpush1.xpose.msra.mxu0 0.0
        %3347 = vmatprep.subr.mxu0 0.0
        %3348 = vmatpush1.xpose.msra.mxu0 0.0
        %3349 = vmatprep.subr.mxu0 0.0
        %3350 = vmatpush1.xpose.msra.mxu0 0.0
        %3351 = vmatprep.subr.mxu0 0.0
        %3352 = vmatpush1.xpose.msra.mxu0 0.0
        %3353 = vmatprep.subr.mxu0 0.0
        %3354 = vmatpush1.xpose.msra.mxu0 0.0
        %3355 = vmatprep.subr.mxu0 0.0
        %3356 = vmatpush1.xpose.msra.mxu0 0.0
        %3357 = vmatprep.subr.mxu0 0.0
        %3358 = vmatpush1.xpose.msra.mxu0 0.0
        %3359 = vmatprep.subr.mxu0 0.0
        %3360 = vmatpush1.xpose.msra.mxu0 0.0
        %3361 = vmatprep.subr.mxu0 0.0
        %3362 = vmatpush1.xpose.msra.mxu0 0.0
        %3363 = vmatprep.subr.mxu0 0.0
        %3364 = vmatpush1.xpose.msra.mxu0 0.0
        %3365 = vmatprep.subr.mxu0 0.0
        %3366 = vmatpush1.xpose.msra.mxu0 0.0
        %3367 = vmatprep.mubr.f32.mxu0 0.0
        %3368 = vmatmul.mubr.f32.gmra.mrb[0].mxu0 %v3299
        %v3369 = vpop.f32.mrb[0].mxu0
        %v3370 = vadd.f32 0.0, %v3369
        %v3371 = vpop.f32.mrb[0].mxu0
        %3372 = vdwg.mxu0
        %v3373 = vmul.f32 %v3370, 0.25
        %v3374 = vsel %vm3107, %v3373, -inf
        %3375 = vmax.xlane.f32.xlu0 %v3374
        %v3376 = vpop.xlane.xlu0 %3375
        %v3377 = vsub.f32 %v3373, %v3376
        %v3378 = vmul.f32 %v3377, 1.442695
        %v3379 = vpow.pop %v3378
        %v3380 = vsel %vm3107, %v3379, 0.0
        %3381 = vadd.xlane.f32.xlu0 %v3380
        %v3382 = vpop.xlane.xlu0 %3381
        %v3383 = vrcp.pop %v3382
        %v3384 = vmul.f32 %v3379, %v3383
        %v3385 = vadd.f32 %v3296, %v3384
        %v3386 = vmul.f32 %v3385, 0.25
        %3387 = vst.msk [vmem:[%s648] sm:$0x3] %vm3107, %v3386
        %3388 = vrot.lane.b32.xlu0 %v2957, 112
        %v3389 = vpop.permute.xlu0 %3388
        %3390 = vrot.lane.b32.xlu0 %v3027, 112
        %v3391 = vpop.permute.xlu0 %3390
        %v3392 = vsel %vm2163, %v3389, 0
        %v3394 = vsel %vm2163, %v3391, 0
        %3396 = vmatprep.subr.mxu0 0.0
        %3397 = vmatpush1.xpose.msra.mxu0 %v3394
        %3398 = vmatprep.subr.mxu0 0.0
        %3399 = vmatpush1.xpose.msra.mxu0 0.0
        %3400 = vmatprep.subr.mxu0 0.0
        %3401 = vmatpush1.xpose.msra.mxu0 0.0
        %3402 = vmatprep.subr.mxu0 0.0
        %3403 = vmatpush1.xpose.msra.mxu0 0.0
        %3404 = vmatprep.subr.mxu0 0.0
        %3405 = vmatpush1.xpose.msra.mxu0 0.0
        %3406 = vmatprep.subr.mxu0 0.0
        %3407 = vmatpush1.xpose.msra.mxu0 0.0
        %3408 = vmatprep.subr.mxu0 0.0
        %3409 = vmatpush1.xpose.msra.mxu0 0.0
        %3410 = vmatprep.subr.mxu0 0.0
        %3411 = vmatpush1.xpose.msra.mxu0 0.0
        %3412 = vmatprep.subr.mxu0 0.0
        %3413 = vmatpush1.xpose.msra.mxu0 0.0
        %3414 = vmatprep.subr.mxu0 0.0
        %3415 = vmatpush1.xpose.msra.mxu0 0.0
        %3416 = vmatprep.subr.mxu0 0.0
        %3417 = vmatpush1.xpose.msra.mxu0 0.0
        %3418 = vmatprep.subr.mxu0 0.0
        %3419 = vmatpush1.xpose.msra.mxu0 0.0
        %3420 = vmatprep.subr.mxu0 0.0
        %3421 = vmatpush1.xpose.msra.mxu0 0.0
        %3422 = vmatprep.subr.mxu0 0.0
        %3423 = vmatpush1.xpose.msra.mxu0 0.0
        %3424 = vmatprep.subr.mxu0 0.0
        %3425 = vmatpush1.xpose.msra.mxu0 0.0
        %3426 = vmatprep.subr.mxu0 0.0
        %3427 = vmatpush1.xpose.msra.mxu0 0.0
        %3428 = vmatprep.subr.mxu0 0.0
        %3429 = vmatpush1.xpose.msra.mxu0 0.0
        %3430 = vmatprep.subr.mxu0 0.0
        %3431 = vmatpush1.xpose.msra.mxu0 0.0
        %3432 = vmatprep.subr.mxu0 0.0
        %3433 = vmatpush1.xpose.msra.mxu0 0.0
        %3434 = vmatprep.subr.mxu0 0.0
        %3435 = vmatpush1.xpose.msra.mxu0 0.0
        %3436 = vmatprep.subr.mxu0 0.0
        %3437 = vmatpush1.xpose.msra.mxu0 0.0
        %3438 = vmatprep.subr.mxu0 0.0
        %3439 = vmatpush1.xpose.msra.mxu0 0.0
        %3440 = vmatprep.subr.mxu0 0.0
        %3441 = vmatpush1.xpose.msra.mxu0 0.0
        %3442 = vmatprep.subr.mxu0 0.0
        %3443 = vmatpush1.xpose.msra.mxu0 0.0
        %3444 = vmatprep.subr.mxu0 0.0
        %3445 = vmatpush1.xpose.msra.mxu0 0.0
        %3446 = vmatprep.subr.mxu0 0.0
        %3447 = vmatpush1.xpose.msra.mxu0 0.0
        %3448 = vmatprep.subr.mxu0 0.0
        %3449 = vmatpush1.xpose.msra.mxu0 0.0
        %3450 = vmatprep.subr.mxu0 0.0
        %3451 = vmatpush1.xpose.msra.mxu0 0.0
        %3452 = vmatprep.subr.mxu0 0.0
        %3453 = vmatpush1.xpose.msra.mxu0 0.0
        %3454 = vmatprep.subr.mxu0 0.0
        %3455 = vmatpush1.xpose.msra.mxu0 0.0
        %3456 = vmatprep.subr.mxu0 0.0
        %3457 = vmatpush1.xpose.msra.mxu0 0.0
        %3458 = vmatprep.subr.mxu0 0.0
        %3459 = vmatpush1.xpose.msra.mxu0 0.0
        %3460 = vmatprep.mubr.f32.mxu0 0.0
        %3461 = vmatmul.mubr.f32.gmra.mrb[0].mxu0 %v3392
        %v3462 = vpop.f32.mrb[0].mxu0
        %v3463 = vadd.f32 0.0, %v3462
        %v3464 = vpop.f32.mrb[0].mxu0
        %3465 = vdwg.mxu0
        %v3466 = vmul.f32 %v3463, 0.25
        %v3467 = vsel %vm3107, %v3466, -inf
        %3468 = vmax.xlane.f32.xlu0 %v3467
        %v3469 = vpop.xlane.xlu0 %3468
        %v3470 = vsub.f32 %v3466, %v3469
        %v3471 = vmul.f32 %v3470, 1.442695
        %v3472 = vpow.pop %v3471
        %v3473 = vsel %vm3107, %v3472, 0.0
        %3474 = vadd.xlane.f32.xlu0 %v3473
        %v3475 = vpop.xlane.xlu0 %3474
        %v3476 = vrcp.pop %v3475
        %v3477 = vmul.f32 %v3472, %v3476
        %3478 = vrot.lane.b32.xlu0 %v3119, 112
        %v3479 = vpop.permute.xlu0 %3478
        %3480 = vrot.lane.b32.xlu0 %v3120, 112
        %v3481 = vpop.permute.xlu0 %3480
        %v3482 = vsel %vm2163, %v3479, 0
        %v3484 = vsel %vm2163, %v3481, 0
        %3486 = vmatprep.subr.mxu0 0.0
        %3487 = vmatpush1.xpose.msra.mxu0 %v3484
        %3488 = vmatprep.subr.mxu0 0.0
        %3489 = vmatpush1.xpose.msra.mxu0 0.0
        %3490 = vmatprep.subr.mxu0 0.0
        %3491 = vmatpush1.xpose.msra.mxu0 0.0
        %3492 = vmatprep.subr.mxu0 0.0
        %3493 = vmatpush1.xpose.msra.mxu0 0.0
        %3494 = vmatprep.subr.mxu0 0.0
        %3495 = vmatpush1.xpose.msra.mxu0 0.0
        %3496 = vmatprep.subr.mxu0 0.0
        %3497 = vmatpush1.xpose.msra.mxu0 0.0
        %3498 = vmatprep.subr.mxu0 0.0
        %3499 = vmatpush1.xpose.msra.mxu0 0.0
        %3500 = vmatprep.subr.mxu0 0.0
        %3501 = vmatpush1.xpose.msra.mxu0 0.0
        %3502 = vmatprep.subr.mxu0 0.0
        %3503 = vmatpush1.xpose.msra.mxu0 0.0
        %3504 = vmatprep.subr.mxu0 0.0
        %3505 = vmatpush1.xpose.msra.mxu0 0.0
        %3506 = vmatprep.subr.mxu0 0.0
        %3507 = vmatpush1.xpose.msra.mxu0 0.0
        %3508 = vmatprep.subr.mxu0 0.0
        %3509 = vmatpush1.xpose.msra.mxu0 0.0
        %3510 = vmatprep.subr.mxu0 0.0
        %3511 = vmatpush1.xpose.msra.mxu0 0.0
        %3512 = vmatprep.subr.mxu0 0.0
        %3513 = vmatpush1.xpose.msra.mxu0 0.0
        %3514 = vmatprep.subr.mxu0 0.0
        %3515 = vmatpush1.xpose.msra.mxu0 0.0
        %3516 = vmatprep.subr.mxu0 0.0
        %3517 = vmatpush1.xpose.msra.mxu0 0.0
        %3518 = vmatprep.subr.mxu0 0.0
        %3519 = vmatpush1.xpose.msra.mxu0 0.0
        %3520 = vmatprep.subr.mxu0 0.0
        %3521 = vmatpush1.xpose.msra.mxu0 0.0
        %3522 = vmatprep.subr.mxu0 0.0
        %3523 = vmatpush1.xpose.msra.mxu0 0.0
        %3524 = vmatprep.subr.mxu0 0.0
        %3525 = vmatpush1.xpose.msra.mxu0 0.0
        %3526 = vmatprep.subr.mxu0 0.0
        %3527 = vmatpush1.xpose.msra.mxu0 0.0
        %3528 = vmatprep.subr.mxu0 0.0
        %3529 = vmatpush1.xpose.msra.mxu0 0.0
        %3530 = vmatprep.subr.mxu0 0.0
        %3531 = vmatpush1.xpose.msra.mxu0 0.0
        %3532 = vmatprep.subr.mxu0 0.0
        %3533 = vmatpush1.xpose.msra.mxu0 0.0
        %3534 = vmatprep.subr.mxu0 0.0
        %3535 = vmatpush1.xpose.msra.mxu0 0.0
        %3536 = vmatprep.subr.mxu0 0.0
        %3537 = vmatpush1.xpose.msra.mxu0 0.0
        %3538 = vmatprep.subr.mxu0 0.0
        %3539 = vmatpush1.xpose.msra.mxu0 0.0
        %3540 = vmatprep.subr.mxu0 0.0
        %3541 = vmatpush1.xpose.msra.mxu0 0.0
        %3542 = vmatprep.subr.mxu0 0.0
        %3543 = vmatpush1.xpose.msra.mxu0 0.0
        %3544 = vmatprep.subr.mxu0 0.0
        %3545 = vmatpush1.xpose.msra.mxu0 0.0
        %3546 = vmatprep.subr.mxu0 0.0
        %3547 = vmatpush1.xpose.msra.mxu0 0.0
        %3548 = vmatprep.subr.mxu0 0.0
        %3549 = vmatpush1.xpose.msra.mxu0 0.0
        %3550 = vmatprep.mubr.f32.mxu0 0.0
        %3551 = vmatmul.mubr.f32.gmra.mrb[0].mxu0 %v3482
        %v3552 = vpop.f32.mrb[0].mxu0
        %v3553 = vadd.f32 0.0, %v3552
        %v3554 = vpop.f32.mrb[0].mxu0
        %3555 = vdwg.mxu0
        %v3556 = vmul.f32 %v3553, 0.25
        %v3557 = vsel %vm3107, %v3556, -inf
        %3558 = vmax.xlane.f32.xlu0 %v3557
        %v3559 = vpop.xlane.xlu0 %3558
        %v3560 = vsub.f32 %v3556, %v3559
        %v3561 = vmul.f32 %v3560, 1.442695
        %v3562 = vpow.pop %v3561
        %v3563 = vsel %vm3107, %v3562, 0.0
        %3564 = vadd.xlane.f32.xlu0 %v3563
        %v3565 = vpop.xlane.xlu0 %3564
        %v3566 = vrcp.pop %v3565
        %v3567 = vmul.f32 %v3562, %v3566
        %v3568 = vadd.f32 %v3477, %v3567
        %3569 = vrot.lane.b32.xlu0 %v3208, 112
        %v3570 = vpop.permute.xlu0 %3569
        %3571 = vrot.lane.b32.xlu0 %v3209, 112
        %v3572 = vpop.permute.xlu0 %3571
        %v3573 = vsel %vm2163, %v3570, 0
        %v3575 = vsel %vm2163, %v3572, 0
        %3577 = vmatprep.subr.mxu0 0.0
        %3578 = vmatpush1.xpose.msra.mxu0 %v3575
        %3579 = vmatprep.subr.mxu0 0.0
        %3580 = vmatpush1.xpose.msra.mxu0 0.0
        %3581 = vmatprep.subr.mxu0 0.0
        %3582 = vmatpush1.xpose.msra.mxu0 0.0
        %3583 = vmatprep.subr.mxu0 0.0
        %3584 = vmatpush1.xpose.msra.mxu0 0.0
        %3585 = vmatprep.subr.mxu0 0.0
        %3586 = vmatpush1.xpose.msra.mxu0 0.0
        %3587 = vmatprep.subr.mxu0 0.0
        %3588 = vmatpush1.xpose.msra.mxu0 0.0
        %3589 = vmatprep.subr.mxu0 0.0
        %3590 = vmatpush1.xpose.msra.mxu0 0.0
        %3591 = vmatprep.subr.mxu0 0.0
        %3592 = vmatpush1.xpose.msra.mxu0 0.0
        %3593 = vmatprep.subr.mxu0 0.0
        %3594 = vmatpush1.xpose.msra.mxu0 0.0
        %3595 = vmatprep.subr.mxu0 0.0
        %3596 = vmatpush1.xpose.msra.mxu0 0.0
        %3597 = vmatprep.subr.mxu0 0.0
        %3598 = vmatpush1.xpose.msra.mxu0 0.0
        %3599 = vmatprep.subr.mxu0 0.0
        %3600 = vmatpush1.xpose.msra.mxu0 0.0
        %3601 = vmatprep.subr.mxu0 0.0
        %3602 = vmatpush1.xpose.msra.mxu0 0.0
        %3603 = vmatprep.subr.mxu0 0.0
        %3604 = vmatpush1.xpose.msra.mxu0 0.0
        %3605 = vmatprep.subr.mxu0 0.0
        %3606 = vmatpush1.xpose.msra.mxu0 0.0
        %3607 = vmatprep.subr.mxu0 0.0
        %3608 = vmatpush1.xpose.msra.mxu0 0.0
        %3609 = vmatprep.subr.mxu0 0.0
        %3610 = vmatpush1.xpose.msra.mxu0 0.0
        %3611 = vmatprep.subr.mxu0 0.0
        %3612 = vmatpush1.xpose.msra.mxu0 0.0
        %3613 = vmatprep.subr.mxu0 0.0
        %3614 = vmatpush1.xpose.msra.mxu0 0.0
        %3615 = vmatprep.subr.mxu0 0.0
        %3616 = vmatpush1.xpose.msra.mxu0 0.0
        %3617 = vmatprep.subr.mxu0 0.0
        %3618 = vmatpush1.xpose.msra.mxu0 0.0
        %3619 = vmatprep.subr.mxu0 0.0
        %3620 = vmatpush1.xpose.msra.mxu0 0.0
        %3621 = vmatprep.subr.mxu0 0.0
        %3622 = vmatpush1.xpose.msra.mxu0 0.0
        %3623 = vmatprep.subr.mxu0 0.0
        %3624 = vmatpush1.xpose.msra.mxu0 0.0
        %3625 = vmatprep.subr.mxu0 0.0
        %3626 = vmatpush1.xpose.msra.mxu0 0.0
        %3627 = vmatprep.subr.mxu0 0.0
        %3628 = vmatpush1.xpose.msra.mxu0 0.0
        %3629 = vmatprep.subr.mxu0 0.0
        %3630 = vmatpush1.xpose.msra.mxu0 0.0
        %3631 = vmatprep.subr.mxu0 0.0
        %3632 = vmatpush1.xpose.msra.mxu0 0.0
        %3633 = vmatprep.subr.mxu0 0.0
        %3634 = vmatpush1.xpose.msra.mxu0 0.0
        %3635 = vmatprep.subr.mxu0 0.0
        %3636 = vmatpush1.xpose.msra.mxu0 0.0
        %3637 = vmatprep.subr.mxu0 0.0
        %3638 = vmatpush1.xpose.msra.mxu0 0.0
        %3639 = vmatprep.subr.mxu0 0.0
        %3640 = vmatpush1.xpose.msra.mxu0 0.0
        %3641 = vmatprep.mubr.f32.mxu0 0.0
        %3642 = vmatmul.mubr.f32.gmra.mrb[0].mxu0 %v3573
        %v3643 = vpop.f32.mrb[0].mxu0
        %v3644 = vadd.f32 0.0, %v3643
        %v3645 = vpop.f32.mrb[0].mxu0
        %3646 = vdwg.mxu0
        %v3647 = vmul.f32 %v3644, 0.25
        %v3648 = vsel %vm3107, %v3647, -inf
        %3649 = vmax.xlane.f32.xlu0 %v3648
        %v3650 = vpop.xlane.xlu0 %3649
        %v3651 = vsub.f32 %v3647, %v3650
        %v3652 = vmul.f32 %v3651, 1.442695
        %v3653 = vpow.pop %v3652
        %v3654 = vsel %vm3107, %v3653, 0.0
        %3655 = vadd.xlane.f32.xlu0 %v3654
        %v3656 = vpop.xlane.xlu0 %3655
        %v3657 = vrcp.pop %v3656
        %v3658 = vmul.f32 %v3653, %v3657
        %v3659 = vadd.f32 %v3568, %v3658
        %3660 = vrot.lane.b32.xlu0 %v3297, 112
        %v3661 = vpop.permute.xlu0 %3660
        %3662 = vrot.lane.b32.xlu0 %v3298, 112
        %v3663 = vpop.permute.xlu0 %3662
        %v3664 = vsel %vm2163, %v3661, 0
        %v3666 = vsel %vm2163, %v3663, 0
        %3668 = vmatprep.subr.mxu0 0.0
        %3669 = vmatpush1.xpose.msra.mxu0 %v3666
        %3670 = vmatprep.subr.mxu0 0.0
        %3671 = vmatpush1.xpose.msra.mxu0 0.0
        %3672 = vmatprep.subr.mxu0 0.0
        %3673 = vmatpush1.xpose.msra.mxu0 0.0
        %3674 = vmatprep.subr.mxu0 0.0
        %3675 = vmatpush1.xpose.msra.mxu0 0.0
        %3676 = vmatprep.subr.mxu0 0.0
        %3677 = vmatpush1.xpose.msra.mxu0 0.0
        %3678 = vmatprep.subr.mxu0 0.0
        %3679 = vmatpush1.xpose.msra.mxu0 0.0
        %3680 = vmatprep.subr.mxu0 0.0
        %3681 = vmatpush1.xpose.msra.mxu0 0.0
        %3682 = vmatprep.subr.mxu0 0.0
        %3683 = vmatpush1.xpose.msra.mxu0 0.0
        %3684 = vmatprep.subr.mxu0 0.0
        %3685 = vmatpush1.xpose.msra.mxu0 0.0
        %3686 = vmatprep.subr.mxu0 0.0
        %3687 = vmatpush1.xpose.msra.mxu0 0.0
        %3688 = vmatprep.subr.mxu0 0.0
        %3689 = vmatpush1.xpose.msra.mxu0 0.0
        %3690 = vmatprep.subr.mxu0 0.0
        %3691 = vmatpush1.xpose.msra.mxu0 0.0
        %3692 = vmatprep.subr.mxu0 0.0
        %3693 = vmatpush1.xpose.msra.mxu0 0.0
        %3694 = vmatprep.subr.mxu0 0.0
        %3695 = vmatpush1.xpose.msra.mxu0 0.0
        %3696 = vmatprep.subr.mxu0 0.0
        %3697 = vmatpush1.xpose.msra.mxu0 0.0
        %3698 = vmatprep.subr.mxu0 0.0
        %3699 = vmatpush1.xpose.msra.mxu0 0.0
        %3700 = vmatprep.subr.mxu0 0.0
        %3701 = vmatpush1.xpose.msra.mxu0 0.0
        %3702 = vmatprep.subr.mxu0 0.0
        %3703 = vmatpush1.xpose.msra.mxu0 0.0
        %3704 = vmatprep.subr.mxu0 0.0
        %3705 = vmatpush1.xpose.msra.mxu0 0.0
        %3706 = vmatprep.subr.mxu0 0.0
        %3707 = vmatpush1.xpose.msra.mxu0 0.0
        %3708 = vmatprep.subr.mxu0 0.0
        %3709 = vmatpush1.xpose.msra.mxu0 0.0
        %3710 = vmatprep.subr.mxu0 0.0
        %3711 = vmatpush1.xpose.msra.mxu0 0.0
        %3712 = vmatprep.subr.mxu0 0.0
        %3713 = vmatpush1.xpose.msra.mxu0 0.0
        %3714 = vmatprep.subr.mxu0 0.0
        %3715 = vmatpush1.xpose.msra.mxu0 0.0
        %3716 = vmatprep.subr.mxu0 0.0
        %3717 = vmatpush1.xpose.msra.mxu0 0.0
        %3718 = vmatprep.subr.mxu0 0.0
        %3719 = vmatpush1.xpose.msra.mxu0 0.0
        %3720 = vmatprep.subr.mxu0 0.0
        %3721 = vmatpush1.xpose.msra.mxu0 0.0
        %3722 = vmatprep.subr.mxu0 0.0
        %3723 = vmatpush1.xpose.msra.mxu0 0.0
        %3724 = vmatprep.subr.mxu0 0.0
        %3725 = vmatpush1.xpose.msra.mxu0 0.0
        %3726 = vmatprep.subr.mxu0 0.0
        %3727 = vmatpush1.xpose.msra.mxu0 0.0
        %3728 = vmatprep.subr.mxu0 0.0
        %3729 = vmatpush1.xpose.msra.mxu0 0.0
        %3730 = vmatprep.subr.mxu0 0.0
        %3731 = vmatpush1.xpose.msra.mxu0 0.0
        %3732 = vmatprep.mubr.f32.mxu0 0.0
        %3733 = vmatmul.mubr.f32.gmra.mrb[0].mxu0 %v3664
        %v3734 = vpop.f32.mrb[0].mxu0
        %v3735 = vadd.f32 0.0, %v3734
        %v3736 = vpop.f32.mrb[0].mxu0
        %3737 = vdwg.mxu0
        %v3738 = vmul.f32 %v3735, 0.25
        %v3739 = vsel %vm3107, %v3738, -inf
        %3740 = vmax.xlane.f32.xlu0 %v3739
        %v3741 = vpop.xlane.xlu0 %3740
        %v3742 = vsub.f32 %v3738, %v3741
        %v3743 = vmul.f32 %v3742, 1.442695
        %v3744 = vpow.pop %v3743
        %v3745 = vsel %vm3107, %v3744, 0.0
        %3746 = vadd.xlane.f32.xlu0 %v3745
        %v3747 = vpop.xlane.xlu0 %3746
        %v3748 = vrcp.pop %v3747
        %v3749 = vmul.f32 %v3744, %v3748
        %v3750 = vadd.f32 %v3659, %v3749
        %v3751 = vmul.f32 %v3750, 0.25
        %s3752 = scalar_lea.vmem %s648, 2
        %3753 = vst.msk [vmem:[%s3752] sm:$0x3] %vm3107, %v3751
        %p3754 = scmp.lt.s32.totalorder %s32, 1
        %s3755 = scalar_select %p3754, %s32, 1
        %s3756 = smul.addr %s3755, 2
        %s3757 = smul.addr %s3756, 8
        %s3758 = scalar_lea.vmem %s17, %s3757
        %p3759 = scmp.lt.s32.totalorder %s32, 1
        %s3760 = scalar_select %p3759, %s32, 1
        %s3761 = smul.addr %s3760, 2
        %s3762 = smul.addr %s3761, 2
        %s3763 = scalar_lea.vmem %s18, %s3762
        // Predicated region
        $region97: #{dcdetector_forward.2} parent=87 // pred_check
          %p3764 = pneg %p422
        $region98: #{dcdetector_forward.2} parent=87 // pred_check_branch
          %3766 = sbr.rel (%p3764) target = $region100
        $region99: #{dcdetector_forward.2} parent=87 // pred_region
          _
        $region100: #{dcdetector_forward.2} parent=87 // pred_fallthru
          _
        // Predicated region
        $region101: #{dcdetector_forward.2} parent=87 // pred_check
          %p3767 = pneg %p448
        $region102: #{dcdetector_forward.2} parent=87 // pred_check_branch
          %3769 = sbr.rel (%p3767) target = $region104
        $region103: #{dcdetector_forward.2} parent=87 // pred_region
          _
        $region104: #{dcdetector_forward.2} parent=87 // pred_fallthru
          _
      $region88: #{dcdetector_forward.2} parent=5 // pred_fallthru
        _
      %p3770 = scmp.le.s32.totalorder 2, %s27
      // Predicated region
      $region105: #{dcdetector_forward.2} parent=5 // pred_check
        %p3771 = pneg %p3770
      $region106: #{dcdetector_forward.2} parent=5 // pred_check_branch
        %3773 = sbr.rel (%p3771) target = $region108
      $region107: #{dcdetector_forward.2} parent=5 // pred_region
        %s3774 = ssub.s32 %s27, 2
        // Predicated region
        $region109: #{dcdetector_forward.2} parent=107 // pred_check
          %p3775 = pneg %p428
        $region110: #{dcdetector_forward.2} parent=107 // pred_check_branch
          %3777 = sbr.rel (%p3775) target = $region112
        $region111: #{dcdetector_forward.2} parent=107 // pred_region
          %p3778 = scmp.lt.s32.totalorder %s33, 1
          %s3779 = scalar_select %p3778, %s33, 1
          %s3780 = smul.addr %s3779, 2
          %s3781 = smul.addr %s3780, 8
          %s3782 = scalar_lea.vmem %s17, %s3781
        $region112: #{dcdetector_forward.2} parent=107 // pred_fallthru
          _
        // Predicated region
        $region113: #{dcdetector_forward.2} parent=107 // pred_check
          %p3783 = pneg %p454
        $region114: #{dcdetector_forward.2} parent=107 // pred_check_branch
          %3785 = sbr.rel (%p3783) target = $region116
        $region115: #{dcdetector_forward.2} parent=107 // pred_region
          %p3786 = scmp.lt.s32.totalorder %s33, 1
          %s3787 = scalar_select %p3786, %s33, 1
          %s3788 = smul.addr %s3787, 2
          %s3789 = smul.addr %s3788, 2
          %s3790 = scalar_lea.vmem %s18, %s3789
        $region116: #{dcdetector_forward.2} parent=107 // pred_fallthru
          _
      $region108: #{dcdetector_forward.2} parent=5 // pred_fallthru
        _
    $region6: #{dcdetector_forward.2} parent=1 // loop_footer
      %s31 = sadd.s32 1, %s27
    $region7: #{dcdetector_forward.2} parent=1 // loop_footer_branch
      %26 = sbr.rel target = $region3
    $region8: #{dcdetector_forward.2} parent=1 // loop_exit
      _
    %3791 = vsyncpa [#allocation3], 1
    %s3792 = scalar_lea.sflag [#allocation3], 1
    %3793 = vsyncpa %s3792, 1
    %3794 = vsyncpa [#allocation5], 1

// kernel: dcdetector_forward.3
$region0: #{dcdetector_forward.3}
  #allocation0 [shape = 'u32[]', space=smem, size = 0x4, offset = 0x4, fixed_abs, tag = 'smem constant byte address 0x4 - core index']
  #allocation1 [shape = 'u32[144,128]{1,0:T(1,128)}', space=vmem, size = 0x12000, scoped, tag = 'internal scratch']
  %s0 = inlined_call_operand.vmem [shape: f32[2,4,16], index: 0, kind: input, shape index: {}]
  %s1 = inlined_call_operand.vmem [shape: f32[2,16,4], index: 1, kind: input, shape index: {}, may-alias: {1,7}]
  %s2 = inlined_call_operand.vmem [shape: f32[16,4], index: 2, kind: input, shape index: {}, may-alias: {2,8}]
  %s3 = inlined_call_operand.vmem [shape: f32[16,16], index: 3, kind: input, shape index: {}, may-alias: {3,9}]
  %s4 = inlined_call_operand.vmem [shape: f32[16,16], index: 4, kind: input, shape index: {}, may-alias: {4,10}]
  %s5 = inlined_call_operand.vmem [shape: f32[12,32], index: 5, kind: input, shape index: {}]
  %s6 = inlined_call_operand.vmem [shape: f32[16,32], index: 6, kind: input, shape index: {}, may-alias: {6,12}]
  %s7 = inlined_call_operand.vmem [shape: f32[2,16,4], index: 7, kind: input, shape index: {}, may-alias: {1,7}]
  %s8 = inlined_call_operand.vmem [shape: f32[16,4], index: 8, kind: input, shape index: {}, may-alias: {2,8}]
  %s9 = inlined_call_operand.vmem [shape: f32[16,16], index: 9, kind: input, shape index: {}, may-alias: {3,9}]
  %s10 = inlined_call_operand.vmem [shape: f32[16,16], index: 10, kind: input, shape index: {}, may-alias: {4,10}]
  %s11 = inlined_call_operand.vmem [shape: f32[12,32], index: 11, kind: input, shape index: {}]
  %s12 = inlined_call_operand.vmem [shape: f32[16,32], index: 12, kind: input, shape index: {}, may-alias: {6,12}]
  %s13 = inlined_call_operand.vmem [shape: f32[1,32,32], index: 13, kind: input, shape index: {}]
  %s14 = inlined_call_operand.vmem [shape: f32[1,1,32], index: 14, kind: input, shape index: {}]
  %s15 = inlined_call_operand.vmem [shape: f32[1,32,32], index: 15, kind: input, shape index: {}]
  %s16 = inlined_call_operand.vmem [shape: f32[1,1,32], index: 16, kind: input, shape index: {}]
  %s17 = inlined_call_operand.vmem [shape: f32[2,2,4,4], index: 17, kind: output, shape index: {0}]
  %s18 = inlined_call_operand.vmem [shape: f32[2,2,4,4], index: 18, kind: output, shape index: {1}]
  %19 = xla_tuple %s17, %s18
  %s20 = sld [smem:[#allocation0]]
  $region109: #{dcdetector_forward.3} parent=0
    _
  %s22 = ssub.s32 1, %s20
  %s23 = scalar_select 0, %s22, %s20
  loop: start=0, step=1, limit=4
  $region2: #{dcdetector_forward.3} parent=0 // loop_pre_header
    _
  $region3: #{dcdetector_forward.3} parent=0 // loop_header
    %s25 = sphi 0, %s29
    %p26 = scmp.ge.s32.totalorder %s25, 4
    %s35 = sphi 0, %s37
    %s38 = sphi 0, %s35
    %s39 = sphi 0, %s38
    %s55 = sphi 0, %s39
    %s61 = sphi 0, %s63
    %s64 = sphi 0, %s61
    %s65 = sphi 0, %s64
    %s81 = sphi 0, %s65
    %s85 = sphi 0, %s85
    %s87 = sphi 0, %s85
    %s88 = sphi 0, %s87
    %s102 = sphi 0, %s88
    %s106 = sphi 0, %s106
    %s108 = sphi 0, %s106
    %s109 = sphi 0, %s108
    %s123 = sphi 0, %s109
    %s127 = sphi 0, %s127
    %s129 = sphi 0, %s127
    %s130 = sphi 0, %s129
    %s144 = sphi 0, %s130
    %s148 = sphi 0, %s148
    %s150 = sphi 0, %s148
    %s151 = sphi 0, %s150
    %s165 = sphi 0, %s151
    %s169 = sphi 0, %s169
    %s171 = sphi 0, %s169
    %s172 = sphi 0, %s171
    %s186 = sphi 0, %s172
    %s192 = sphi 0, %s194
    %s195 = sphi 0, %s192
    %s196 = sphi 0, %s195
    %s212 = sphi 0, %s196
    %s216 = sphi 0, %s216
    %s218 = sphi 0, %s216
    %s219 = sphi 0, %s218
    %s233 = sphi 0, %s219
    %s237 = sphi 0, %s237
    %s239 = sphi 0, %s237
    %s240 = sphi 0, %s239
    %s254 = sphi 0, %s240
    %s258 = sphi 0, %s258
    %s260 = sphi 0, %s258
    %s261 = sphi 0, %s260
    %s275 = sphi 0, %s261
    %s279 = sphi 0, %s279
    %s281 = sphi 0, %s279
    %s282 = sphi 0, %s281
    %s296 = sphi 0, %s282
    %s300 = sphi 0, %s300
    %s302 = sphi 0, %s300
    %s303 = sphi 0, %s302
    %s317 = sphi 0, %s303
    %s321 = sphi 0, %s321
    %s323 = sphi 0, %s321
    %s324 = sphi 0, %s323
    %s338 = sphi 0, %s324
    %s342 = sphi 0, %s342
    %s344 = sphi 0, %s342
    %s345 = sphi 0, %s344
    %s359 = sphi 0, %s345
    %s363 = sphi 0, %s363
    %s365 = sphi 0, %s363
    %s366 = sphi 0, %s365
    %s380 = sphi 0, %s366
    %s384 = sphi 0, %s384
    %s386 = sphi 0, %s384
    %s387 = sphi 0, %s386
    %s401 = sphi 0, %s387
    %s407 = sphi 0, %s409
    %s410 = sphi 0, %s407
    %s411 = sphi 0, %s410
    %s427 = sphi 0, %s411
    %s433 = sphi 0, %s435
    %s436 = sphi 0, %s433
    %s437 = sphi 0, %s436
    %s453 = sphi 0, %s437
  $region4: #{dcdetector_forward.3} parent=0 // loop_header_branch
    %28 = sbr.rel (%p26) target = $region8
  $region5: #{dcdetector_forward.3} parent=0 // loop_body
    %s30 = ssub.s32 %s25, 1
    %s31 = ssub.s32 %s25, 2
    %s32 = sadd.s32 %s25, 1
    %s33 = ssub.s32 %s25, %s32
    %p34 = scmp.eq.s32.totalorder %s33, 0
    %s36 = sadd.s32 %s35, 1
    %s37 = scalar_select %p34, %s35, %s36
    %p40 = pneg %p34
    %p41 = scmp.eq.s32.totalorder %s25, 1
    %p42 = por %p40, %p41
    %p43 = scmp.ne.s32.totalorder %s35, %s38
    %p44 = scmp.eq.s32.totalorder %s25, 0
    %p45 = por %p43, %p44
    %p46 = scmp.ne.s32.totalorder %s35, %s38
    %p47 = scmp.eq.s32.totalorder %s30, 1
    %p48 = por %p46, %p47
    %p49 = scmp.ne.s32.totalorder %s38, %s39
    %p50 = scmp.eq.s32.totalorder %s30, 0
    %p51 = por %p49, %p50
    %p52 = scmp.ne.s32.totalorder %s38, %s39
    %p53 = scmp.eq.s32.totalorder %s31, 1
    %p54 = por %p52, %p53
    %p56 = scmp.ne.s32.totalorder %s39, %s55
    %p57 = scmp.eq.s32.totalorder %s31, 0
    %p58 = por %p56, %p57
    %s59 = ssub.s32 %s25, %s32
    %p60 = scmp.eq.s32.totalorder %s59, 0
    %s62 = sadd.s32 %s61, 1
    %s63 = scalar_select %p60, %s61, %s62
    %p66 = pneg %p60
    %p67 = scmp.eq.s32.totalorder %s25, 1
    %p68 = por %p66, %p67
    %p69 = scmp.ne.s32.totalorder %s61, %s64
    %p70 = scmp.eq.s32.totalorder %s25, 0
    %p71 = por %p69, %p70
    %p72 = scmp.ne.s32.totalorder %s61, %s64
    %p73 = scmp.eq.s32.totalorder %s30, 1
    %p74 = por %p72, %p73
    %p75 = scmp.ne.s32.totalorder %s64, %s65
    %p76 = scmp.eq.s32.totalorder %s30, 0
    %p77 = por %p75, %p76
    %p78 = scmp.ne.s32.totalorder %s64, %s65
    %p79 = scmp.eq.s32.totalorder %s31, 1
    %p80 = por %p78, %p79
    %p82 = scmp.ne.s32.totalorder %s65, %s81
    %p83 = scmp.eq.s32.totalorder %s31, 0
    %p84 = por %p82, %p83
    %s86 = sadd.s32 %s85, 1
    %p89 = scmp.eq.s32.totalorder %s25, 1
    %p90 = scmp.ne.s32.totalorder %s85, %s87
    %p91 = scmp.eq.s32.totalorder %s25, 0
    %p92 = por %p90, %p91
    %p93 = scmp.ne.s32.totalorder %s85, %s87
    %p94 = scmp.eq.s32.totalorder %s30, 1
    %p95 = por %p93, %p94
    %p96 = scmp.ne.s32.totalorder %s87, %s88
    %p97 = scmp.eq.s32.totalorder %s30, 0
    %p98 = por %p96, %p97
    %p99 = scmp.ne.s32.totalorder %s87, %s88
    %p100 = scmp.eq.s32.totalorder %s31, 1
    %p101 = por %p99, %p100
    %p103 = scmp.ne.s32.totalorder %s88, %s102
    %p104 = scmp.eq.s32.totalorder %s31, 0
    %p105 = por %p103, %p104
    %s107 = sadd.s32 %s106, 1
    %p110 = scmp.eq.s32.totalorder %s25, 1
    %p111 = scmp.ne.s32.totalorder %s106, %s108
    %p112 = scmp.eq.s32.totalorder %s25, 0
    %p113 = por %p111, %p112
    %p114 = scmp.ne.s32.totalorder %s106, %s108
    %p115 = scmp.eq.s32.totalorder %s30, 1
    %p116 = por %p114, %p115
    %p117 = scmp.ne.s32.totalorder %s108, %s109
    %p118 = scmp.eq.s32.totalorder %s30, 0
    %p119 = por %p117, %p118
    %p120 = scmp.ne.s32.totalorder %s108, %s109
    %p121 = scmp.eq.s32.totalorder %s31, 1
    %p122 = por %p120, %p121
    %p124 = scmp.ne.s32.totalorder %s109, %s123
    %p125 = scmp.eq.s32.totalorder %s31, 0
    %p126 = por %p124, %p125
    %s128 = sadd.s32 %s127, 1
    %p131 = scmp.eq.s32.totalorder %s25, 1
    %p132 = scmp.ne.s32.totalorder %s127, %s129
    %p133 = scmp.eq.s32.totalorder %s25, 0
    %p134 = por %p132, %p133
    %p135 = scmp.ne.s32.totalorder %s127, %s129
    %p136 = scmp.eq.s32.totalorder %s30, 1
    %p137 = por %p135, %p136
    %p138 = scmp.ne.s32.totalorder %s129, %s130
    %p139 = scmp.eq.s32.totalorder %s30, 0
    %p140 = por %p138, %p139
    %p141 = scmp.ne.s32.totalorder %s129, %s130
    %p142 = scmp.eq.s32.totalorder %s31, 1
    %p143 = por %p141, %p142
    %p145 = scmp.ne.s32.totalorder %s130, %s144
    %p146 = scmp.eq.s32.totalorder %s31, 0
    %p147 = por %p145, %p146
    %s149 = sadd.s32 %s148, 1
    %p152 = scmp.eq.s32.totalorder %s25, 1
    %p153 = scmp.ne.s32.totalorder %s148, %s150
    %p154 = scmp.eq.s32.totalorder %s25, 0
    %p155 = por %p153, %p154
    %p156 = scmp.ne.s32.totalorder %s148, %s150
    %p157 = scmp.eq.s32.totalorder %s30, 1
    %p158 = por %p156, %p157
    %p159 = scmp.ne.s32.totalorder %s150, %s151
    %p160 = scmp.eq.s32.totalorder %s30, 0
    %p161 = por %p159, %p160
    %p162 = scmp.ne.s32.totalorder %s150, %s151
    %p163 = scmp.eq.s32.totalorder %s31, 1
    %p164 = por %p162, %p163
    %p166 = scmp.ne.s32.totalorder %s151, %s165
    %p167 = scmp.eq.s32.totalorder %s31, 0
    %p168 = por %p166, %p167
    %s170 = sadd.s32 %s169, 1
    %p173 = scmp.eq.s32.totalorder %s25, 1
    %p174 = scmp.ne.s32.totalorder %s169, %s171
    %p175 = scmp.eq.s32.totalorder %s25, 0
    %p176 = por %p174, %p175
    %p177 = scmp.ne.s32.totalorder %s169, %s171
    %p178 = scmp.eq.s32.totalorder %s30, 1
    %p179 = por %p177, %p178
    %p180 = scmp.ne.s32.totalorder %s171, %s172
    %p181 = scmp.eq.s32.totalorder %s30, 0
    %p182 = por %p180, %p181
    %p183 = scmp.ne.s32.totalorder %s171, %s172
    %p184 = scmp.eq.s32.totalorder %s31, 1
    %p185 = por %p183, %p184
    %p187 = scmp.ne.s32.totalorder %s172, %s186
    %p188 = scmp.eq.s32.totalorder %s31, 0
    %p189 = por %p187, %p188
    %s190 = ssub.s32 %s25, %s32
    %p191 = scmp.eq.s32.totalorder %s190, 0
    %s193 = sadd.s32 %s192, 1
    %s194 = scalar_select %p191, %s192, %s193
    %p197 = pneg %p191
    %p198 = scmp.eq.s32.totalorder %s25, 1
    %p199 = por %p197, %p198
    %p200 = scmp.ne.s32.totalorder %s192, %s195
    %p201 = scmp.eq.s32.totalorder %s25, 0
    %p202 = por %p200, %p201
    %p203 = scmp.ne.s32.totalorder %s192, %s195
    %p204 = scmp.eq.s32.totalorder %s30, 1
    %p205 = por %p203, %p204
    %p206 = scmp.ne.s32.totalorder %s195, %s196
    %p207 = scmp.eq.s32.totalorder %s30, 0
    %p208 = por %p206, %p207
    %p209 = scmp.ne.s32.totalorder %s195, %s196
    %p210 = scmp.eq.s32.totalorder %s31, 1
    %p211 = por %p209, %p210
    %p213 = scmp.ne.s32.totalorder %s196, %s212
    %p214 = scmp.eq.s32.totalorder %s31, 0
    %p215 = por %p213, %p214
    %s217 = sadd.s32 %s216, 1
    %p220 = scmp.eq.s32.totalorder %s25, 1
    %p221 = scmp.ne.s32.totalorder %s216, %s218
    %p222 = scmp.eq.s32.totalorder %s25, 0
    %p223 = por %p221, %p222
    %p224 = scmp.ne.s32.totalorder %s216, %s218
    %p225 = scmp.eq.s32.totalorder %s30, 1
    %p226 = por %p224, %p225
    %p227 = scmp.ne.s32.totalorder %s218, %s219
    %p228 = scmp.eq.s32.totalorder %s30, 0
    %p229 = por %p227, %p228
    %p230 = scmp.ne.s32.totalorder %s218, %s219
    %p231 = scmp.eq.s32.totalorder %s31, 1
    %p232 = por %p230, %p231
    %p234 = scmp.ne.s32.totalorder %s219, %s233
    %p235 = scmp.eq.s32.totalorder %s31, 0
    %p236 = por %p234, %p235
    %s238 = sadd.s32 %s237, 1
    %p241 = scmp.eq.s32.totalorder %s25, 1
    %p242 = scmp.ne.s32.totalorder %s237, %s239
    %p243 = scmp.eq.s32.totalorder %s25, 0
    %p244 = por %p242, %p243
    %p245 = scmp.ne.s32.totalorder %s237, %s239
    %p246 = scmp.eq.s32.totalorder %s30, 1
    %p247 = por %p245, %p246
    %p248 = scmp.ne.s32.totalorder %s239, %s240
    %p249 = scmp.eq.s32.totalorder %s30, 0
    %p250 = por %p248, %p249
    %p251 = scmp.ne.s32.totalorder %s239, %s240
    %p252 = scmp.eq.s32.totalorder %s31, 1
    %p253 = por %p251, %p252
    %p255 = scmp.ne.s32.totalorder %s240, %s254
    %p256 = scmp.eq.s32.totalorder %s31, 0
    %p257 = por %p255, %p256
    %s259 = sadd.s32 %s258, 1
    %p262 = scmp.eq.s32.totalorder %s25, 1
    %p263 = scmp.ne.s32.totalorder %s258, %s260
    %p264 = scmp.eq.s32.totalorder %s25, 0
    %p265 = por %p263, %p264
    %p266 = scmp.ne.s32.totalorder %s258, %s260
    %p267 = scmp.eq.s32.totalorder %s30, 1
    %p268 = por %p266, %p267
    %p269 = scmp.ne.s32.totalorder %s260, %s261
    %p270 = scmp.eq.s32.totalorder %s30, 0
    %p271 = por %p269, %p270
    %p272 = scmp.ne.s32.totalorder %s260, %s261
    %p273 = scmp.eq.s32.totalorder %s31, 1
    %p274 = por %p272, %p273
    %p276 = scmp.ne.s32.totalorder %s261, %s275
    %p277 = scmp.eq.s32.totalorder %s31, 0
    %p278 = por %p276, %p277
    %s280 = sadd.s32 %s279, 1
    %p283 = scmp.eq.s32.totalorder %s25, 1
    %p284 = scmp.ne.s32.totalorder %s279, %s281
    %p285 = scmp.eq.s32.totalorder %s25, 0
    %p286 = por %p284, %p285
    %p287 = scmp.ne.s32.totalorder %s279, %s281
    %p288 = scmp.eq.s32.totalorder %s30, 1
    %p289 = por %p287, %p288
    %p290 = scmp.ne.s32.totalorder %s281, %s282
    %p291 = scmp.eq.s32.totalorder %s30, 0
    %p292 = por %p290, %p291
    %p293 = scmp.ne.s32.totalorder %s281, %s282
    %p294 = scmp.eq.s32.totalorder %s31, 1
    %p295 = por %p293, %p294
    %p297 = scmp.ne.s32.totalorder %s282, %s296
    %p298 = scmp.eq.s32.totalorder %s31, 0
    %p299 = por %p297, %p298
    %s301 = sadd.s32 %s300, 1
    %p304 = scmp.eq.s32.totalorder %s25, 1
    %p305 = scmp.ne.s32.totalorder %s300, %s302
    %p306 = scmp.eq.s32.totalorder %s25, 0
    %p307 = por %p305, %p306
    %p308 = scmp.ne.s32.totalorder %s300, %s302
    %p309 = scmp.eq.s32.totalorder %s30, 1
    %p310 = por %p308, %p309
    %p311 = scmp.ne.s32.totalorder %s302, %s303
    %p312 = scmp.eq.s32.totalorder %s30, 0
    %p313 = por %p311, %p312
    %p314 = scmp.ne.s32.totalorder %s302, %s303
    %p315 = scmp.eq.s32.totalorder %s31, 1
    %p316 = por %p314, %p315
    %p318 = scmp.ne.s32.totalorder %s303, %s317
    %p319 = scmp.eq.s32.totalorder %s31, 0
    %p320 = por %p318, %p319
    %s322 = sadd.s32 %s321, 1
    %p325 = scmp.eq.s32.totalorder %s25, 1
    %p326 = scmp.ne.s32.totalorder %s321, %s323
    %p327 = scmp.eq.s32.totalorder %s25, 0
    %p328 = por %p326, %p327
    %p329 = scmp.ne.s32.totalorder %s321, %s323
    %p330 = scmp.eq.s32.totalorder %s30, 1
    %p331 = por %p329, %p330
    %p332 = scmp.ne.s32.totalorder %s323, %s324
    %p333 = scmp.eq.s32.totalorder %s30, 0
    %p334 = por %p332, %p333
    %p335 = scmp.ne.s32.totalorder %s323, %s324
    %p336 = scmp.eq.s32.totalorder %s31, 1
    %p337 = por %p335, %p336
    %p339 = scmp.ne.s32.totalorder %s324, %s338
    %p340 = scmp.eq.s32.totalorder %s31, 0
    %p341 = por %p339, %p340
    %s343 = sadd.s32 %s342, 1
    %p346 = scmp.eq.s32.totalorder %s25, 1
    %p347 = scmp.ne.s32.totalorder %s342, %s344
    %p348 = scmp.eq.s32.totalorder %s25, 0
    %p349 = por %p347, %p348
    %p350 = scmp.ne.s32.totalorder %s342, %s344
    %p351 = scmp.eq.s32.totalorder %s30, 1
    %p352 = por %p350, %p351
    %p353 = scmp.ne.s32.totalorder %s344, %s345
    %p354 = scmp.eq.s32.totalorder %s30, 0
    %p355 = por %p353, %p354
    %p356 = scmp.ne.s32.totalorder %s344, %s345
    %p357 = scmp.eq.s32.totalorder %s31, 1
    %p358 = por %p356, %p357
    %p360 = scmp.ne.s32.totalorder %s345, %s359
    %p361 = scmp.eq.s32.totalorder %s31, 0
    %p362 = por %p360, %p361
    %s364 = sadd.s32 %s363, 1
    %p367 = scmp.eq.s32.totalorder %s25, 1
    %p368 = scmp.ne.s32.totalorder %s363, %s365
    %p369 = scmp.eq.s32.totalorder %s25, 0
    %p370 = por %p368, %p369
    %p371 = scmp.ne.s32.totalorder %s363, %s365
    %p372 = scmp.eq.s32.totalorder %s30, 1
    %p373 = por %p371, %p372
    %p374 = scmp.ne.s32.totalorder %s365, %s366
    %p375 = scmp.eq.s32.totalorder %s30, 0
    %p376 = por %p374, %p375
    %p377 = scmp.ne.s32.totalorder %s365, %s366
    %p378 = scmp.eq.s32.totalorder %s31, 1
    %p379 = por %p377, %p378
    %p381 = scmp.ne.s32.totalorder %s366, %s380
    %p382 = scmp.eq.s32.totalorder %s31, 0
    %p383 = por %p381, %p382
    %s385 = sadd.s32 %s384, 1
    %p388 = scmp.eq.s32.totalorder %s25, 1
    %p389 = scmp.ne.s32.totalorder %s384, %s386
    %p390 = scmp.eq.s32.totalorder %s25, 0
    %p391 = por %p389, %p390
    %p392 = scmp.ne.s32.totalorder %s384, %s386
    %p393 = scmp.eq.s32.totalorder %s30, 1
    %p394 = por %p392, %p393
    %p395 = scmp.ne.s32.totalorder %s386, %s387
    %p396 = scmp.eq.s32.totalorder %s30, 0
    %p397 = por %p395, %p396
    %p398 = scmp.ne.s32.totalorder %s386, %s387
    %p399 = scmp.eq.s32.totalorder %s31, 1
    %p400 = por %p398, %p399
    %p402 = scmp.ne.s32.totalorder %s387, %s401
    %p403 = scmp.eq.s32.totalorder %s31, 0
    %p404 = por %p402, %p403
    %s405 = ssub.s32 %s25, %s32
    %p406 = scmp.eq.s32.totalorder %s405, 0
    %s408 = sadd.s32 %s407, 1
    %s409 = scalar_select %p406, %s407, %s408
    %p412 = pneg %p406
    %p413 = scmp.eq.s32.totalorder %s25, 1
    %p414 = por %p412, %p413
    %p415 = scmp.ne.s32.totalorder %s407, %s410
    %p416 = scmp.eq.s32.totalorder %s25, 0
    %p417 = por %p415, %p416
    %p418 = scmp.ne.s32.totalorder %s407, %s410
    %p419 = scmp.eq.s32.totalorder %s30, 1
    %p420 = por %p418, %p419
    %p421 = scmp.ne.s32.totalorder %s410, %s411
    %p422 = scmp.eq.s32.totalorder %s30, 0
    %p423 = por %p421, %p422
    %p424 = scmp.ne.s32.totalorder %s410, %s411
    %p425 = scmp.eq.s32.totalorder %s31, 1
    %p426 = por %p424, %p425
    %p428 = scmp.ne.s32.totalorder %s411, %s427
    %p429 = scmp.eq.s32.totalorder %s31, 0
    %p430 = por %p428, %p429
    %s431 = ssub.s32 %s25, %s32
    %p432 = scmp.eq.s32.totalorder %s431, 0
    %s434 = sadd.s32 %s433, 1
    %s435 = scalar_select %p432, %s433, %s434
    %p438 = pneg %p432
    %p439 = scmp.eq.s32.totalorder %s25, 1
    %p440 = por %p438, %p439
    %p441 = scmp.ne.s32.totalorder %s433, %s436
    %p442 = scmp.eq.s32.totalorder %s25, 0
    %p443 = por %p441, %p442
    %p444 = scmp.ne.s32.totalorder %s433, %s436
    %p445 = scmp.eq.s32.totalorder %s30, 1
    %p446 = por %p444, %p445
    %p447 = scmp.ne.s32.totalorder %s436, %s437
    %p448 = scmp.eq.s32.totalorder %s30, 0
    %p449 = por %p447, %p448
    %p450 = scmp.ne.s32.totalorder %s436, %s437
    %p451 = scmp.eq.s32.totalorder %s31, 1
    %p452 = por %p450, %p451
    %p454 = scmp.ne.s32.totalorder %s437, %s453
    %p455 = scmp.eq.s32.totalorder %s31, 0
    %p456 = por %p454, %p455
    %p457 = scmp.le.s32.totalorder 1, %s25
    %p458 = scmp.lt.s32.totalorder %s25, 3
    %p459 = pnand %p457, %p458
    %p460 = pneg %p459
    // Predicated region
    $region9: #{dcdetector_forward.3} parent=5 // pred_check
      _
    $region10: #{dcdetector_forward.3} parent=5 // pred_check_branch
      %462 = sbr.rel (%p459) target = $region12
    $region11: #{dcdetector_forward.3} parent=5 // pred_region
      %s463 = ssub.s32 %s25, 1
      // Predicated region
      $region13: #{dcdetector_forward.3} parent=11 // pred_check
        %p464 = pneg %p98
      $region14: #{dcdetector_forward.3} parent=11 // pred_check_branch
        %466 = sbr.rel (%p464) target = $region16
      $region15: #{dcdetector_forward.3} parent=11 // pred_region
        _
      $region16: #{dcdetector_forward.3} parent=11 // pred_fallthru
        _
      // Predicated region
      $region17: #{dcdetector_forward.3} parent=11 // pred_check
        %p467 = pneg %p119
      $region18: #{dcdetector_forward.3} parent=11 // pred_check_branch
        %469 = sbr.rel (%p467) target = $region20
      $region19: #{dcdetector_forward.3} parent=11 // pred_region
        _
      $region20: #{dcdetector_forward.3} parent=11 // pred_fallthru
        _
      // Predicated region
      $region21: #{dcdetector_forward.3} parent=11 // pred_check
        %p470 = pneg %p140
      $region22: #{dcdetector_forward.3} parent=11 // pred_check_branch
        %472 = sbr.rel (%p470) target = $region24
      $region23: #{dcdetector_forward.3} parent=11 // pred_region
        _
      $region24: #{dcdetector_forward.3} parent=11 // pred_fallthru
        _
      // Predicated region
      $region25: #{dcdetector_forward.3} parent=11 // pred_check
        %p473 = pneg %p161
      $region26: #{dcdetector_forward.3} parent=11 // pred_check_branch
        %475 = sbr.rel (%p473) target = $region28
      $region27: #{dcdetector_forward.3} parent=11 // pred_region
        _
      $region28: #{dcdetector_forward.3} parent=11 // pred_fallthru
        _
      // Predicated region
      $region29: #{dcdetector_forward.3} parent=11 // pred_check
        %p476 = pneg %p182
      $region30: #{dcdetector_forward.3} parent=11 // pred_check_branch
        %478 = sbr.rel (%p476) target = $region32
      $region31: #{dcdetector_forward.3} parent=11 // pred_region
        _
      $region32: #{dcdetector_forward.3} parent=11 // pred_fallthru
        _
      // Predicated region
      $region33: #{dcdetector_forward.3} parent=11 // pred_check
        %p479 = pneg %p229
      $region34: #{dcdetector_forward.3} parent=11 // pred_check_branch
        %481 = sbr.rel (%p479) target = $region36
      $region35: #{dcdetector_forward.3} parent=11 // pred_region
        _
      $region36: #{dcdetector_forward.3} parent=11 // pred_fallthru
        _
      // Predicated region
      $region37: #{dcdetector_forward.3} parent=11 // pred_check
        %p482 = pneg %p250
      $region38: #{dcdetector_forward.3} parent=11 // pred_check_branch
        %484 = sbr.rel (%p482) target = $region40
      $region39: #{dcdetector_forward.3} parent=11 // pred_region
        _
      $region40: #{dcdetector_forward.3} parent=11 // pred_fallthru
        _
      // Predicated region
      $region41: #{dcdetector_forward.3} parent=11 // pred_check
        %p485 = pneg %p271
      $region42: #{dcdetector_forward.3} parent=11 // pred_check_branch
        %487 = sbr.rel (%p485) target = $region44
      $region43: #{dcdetector_forward.3} parent=11 // pred_region
        _
      $region44: #{dcdetector_forward.3} parent=11 // pred_fallthru
        _
      // Predicated region
      $region45: #{dcdetector_forward.3} parent=11 // pred_check
        %p488 = pneg %p292
      $region46: #{dcdetector_forward.3} parent=11 // pred_check_branch
        %490 = sbr.rel (%p488) target = $region48
      $region47: #{dcdetector_forward.3} parent=11 // pred_region
        _
      $region48: #{dcdetector_forward.3} parent=11 // pred_fallthru
        _
      // Predicated region
      $region49: #{dcdetector_forward.3} parent=11 // pred_check
        %p491 = pneg %p313
      $region50: #{dcdetector_forward.3} parent=11 // pred_check_branch
        %493 = sbr.rel (%p491) target = $region52
      $region51: #{dcdetector_forward.3} parent=11 // pred_region
        _
      $region52: #{dcdetector_forward.3} parent=11 // pred_fallthru
        _
      // Predicated region
      $region53: #{dcdetector_forward.3} parent=11 // pred_check
        %p494 = pneg %p334
      $region54: #{dcdetector_forward.3} parent=11 // pred_check_branch
        %496 = sbr.rel (%p494) target = $region56
      $region55: #{dcdetector_forward.3} parent=11 // pred_region
        _
      $region56: #{dcdetector_forward.3} parent=11 // pred_fallthru
        _
      // Predicated region
      $region57: #{dcdetector_forward.3} parent=11 // pred_check
        %p497 = pneg %p355
      $region58: #{dcdetector_forward.3} parent=11 // pred_check_branch
        %499 = sbr.rel (%p497) target = $region60
      $region59: #{dcdetector_forward.3} parent=11 // pred_region
        _
      $region60: #{dcdetector_forward.3} parent=11 // pred_fallthru
        _
      // Predicated region
      $region61: #{dcdetector_forward.3} parent=11 // pred_check
        %p500 = pneg %p376
      $region62: #{dcdetector_forward.3} parent=11 // pred_check_branch
        %502 = sbr.rel (%p500) target = $region64
      $region63: #{dcdetector_forward.3} parent=11 // pred_region
        _
      $region64: #{dcdetector_forward.3} parent=11 // pred_fallthru
        _
      // Predicated region
      $region65: #{dcdetector_forward.3} parent=11 // pred_check
        %p503 = pneg %p397
      $region66: #{dcdetector_forward.3} parent=11 // pred_check_branch
        %505 = sbr.rel (%p503) target = $region68
      $region67: #{dcdetector_forward.3} parent=11 // pred_region
        _
      $region68: #{dcdetector_forward.3} parent=11 // pred_fallthru
        _
    $region12: #{dcdetector_forward.3} parent=5 // pred_fallthru
      _
    %p506 = scmp.lt.s32.totalorder %s25, 2
    // Predicated region
    $region69: #{dcdetector_forward.3} parent=5 // pred_check
      %p507 = pneg %p506
    $region70: #{dcdetector_forward.3} parent=5 // pred_check_branch
      %509 = sbr.rel (%p507) target = $region72
    $region71: #{dcdetector_forward.3} parent=5 // pred_region
      // Predicated region
      $region73: #{dcdetector_forward.3} parent=71 // pred_check
        %p510 = pneg %p45
      $region74: #{dcdetector_forward.3} parent=71 // pred_check_branch
        %512 = sbr.rel (%p510) target = $region76
      $region75: #{dcdetector_forward.3} parent=71 // pred_region
        %p513 = scmp.lt.s32.totalorder %s25, 1
        %s514 = scalar_select %p513, %s25, 1
        %s515 = smul.addr %s514, 4
        %s516 = scalar_lea.vmem %s0, %s515
      $region76: #{dcdetector_forward.3} parent=71 // pred_fallthru
        _
      // Predicated region
      $region77: #{dcdetector_forward.3} parent=71 // pred_check
        %p517 = pneg %p71
      $region78: #{dcdetector_forward.3} parent=71 // pred_check_branch
        %519 = sbr.rel (%p517) target = $region80
      $region79: #{dcdetector_forward.3} parent=71 // pred_region
        %p520 = scmp.lt.s32.totalorder %s25, 1
        %s521 = scalar_select %p520, %s25, 1
        %s522 = smul.addr %s521, 2
        %s523 = smul.addr %s522, 8
        %s524 = scalar_lea.vmem %s1, %s523
      $region80: #{dcdetector_forward.3} parent=71 // pred_fallthru
        _
      // Predicated region
      $region81: #{dcdetector_forward.3} parent=71 // pred_check
        %p525 = pneg %p202
      $region82: #{dcdetector_forward.3} parent=71 // pred_check_branch
        %527 = sbr.rel (%p525) target = $region84
      $region83: #{dcdetector_forward.3} parent=71 // pred_region
        %p528 = scmp.lt.s32.totalorder %s25, 1
        %s529 = scalar_select %p528, %s25, 1
        %s530 = smul.addr %s529, 2
        %s531 = smul.addr %s530, 8
        %s532 = scalar_lea.vmem %s7, %s531
      $region84: #{dcdetector_forward.3} parent=71 // pred_fallthru
        _
    $region72: #{dcdetector_forward.3} parent=5 // pred_fallthru
      _
    %p533 = scmp.le.s32.totalorder 1, %s25
    %p534 = scmp.lt.s32.totalorder %s25, 3
    %p535 = pnand %p533, %p534
    %p536 = pneg %p535
    // Predicated region
    $region85: #{dcdetector_forward.3} parent=5 // pred_check
      _
    $region86: #{dcdetector_forward.3} parent=5 // pred_check_branch
      %538 = sbr.rel (%p535) target = $region88
    $region87: #{dcdetector_forward.3} parent=5 // pred_region
      %s539 = ssub.s32 %s25, 1
      %p540 = scmp.lt.s32.totalorder %s30, 1
      %s541 = scalar_select %p540, %s30, 1
      %s542 = smul.addr %s541, 4
      %s543 = scalar_lea.vmem %s0, %s542
      %p544 = pneg %p51
      %p545 = pneg %p48
      %p546 = scmp.lt.s32.totalorder %s30, 1
      %s547 = scalar_select %p546, %s30, 1
      %s548 = smul.addr %s547, 2
      %s549 = smul.addr %s548, 8
      %s550 = scalar_lea.vmem %s1, %s549
      %p551 = pneg %p77
      %p552 = pneg %p74
      %p553 = pneg %p98
      %p554 = pneg %p95
      %p555 = pneg %p119
      %p556 = pneg %p116
      %p557 = pneg %p140
      %p558 = pneg %p137
      %p559 = pneg %p161
      %p560 = pneg %p158
      %p561 = pneg %p182
      %p562 = pneg %p179
      %p563 = scmp.lt.s32.totalorder %s30, 1
      %s564 = scalar_select %p563, %s30, 1
      %s565 = smul.addr %s564, 2
      %s566 = smul.addr %s565, 8
      %s567 = scalar_lea.vmem %s7, %s566
      %p568 = pneg %p208
      %p569 = pneg %p205
      %p570 = pneg %p229
      %p571 = pneg %p226
      %p572 = pneg %p250
      %p573 = pneg %p247
      %p574 = pneg %p271
      %p575 = pneg %p268
      %p576 = pneg %p292
      %p577 = pneg %p289
      %p578 = pneg %p313
      %p579 = pneg %p310
      %p580 = pneg %p334
      %p581 = pneg %p331
      %p582 = pneg %p355
      %p583 = pneg %p352
      %p584 = pneg %p376
      %p585 = pneg %p373
      %p586 = pneg %p397
      %p587 = pneg %p394
      %p588 = pneg %p423
      %p589 = pneg %p420
      %p590 = scmp.lt.s32.totalorder %s30, 1
      %s591 = scalar_select %p590, %s30, 1
      %s592 = smul.addr %s591, 2
      %s593 = smul.addr %s592, 4
      %s594 = scalar_lea.vmem %s17, %s593
      %p595 = pneg %p449
      %p596 = pneg %p446
      %p597 = scmp.lt.s32.totalorder %s30, 1
      %s598 = scalar_select %p597, %s30, 1
      %s599 = smul.addr %s598, 2
      %s600 = smul.addr %s599, 4
      %s601 = scalar_lea.vmem %s18, %s600
      %p602 = scmp.lt.s32.totalorder %s30, 1
      %s603 = scalar_select %p602, %s30, 1
      %s604 = smul.addr %s603, 4
      %s605 = scalar_lea.vmem %s0, %s604
      %p606 = scmp.lt.s32.totalorder %s30, 1
      %s607 = scalar_select %p606, %s30, 1
      %s608 = smul.addr %s607, 2
      %s609 = smul.addr %s608, 8
      %s610 = scalar_lea.vmem %s1, %s609
      %p611 = scmp.lt.s32.totalorder %s30, 1
      %s612 = scalar_select %p611, %s30, 1
      %s613 = smul.addr %s612, 2
      %s614 = smul.addr %s613, 8
      %s615 = scalar_lea.vmem %s7, %s614
      %p616 = scmp.lt.s32.totalorder %s30, 1
      %s617 = scalar_select %p616, %s30, 1
      %s618 = smul.addr %s617, 2
      %s619 = smul.addr %s618, 4
      %s620 = scalar_lea.vmem %s17, %s619
      %p621 = scmp.lt.s32.totalorder %s30, 1
      %s622 = scalar_select %p621, %s30, 1
      %s623 = smul.addr %s622, 2
      %s624 = smul.addr %s623, 4
      %s625 = scalar_lea.vmem %s18, %s624
      %v626 = vld [vmem:[%s605] sm:$0xf]
      %vm627 = vcmask 125952
      %v628 = vsel %vm627, %v626, 0.0
      %629 = vadd.xlane.f32.xlu0 %v628
      %v630 = vpop.xlane.xlu0 %629
      %v631 = vrcp.pop 16.0
      %v632 = vmul.f32 %v630, %v631
      %v633 = vsub.f32 %v626, %v632
      %v634 = vmul.f32 %v633, %v633
      %v635 = vsel %vm627, %v634, 0.0
      %636 = vadd.xlane.f32.xlu0 %v635
      %v637 = vpop.xlane.xlu0 %636
      %v638 = vmul.f32 %v637, %v631
      %v639 = vadd.f32 %v638, 1e-05
      %v640 = vrsqrt.pop %v639
      %v641 = vld [vmem:[%s610] sm:$0xff]
      %v642 = vld [vmem:[%s610 + $0x8] sm:$0xff]
      %v643 = vld [vmem:[%s2] sm:$0xff]
      %v644 = vld [vmem:[%s2 + $0x8] sm:$0xff]
      %vm645 = vcmask 31744
      %v647 = vsel %vm645, %v643, 0
      %v650 = vsel %vm645, %v644, 0
      %vm652 = vcmask 1043456
      %v654 = vsel %vm652, %v632, 0
      %656 = vmatprep.subr.mxu0 0.0
      %657 = vmatpush1.msra.mxu0 %v654
      %658 = vmatprep.subr.mxu0 0.0
      %659 = vmatpush1.msra.mxu0 0.0
      %660 = vmatprep.subr.mxu0 0.0
      %661 = vmatpush1.msra.mxu0 0.0
      %662 = vmatprep.subr.mxu0 0.0
      %663 = vmatpush1.msra.mxu0 0.0
      %664 = vmatprep.subr.mxu0 0.0
      %665 = vmatpush1.msra.mxu0 0.0
      %666 = vmatprep.subr.mxu0 0.0
      %667 = vmatpush1.msra.mxu0 0.0
      %668 = vmatprep.subr.mxu0 0.0
      %669 = vmatpush1.msra.mxu0 0.0
      %670 = vmatprep.subr.mxu0 0.0
      %671 = vmatpush1.msra.mxu0 0.0
      %672 = vmatprep.subr.mxu0 0.0
      %673 = vmatpush1.msra.mxu0 0.0
      %674 = vmatprep.subr.mxu0 0.0
      %675 = vmatpush1.msra.mxu0 0.0
      %676 = vmatprep.subr.mxu0 0.0
      %677 = vmatpush1.msra.mxu0 0.0
      %678 = vmatprep.subr.mxu0 0.0
      %679 = vmatpush1.msra.mxu0 0.0
      %680 = vmatprep.subr.mxu0 0.0
      %681 = vmatpush1.msra.mxu0 0.0
      %682 = vmatprep.subr.mxu0 0.0
      %683 = vmatpush1.msra.mxu0 0.0
      %684 = vmatprep.subr.mxu0 0.0
      %685 = vmatpush1.msra.mxu0 0.0
      %686 = vmatprep.subr.mxu0 0.0
      %687 = vmatpush1.msra.mxu0 0.0
      %688 = vmatprep.subr.mxu0 0.0
      %689 = vmatpush1.msra.mxu0 0.0
      %690 = vmatprep.subr.mxu0 0.0
      %691 = vmatpush1.msra.mxu0 0.0
      %692 = vmatprep.subr.mxu0 0.0
      %693 = vmatpush1.msra.mxu0 0.0
      %694 = vmatprep.subr.mxu0 0.0
      %695 = vmatpush1.msra.mxu0 0.0
      %696 = vmatprep.subr.mxu0 0.0
      %697 = vmatpush1.msra.mxu0 0.0
      %698 = vmatprep.subr.mxu0 0.0
      %699 = vmatpush1.msra.mxu0 0.0
      %700 = vmatprep.subr.mxu0 0.0
      %701 = vmatpush1.msra.mxu0 0.0
      %702 = vmatprep.subr.mxu0 0.0
      %703 = vmatpush1.msra.mxu0 0.0
      %704 = vmatprep.subr.mxu0 0.0
      %705 = vmatpush1.msra.mxu0 0.0
      %706 = vmatprep.subr.mxu0 0.0
      %707 = vmatpush1.msra.mxu0 0.0
      %708 = vmatprep.subr.mxu0 0.0
      %709 = vmatpush1.msra.mxu0 0.0
      %710 = vmatprep.subr.mxu0 0.0
      %711 = vmatpush1.msra.mxu0 0.0
      %712 = vmatprep.subr.mxu0 0.0
      %713 = vmatpush1.msra.mxu0 0.0
      %714 = vmatprep.subr.mxu0 0.0
      %715 = vmatpush1.msra.mxu0 0.0
      %716 = vmatprep.subr.mxu0 0.0
      %717 = vmatpush1.msra.mxu0 0.0
      %718 = vmatprep.subr.mxu0 0.0
      %719 = vmatpush1.msra.mxu0 0.0
      %720 = vmatprep.mubr.f32.mxu0 0.0
      %721 = vmatmul.mubr.f32.gmra.mrb[0].mxu0 %v647
      %v722 = vpop.f32.mrb[0].mxu0
      %v723 = vadd.f32 0.0, %v722
      %v724 = vpop.f32.mrb[0].mxu0
      %725 = vmatprep.mubr.f32.mxu0 0.0
      %726 = vmatmul.mubr.f32.gmra.mrb[0].mxu0 %v650
      %v727 = vpop.f32.mrb[0].mxu0
      %v728 = vadd.f32 0.0, %v727
      %v729 = vpop.f32.mrb[0].mxu0
      %730 = vdwg.mxu0
      %v732 = vsel %vm652, %v640, 0
      %734 = vmatprep.subr.mxu0 0.0
      %735 = vmatpush1.msra.mxu0 %v732
      %736 = vmatprep.subr.mxu0 0.0
      %737 = vmatpush1.msra.mxu0 0.0
      %738 = vmatprep.subr.mxu0 0.0
      %739 = vmatpush1.msra.mxu0 0.0
      %740 = vmatprep.subr.mxu0 0.0
      %741 = vmatpush1.msra.mxu0 0.0
      %742 = vmatprep.subr.mxu0 0.0
      %743 = vmatpush1.msra.mxu0 0.0
      %744 = vmatprep.subr.mxu0 0.0
      %745 = vmatpush1.msra.mxu0 0.0
      %746 = vmatprep.subr.mxu0 0.0
      %747 = vmatpush1.msra.mxu0 0.0
      %748 = vmatprep.subr.mxu0 0.0
      %749 = vmatpush1.msra.mxu0 0.0
      %750 = vmatprep.subr.mxu0 0.0
      %751 = vmatpush1.msra.mxu0 0.0
      %752 = vmatprep.subr.mxu0 0.0
      %753 = vmatpush1.msra.mxu0 0.0
      %754 = vmatprep.subr.mxu0 0.0
      %755 = vmatpush1.msra.mxu0 0.0
      %756 = vmatprep.subr.mxu0 0.0
      %757 = vmatpush1.msra.mxu0 0.0
      %758 = vmatprep.subr.mxu0 0.0
      %759 = vmatpush1.msra.mxu0 0.0
      %760 = vmatprep.subr.mxu0 0.0
      %761 = vmatpush1.msra.mxu0 0.0
      %762 = vmatprep.subr.mxu0 0.0
      %763 = vmatpush1.msra.mxu0 0.0
      %764 = vmatprep.subr.mxu0 0.0
      %765 = vmatpush1.msra.mxu0 0.0
      %766 = vmatprep.subr.mxu0 0.0
      %767 = vmatpush1.msra.mxu0 0.0
      %768 = vmatprep.subr.mxu0 0.0
      %769 = vmatpush1.msra.mxu0 0.0
      %770 = vmatprep.subr.mxu0 0.0
      %771 = vmatpush1.msra.mxu0 0.0
      %772 = vmatprep.subr.mxu0 0.0
      %773 = vmatpush1.msra.mxu0 0.0
      %774 = vmatprep.subr.mxu0 0.0
      %775 = vmatpush1.msra.mxu0 0.0
      %776 = vmatprep.subr.mxu0 0.0
      %777 = vmatpush1.msra.mxu0 0.0
      %778 = vmatprep.subr.mxu0 0.0
      %779 = vmatpush1.msra.mxu0 0.0
      %780 = vmatprep.subr.mxu0 0.0
      %781 = vmatpush1.msra.mxu0 0.0
      %782 = vmatprep.subr.mxu0 0.0
      %783 = vmatpush1.msra.mxu0 0.0
      %784 = vmatprep.subr.mxu0 0.0
      %785 = vmatpush1.msra.mxu0 0.0
      %786 = vmatprep.subr.mxu0 0.0
      %787 = vmatpush1.msra.mxu0 0.0
      %788 = vmatprep.subr.mxu0 0.0
      %789 = vmatpush1.msra.mxu0 0.0
      %790 = vmatprep.subr.mxu0 0.0
      %791 = vmatpush1.msra.mxu0 0.0
      %792 = vmatprep.subr.mxu0 0.0
      %793 = vmatpush1.msra.mxu0 0.0
      %794 = vmatprep.subr.mxu0 0.0
      %795 = vmatpush1.msra.mxu0 0.0
      %796 = vmatprep.subr.mxu0 0.0
      %797 = vmatpush1.msra.mxu0 0.0
      %798 = vmatprep.mubr.f32.mxu0 0.0
      %799 = vmatmul.mubr.f32.gmra.mrb[0].mxu0 %v647
      %v800 = vpop.f32.mrb[0].mxu0
      %v801 = vadd.f32 0.0, %v800
      %v802 = vpop.f32.mrb[0].mxu0
      %803 = vmatprep.mubr.f32.mxu0 0.0
      %804 = vmatmul.mubr.f32.gmra.mrb[0].mxu0 %v650
      %v805 = vpop.f32.mrb[0].mxu0
      %v806 = vadd.f32 0.0, %v805
      %v807 = vpop.f32.mrb[0].mxu0
      %808 = vdwg.mxu0
      %810 = vset.pattern.permute.xlu0 0
      %811 = vperm.xlu0 %810, %v723
      %v812 = vpop.permute.xlu0 %811
      %815 = vset.pattern.permute.xlu0 0
      %816 = vperm.xlu0 %815, %v728
      %v817 = vpop.permute.xlu0 %816
      %v819 = vsub.f32 %v641, %v812
      %v820 = vsub.f32 %v642, %v817
      %822 = vset.pattern.permute.xlu0 0
      %823 = vperm.xlu0 %822, %v801
      %v824 = vpop.permute.xlu0 %823
      %827 = vset.pattern.permute.xlu0 0
      %828 = vperm.xlu0 %827, %v806
      %v829 = vpop.permute.xlu0 %828
      %v831 = vmul.f32 %v819, %v824
      %v832 = vmul.f32 %v820, %v829
      %v833 = vld [vmem:[%s3] sm:$0xff]
      %v834 = vld [vmem:[%s3 + $0x8] sm:$0xff]
      %vm835 = vcmask 130048
      %v837 = vsel %vm835, %v833, 0
      %v840 = vsel %vm835, %v834, 0
      %842 = vmatprep.subr.mxu0 0.0
      %843 = vmatpush1.msra.mxu0 %v831
      %844 = vmatprep.subr.mxu0 0.0
      %845 = vmatpush1.msra.mxu0 %v832
      %846 = vmatprep.subr.mxu0 0.0
      %847 = vmatpush1.msra.mxu0 0.0
      %848 = vmatprep.subr.mxu0 0.0
      %849 = vmatpush1.msra.mxu0 0.0
      %850 = vmatprep.subr.mxu0 0.0
      %851 = vmatpush1.msra.mxu0 0.0
      %852 = vmatprep.subr.mxu0 0.0
      %853 = vmatpush1.msra.mxu0 0.0
      %854 = vmatprep.subr.mxu0 0.0
      %855 = vmatpush1.msra.mxu0 0.0
      %856 = vmatprep.subr.mxu0 0.0
      %857 = vmatpush1.msra.mxu0 0.0
      %858 = vmatprep.subr.mxu0 0.0
      %859 = vmatpush1.msra.mxu0 0.0
      %860 = vmatprep.subr.mxu0 0.0
      %861 = vmatpush1.msra.mxu0 0.0
      %862 = vmatprep.subr.mxu0 0.0
      %863 = vmatpush1.msra.mxu0 0.0
      %864 = vmatprep.subr.mxu0 0.0
      %865 = vmatpush1.msra.mxu0 0.0
      %866 = vmatprep.subr.mxu0 0.0
      %867 = vmatpush1.msra.mxu0 0.0
      %868 = vmatprep.subr.mxu0 0.0
      %869 = vmatpush1.msra.mxu0 0.0
      %870 = vmatprep.subr.mxu0 0.0
      %871 = vmatpush1.msra.mxu0 0.0
      %872 = vmatprep.subr.mxu0 0.0
      %873 = vmatpush1.msra.mxu0 0.0
      %874 = vmatprep.subr.mxu0 0.0
      %875 = vmatpush1.msra.mxu0 0.0
      %876 = vmatprep.subr.mxu0 0.0
      %877 = vmatpush1.msra.mxu0 0.0
      %878 = vmatprep.subr.mxu0 0.0
      %879 = vmatpush1.msra.mxu0 0.0
      %880 = vmatprep.subr.mxu0 0.0
      %881 = vmatpush1.msra.mxu0 0.0
      %882 = vmatprep.subr.mxu0 0.0
      %883 = vmatpush1.msra.mxu0 0.0
      %884 = vmatprep.subr.mxu0 0.0
      %885 = vmatpush1.msra.mxu0 0.0
      %886 = vmatprep.subr.mxu0 0.0
      %887 = vmatpush1.msra.mxu0 0.0
      %888 = vmatprep.subr.mxu0 0.0
      %889 = vmatpush1.msra.mxu0 0.0
      %890 = vmatprep.subr.mxu0 0.0
      %891 = vmatpush1.msra.mxu0 0.0
      %892 = vmatprep.subr.mxu0 0.0
      %893 = vmatpush1.msra.mxu0 0.0
      %894 = vmatprep.subr.mxu0 0.0
      %895 = vmatpush1.msra.mxu0 0.0
      %896 = vmatprep.subr.mxu0 0.0
      %897 = vmatpush1.msra.mxu0 0.0
      %898 = vmatprep.subr.mxu0 0.0
      %899 = vmatpush1.msra.mxu0 0.0
      %900 = vmatprep.subr.mxu0 0.0
      %901 = vmatpush1.msra.mxu0 0.0
      %902 = vmatprep.subr.mxu0 0.0
      %903 = vmatpush1.msra.mxu0 0.0
      %904 = vmatprep.subr.mxu0 0.0
      %905 = vmatpush1.msra.mxu0 0.0
      %906 = vmatprep.mubr.f32.mxu0 0.0
      %907 = vmatmul.mubr.f32.gmra.mrb[0].mxu0 %v837
      %v908 = vpop.f32.mrb[0].mxu0
      %v909 = vadd.f32 0.0, %v908
      %v910 = vpop.f32.mrb[0].mxu0
      %911 = vmatprep.mubr.f32.mxu0 0.0
      %912 = vmatmul.mubr.f32.gmra.mrb[0].mxu0 %v840
      %v913 = vpop.f32.mrb[0].mxu0
      %v914 = vadd.f32 0.0, %v913
      %v915 = vpop.f32.mrb[0].mxu0
      %916 = vdwg.mxu0
      %v917 = vld [vmem:[%s4] sm:$0xff]
      %v918 = vld [vmem:[%s4 + $0x8] sm:$0xff]
      %v920 = vsel %vm835, %v917, 0
      %v923 = vsel %vm835, %v918, 0
      %925 = vmatprep.subr.mxu0 0.0
      %926 = vmatpush1.msra.mxu0 %v831
      %927 = vmatprep.subr.mxu0 0.0
      %928 = vmatpush1.msra.mxu0 %v832
      %929 = vmatprep.subr.mxu0 0.0
      %930 = vmatpush1.msra.mxu0 0.0
      %931 = vmatprep.subr.mxu0 0.0
      %932 = vmatpush1.msra.mxu0 0.0
      %933 = vmatprep.subr.mxu0 0.0
      %934 = vmatpush1.msra.mxu0 0.0
      %935 = vmatprep.subr.mxu0 0.0
      %936 = vmatpush1.msra.mxu0 0.0
      %937 = vmatprep.subr.mxu0 0.0
      %938 = vmatpush1.msra.mxu0 0.0
      %939 = vmatprep.subr.mxu0 0.0
      %940 = vmatpush1.msra.mxu0 0.0
      %941 = vmatprep.subr.mxu0 0.0
      %942 = vmatpush1.msra.mxu0 0.0
      %943 = vmatprep.subr.mxu0 0.0
      %944 = vmatpush1.msra.mxu0 0.0
      %945 = vmatprep.subr.mxu0 0.0
      %946 = vmatpush1.msra.mxu0 0.0
      %947 = vmatprep.subr.mxu0 0.0
      %948 = vmatpush1.msra.mxu0 0.0
      %949 = vmatprep.subr.mxu0 0.0
      %950 = vmatpush1.msra.mxu0 0.0
      %951 = vmatprep.subr.mxu0 0.0
      %952 = vmatpush1.msra.mxu0 0.0
      %953 = vmatprep.subr.mxu0 0.0
      %954 = vmatpush1.msra.mxu0 0.0
      %955 = vmatprep.subr.mxu0 0.0
      %956 = vmatpush1.msra.mxu0 0.0
      %957 = vmatprep.subr.mxu0 0.0
      %958 = vmatpush1.msra.mxu0 0.0
      %959 = vmatprep.subr.mxu0 0.0
      %960 = vmatpush1.msra.mxu0 0.0
      %961 = vmatprep.subr.mxu0 0.0
      %962 = vmatpush1.msra.mxu0 0.0
      %963 = vmatprep.subr.mxu0 0.0
      %964 = vmatpush1.msra.mxu0 0.0
      %965 = vmatprep.subr.mxu0 0.0
      %966 = vmatpush1.msra.mxu0 0.0
      %967 = vmatprep.subr.mxu0 0.0
      %968 = vmatpush1.msra.mxu0 0.0
      %969 = vmatprep.subr.mxu0 0.0
      %970 = vmatpush1.msra.mxu0 0.0
      %971 = vmatprep.subr.mxu0 0.0
      %972 = vmatpush1.msra.mxu0 0.0
      %973 = vmatprep.subr.mxu0 0.0
      %974 = vmatpush1.msra.mxu0 0.0
      %975 = vmatprep.subr.mxu0 0.0
      %976 = vmatpush1.msra.mxu0 0.0
      %977 = vmatprep.subr.mxu0 0.0
      %978 = vmatpush1.msra.mxu0 0.0
      %979 = vmatprep.subr.mxu0 0.0
      %980 = vmatpush1.msra.mxu0 0.0
      %981 = vmatprep.subr.mxu0 0.0
      %982 = vmatpush1.msra.mxu0 0.0
      %983 = vmatprep.subr.mxu0 0.0
      %984 = vmatpush1.msra.mxu0 0.0
      %985 = vmatprep.subr.mxu0 0.0
      %986 = vmatpush1.msra.mxu0 0.0
      %987 = vmatprep.subr.mxu0 0.0
      %988 = vmatpush1.msra.mxu0 0.0
      %989 = vmatprep.mubr.f32.mxu0 0.0
      %990 = vmatmul.mubr.f32.gmra.mrb[0].mxu0 %v920
      %v991 = vpop.f32.mrb[0].mxu0
      %v992 = vadd.f32 0.0, %v991
      %v993 = vpop.f32.mrb[0].mxu0
      %994 = vmatprep.mubr.f32.mxu0 0.0
      %995 = vmatmul.mubr.f32.gmra.mrb[0].mxu0 %v923
      %v996 = vpop.f32.mrb[0].mxu0
      %v997 = vadd.f32 0.0, %v996
      %v998 = vpop.f32.mrb[0].mxu0
      %999 = vdwg.mxu0
      %v1000 = vld [vmem:[%s5] sm:$0xff]
      %v1001 = vld [vmem:[%s5 + $0x8] sm:$0xf]
      %v1003 = vrot.slane %v1000, 4
      %v1005 = vsel %vm645, %v831, 0
      %v1008 = vsel %vm645, %v832, 0
      %v1010 = vsel %vm652, %v1003, 0
      %1012 = vmatprep.subr.mxu0 0.0
      %1013 = vmatpush1.msra.mxu0 %v1010
      %1014 = vmatprep.subr.mxu0 0.0
      %1015 = vmatpush1.msra.mxu0 0.0
      %1016 = vmatprep.subr.mxu0 0.0
      %1017 = vmatpush1.msra.mxu0 0.0
      %1018 = vmatprep.subr.mxu0 0.0
      %1019 = vmatpush1.msra.mxu0 0.0
      %1020 = vmatprep.subr.mxu0 0.0
      %1021 = vmatpush1.msra.mxu0 0.0
      %1022 = vmatprep.subr.mxu0 0.0
      %1023 = vmatpush1.msra.mxu0 0.0
      %1024 = vmatprep.subr.mxu0 0.0
      %1025 = vmatpush1.msra.mxu0 0.0
      %1026 = vmatprep.subr.mxu0 0.0
      %1027 = vmatpush1.msra.mxu0 0.0
      %1028 = vmatprep.subr.mxu0 0.0
      %1029 = vmatpush1.msra.mxu0 0.0
      %1030 = vmatprep.subr.mxu0 0.0
      %1031 = vmatpush1.msra.mxu0 0.0
      %1032 = vmatprep.subr.mxu0 0.0
      %1033 = vmatpush1.msra.mxu0 0.0
      %1034 = vmatprep.subr.mxu0 0.0
      %1035 = vmatpush1.msra.mxu0 0.0
      %1036 = vmatprep.subr.mxu0 0.0
      %1037 = vmatpush1.msra.mxu0 0.0
      %1038 = vmatprep.subr.mxu0 0.0
      %1039 = vmatpush1.msra.mxu0 0.0
      %1040 = vmatprep.subr.mxu0 0.0
      %1041 = vmatpush1.msra.mxu0 0.0
      %1042 = vmatprep.subr.mxu0 0.0
      %1043 = vmatpush1.msra.mxu0 0.0
      %1044 = vmatprep.subr.mxu0 0.0
      %1045 = vmatpush1.msra.mxu0 0.0
      %1046 = vmatprep.subr.mxu0 0.0
      %1047 = vmatpush1.msra.mxu0 0.0
      %1048 = vmatprep.subr.mxu0 0.0
      %1049 = vmatpush1.msra.mxu0 0.0
      %1050 = vmatprep.subr.mxu0 0.0
      %1051 = vmatpush1.msra.mxu0 0.0
      %1052 = vmatprep.subr.mxu0 0.0
      %1053 = vmatpush1.msra.mxu0 0.0
      %1054 = vmatprep.subr.mxu0 0.0
      %1055 = vmatpush1.msra.mxu0 0.0
      %1056 = vmatprep.subr.mxu0 0.0
      %1057 = vmatpush1.msra.mxu0 0.0
      %1058 = vmatprep.subr.mxu0 0.0
      %1059 = vmatpush1.msra.mxu0 0.0
      %1060 = vmatprep.subr.mxu0 0.0
      %1061 = vmatpush1.msra.mxu0 0.0
      %1062 = vmatprep.subr.mxu0 0.0
      %1063 = vmatpush1.msra.mxu0 0.0
      %1064 = vmatprep.subr.mxu0 0.0
      %1065 = vmatpush1.msra.mxu0 0.0
      %1066 = vmatprep.subr.mxu0 0.0
      %1067 = vmatpush1.msra.mxu0 0.0
      %1068 = vmatprep.subr.mxu0 0.0
      %1069 = vmatpush1.msra.mxu0 0.0
      %1070 = vmatprep.subr.mxu0 0.0
      %1071 = vmatpush1.msra.mxu0 0.0
      %1072 = vmatprep.subr.mxu0 0.0
      %1073 = vmatpush1.msra.mxu0 0.0
      %1074 = vmatprep.subr.mxu0 0.0
      %1075 = vmatpush1.msra.mxu0 0.0
      %1076 = vmatprep.mubr.f32.mxu0 0.0
      %1077 = vmatmul.mubr.f32.gmra.mrb[0].mxu0 %v1005
      %v1078 = vpop.f32.mrb[0].mxu0
      %v1079 = vadd.f32 0.0, %v1078
      %v1080 = vpop.f32.mrb[0].mxu0
      %1081 = vmatprep.mubr.f32.mxu0 0.0
      %1082 = vmatmul.mubr.f32.gmra.mrb[0].mxu0 %v1008
      %v1083 = vpop.f32.mrb[0].mxu0
      %v1084 = vadd.f32 0.0, %v1083
      %v1085 = vpop.f32.mrb[0].mxu0
      %1086 = vdwg.mxu0
      %v1088 = vsel %vm645, %v909, 0
      %v1091 = vsel %vm645, %v914, 0
      %v1093 = vsel %vm652, %v1000, 0
      %1095 = vmatprep.subr.mxu0 0.0
      %1096 = vmatpush1.msra.mxu0 %v1093
      %1097 = vmatprep.subr.mxu0 0.0
      %1098 = vmatpush1.msra.mxu0 0.0
      %1099 = vmatprep.subr.mxu0 0.0
      %1100 = vmatpush1.msra.mxu0 0.0
      %1101 = vmatprep.subr.mxu0 0.0
      %1102 = vmatpush1.msra.mxu0 0.0
      %1103 = vmatprep.subr.mxu0 0.0
      %1104 = vmatpush1.msra.mxu0 0.0
      %1105 = vmatprep.subr.mxu0 0.0
      %1106 = vmatpush1.msra.mxu0 0.0
      %1107 = vmatprep.subr.mxu0 0.0
      %1108 = vmatpush1.msra.mxu0 0.0
      %1109 = vmatprep.subr.mxu0 0.0
      %1110 = vmatpush1.msra.mxu0 0.0
      %1111 = vmatprep.subr.mxu0 0.0
      %1112 = vmatpush1.msra.mxu0 0.0
      %1113 = vmatprep.subr.mxu0 0.0
      %1114 = vmatpush1.msra.mxu0 0.0
      %1115 = vmatprep.subr.mxu0 0.0
      %1116 = vmatpush1.msra.mxu0 0.0
      %1117 = vmatprep.subr.mxu0 0.0
      %1118 = vmatpush1.msra.mxu0 0.0
      %1119 = vmatprep.subr.mxu0 0.0
      %1120 = vmatpush1.msra.mxu0 0.0
      %1121 = vmatprep.subr.mxu0 0.0
      %1122 = vmatpush1.msra.mxu0 0.0
      %1123 = vmatprep.subr.mxu0 0.0
      %1124 = vmatpush1.msra.mxu0 0.0
      %1125 = vmatprep.subr.mxu0 0.0
      %1126 = vmatpush1.msra.mxu0 0.0
      %1127 = vmatprep.subr.mxu0 0.0
      %1128 = vmatpush1.msra.mxu0 0.0
      %1129 = vmatprep.subr.mxu0 0.0
      %1130 = vmatpush1.msra.mxu0 0.0
      %1131 = vmatprep.subr.mxu0 0.0
      %1132 = vmatpush1.msra.mxu0 0.0
      %1133 = vmatprep.subr.mxu0 0.0
      %1134 = vmatpush1.msra.mxu0 0.0
      %1135 = vmatprep.subr.mxu0 0.0
      %1136 = vmatpush1.msra.mxu0 0.0
      %1137 = vmatprep.subr.mxu0 0.0
      %1138 = vmatpush1.msra.mxu0 0.0
      %1139 = vmatprep.subr.mxu0 0.0
      %1140 = vmatpush1.msra.mxu0 0.0
      %1141 = vmatprep.subr.mxu0 0.0
      %1142 = vmatpush1.msra.mxu0 0.0
      %1143 = vmatprep.subr.mxu0 0.0
      %1144 = vmatpush1.msra.mxu0 0.0
      %1145 = vmatprep.subr.mxu0 0.0
      %1146 = vmatpush1.msra.mxu0 0.0
      %1147 = vmatprep.subr.mxu0 0.0
      %1148 = vmatpush1.msra.mxu0 0.0
      %1149 = vmatprep.subr.mxu0 0.0
      %1150 = vmatpush1.msra.mxu0 0.0
      %1151 = vmatprep.subr.mxu0 0.0
      %1152 = vmatpush1.msra.mxu0 0.0
      %1153 = vmatprep.subr.mxu0 0.0
      %1154 = vmatpush1.msra.mxu0 0.0
      %1155 = vmatprep.subr.mxu0 0.0
      %1156 = vmatpush1.msra.mxu0 0.0
      %1157 = vmatprep.subr.mxu0 0.0
      %1158 = vmatpush1.msra.mxu0 0.0
      %1159 = vmatprep.mubr.f32.mxu0 0.0
      %1160 = vmatmul.mubr.f32.gmra.mrb[0].mxu0 %v1088
      %v1161 = vpop.f32.mrb[0].mxu0
      %v1162 = vadd.f32 %v1079, %v1161
      %v1163 = vpop.f32.mrb[0].mxu0
      %1164 = vmatprep.mubr.f32.mxu0 0.0
      %1165 = vmatmul.mubr.f32.gmra.mrb[0].mxu0 %v1091
      %v1166 = vpop.f32.mrb[0].mxu0
      %v1167 = vadd.f32 %v1084, %v1166
      %v1168 = vpop.f32.mrb[0].mxu0
      %1169 = vdwg.mxu0
      %v1171 = vsel %vm645, %v992, 0
      %v1174 = vsel %vm645, %v997, 0
      %v1177 = vsel %vm652, %v1001, 0
      %1179 = vmatprep.subr.mxu0 0.0
      %1180 = vmatpush1.msra.mxu0 %v1177
      %1181 = vmatprep.subr.mxu0 0.0
      %1182 = vmatpush1.msra.mxu0 0.0
      %1183 = vmatprep.subr.mxu0 0.0
      %1184 = vmatpush1.msra.mxu0 0.0
      %1185 = vmatprep.subr.mxu0 0.0
      %1186 = vmatpush1.msra.mxu0 0.0
      %1187 = vmatprep.subr.mxu0 0.0
      %1188 = vmatpush1.msra.mxu0 0.0
      %1189 = vmatprep.subr.mxu0 0.0
      %1190 = vmatpush1.msra.mxu0 0.0
      %1191 = vmatprep.subr.mxu0 0.0
      %1192 = vmatpush1.msra.mxu0 0.0
      %1193 = vmatprep.subr.mxu0 0.0
      %1194 = vmatpush1.msra.mxu0 0.0
      %1195 = vmatprep.subr.mxu0 0.0
      %1196 = vmatpush1.msra.mxu0 0.0
      %1197 = vmatprep.subr.mxu0 0.0
      %1198 = vmatpush1.msra.mxu0 0.0
      %1199 = vmatprep.subr.mxu0 0.0
      %1200 = vmatpush1.msra.mxu0 0.0
      %1201 = vmatprep.subr.mxu0 0.0
      %1202 = vmatpush1.msra.mxu0 0.0
      %1203 = vmatprep.subr.mxu0 0.0
      %1204 = vmatpush1.msra.mxu0 0.0
      %1205 = vmatprep.subr.mxu0 0.0
      %1206 = vmatpush1.msra.mxu0 0.0
      %1207 = vmatprep.subr.mxu0 0.0
      %1208 = vmatpush1.msra.mxu0 0.0
      %1209 = vmatprep.subr.mxu0 0.0
      %1210 = vmatpush1.msra.mxu0 0.0
      %1211 = vmatprep.subr.mxu0 0.0
      %1212 = vmatpush1.msra.mxu0 0.0
      %1213 = vmatprep.subr.mxu0 0.0
      %1214 = vmatpush1.msra.mxu0 0.0
      %1215 = vmatprep.subr.mxu0 0.0
      %1216 = vmatpush1.msra.mxu0 0.0
      %1217 = vmatprep.subr.mxu0 0.0
      %1218 = vmatpush1.msra.mxu0 0.0
      %1219 = vmatprep.subr.mxu0 0.0
      %1220 = vmatpush1.msra.mxu0 0.0
      %1221 = vmatprep.subr.mxu0 0.0
      %1222 = vmatpush1.msra.mxu0 0.0
      %1223 = vmatprep.subr.mxu0 0.0
      %1224 = vmatpush1.msra.mxu0 0.0
      %1225 = vmatprep.subr.mxu0 0.0
      %1226 = vmatpush1.msra.mxu0 0.0
      %1227 = vmatprep.subr.mxu0 0.0
      %1228 = vmatpush1.msra.mxu0 0.0
      %1229 = vmatprep.subr.mxu0 0.0
      %1230 = vmatpush1.msra.mxu0 0.0
      %1231 = vmatprep.subr.mxu0 0.0
      %1232 = vmatpush1.msra.mxu0 0.0
      %1233 = vmatprep.subr.mxu0 0.0
      %1234 = vmatpush1.msra.mxu0 0.0
      %1235 = vmatprep.subr.mxu0 0.0
      %1236 = vmatpush1.msra.mxu0 0.0
      %1237 = vmatprep.subr.mxu0 0.0
      %1238 = vmatpush1.msra.mxu0 0.0
      %1239 = vmatprep.subr.mxu0 0.0
      %1240 = vmatpush1.msra.mxu0 0.0
      %1241 = vmatprep.subr.mxu0 0.0
      %1242 = vmatpush1.msra.mxu0 0.0
      %1243 = vmatprep.mubr.f32.mxu0 0.0
      %1244 = vmatmul.mubr.f32.gmra.mrb[0].mxu0 %v1171
      %v1245 = vpop.f32.mrb[0].mxu0
      %v1246 = vadd.f32 0.0, %v1245
      %v1247 = vpop.f32.mrb[0].mxu0
      %1248 = vmatprep.mubr.f32.mxu0 0.0
      %1249 = vmatmul.mubr.f32.gmra.mrb[0].mxu0 %v1174
      %v1250 = vpop.f32.mrb[0].mxu0
      %v1251 = vadd.f32 0.0, %v1250
      %v1252 = vpop.f32.mrb[0].mxu0
      %1253 = vdwg.mxu0
      %v1254 = vadd.f32 %v1162, %v1246
      %v1255 = vadd.f32 %v1167, %v1251
      %v1256 = vld [vmem:[%s6] sm:$0xff]
      %v1257 = vld [vmem:[%s6 + $0x8] sm:$0xff]
      %v1258 = vadd.f32 %v1254, %v1256
      %v1259 = vadd.f32 %v1255, %v1257
      %v1260 = vld [vmem:[%s615] sm:$0xff]
      %v1261 = vld [vmem:[%s615 + $0x8] sm:$0xff]
      %v1262 = vld [vmem:[%s8] sm:$0xff]
      %v1263 = vld [vmem:[%s8 + $0x8] sm:$0xff]
      %v1265 = vsel %vm645, %v1262, 0
      %v1268 = vsel %vm645, %v1263, 0
      %1270 = vmatprep.subr.mxu0 0.0
      %1271 = vmatpush1.msra.mxu0 %v654
      %1272 = vmatprep.subr.mxu0 0.0
      %1273 = vmatpush1.msra.mxu0 0.0
      %1274 = vmatprep.subr.mxu0 0.0
      %1275 = vmatpush1.msra.mxu0 0.0
      %1276 = vmatprep.subr.mxu0 0.0
      %1277 = vmatpush1.msra.mxu0 0.0
      %1278 = vmatprep.subr.mxu0 0.0
      %1279 = vmatpush1.msra.mxu0 0.0
      %1280 = vmatprep.subr.mxu0 0.0
      %1281 = vmatpush1.msra.mxu0 0.0
      %1282 = vmatprep.subr.mxu0 0.0
      %1283 = vmatpush1.msra.mxu0 0.0
      %1284 = vmatprep.subr.mxu0 0.0
      %1285 = vmatpush1.msra.mxu0 0.0
      %1286 = vmatprep.subr.mxu0 0.0
      %1287 = vmatpush1.msra.mxu0 0.0
      %1288 = vmatprep.subr.mxu0 0.0
      %1289 = vmatpush1.msra.mxu0 0.0
      %1290 = vmatprep.subr.mxu0 0.0
      %1291 = vmatpush1.msra.mxu0 0.0
      %1292 = vmatprep.subr.mxu0 0.0
      %1293 = vmatpush1.msra.mxu0 0.0
      %1294 = vmatprep.subr.mxu0 0.0
      %1295 = vmatpush1.msra.mxu0 0.0
      %1296 = vmatprep.subr.mxu0 0.0
      %1297 = vmatpush1.msra.mxu0 0.0
      %1298 = vmatprep.subr.mxu0 0.0
      %1299 = vmatpush1.msra.mxu0 0.0
      %1300 = vmatprep.subr.mxu0 0.0
      %1301 = vmatpush1.msra.mxu0 0.0
      %1302 = vmatprep.subr.mxu0 0.0
      %1303 = vmatpush1.msra.mxu0 0.0
      %1304 = vmatprep.subr.mxu0 0.0
      %1305 = vmatpush1.msra.mxu0 0.0
      %1306 = vmatprep.subr.mxu0 0.0
      %1307 = vmatpush1.msra.mxu0 0.0
      %1308 = vmatprep.subr.mxu0 0.0
      %1309 = vmatpush1.msra.mxu0 0.0
      %1310 = vmatprep.subr.mxu0 0.0
      %1311 = vmatpush1.msra.mxu0 0.0
      %1312 = vmatprep.subr.mxu0 0.0
      %1313 = vmatpush1.msra.mxu0 0.0
      %1314 = vmatprep.subr.mxu0 0.0
      %1315 = vmatpush1.msra.mxu0 0.0
      %1316 = vmatprep.subr.mxu0 0.0
      %1317 = vmatpush1.msra.mxu0 0.0
      %1318 = vmatprep.subr.mxu0 0.0
      %1319 = vmatpush1.msra.mxu0 0.0
      %1320 = vmatprep.subr.mxu0 0.0
      %1321 = vmatpush1.msra.mxu0 0.0
      %1322 = vmatprep.subr.mxu0 0.0
      %1323 = vmatpush1.msra.mxu0 0.0
      %1324 = vmatprep.subr.mxu0 0.0
      %1325 = vmatpush1.msra.mxu0 0.0
      %1326 = vmatprep.subr.mxu0 0.0
      %1327 = vmatpush1.msra.mxu0 0.0
      %1328 = vmatprep.subr.mxu0 0.0
      %1329 = vmatpush1.msra.mxu0 0.0
      %1330 = vmatprep.subr.mxu0 0.0
      %1331 = vmatpush1.msra.mxu0 0.0
      %1332 = vmatprep.subr.mxu0 0.0
      %1333 = vmatpush1.msra.mxu0 0.0
      %1334 = vmatprep.mubr.f32.mxu0 0.0
      %1335 = vmatmul.mubr.f32.gmra.mrb[0].mxu0 %v1265
      %v1336 = vpop.f32.mrb[0].mxu0
      %v1337 = vadd.f32 0.0, %v1336
      %v1338 = vpop.f32.mrb[0].mxu0
      %1339 = vmatprep.mubr.f32.mxu0 0.0
      %1340 = vmatmul.mubr.f32.gmra.mrb[0].mxu0 %v1268
      %v1341 = vpop.f32.mrb[0].mxu0
      %v1342 = vadd.f32 0.0, %v1341
      %v1343 = vpop.f32.mrb[0].mxu0
      %1344 = vdwg.mxu0
      %1345 = vmatprep.subr.mxu0 0.0
      %1346 = vmatpush1.msra.mxu0 %v732
      %1347 = vmatprep.subr.mxu0 0.0
      %1348 = vmatpush1.msra.mxu0 0.0
      %1349 = vmatprep.subr.mxu0 0.0
      %1350 = vmatpush1.msra.mxu0 0.0
      %1351 = vmatprep.subr.mxu0 0.0
      %1352 = vmatpush1.msra.mxu0 0.0
      %1353 = vmatprep.subr.mxu0 0.0
      %1354 = vmatpush1.msra.mxu0 0.0
      %1355 = vmatprep.subr.mxu0 0.0
      %1356 = vmatpush1.msra.mxu0 0.0
      %1357 = vmatprep.subr.mxu0 0.0
      %1358 = vmatpush1.msra.mxu0 0.0
      %1359 = vmatprep.subr.mxu0 0.0
      %1360 = vmatpush1.msra.mxu0 0.0
      %1361 = vmatprep.subr.mxu0 0.0
      %1362 = vmatpush1.msra.mxu0 0.0
      %1363 = vmatprep.subr.mxu0 0.0
      %1364 = vmatpush1.msra.mxu0 0.0
      %1365 = vmatprep.subr.mxu0 0.0
      %1366 = vmatpush1.msra.mxu0 0.0
      %1367 = vmatprep.subr.mxu0 0.0
      %1368 = vmatpush1.msra.mxu0 0.0
      %1369 = vmatprep.subr.mxu0 0.0
      %1370 = vmatpush1.msra.mxu0 0.0
      %1371 = vmatprep.subr.mxu0 0.0
      %1372 = vmatpush1.msra.mxu0 0.0
      %1373 = vmatprep.subr.mxu0 0.0
      %1374 = vmatpush1.msra.mxu0 0.0
      %1375 = vmatprep.subr.mxu0 0.0
      %1376 = vmatpush1.msra.mxu0 0.0
      %1377 = vmatprep.subr.mxu0 0.0
      %1378 = vmatpush1.msra.mxu0 0.0
      %1379 = vmatprep.subr.mxu0 0.0
      %1380 = vmatpush1.msra.mxu0 0.0
      %1381 = vmatprep.subr.mxu0 0.0
      %1382 = vmatpush1.msra.mxu0 0.0
      %1383 = vmatprep.subr.mxu0 0.0
      %1384 = vmatpush1.msra.mxu0 0.0
      %1385 = vmatprep.subr.mxu0 0.0
      %1386 = vmatpush1.msra.mxu0 0.0
      %1387 = vmatprep.subr.mxu0 0.0
      %1388 = vmatpush1.msra.mxu0 0.0
      %1389 = vmatprep.subr.mxu0 0.0
      %1390 = vmatpush1.msra.mxu0 0.0
      %1391 = vmatprep.subr.mxu0 0.0
      %1392 = vmatpush1.msra.mxu0 0.0
      %1393 = vmatprep.subr.mxu0 0.0
      %1394 = vmatpush1.msra.mxu0 0.0
      %1395 = vmatprep.subr.mxu0 0.0
      %1396 = vmatpush1.msra.mxu0 0.0
      %1397 = vmatprep.subr.mxu0 0.0
      %1398 = vmatpush1.msra.mxu0 0.0
      %1399 = vmatprep.subr.mxu0 0.0
      %1400 = vmatpush1.msra.mxu0 0.0
      %1401 = vmatprep.subr.mxu0 0.0
      %1402 = vmatpush1.msra.mxu0 0.0
      %1403 = vmatprep.subr.mxu0 0.0
      %1404 = vmatpush1.msra.mxu0 0.0
      %1405 = vmatprep.subr.mxu0 0.0
      %1406 = vmatpush1.msra.mxu0 0.0
      %1407 = vmatprep.subr.mxu0 0.0
      %1408 = vmatpush1.msra.mxu0 0.0
      %1409 = vmatprep.mubr.f32.mxu0 0.0
      %1410 = vmatmul.mubr.f32.gmra.mrb[0].mxu0 %v1265
      %v1411 = vpop.f32.mrb[0].mxu0
      %v1412 = vadd.f32 0.0, %v1411
      %v1413 = vpop.f32.mrb[0].mxu0
      %1414 = vmatprep.mubr.f32.mxu0 0.0
      %1415 = vmatmul.mubr.f32.gmra.mrb[0].mxu0 %v1268
      %v1416 = vpop.f32.mrb[0].mxu0
      %v1417 = vadd.f32 0.0, %v1416
      %v1418 = vpop.f32.mrb[0].mxu0
      %1419 = vdwg.mxu0
      %1421 = vset.pattern.permute.xlu0 0
      %1422 = vperm.xlu0 %1421, %v1337
      %v1423 = vpop.permute.xlu0 %1422
      %1426 = vset.pattern.permute.xlu0 0
      %1427 = vperm.xlu0 %1426, %v1342
      %v1428 = vpop.permute.xlu0 %1427
      %v1430 = vsub.f32 %v1260, %v1423
      %v1431 = vsub.f32 %v1261, %v1428
      %1433 = vset.pattern.permute.xlu0 0
      %1434 = vperm.xlu0 %1433, %v1412
      %v1435 = vpop.permute.xlu0 %1434
      %1438 = vset.pattern.permute.xlu0 0
      %1439 = vperm.xlu0 %1438, %v1417
      %v1440 = vpop.permute.xlu0 %1439
      %v1442 = vmul.f32 %v1430, %v1435
      %v1443 = vmul.f32 %v1431, %v1440
      %v1444 = vld [vmem:[%s9] sm:$0xff]
      %v1445 = vld [vmem:[%s9 + $0x8] sm:$0xff]
      %v1447 = vsel %vm835, %v1444, 0
      %v1450 = vsel %vm835, %v1445, 0
      %1452 = vmatprep.subr.mxu0 0.0
      %1453 = vmatpush1.msra.mxu0 %v1442
      %1454 = vmatprep.subr.mxu0 0.0
      %1455 = vmatpush1.msra.mxu0 %v1443
      %1456 = vmatprep.subr.mxu0 0.0
      %1457 = vmatpush1.msra.mxu0 0.0
      %1458 = vmatprep.subr.mxu0 0.0
      %1459 = vmatpush1.msra.mxu0 0.0
      %1460 = vmatprep.subr.mxu0 0.0
      %1461 = vmatpush1.msra.mxu0 0.0
      %1462 = vmatprep.subr.mxu0 0.0
      %1463 = vmatpush1.msra.mxu0 0.0
      %1464 = vmatprep.subr.mxu0 0.0
      %1465 = vmatpush1.msra.mxu0 0.0
      %1466 = vmatprep.subr.mxu0 0.0
      %1467 = vmatpush1.msra.mxu0 0.0
      %1468 = vmatprep.subr.mxu0 0.0
      %1469 = vmatpush1.msra.mxu0 0.0
      %1470 = vmatprep.subr.mxu0 0.0
      %1471 = vmatpush1.msra.mxu0 0.0
      %1472 = vmatprep.subr.mxu0 0.0
      %1473 = vmatpush1.msra.mxu0 0.0
      %1474 = vmatprep.subr.mxu0 0.0
      %1475 = vmatpush1.msra.mxu0 0.0
      %1476 = vmatprep.subr.mxu0 0.0
      %1477 = vmatpush1.msra.mxu0 0.0
      %1478 = vmatprep.subr.mxu0 0.0
      %1479 = vmatpush1.msra.mxu0 0.0
      %1480 = vmatprep.subr.mxu0 0.0
      %1481 = vmatpush1.msra.mxu0 0.0
      %1482 = vmatprep.subr.mxu0 0.0
      %1483 = vmatpush1.msra.mxu0 0.0
      %1484 = vmatprep.subr.mxu0 0.0
      %1485 = vmatpush1.msra.mxu0 0.0
      %1486 = vmatprep.subr.mxu0 0.0
      %1487 = vmatpush1.msra.mxu0 0.0
      %1488 = vmatprep.subr.mxu0 0.0
      %1489 = vmatpush1.msra.mxu0 0.0
      %1490 = vmatprep.subr.mxu0 0.0
      %1491 = vmatpush1.msra.mxu0 0.0
      %1492 = vmatprep.subr.mxu0 0.0
      %1493 = vmatpush1.msra.mxu0 0.0
      %1494 = vmatprep.subr.mxu0 0.0
      %1495 = vmatpush1.msra.mxu0 0.0
      %1496 = vmatprep.subr.mxu0 0.0
      %1497 = vmatpush1.msra.mxu0 0.0
      %1498 = vmatprep.subr.mxu0 0.0
      %1499 = vmatpush1.msra.mxu0 0.0
      %1500 = vmatprep.subr.mxu0 0.0
      %1501 = vmatpush1.msra.mxu0 0.0
      %1502 = vmatprep.subr.mxu0 0.0
      %1503 = vmatpush1.msra.mxu0 0.0
      %1504 = vmatprep.subr.mxu0 0.0
      %1505 = vmatpush1.msra.mxu0 0.0
      %1506 = vmatprep.subr.mxu0 0.0
      %1507 = vmatpush1.msra.mxu0 0.0
      %1508 = vmatprep.subr.mxu0 0.0
      %1509 = vmatpush1.msra.mxu0 0.0
      %1510 = vmatprep.subr.mxu0 0.0
      %1511 = vmatpush1.msra.mxu0 0.0
      %1512 = vmatprep.subr.mxu0 0.0
      %1513 = vmatpush1.msra.mxu0 0.0
      %1514 = vmatprep.subr.mxu0 0.0
      %1515 = vmatpush1.msra.mxu0 0.0
      %1516 = vmatprep.mubr.f32.mxu0 0.0
      %1517 = vmatmul.mubr.f32.gmra.mrb[0].mxu0 %v1447
      %v1518 = vpop.f32.mrb[0].mxu0
      %v1519 = vadd.f32 0.0, %v1518
      %v1520 = vpop.f32.mrb[0].mxu0
      %1521 = vmatprep.mubr.f32.mxu0 0.0
      %1522 = vmatmul.mubr.f32.gmra.mrb[0].mxu0 %v1450
      %v1523 = vpop.f32.mrb[0].mxu0
      %v1524 = vadd.f32 0.0, %v1523
      %v1525 = vpop.f32.mrb[0].mxu0
      %1526 = vdwg.mxu0
      %v1527 = vld [vmem:[%s10] sm:$0xff]
      %v1528 = vld [vmem:[%s10 + $0x8] sm:$0xff]
      %v1530 = vsel %vm835, %v1527, 0
      %v1533 = vsel %vm835, %v1528, 0
      %1535 = vmatprep.subr.mxu0 0.0
      %1536 = vmatpush1.msra.mxu0 %v1442
      %1537 = vmatprep.subr.mxu0 0.0
      %1538 = vmatpush1.msra.mxu0 %v1443
      %1539 = vmatprep.subr.mxu0 0.0
      %1540 = vmatpush1.msra.mxu0 0.0
      %1541 = vmatprep.subr.mxu0 0.0
      %1542 = vmatpush1.msra.mxu0 0.0
      %1543 = vmatprep.subr.mxu0 0.0
      %1544 = vmatpush1.msra.mxu0 0.0
      %1545 = vmatprep.subr.mxu0 0.0
      %1546 = vmatpush1.msra.mxu0 0.0
      %1547 = vmatprep.subr.mxu0 0.0
      %1548 = vmatpush1.msra.mxu0 0.0
      %1549 = vmatprep.subr.mxu0 0.0
      %1550 = vmatpush1.msra.mxu0 0.0
      %1551 = vmatprep.subr.mxu0 0.0
      %1552 = vmatpush1.msra.mxu0 0.0
      %1553 = vmatprep.subr.mxu0 0.0
      %1554 = vmatpush1.msra.mxu0 0.0
      %1555 = vmatprep.subr.mxu0 0.0
      %1556 = vmatpush1.msra.mxu0 0.0
      %1557 = vmatprep.subr.mxu0 0.0
      %1558 = vmatpush1.msra.mxu0 0.0
      %1559 = vmatprep.subr.mxu0 0.0
      %1560 = vmatpush1.msra.mxu0 0.0
      %1561 = vmatprep.subr.mxu0 0.0
      %1562 = vmatpush1.msra.mxu0 0.0
      %1563 = vmatprep.subr.mxu0 0.0
      %1564 = vmatpush1.msra.mxu0 0.0
      %1565 = vmatprep.subr.mxu0 0.0
      %1566 = vmatpush1.msra.mxu0 0.0
      %1567 = vmatprep.subr.mxu0 0.0
      %1568 = vmatpush1.msra.mxu0 0.0
      %1569 = vmatprep.subr.mxu0 0.0
      %1570 = vmatpush1.msra.mxu0 0.0
      %1571 = vmatprep.subr.mxu0 0.0
      %1572 = vmatpush1.msra.mxu0 0.0
      %1573 = vmatprep.subr.mxu0 0.0
      %1574 = vmatpush1.msra.mxu0 0.0
      %1575 = vmatprep.subr.mxu0 0.0
      %1576 = vmatpush1.msra.mxu0 0.0
      %1577 = vmatprep.subr.mxu0 0.0
      %1578 = vmatpush1.msra.mxu0 0.0
      %1579 = vmatprep.subr.mxu0 0.0
      %1580 = vmatpush1.msra.mxu0 0.0
      %1581 = vmatprep.subr.mxu0 0.0
      %1582 = vmatpush1.msra.mxu0 0.0
      %1583 = vmatprep.subr.mxu0 0.0
      %1584 = vmatpush1.msra.mxu0 0.0
      %1585 = vmatprep.subr.mxu0 0.0
      %1586 = vmatpush1.msra.mxu0 0.0
      %1587 = vmatprep.subr.mxu0 0.0
      %1588 = vmatpush1.msra.mxu0 0.0
      %1589 = vmatprep.subr.mxu0 0.0
      %1590 = vmatpush1.msra.mxu0 0.0
      %1591 = vmatprep.subr.mxu0 0.0
      %1592 = vmatpush1.msra.mxu0 0.0
      %1593 = vmatprep.subr.mxu0 0.0
      %1594 = vmatpush1.msra.mxu0 0.0
      %1595 = vmatprep.subr.mxu0 0.0
      %1596 = vmatpush1.msra.mxu0 0.0
      %1597 = vmatprep.subr.mxu0 0.0
      %1598 = vmatpush1.msra.mxu0 0.0
      %1599 = vmatprep.mubr.f32.mxu0 0.0
      %1600 = vmatmul.mubr.f32.gmra.mrb[0].mxu0 %v1530
      %v1601 = vpop.f32.mrb[0].mxu0
      %v1602 = vadd.f32 0.0, %v1601
      %v1603 = vpop.f32.mrb[0].mxu0
      %1604 = vmatprep.mubr.f32.mxu0 0.0
      %1605 = vmatmul.mubr.f32.gmra.mrb[0].mxu0 %v1533
      %v1606 = vpop.f32.mrb[0].mxu0
      %v1607 = vadd.f32 0.0, %v1606
      %v1608 = vpop.f32.mrb[0].mxu0
      %1609 = vdwg.mxu0
      %v1610 = vld [vmem:[%s11] sm:$0xff]
      %v1611 = vld [vmem:[%s11 + $0x8] sm:$0xf]
      %v1613 = vrot.slane %v1610, 4
      %v1615 = vsel %vm645, %v1442, 0
      %v1618 = vsel %vm645, %v1443, 0
      %v1620 = vsel %vm652, %v1613, 0
      %1622 = vmatprep.subr.mxu0 0.0
      %1623 = vmatpush1.msra.mxu0 %v1620
      %1624 = vmatprep.subr.mxu0 0.0
      %1625 = vmatpush1.msra.mxu0 0.0
      %1626 = vmatprep.subr.mxu0 0.0
      %1627 = vmatpush1.msra.mxu0 0.0
      %1628 = vmatprep.subr.mxu0 0.0
      %1629 = vmatpush1.msra.mxu0 0.0
      %1630 = vmatprep.subr.mxu0 0.0
      %1631 = vmatpush1.msra.mxu0 0.0
      %1632 = vmatprep.subr.mxu0 0.0
      %1633 = vmatpush1.msra.mxu0 0.0
      %1634 = vmatprep.subr.mxu0 0.0
      %1635 = vmatpush1.msra.mxu0 0.0
      %1636 = vmatprep.subr.mxu0 0.0
      %1637 = vmatpush1.msra.mxu0 0.0
      %1638 = vmatprep.subr.mxu0 0.0
      %1639 = vmatpush1.msra.mxu0 0.0
      %1640 = vmatprep.subr.mxu0 0.0
      %1641 = vmatpush1.msra.mxu0 0.0
      %1642 = vmatprep.subr.mxu0 0.0
      %1643 = vmatpush1.msra.mxu0 0.0
      %1644 = vmatprep.subr.mxu0 0.0
      %1645 = vmatpush1.msra.mxu0 0.0
      %1646 = vmatprep.subr.mxu0 0.0
      %1647 = vmatpush1.msra.mxu0 0.0
      %1648 = vmatprep.subr.mxu0 0.0
      %1649 = vmatpush1.msra.mxu0 0.0
      %1650 = vmatprep.subr.mxu0 0.0
      %1651 = vmatpush1.msra.mxu0 0.0
      %1652 = vmatprep.subr.mxu0 0.0
      %1653 = vmatpush1.msra.mxu0 0.0
      %1654 = vmatprep.subr.mxu0 0.0
      %1655 = vmatpush1.msra.mxu0 0.0
      %1656 = vmatprep.subr.mxu0 0.0
      %1657 = vmatpush1.msra.mxu0 0.0
      %1658 = vmatprep.subr.mxu0 0.0
      %1659 = vmatpush1.msra.mxu0 0.0
      %1660 = vmatprep.subr.mxu0 0.0
      %1661 = vmatpush1.msra.mxu0 0.0
      %1662 = vmatprep.subr.mxu0 0.0
      %1663 = vmatpush1.msra.mxu0 0.0
      %1664 = vmatprep.subr.mxu0 0.0
      %1665 = vmatpush1.msra.mxu0 0.0
      %1666 = vmatprep.subr.mxu0 0.0
      %1667 = vmatpush1.msra.mxu0 0.0
      %1668 = vmatprep.subr.mxu0 0.0
      %1669 = vmatpush1.msra.mxu0 0.0
      %1670 = vmatprep.subr.mxu0 0.0
      %1671 = vmatpush1.msra.mxu0 0.0
      %1672 = vmatprep.subr.mxu0 0.0
      %1673 = vmatpush1.msra.mxu0 0.0
      %1674 = vmatprep.subr.mxu0 0.0
      %1675 = vmatpush1.msra.mxu0 0.0
      %1676 = vmatprep.subr.mxu0 0.0
      %1677 = vmatpush1.msra.mxu0 0.0
      %1678 = vmatprep.subr.mxu0 0.0
      %1679 = vmatpush1.msra.mxu0 0.0
      %1680 = vmatprep.subr.mxu0 0.0
      %1681 = vmatpush1.msra.mxu0 0.0
      %1682 = vmatprep.subr.mxu0 0.0
      %1683 = vmatpush1.msra.mxu0 0.0
      %1684 = vmatprep.subr.mxu0 0.0
      %1685 = vmatpush1.msra.mxu0 0.0
      %1686 = vmatprep.mubr.f32.mxu0 0.0
      %1687 = vmatmul.mubr.f32.gmra.mrb[0].mxu0 %v1615
      %v1688 = vpop.f32.mrb[0].mxu0
      %v1689 = vadd.f32 0.0, %v1688
      %v1690 = vpop.f32.mrb[0].mxu0
      %1691 = vmatprep.mubr.f32.mxu0 0.0
      %1692 = vmatmul.mubr.f32.gmra.mrb[0].mxu0 %v1618
      %v1693 = vpop.f32.mrb[0].mxu0
      %v1694 = vadd.f32 0.0, %v1693
      %v1695 = vpop.f32.mrb[0].mxu0
      %1696 = vdwg.mxu0
      %v1698 = vsel %vm645, %v1519, 0
      %v1701 = vsel %vm645, %v1524, 0
      %v1703 = vsel %vm652, %v1610, 0
      %1705 = vmatprep.subr.mxu0 0.0
      %1706 = vmatpush1.msra.mxu0 %v1703
      %1707 = vmatprep.subr.mxu0 0.0
      %1708 = vmatpush1.msra.mxu0 0.0
      %1709 = vmatprep.subr.mxu0 0.0
      %1710 = vmatpush1.msra.mxu0 0.0
      %1711 = vmatprep.subr.mxu0 0.0
      %1712 = vmatpush1.msra.mxu0 0.0
      %1713 = vmatprep.subr.mxu0 0.0
      %1714 = vmatpush1.msra.mxu0 0.0
      %1715 = vmatprep.subr.mxu0 0.0
      %1716 = vmatpush1.msra.mxu0 0.0
      %1717 = vmatprep.subr.mxu0 0.0
      %1718 = vmatpush1.msra.mxu0 0.0
      %1719 = vmatprep.subr.mxu0 0.0
      %1720 = vmatpush1.msra.mxu0 0.0
      %1721 = vmatprep.subr.mxu0 0.0
      %1722 = vmatpush1.msra.mxu0 0.0
      %1723 = vmatprep.subr.mxu0 0.0
      %1724 = vmatpush1.msra.mxu0 0.0
      %1725 = vmatprep.subr.mxu0 0.0
      %1726 = vmatpush1.msra.mxu0 0.0
      %1727 = vmatprep.subr.mxu0 0.0
      %1728 = vmatpush1.msra.mxu0 0.0
      %1729 = vmatprep.subr.mxu0 0.0
      %1730 = vmatpush1.msra.mxu0 0.0
      %1731 = vmatprep.subr.mxu0 0.0
      %1732 = vmatpush1.msra.mxu0 0.0
      %1733 = vmatprep.subr.mxu0 0.0
      %1734 = vmatpush1.msra.mxu0 0.0
      %1735 = vmatprep.subr.mxu0 0.0
      %1736 = vmatpush1.msra.mxu0 0.0
      %1737 = vmatprep.subr.mxu0 0.0
      %1738 = vmatpush1.msra.mxu0 0.0
      %1739 = vmatprep.subr.mxu0 0.0
      %1740 = vmatpush1.msra.mxu0 0.0
      %1741 = vmatprep.subr.mxu0 0.0
      %1742 = vmatpush1.msra.mxu0 0.0
      %1743 = vmatprep.subr.mxu0 0.0
      %1744 = vmatpush1.msra.mxu0 0.0
      %1745 = vmatprep.subr.mxu0 0.0
      %1746 = vmatpush1.msra.mxu0 0.0
      %1747 = vmatprep.subr.mxu0 0.0
      %1748 = vmatpush1.msra.mxu0 0.0
      %1749 = vmatprep.subr.mxu0 0.0
      %1750 = vmatpush1.msra.mxu0 0.0
      %1751 = vmatprep.subr.mxu0 0.0
      %1752 = vmatpush1.msra.mxu0 0.0
      %1753 = vmatprep.subr.mxu0 0.0
      %1754 = vmatpush1.msra.mxu0 0.0
      %1755 = vmatprep.subr.mxu0 0.0
      %1756 = vmatpush1.msra.mxu0 0.0
      %1757 = vmatprep.subr.mxu0 0.0
      %1758 = vmatpush1.msra.mxu0 0.0
      %1759 = vmatprep.subr.mxu0 0.0
      %1760 = vmatpush1.msra.mxu0 0.0
      %1761 = vmatprep.subr.mxu0 0.0
      %1762 = vmatpush1.msra.mxu0 0.0
      %1763 = vmatprep.subr.mxu0 0.0
      %1764 = vmatpush1.msra.mxu0 0.0
      %1765 = vmatprep.subr.mxu0 0.0
      %1766 = vmatpush1.msra.mxu0 0.0
      %1767 = vmatprep.subr.mxu0 0.0
      %1768 = vmatpush1.msra.mxu0 0.0
      %1769 = vmatprep.mubr.f32.mxu0 0.0
      %1770 = vmatmul.mubr.f32.gmra.mrb[0].mxu0 %v1698
      %v1771 = vpop.f32.mrb[0].mxu0
      %v1772 = vadd.f32 %v1689, %v1771
      %v1773 = vpop.f32.mrb[0].mxu0
      %1774 = vmatprep.mubr.f32.mxu0 0.0
      %1775 = vmatmul.mubr.f32.gmra.mrb[0].mxu0 %v1701
      %v1776 = vpop.f32.mrb[0].mxu0
      %v1777 = vadd.f32 %v1694, %v1776
      %v1778 = vpop.f32.mrb[0].mxu0
      %1779 = vdwg.mxu0
      %v1781 = vsel %vm645, %v1602, 0
      %v1784 = vsel %vm645, %v1607, 0
      %v1787 = vsel %vm652, %v1611, 0
      %1789 = vmatprep.subr.mxu0 0.0
      %1790 = vmatpush1.msra.mxu0 %v1787
      %1791 = vmatprep.subr.mxu0 0.0
      %1792 = vmatpush1.msra.mxu0 0.0
      %1793 = vmatprep.subr.mxu0 0.0
      %1794 = vmatpush1.msra.mxu0 0.0
      %1795 = vmatprep.subr.mxu0 0.0
      %1796 = vmatpush1.msra.mxu0 0.0
      %1797 = vmatprep.subr.mxu0 0.0
      %1798 = vmatpush1.msra.mxu0 0.0
      %1799 = vmatprep.subr.mxu0 0.0
      %1800 = vmatpush1.msra.mxu0 0.0
      %1801 = vmatprep.subr.mxu0 0.0
      %1802 = vmatpush1.msra.mxu0 0.0
      %1803 = vmatprep.subr.mxu0 0.0
      %1804 = vmatpush1.msra.mxu0 0.0
      %1805 = vmatprep.subr.mxu0 0.0
      %1806 = vmatpush1.msra.mxu0 0.0
      %1807 = vmatprep.subr.mxu0 0.0
      %1808 = vmatpush1.msra.mxu0 0.0
      %1809 = vmatprep.subr.mxu0 0.0
      %1810 = vmatpush1.msra.mxu0 0.0
      %1811 = vmatprep.subr.mxu0 0.0
      %1812 = vmatpush1.msra.mxu0 0.0
      %1813 = vmatprep.subr.mxu0 0.0
      %1814 = vmatpush1.msra.mxu0 0.0
      %1815 = vmatprep.subr.mxu0 0.0
      %1816 = vmatpush1.msra.mxu0 0.0
      %1817 = vmatprep.subr.mxu0 0.0
      %1818 = vmatpush1.msra.mxu0 0.0
      %1819 = vmatprep.subr.mxu0 0.0
      %1820 = vmatpush1.msra.mxu0 0.0
      %1821 = vmatprep.subr.mxu0 0.0
      %1822 = vmatpush1.msra.mxu0 0.0
      %1823 = vmatprep.subr.mxu0 0.0
      %1824 = vmatpush1.msra.mxu0 0.0
      %1825 = vmatprep.subr.mxu0 0.0
      %1826 = vmatpush1.msra.mxu0 0.0
      %1827 = vmatprep.subr.mxu0 0.0
      %1828 = vmatpush1.msra.mxu0 0.0
      %1829 = vmatprep.subr.mxu0 0.0
      %1830 = vmatpush1.msra.mxu0 0.0
      %1831 = vmatprep.subr.mxu0 0.0
      %1832 = vmatpush1.msra.mxu0 0.0
      %1833 = vmatprep.subr.mxu0 0.0
      %1834 = vmatpush1.msra.mxu0 0.0
      %1835 = vmatprep.subr.mxu0 0.0
      %1836 = vmatpush1.msra.mxu0 0.0
      %1837 = vmatprep.subr.mxu0 0.0
      %1838 = vmatpush1.msra.mxu0 0.0
      %1839 = vmatprep.subr.mxu0 0.0
      %1840 = vmatpush1.msra.mxu0 0.0
      %1841 = vmatprep.subr.mxu0 0.0
      %1842 = vmatpush1.msra.mxu0 0.0
      %1843 = vmatprep.subr.mxu0 0.0
      %1844 = vmatpush1.msra.mxu0 0.0
      %1845 = vmatprep.subr.mxu0 0.0
      %1846 = vmatpush1.msra.mxu0 0.0
      %1847 = vmatprep.subr.mxu0 0.0
      %1848 = vmatpush1.msra.mxu0 0.0
      %1849 = vmatprep.subr.mxu0 0.0
      %1850 = vmatpush1.msra.mxu0 0.0
      %1851 = vmatprep.subr.mxu0 0.0
      %1852 = vmatpush1.msra.mxu0 0.0
      %1853 = vmatprep.mubr.f32.mxu0 0.0
      %1854 = vmatmul.mubr.f32.gmra.mrb[0].mxu0 %v1781
      %v1855 = vpop.f32.mrb[0].mxu0
      %v1856 = vadd.f32 0.0, %v1855
      %v1857 = vpop.f32.mrb[0].mxu0
      %1858 = vmatprep.mubr.f32.mxu0 0.0
      %1859 = vmatmul.mubr.f32.gmra.mrb[0].mxu0 %v1784
      %v1860 = vpop.f32.mrb[0].mxu0
      %v1861 = vadd.f32 0.0, %v1860
      %v1862 = vpop.f32.mrb[0].mxu0
      %1863 = vdwg.mxu0
      %v1864 = vadd.f32 %v1772, %v1856
      %v1865 = vadd.f32 %v1777, %v1861
      %v1866 = vld [vmem:[%s12] sm:$0xff]
      %v1867 = vld [vmem:[%s12 + $0x8] sm:$0xff]
      %v1868 = vadd.f32 %v1864, %v1866
      %v1869 = vadd.f32 %v1865, %v1867
      %v1870 = vld [vmem:[%s13] sm:$0xff]
      %v1871 = vld [vmem:[%s13 + $0x8] sm:$0xff]
      %v1872 = vld [vmem:[%s13 + $0x10] sm:$0xff]
      %v1873 = vld [vmem:[%s13 + $0x18] sm:$0xff]
      %v1874 = vld [vmem:[%s14] sm:$0x1]
      %v1875 = vld [vmem:[%s15] sm:$0xff]
      %v1876 = vld [vmem:[%s15 + $0x8] sm:$0xff]
      %v1877 = vld [vmem:[%s15 + $0x10] sm:$0xff]
      %v1878 = vld [vmem:[%s15 + $0x18] sm:$0xff]
      %v1879 = vld [vmem:[%s16] sm:$0x1]
      %v1881 = vlaneseq
      %v1882 = vshrl.u32 %v1881, 7
      %v1883 = vsub.s32 0, %v1882
      %v1884 = vrot.slane %v1874, %v1883
      %vm1886 = vcmask 261120
      %v1888 = vsel %vm1886, %v1258, 0
      %v1891 = vsel %vm1886, %v1259, 0
      %1893 = vmatprep.subr.mxu0 0.0
      %1894 = vmatpush1.msra.mxu0 %v1870
      %1895 = vmatprep.subr.mxu0 0.0
      %1896 = vmatpush1.msra.mxu0 %v1871
      %1897 = vmatprep.subr.mxu0 0.0
      %1898 = vmatpush1.msra.mxu0 %v1872
      %1899 = vmatprep.subr.mxu0 0.0
      %1900 = vmatpush1.msra.mxu0 %v1873
      %1901 = vmatprep.subr.mxu0 0.0
      %1902 = vmatpush1.msra.mxu0 0.0
      %1903 = vmatprep.subr.mxu0 0.0
      %1904 = vmatpush1.msra.mxu0 0.0
      %1905 = vmatprep.subr.mxu0 0.0
      %1906 = vmatpush1.msra.mxu0 0.0
      %1907 = vmatprep.subr.mxu0 0.0
      %1908 = vmatpush1.msra.mxu0 0.0
      %1909 = vmatprep.subr.mxu0 0.0
      %1910 = vmatpush1.msra.mxu0 0.0
      %1911 = vmatprep.subr.mxu0 0.0
      %1912 = vmatpush1.msra.mxu0 0.0
      %1913 = vmatprep.subr.mxu0 0.0
      %1914 = vmatpush1.msra.mxu0 0.0
      %1915 = vmatprep.subr.mxu0 0.0
      %1916 = vmatpush1.msra.mxu0 0.0
      %1917 = vmatprep.subr.mxu0 0.0
      %1918 = vmatpush1.msra.mxu0 0.0
      %1919 = vmatprep.subr.mxu0 0.0
      %1920 = vmatpush1.msra.mxu0 0.0
      %1921 = vmatprep.subr.mxu0 0.0
      %1922 = vmatpush1.msra.mxu0 0.0
      %1923 = vmatprep.subr.mxu0 0.0
      %1924 = vmatpush1.msra.mxu0 0.0
      %1925 = vmatprep.subr.mxu0 0.0
      %1926 = vmatpush1.msra.mxu0 0.0
      %1927 = vmatprep.subr.mxu0 0.0
      %1928 = vmatpush1.msra.mxu0 0.0
      %1929 = vmatprep.subr.mxu0 0.0
      %1930 = vmatpush1.msra.mxu0 0.0
      %1931 = vmatprep.subr.mxu0 0.0
      %1932 = vmatpush1.msra.mxu0 0.0
      %1933 = vmatprep.subr.mxu0 0.0
      %1934 = vmatpush1.msra.mxu0 0.0
      %1935 = vmatprep.subr.mxu0 0.0
      %1936 = vmatpush1.msra.mxu0 0.0
      %1937 = vmatprep.subr.mxu0 0.0
      %1938 = vmatpush1.msra.mxu0 0.0
      %1939 = vmatprep.subr.mxu0 0.0
      %1940 = vmatpush1.msra.mxu0 0.0
      %1941 = vmatprep.subr.mxu0 0.0
      %1942 = vmatpush1.msra.mxu0 0.0
      %1943 = vmatprep.subr.mxu0 0.0
      %1944 = vmatpush1.msra.mxu0 0.0
      %1945 = vmatprep.subr.mxu0 0.0
      %1946 = vmatpush1.msra.mxu0 0.0
      %1947 = vmatprep.subr.mxu0 0.0
      %1948 = vmatpush1.msra.mxu0 0.0
      %1949 = vmatprep.subr.mxu0 0.0
      %1950 = vmatpush1.msra.mxu0 0.0
      %1951 = vmatprep.subr.mxu0 0.0
      %1952 = vmatpush1.msra.mxu0 0.0
      %1953 = vmatprep.subr.mxu0 0.0
      %1954 = vmatpush1.msra.mxu0 0.0
      %1955 = vmatprep.subr.mxu0 0.0
      %1956 = vmatpush1.msra.mxu0 0.0
      %1957 = vmatprep.mubr.f32.mxu0 0.0
      %1958 = vmatmul.mubr.f32.gmra.mrb[0].mxu0 %v1888
      %v1959 = vpop.f32.mrb[0].mxu0
      %v1960 = vadd.f32 %v1884, %v1959
      %v1961 = vpop.f32.mrb[0].mxu0
      %1962 = vmatprep.mubr.f32.mxu0 0.0
      %1963 = vmatmul.mubr.f32.gmra.mrb[0].mxu0 %v1891
      %v1964 = vpop.f32.mrb[0].mxu0
      %v1965 = vadd.f32 %v1884, %v1964
      %v1966 = vpop.f32.mrb[0].mxu0
      %1967 = vdwg.mxu0
      %v1969 = vlaneseq
      %v1970 = vshrl.u32 %v1969, 7
      %v1971 = vsub.s32 0, %v1970
      %v1972 = vrot.slane %v1879, %v1971
      %1974 = vmatprep.subr.mxu0 0.0
      %1975 = vmatpush1.msra.mxu0 %v1875
      %1976 = vmatprep.subr.mxu0 0.0
      %1977 = vmatpush1.msra.mxu0 %v1876
      %1978 = vmatprep.subr.mxu0 0.0
      %1979 = vmatpush1.msra.mxu0 %v1877
      %1980 = vmatprep.subr.mxu0 0.0
      %1981 = vmatpush1.msra.mxu0 %v1878
      %1982 = vmatprep.subr.mxu0 0.0
      %1983 = vmatpush1.msra.mxu0 0.0
      %1984 = vmatprep.subr.mxu0 0.0
      %1985 = vmatpush1.msra.mxu0 0.0
      %1986 = vmatprep.subr.mxu0 0.0
      %1987 = vmatpush1.msra.mxu0 0.0
      %1988 = vmatprep.subr.mxu0 0.0
      %1989 = vmatpush1.msra.mxu0 0.0
      %1990 = vmatprep.subr.mxu0 0.0
      %1991 = vmatpush1.msra.mxu0 0.0
      %1992 = vmatprep.subr.mxu0 0.0
      %1993 = vmatpush1.msra.mxu0 0.0
      %1994 = vmatprep.subr.mxu0 0.0
      %1995 = vmatpush1.msra.mxu0 0.0
      %1996 = vmatprep.subr.mxu0 0.0
      %1997 = vmatpush1.msra.mxu0 0.0
      %1998 = vmatprep.subr.mxu0 0.0
      %1999 = vmatpush1.msra.mxu0 0.0
      %2000 = vmatprep.subr.mxu0 0.0
      %2001 = vmatpush1.msra.mxu0 0.0
      %2002 = vmatprep.subr.mxu0 0.0
      %2003 = vmatpush1.msra.mxu0 0.0
      %2004 = vmatprep.subr.mxu0 0.0
      %2005 = vmatpush1.msra.mxu0 0.0
      %2006 = vmatprep.subr.mxu0 0.0
      %2007 = vmatpush1.msra.mxu0 0.0
      %2008 = vmatprep.subr.mxu0 0.0
      %2009 = vmatpush1.msra.mxu0 0.0
      %2010 = vmatprep.subr.mxu0 0.0
      %2011 = vmatpush1.msra.mxu0 0.0
      %2012 = vmatprep.subr.mxu0 0.0
      %2013 = vmatpush1.msra.mxu0 0.0
      %2014 = vmatprep.subr.mxu0 0.0
      %2015 = vmatpush1.msra.mxu0 0.0
      %2016 = vmatprep.subr.mxu0 0.0
      %2017 = vmatpush1.msra.mxu0 0.0
      %2018 = vmatprep.subr.mxu0 0.0
      %2019 = vmatpush1.msra.mxu0 0.0
      %2020 = vmatprep.subr.mxu0 0.0
      %2021 = vmatpush1.msra.mxu0 0.0
      %2022 = vmatprep.subr.mxu0 0.0
      %2023 = vmatpush1.msra.mxu0 0.0
      %2024 = vmatprep.subr.mxu0 0.0
      %2025 = vmatpush1.msra.mxu0 0.0
      %2026 = vmatprep.subr.mxu0 0.0
      %2027 = vmatpush1.msra.mxu0 0.0
      %2028 = vmatprep.subr.mxu0 0.0
      %2029 = vmatpush1.msra.mxu0 0.0
      %2030 = vmatprep.subr.mxu0 0.0
      %2031 = vmatpush1.msra.mxu0 0.0
      %2032 = vmatprep.subr.mxu0 0.0
      %2033 = vmatpush1.msra.mxu0 0.0
      %2034 = vmatprep.subr.mxu0 0.0
      %2035 = vmatpush1.msra.mxu0 0.0
      %2036 = vmatprep.subr.mxu0 0.0
      %2037 = vmatpush1.msra.mxu0 0.0
      %2038 = vmatprep.mubr.f32.mxu0 0.0
      %2039 = vmatmul.mubr.f32.gmra.mrb[0].mxu0 %v1888
      %v2040 = vpop.f32.mrb[0].mxu0
      %v2041 = vadd.f32 %v1972, %v2040
      %v2042 = vpop.f32.mrb[0].mxu0
      %2043 = vmatprep.mubr.f32.mxu0 0.0
      %2044 = vmatmul.mubr.f32.gmra.mrb[0].mxu0 %v1891
      %v2045 = vpop.f32.mrb[0].mxu0
      %v2046 = vadd.f32 %v1972, %v2045
      %v2047 = vpop.f32.mrb[0].mxu0
      %2048 = vdwg.mxu0
      %v2050 = vsel %vm835, %v1960, 0
      %v2053 = vsel %vm835, %v2041, 0
      %2055 = vmatprep.subr.mxu0 0.0
      %2056 = vmatpush1.xpose.msra.mxu0 %v2053
      %2057 = vmatprep.subr.mxu0 0.0
      %2058 = vmatpush1.xpose.msra.mxu0 0.0
      %2059 = vmatprep.subr.mxu0 0.0
      %2060 = vmatpush1.xpose.msra.mxu0 0.0
      %2061 = vmatprep.subr.mxu0 0.0
      %2062 = vmatpush1.xpose.msra.mxu0 0.0
      %2063 = vmatprep.subr.mxu0 0.0
      %2064 = vmatpush1.xpose.msra.mxu0 0.0
      %2065 = vmatprep.subr.mxu0 0.0
      %2066 = vmatpush1.xpose.msra.mxu0 0.0
      %2067 = vmatprep.subr.mxu0 0.0
      %2068 = vmatpush1.xpose.msra.mxu0 0.0
      %2069 = vmatprep.subr.mxu0 0.0
      %2070 = vmatpush1.xpose.msra.mxu0 0.0
      %2071 = vmatprep.subr.mxu0 0.0
      %2072 = vmatpush1.xpose.msra.mxu0 0.0
      %2073 = vmatprep.subr.mxu0 0.0
      %2074 = vmatpush1.xpose.msra.mxu0 0.0
      %2075 = vmatprep.subr.mxu0 0.0
      %2076 = vmatpush1.xpose.msra.mxu0 0.0
      %2077 = vmatprep.subr.mxu0 0.0
      %2078 = vmatpush1.xpose.msra.mxu0 0.0
      %2079 = vmatprep.subr.mxu0 0.0
      %2080 = vmatpush1.xpose.msra.mxu0 0.0
      %2081 = vmatprep.subr.mxu0 0.0
      %2082 = vmatpush1.xpose.msra.mxu0 0.0
      %2083 = vmatprep.subr.mxu0 0.0
      %2084 = vmatpush1.xpose.msra.mxu0 0.0
      %2085 = vmatprep.subr.mxu0 0.0
      %2086 = vmatpush1.xpose.msra.mxu0 0.0
      %2087 = vmatprep.subr.mxu0 0.0
      %2088 = vmatpush1.xpose.msra.mxu0 0.0
      %2089 = vmatprep.subr.mxu0 0.0
      %2090 = vmatpush1.xpose.msra.mxu0 0.0
      %2091 = vmatprep.subr.mxu0 0.0
      %2092 = vmatpush1.xpose.msra.mxu0 0.0
      %2093 = vmatprep.subr.mxu0 0.0
      %2094 = vmatpush1.xpose.msra.mxu0 0.0
      %2095 = vmatprep.subr.mxu0 0.0
      %2096 = vmatpush1.xpose.msra.mxu0 0.0
      %2097 = vmatprep.subr.mxu0 0.0
      %2098 = vmatpush1.xpose.msra.mxu0 0.0
      %2099 = vmatprep.subr.mxu0 0.0
      %2100 = vmatpush1.xpose.msra.mxu0 0.0
      %2101 = vmatprep.subr.mxu0 0.0
      %2102 = vmatpush1.xpose.msra.mxu0 0.0
      %2103 = vmatprep.subr.mxu0 0.0
      %2104 = vmatpush1.xpose.msra.mxu0 0.0
      %2105 = vmatprep.subr.mxu0 0.0
      %2106 = vmatpush1.xpose.msra.mxu0 0.0
      %2107 = vmatprep.subr.mxu0 0.0
      %2108 = vmatpush1.xpose.msra.mxu0 0.0
      %2109 = vmatprep.subr.mxu0 0.0
      %2110 = vmatpush1.xpose.msra.mxu0 0.0
      %2111 = vmatprep.subr.mxu0 0.0
      %2112 = vmatpush1.xpose.msra.mxu0 0.0
      %2113 = vmatprep.subr.mxu0 0.0
      %2114 = vmatpush1.xpose.msra.mxu0 0.0
      %2115 = vmatprep.subr.mxu0 0.0
      %2116 = vmatpush1.xpose.msra.mxu0 0.0
      %2117 = vmatprep.subr.mxu0 0.0
      %2118 = vmatpush1.xpose.msra.mxu0 0.0
      %2119 = vmatprep.mubr.f32.mxu0 0.0
      %2120 = vmatmul.mubr.f32.gmra.mrb[0].mxu0 %v2050
      %v2121 = vpop.f32.mrb[0].mxu0
      %v2122 = vadd.f32 0.0, %v2121
      %v2123 = vpop.f32.mrb[0].mxu0
      %2124 = vdwg.mxu0
      %v2125 = vmul.f32 %v2122, 0.25
      %vm2126 = vcmask 27648
      %v2127 = vsel %vm2126, %v2125, -inf
      %2128 = vmax.xlane.f32.xlu0 %v2127
      %v2129 = vpop.xlane.xlu0 %2128
      %v2130 = vsub.f32 %v2125, %v2129
      %v2131 = vmul.f32 %v2130, 1.442695
      %v2132 = vpow.pop %v2131
      %v2133 = vsel %vm2126, %v2132, 0.0
      %2134 = vadd.xlane.f32.xlu0 %v2133
      %v2135 = vpop.xlane.xlu0 %2134
      %v2136 = vrcp.pop %v2135
      %v2137 = vmul.f32 %v2132, %v2136
      %v2138 = vrot.slane %v1960, 4
      %v2139 = vrot.slane %v2041, 4
      %v2140 = vsel %vm835, %v2138, 0
      %v2142 = vsel %vm835, %v2139, 0
      %2144 = vmatprep.subr.mxu0 0.0
      %2145 = vmatpush1.xpose.msra.mxu0 %v2142
      %2146 = vmatprep.subr.mxu0 0.0
      %2147 = vmatpush1.xpose.msra.mxu0 0.0
      %2148 = vmatprep.subr.mxu0 0.0
      %2149 = vmatpush1.xpose.msra.mxu0 0.0
      %2150 = vmatprep.subr.mxu0 0.0
      %2151 = vmatpush1.xpose.msra.mxu0 0.0
      %2152 = vmatprep.subr.mxu0 0.0
      %2153 = vmatpush1.xpose.msra.mxu0 0.0
      %2154 = vmatprep.subr.mxu0 0.0
      %2155 = vmatpush1.xpose.msra.mxu0 0.0
      %2156 = vmatprep.subr.mxu0 0.0
      %2157 = vmatpush1.xpose.msra.mxu0 0.0
      %2158 = vmatprep.subr.mxu0 0.0
      %2159 = vmatpush1.xpose.msra.mxu0 0.0
      %2160 = vmatprep.subr.mxu0 0.0
      %2161 = vmatpush1.xpose.msra.mxu0 0.0
      %2162 = vmatprep.subr.mxu0 0.0
      %2163 = vmatpush1.xpose.msra.mxu0 0.0
      %2164 = vmatprep.subr.mxu0 0.0
      %2165 = vmatpush1.xpose.msra.mxu0 0.0
      %2166 = vmatprep.subr.mxu0 0.0
      %2167 = vmatpush1.xpose.msra.mxu0 0.0
      %2168 = vmatprep.subr.mxu0 0.0
      %2169 = vmatpush1.xpose.msra.mxu0 0.0
      %2170 = vmatprep.subr.mxu0 0.0
      %2171 = vmatpush1.xpose.msra.mxu0 0.0
      %2172 = vmatprep.subr.mxu0 0.0
      %2173 = vmatpush1.xpose.msra.mxu0 0.0
      %2174 = vmatprep.subr.mxu0 0.0
      %2175 = vmatpush1.xpose.msra.mxu0 0.0
      %2176 = vmatprep.subr.mxu0 0.0
      %2177 = vmatpush1.xpose.msra.mxu0 0.0
      %2178 = vmatprep.subr.mxu0 0.0
      %2179 = vmatpush1.xpose.msra.mxu0 0.0
      %2180 = vmatprep.subr.mxu0 0.0
      %2181 = vmatpush1.xpose.msra.mxu0 0.0
      %2182 = vmatprep.subr.mxu0 0.0
      %2183 = vmatpush1.xpose.msra.mxu0 0.0
      %2184 = vmatprep.subr.mxu0 0.0
      %2185 = vmatpush1.xpose.msra.mxu0 0.0
      %2186 = vmatprep.subr.mxu0 0.0
      %2187 = vmatpush1.xpose.msra.mxu0 0.0
      %2188 = vmatprep.subr.mxu0 0.0
      %2189 = vmatpush1.xpose.msra.mxu0 0.0
      %2190 = vmatprep.subr.mxu0 0.0
      %2191 = vmatpush1.xpose.msra.mxu0 0.0
      %2192 = vmatprep.subr.mxu0 0.0
      %2193 = vmatpush1.xpose.msra.mxu0 0.0
      %2194 = vmatprep.subr.mxu0 0.0
      %2195 = vmatpush1.xpose.msra.mxu0 0.0
      %2196 = vmatprep.subr.mxu0 0.0
      %2197 = vmatpush1.xpose.msra.mxu0 0.0
      %2198 = vmatprep.subr.mxu0 0.0
      %2199 = vmatpush1.xpose.msra.mxu0 0.0
      %2200 = vmatprep.subr.mxu0 0.0
      %2201 = vmatpush1.xpose.msra.mxu0 0.0
      %2202 = vmatprep.subr.mxu0 0.0
      %2203 = vmatpush1.xpose.msra.mxu0 0.0
      %2204 = vmatprep.subr.mxu0 0.0
      %2205 = vmatpush1.xpose.msra.mxu0 0.0
      %2206 = vmatprep.subr.mxu0 0.0
      %2207 = vmatpush1.xpose.msra.mxu0 0.0
      %2208 = vmatprep.mubr.f32.mxu0 0.0
      %2209 = vmatmul.mubr.f32.gmra.mrb[0].mxu0 %v2140
      %v2210 = vpop.f32.mrb[0].mxu0
      %v2211 = vadd.f32 0.0, %v2210
      %v2212 = vpop.f32.mrb[0].mxu0
      %2213 = vdwg.mxu0
      %v2214 = vmul.f32 %v2211, 0.25
      %v2215 = vsel %vm2126, %v2214, -inf
      %2216 = vmax.xlane.f32.xlu0 %v2215
      %v2217 = vpop.xlane.xlu0 %2216
      %v2218 = vsub.f32 %v2214, %v2217
      %v2219 = vmul.f32 %v2218, 1.442695
      %v2220 = vpow.pop %v2219
      %v2221 = vsel %vm2126, %v2220, 0.0
      %2222 = vadd.xlane.f32.xlu0 %v2221
      %v2223 = vpop.xlane.xlu0 %2222
      %v2224 = vrcp.pop %v2223
      %v2225 = vmul.f32 %v2220, %v2224
      %v2226 = vadd.f32 %v2137, %v2225
      %v2228 = vsel %vm835, %v1965, 0
      %v2231 = vsel %vm835, %v2046, 0
      %2233 = vmatprep.subr.mxu0 0.0
      %2234 = vmatpush1.xpose.msra.mxu0 %v2231
      %2235 = vmatprep.subr.mxu0 0.0
      %2236 = vmatpush1.xpose.msra.mxu0 0.0
      %2237 = vmatprep.subr.mxu0 0.0
      %2238 = vmatpush1.xpose.msra.mxu0 0.0
      %2239 = vmatprep.subr.mxu0 0.0
      %2240 = vmatpush1.xpose.msra.mxu0 0.0
      %2241 = vmatprep.subr.mxu0 0.0
      %2242 = vmatpush1.xpose.msra.mxu0 0.0
      %2243 = vmatprep.subr.mxu0 0.0
      %2244 = vmatpush1.xpose.msra.mxu0 0.0
      %2245 = vmatprep.subr.mxu0 0.0
      %2246 = vmatpush1.xpose.msra.mxu0 0.0
      %2247 = vmatprep.subr.mxu0 0.0
      %2248 = vmatpush1.xpose.msra.mxu0 0.0
      %2249 = vmatprep.subr.mxu0 0.0
      %2250 = vmatpush1.xpose.msra.mxu0 0.0
      %2251 = vmatprep.subr.mxu0 0.0
      %2252 = vmatpush1.xpose.msra.mxu0 0.0
      %2253 = vmatprep.subr.mxu0 0.0
      %2254 = vmatpush1.xpose.msra.mxu0 0.0
      %2255 = vmatprep.subr.mxu0 0.0
      %2256 = vmatpush1.xpose.msra.mxu0 0.0
      %2257 = vmatprep.subr.mxu0 0.0
      %2258 = vmatpush1.xpose.msra.mxu0 0.0
      %2259 = vmatprep.subr.mxu0 0.0
      %2260 = vmatpush1.xpose.msra.mxu0 0.0
      %2261 = vmatprep.subr.mxu0 0.0
      %2262 = vmatpush1.xpose.msra.mxu0 0.0
      %2263 = vmatprep.subr.mxu0 0.0
      %2264 = vmatpush1.xpose.msra.mxu0 0.0
      %2265 = vmatprep.subr.mxu0 0.0
      %2266 = vmatpush1.xpose.msra.mxu0 0.0
      %2267 = vmatprep.subr.mxu0 0.0
      %2268 = vmatpush1.xpose.msra.mxu0 0.0
      %2269 = vmatprep.subr.mxu0 0.0
      %2270 = vmatpush1.xpose.msra.mxu0 0.0
      %2271 = vmatprep.subr.mxu0 0.0
      %2272 = vmatpush1.xpose.msra.mxu0 0.0
      %2273 = vmatprep.subr.mxu0 0.0
      %2274 = vmatpush1.xpose.msra.mxu0 0.0
      %2275 = vmatprep.subr.mxu0 0.0
      %2276 = vmatpush1.xpose.msra.mxu0 0.0
      %2277 = vmatprep.subr.mxu0 0.0
      %2278 = vmatpush1.xpose.msra.mxu0 0.0
      %2279 = vmatprep.subr.mxu0 0.0
      %2280 = vmatpush1.xpose.msra.mxu0 0.0
      %2281 = vmatprep.subr.mxu0 0.0
      %2282 = vmatpush1.xpose.msra.mxu0 0.0
      %2283 = vmatprep.subr.mxu0 0.0
      %2284 = vmatpush1.xpose.msra.mxu0 0.0
      %2285 = vmatprep.subr.mxu0 0.0
      %2286 = vmatpush1.xpose.msra.mxu0 0.0
      %2287 = vmatprep.subr.mxu0 0.0
      %2288 = vmatpush1.xpose.msra.mxu0 0.0
      %2289 = vmatprep.subr.mxu0 0.0
      %2290 = vmatpush1.xpose.msra.mxu0 0.0
      %2291 = vmatprep.subr.mxu0 0.0
      %2292 = vmatpush1.xpose.msra.mxu0 0.0
      %2293 = vmatprep.subr.mxu0 0.0
      %2294 = vmatpush1.xpose.msra.mxu0 0.0
      %2295 = vmatprep.subr.mxu0 0.0
      %2296 = vmatpush1.xpose.msra.mxu0 0.0
      %2297 = vmatprep.mubr.f32.mxu0 0.0
      %2298 = vmatmul.mubr.f32.gmra.mrb[0].mxu0 %v2228
      %v2299 = vpop.f32.mrb[0].mxu0
      %v2300 = vadd.f32 0.0, %v2299
      %v2301 = vpop.f32.mrb[0].mxu0
      %2302 = vdwg.mxu0
      %v2303 = vmul.f32 %v2300, 0.25
      %v2304 = vsel %vm2126, %v2303, -inf
      %2305 = vmax.xlane.f32.xlu0 %v2304
      %v2306 = vpop.xlane.xlu0 %2305
      %v2307 = vsub.f32 %v2303, %v2306
      %v2308 = vmul.f32 %v2307, 1.442695
      %v2309 = vpow.pop %v2308
      %v2310 = vsel %vm2126, %v2309, 0.0
      %2311 = vadd.xlane.f32.xlu0 %v2310
      %v2312 = vpop.xlane.xlu0 %2311
      %v2313 = vrcp.pop %v2312
      %v2314 = vmul.f32 %v2309, %v2313
      %v2315 = vadd.f32 %v2226, %v2314
      %v2316 = vrot.slane %v1965, 4
      %v2317 = vrot.slane %v2046, 4
      %v2318 = vsel %vm835, %v2316, 0
      %v2320 = vsel %vm835, %v2317, 0
      %2322 = vmatprep.subr.mxu0 0.0
      %2323 = vmatpush1.xpose.msra.mxu0 %v2320
      %2324 = vmatprep.subr.mxu0 0.0
      %2325 = vmatpush1.xpose.msra.mxu0 0.0
      %2326 = vmatprep.subr.mxu0 0.0
      %2327 = vmatpush1.xpose.msra.mxu0 0.0
      %2328 = vmatprep.subr.mxu0 0.0
      %2329 = vmatpush1.xpose.msra.mxu0 0.0
      %2330 = vmatprep.subr.mxu0 0.0
      %2331 = vmatpush1.xpose.msra.mxu0 0.0
      %2332 = vmatprep.subr.mxu0 0.0
      %2333 = vmatpush1.xpose.msra.mxu0 0.0
      %2334 = vmatprep.subr.mxu0 0.0
      %2335 = vmatpush1.xpose.msra.mxu0 0.0
      %2336 = vmatprep.subr.mxu0 0.0
      %2337 = vmatpush1.xpose.msra.mxu0 0.0
      %2338 = vmatprep.subr.mxu0 0.0
      %2339 = vmatpush1.xpose.msra.mxu0 0.0
      %2340 = vmatprep.subr.mxu0 0.0
      %2341 = vmatpush1.xpose.msra.mxu0 0.0
      %2342 = vmatprep.subr.mxu0 0.0
      %2343 = vmatpush1.xpose.msra.mxu0 0.0
      %2344 = vmatprep.subr.mxu0 0.0
      %2345 = vmatpush1.xpose.msra.mxu0 0.0
      %2346 = vmatprep.subr.mxu0 0.0
      %2347 = vmatpush1.xpose.msra.mxu0 0.0
      %2348 = vmatprep.subr.mxu0 0.0
      %2349 = vmatpush1.xpose.msra.mxu0 0.0
      %2350 = vmatprep.subr.mxu0 0.0
      %2351 = vmatpush1.xpose.msra.mxu0 0.0
      %2352 = vmatprep.subr.mxu0 0.0
      %2353 = vmatpush1.xpose.msra.mxu0 0.0
      %2354 = vmatprep.subr.mxu0 0.0
      %2355 = vmatpush1.xpose.msra.mxu0 0.0
      %2356 = vmatprep.subr.mxu0 0.0
      %2357 = vmatpush1.xpose.msra.mxu0 0.0
      %2358 = vmatprep.subr.mxu0 0.0
      %2359 = vmatpush1.xpose.msra.mxu0 0.0
      %2360 = vmatprep.subr.mxu0 0.0
      %2361 = vmatpush1.xpose.msra.mxu0 0.0
      %2362 = vmatprep.subr.mxu0 0.0
      %2363 = vmatpush1.xpose.msra.mxu0 0.0
      %2364 = vmatprep.subr.mxu0 0.0
      %2365 = vmatpush1.xpose.msra.mxu0 0.0
      %2366 = vmatprep.subr.mxu0 0.0
      %2367 = vmatpush1.xpose.msra.mxu0 0.0
      %2368 = vmatprep.subr.mxu0 0.0
      %2369 = vmatpush1.xpose.msra.mxu0 0.0
      %2370 = vmatprep.subr.mxu0 0.0
      %2371 = vmatpush1.xpose.msra.mxu0 0.0
      %2372 = vmatprep.subr.mxu0 0.0
      %2373 = vmatpush1.xpose.msra.mxu0 0.0
      %2374 = vmatprep.subr.mxu0 0.0
      %2375 = vmatpush1.xpose.msra.mxu0 0.0
      %2376 = vmatprep.subr.mxu0 0.0
      %2377 = vmatpush1.xpose.msra.mxu0 0.0
      %2378 = vmatprep.subr.mxu0 0.0
      %2379 = vmatpush1.xpose.msra.mxu0 0.0
      %2380 = vmatprep.subr.mxu0 0.0
      %2381 = vmatpush1.xpose.msra.mxu0 0.0
      %2382 = vmatprep.subr.mxu0 0.0
      %2383 = vmatpush1.xpose.msra.mxu0 0.0
      %2384 = vmatprep.subr.mxu0 0.0
      %2385 = vmatpush1.xpose.msra.mxu0 0.0
      %2386 = vmatprep.mubr.f32.mxu0 0.0
      %2387 = vmatmul.mubr.f32.gmra.mrb[0].mxu0 %v2318
      %v2388 = vpop.f32.mrb[0].mxu0
      %v2389 = vadd.f32 0.0, %v2388
      %v2390 = vpop.f32.mrb[0].mxu0
      %2391 = vdwg.mxu0
      %v2392 = vmul.f32 %v2389, 0.25
      %v2393 = vsel %vm2126, %v2392, -inf
      %2394 = vmax.xlane.f32.xlu0 %v2393
      %v2395 = vpop.xlane.xlu0 %2394
      %v2396 = vsub.f32 %v2392, %v2395
      %v2397 = vmul.f32 %v2396, 1.442695
      %v2398 = vpow.pop %v2397
      %v2399 = vsel %vm2126, %v2398, 0.0
      %2400 = vadd.xlane.f32.xlu0 %v2399
      %v2401 = vpop.xlane.xlu0 %2400
      %v2402 = vrcp.pop %v2401
      %v2403 = vmul.f32 %v2398, %v2402
      %v2404 = vadd.f32 %v2315, %v2403
      %v2405 = vmul.f32 %v2404, 0.25
      %2406 = vst.msk [vmem:[%s620] sm:$0xf] %vm2126, %v2405
      %2407 = vrot.lane.b32.xlu0 %v1960, 112
      %v2408 = vpop.permute.xlu0 %2407
      %2409 = vrot.lane.b32.xlu0 %v2041, 112
      %v2410 = vpop.permute.xlu0 %2409
      %v2411 = vsel %vm835, %v2408, 0
      %v2413 = vsel %vm835, %v2410, 0
      %2415 = vmatprep.subr.mxu0 0.0
      %2416 = vmatpush1.xpose.msra.mxu0 %v2413
      %2417 = vmatprep.subr.mxu0 0.0
      %2418 = vmatpush1.xpose.msra.mxu0 0.0
      %2419 = vmatprep.subr.mxu0 0.0
      %2420 = vmatpush1.xpose.msra.mxu0 0.0
      %2421 = vmatprep.subr.mxu0 0.0
      %2422 = vmatpush1.xpose.msra.mxu0 0.0
      %2423 = vmatprep.subr.mxu0 0.0
      %2424 = vmatpush1.xpose.msra.mxu0 0.0
      %2425 = vmatprep.subr.mxu0 0.0
      %2426 = vmatpush1.xpose.msra.mxu0 0.0
      %2427 = vmatprep.subr.mxu0 0.0
      %2428 = vmatpush1.xpose.msra.mxu0 0.0
      %2429 = vmatprep.subr.mxu0 0.0
      %2430 = vmatpush1.xpose.msra.mxu0 0.0
      %2431 = vmatprep.subr.mxu0 0.0
      %2432 = vmatpush1.xpose.msra.mxu0 0.0
      %2433 = vmatprep.subr.mxu0 0.0
      %2434 = vmatpush1.xpose.msra.mxu0 0.0
      %2435 = vmatprep.subr.mxu0 0.0
      %2436 = vmatpush1.xpose.msra.mxu0 0.0
      %2437 = vmatprep.subr.mxu0 0.0
      %2438 = vmatpush1.xpose.msra.mxu0 0.0
      %2439 = vmatprep.subr.mxu0 0.0
      %2440 = vmatpush1.xpose.msra.mxu0 0.0
      %2441 = vmatprep.subr.mxu0 0.0
      %2442 = vmatpush1.xpose.msra.mxu0 0.0
      %2443 = vmatprep.subr.mxu0 0.0
      %2444 = vmatpush1.xpose.msra.mxu0 0.0
      %2445 = vmatprep.subr.mxu0 0.0
      %2446 = vmatpush1.xpose.msra.mxu0 0.0
      %2447 = vmatprep.subr.mxu0 0.0
      %2448 = vmatpush1.xpose.msra.mxu0 0.0
      %2449 = vmatprep.subr.mxu0 0.0
      %2450 = vmatpush1.xpose.msra.mxu0 0.0
      %2451 = vmatprep.subr.mxu0 0.0
      %2452 = vmatpush1.xpose.msra.mxu0 0.0
      %2453 = vmatprep.subr.mxu0 0.0
      %2454 = vmatpush1.xpose.msra.mxu0 0.0
      %2455 = vmatprep.subr.mxu0 0.0
      %2456 = vmatpush1.xpose.msra.mxu0 0.0
      %2457 = vmatprep.subr.mxu0 0.0
      %2458 = vmatpush1.xpose.msra.mxu0 0.0
      %2459 = vmatprep.subr.mxu0 0.0
      %2460 = vmatpush1.xpose.msra.mxu0 0.0
      %2461 = vmatprep.subr.mxu0 0.0
      %2462 = vmatpush1.xpose.msra.mxu0 0.0
      %2463 = vmatprep.subr.mxu0 0.0
      %2464 = vmatpush1.xpose.msra.mxu0 0.0
      %2465 = vmatprep.subr.mxu0 0.0
      %2466 = vmatpush1.xpose.msra.mxu0 0.0
      %2467 = vmatprep.subr.mxu0 0.0
      %2468 = vmatpush1.xpose.msra.mxu0 0.0
      %2469 = vmatprep.subr.mxu0 0.0
      %2470 = vmatpush1.xpose.msra.mxu0 0.0
      %2471 = vmatprep.subr.mxu0 0.0
      %2472 = vmatpush1.xpose.msra.mxu0 0.0
      %2473 = vmatprep.subr.mxu0 0.0
      %2474 = vmatpush1.xpose.msra.mxu0 0.0
      %2475 = vmatprep.subr.mxu0 0.0
      %2476 = vmatpush1.xpose.msra.mxu0 0.0
      %2477 = vmatprep.subr.mxu0 0.0
      %2478 = vmatpush1.xpose.msra.mxu0 0.0
      %2479 = vmatprep.mubr.f32.mxu0 0.0
      %2480 = vmatmul.mubr.f32.gmra.mrb[0].mxu0 %v2411
      %v2481 = vpop.f32.mrb[0].mxu0
      %v2482 = vadd.f32 0.0, %v2481
      %v2483 = vpop.f32.mrb[0].mxu0
      %2484 = vdwg.mxu0
      %v2485 = vmul.f32 %v2482, 0.25
      %v2486 = vsel %vm2126, %v2485, -inf
      %2487 = vmax.xlane.f32.xlu0 %v2486
      %v2488 = vpop.xlane.xlu0 %2487
      %v2489 = vsub.f32 %v2485, %v2488
      %v2490 = vmul.f32 %v2489, 1.442695
      %v2491 = vpow.pop %v2490
      %v2492 = vsel %vm2126, %v2491, 0.0
      %2493 = vadd.xlane.f32.xlu0 %v2492
      %v2494 = vpop.xlane.xlu0 %2493
      %v2495 = vrcp.pop %v2494
      %v2496 = vmul.f32 %v2491, %v2495
      %2497 = vrot.lane.b32.xlu0 %v2138, 112
      %v2498 = vpop.permute.xlu0 %2497
      %2499 = vrot.lane.b32.xlu0 %v2139, 112
      %v2500 = vpop.permute.xlu0 %2499
      %v2501 = vsel %vm835, %v2498, 0
      %v2503 = vsel %vm835, %v2500, 0
      %2505 = vmatprep.subr.mxu0 0.0
      %2506 = vmatpush1.xpose.msra.mxu0 %v2503
      %2507 = vmatprep.subr.mxu0 0.0
      %2508 = vmatpush1.xpose.msra.mxu0 0.0
      %2509 = vmatprep.subr.mxu0 0.0
      %2510 = vmatpush1.xpose.msra.mxu0 0.0
      %2511 = vmatprep.subr.mxu0 0.0
      %2512 = vmatpush1.xpose.msra.mxu0 0.0
      %2513 = vmatprep.subr.mxu0 0.0
      %2514 = vmatpush1.xpose.msra.mxu0 0.0
      %2515 = vmatprep.subr.mxu0 0.0
      %2516 = vmatpush1.xpose.msra.mxu0 0.0
      %2517 = vmatprep.subr.mxu0 0.0
      %2518 = vmatpush1.xpose.msra.mxu0 0.0
      %2519 = vmatprep.subr.mxu0 0.0
      %2520 = vmatpush1.xpose.msra.mxu0 0.0
      %2521 = vmatprep.subr.mxu0 0.0
      %2522 = vmatpush1.xpose.msra.mxu0 0.0
      %2523 = vmatprep.subr.mxu0 0.0
      %2524 = vmatpush1.xpose.msra.mxu0 0.0
      %2525 = vmatprep.subr.mxu0 0.0
      %2526 = vmatpush1.xpose.msra.mxu0 0.0
      %2527 = vmatprep.subr.mxu0 0.0
      %2528 = vmatpush1.xpose.msra.mxu0 0.0
      %2529 = vmatprep.subr.mxu0 0.0
      %2530 = vmatpush1.xpose.msra.mxu0 0.0
      %2531 = vmatprep.subr.mxu0 0.0
      %2532 = vmatpush1.xpose.msra.mxu0 0.0
      %2533 = vmatprep.subr.mxu0 0.0
      %2534 = vmatpush1.xpose.msra.mxu0 0.0
      %2535 = vmatprep.subr.mxu0 0.0
      %2536 = vmatpush1.xpose.msra.mxu0 0.0
      %2537 = vmatprep.subr.mxu0 0.0
      %2538 = vmatpush1.xpose.msra.mxu0 0.0
      %2539 = vmatprep.subr.mxu0 0.0
      %2540 = vmatpush1.xpose.msra.mxu0 0.0
      %2541 = vmatprep.subr.mxu0 0.0
      %2542 = vmatpush1.xpose.msra.mxu0 0.0
      %2543 = vmatprep.subr.mxu0 0.0
      %2544 = vmatpush1.xpose.msra.mxu0 0.0
      %2545 = vmatprep.subr.mxu0 0.0
      %2546 = vmatpush1.xpose.msra.mxu0 0.0
      %2547 = vmatprep.subr.mxu0 0.0
      %2548 = vmatpush1.xpose.msra.mxu0 0.0
      %2549 = vmatprep.subr.mxu0 0.0
      %2550 = vmatpush1.xpose.msra.mxu0 0.0
      %2551 = vmatprep.subr.mxu0 0.0
      %2552 = vmatpush1.xpose.msra.mxu0 0.0
      %2553 = vmatprep.subr.mxu0 0.0
      %2554 = vmatpush1.xpose.msra.mxu0 0.0
      %2555 = vmatprep.subr.mxu0 0.0
      %2556 = vmatpush1.xpose.msra.mxu0 0.0
      %2557 = vmatprep.subr.mxu0 0.0
      %2558 = vmatpush1.xpose.msra.mxu0 0.0
      %2559 = vmatprep.subr.mxu0 0.0
      %2560 = vmatpush1.xpose.msra.mxu0 0.0
      %2561 = vmatprep.subr.mxu0 0.0
      %2562 = vmatpush1.xpose.msra.mxu0 0.0
      %2563 = vmatprep.subr.mxu0 0.0
      %2564 = vmatpush1.xpose.msra.mxu0 0.0
      %2565 = vmatprep.subr.mxu0 0.0
      %2566 = vmatpush1.xpose.msra.mxu0 0.0
      %2567 = vmatprep.subr.mxu0 0.0
      %2568 = vmatpush1.xpose.msra.mxu0 0.0
      %2569 = vmatprep.mubr.f32.mxu0 0.0
      %2570 = vmatmul.mubr.f32.gmra.mrb[0].mxu0 %v2501
      %v2571 = vpop.f32.mrb[0].mxu0
      %v2572 = vadd.f32 0.0, %v2571
      %v2573 = vpop.f32.mrb[0].mxu0
      %2574 = vdwg.mxu0
      %v2575 = vmul.f32 %v2572, 0.25
      %v2576 = vsel %vm2126, %v2575, -inf
      %2577 = vmax.xlane.f32.xlu0 %v2576
      %v2578 = vpop.xlane.xlu0 %2577
      %v2579 = vsub.f32 %v2575, %v2578
      %v2580 = vmul.f32 %v2579, 1.442695
      %v2581 = vpow.pop %v2580
      %v2582 = vsel %vm2126, %v2581, 0.0
      %2583 = vadd.xlane.f32.xlu0 %v2582
      %v2584 = vpop.xlane.xlu0 %2583
      %v2585 = vrcp.pop %v2584
      %v2586 = vmul.f32 %v2581, %v2585
      %v2587 = vadd.f32 %v2496, %v2586
      %2588 = vrot.lane.b32.xlu0 %v1965, 112
      %v2589 = vpop.permute.xlu0 %2588
      %2590 = vrot.lane.b32.xlu0 %v2046, 112
      %v2591 = vpop.permute.xlu0 %2590
      %v2592 = vsel %vm835, %v2589, 0
      %v2594 = vsel %vm835, %v2591, 0
      %2596 = vmatprep.subr.mxu0 0.0
      %2597 = vmatpush1.xpose.msra.mxu0 %v2594
      %2598 = vmatprep.subr.mxu0 0.0
      %2599 = vmatpush1.xpose.msra.mxu0 0.0
      %2600 = vmatprep.subr.mxu0 0.0
      %2601 = vmatpush1.xpose.msra.mxu0 0.0
      %2602 = vmatprep.subr.mxu0 0.0
      %2603 = vmatpush1.xpose.msra.mxu0 0.0
      %2604 = vmatprep.subr.mxu0 0.0
      %2605 = vmatpush1.xpose.msra.mxu0 0.0
      %2606 = vmatprep.subr.mxu0 0.0
      %2607 = vmatpush1.xpose.msra.mxu0 0.0
      %2608 = vmatprep.subr.mxu0 0.0
      %2609 = vmatpush1.xpose.msra.mxu0 0.0
      %2610 = vmatprep.subr.mxu0 0.0
      %2611 = vmatpush1.xpose.msra.mxu0 0.0
      %2612 = vmatprep.subr.mxu0 0.0
      %2613 = vmatpush1.xpose.msra.mxu0 0.0
      %2614 = vmatprep.subr.mxu0 0.0
      %2615 = vmatpush1.xpose.msra.mxu0 0.0
      %2616 = vmatprep.subr.mxu0 0.0
      %2617 = vmatpush1.xpose.msra.mxu0 0.0
      %2618 = vmatprep.subr.mxu0 0.0
      %2619 = vmatpush1.xpose.msra.mxu0 0.0
      %2620 = vmatprep.subr.mxu0 0.0
      %2621 = vmatpush1.xpose.msra.mxu0 0.0
      %2622 = vmatprep.subr.mxu0 0.0
      %2623 = vmatpush1.xpose.msra.mxu0 0.0
      %2624 = vmatprep.subr.mxu0 0.0
      %2625 = vmatpush1.xpose.msra.mxu0 0.0
      %2626 = vmatprep.subr.mxu0 0.0
      %2627 = vmatpush1.xpose.msra.mxu0 0.0
      %2628 = vmatprep.subr.mxu0 0.0
      %2629 = vmatpush1.xpose.msra.mxu0 0.0
      %2630 = vmatprep.subr.mxu0 0.0
      %2631 = vmatpush1.xpose.msra.mxu0 0.0
      %2632 = vmatprep.subr.mxu0 0.0
      %2633 = vmatpush1.xpose.msra.mxu0 0.0
      %2634 = vmatprep.subr.mxu0 0.0
      %2635 = vmatpush1.xpose.msra.mxu0 0.0
      %2636 = vmatprep.subr.mxu0 0.0
      %2637 = vmatpush1.xpose.msra.mxu0 0.0
      %2638 = vmatprep.subr.mxu0 0.0
      %2639 = vmatpush1.xpose.msra.mxu0 0.0
      %2640 = vmatprep.subr.mxu0 0.0
      %2641 = vmatpush1.xpose.msra.mxu0 0.0
      %2642 = vmatprep.subr.mxu0 0.0
      %2643 = vmatpush1.xpose.msra.mxu0 0.0
      %2644 = vmatprep.subr.mxu0 0.0
      %2645 = vmatpush1.xpose.msra.mxu0 0.0
      %2646 = vmatprep.subr.mxu0 0.0
      %2647 = vmatpush1.xpose.msra.mxu0 0.0
      %2648 = vmatprep.subr.mxu0 0.0
      %2649 = vmatpush1.xpose.msra.mxu0 0.0
      %2650 = vmatprep.subr.mxu0 0.0
      %2651 = vmatpush1.xpose.msra.mxu0 0.0
      %2652 = vmatprep.subr.mxu0 0.0
      %2653 = vmatpush1.xpose.msra.mxu0 0.0
      %2654 = vmatprep.subr.mxu0 0.0
      %2655 = vmatpush1.xpose.msra.mxu0 0.0
      %2656 = vmatprep.subr.mxu0 0.0
      %2657 = vmatpush1.xpose.msra.mxu0 0.0
      %2658 = vmatprep.subr.mxu0 0.0
      %2659 = vmatpush1.xpose.msra.mxu0 0.0
      %2660 = vmatprep.mubr.f32.mxu0 0.0
      %2661 = vmatmul.mubr.f32.gmra.mrb[0].mxu0 %v2592
      %v2662 = vpop.f32.mrb[0].mxu0
      %v2663 = vadd.f32 0.0, %v2662
      %v2664 = vpop.f32.mrb[0].mxu0
      %2665 = vdwg.mxu0
      %v2666 = vmul.f32 %v2663, 0.25
      %v2667 = vsel %vm2126, %v2666, -inf
      %2668 = vmax.xlane.f32.xlu0 %v2667
      %v2669 = vpop.xlane.xlu0 %2668
      %v2670 = vsub.f32 %v2666, %v2669
      %v2671 = vmul.f32 %v2670, 1.442695
      %v2672 = vpow.pop %v2671
      %v2673 = vsel %vm2126, %v2672, 0.0
      %2674 = vadd.xlane.f32.xlu0 %v2673
      %v2675 = vpop.xlane.xlu0 %2674
      %v2676 = vrcp.pop %v2675
      %v2677 = vmul.f32 %v2672, %v2676
      %v2678 = vadd.f32 %v2587, %v2677
      %2679 = vrot.lane.b32.xlu0 %v2316, 112
      %v2680 = vpop.permute.xlu0 %2679
      %2681 = vrot.lane.b32.xlu0 %v2317, 112
      %v2682 = vpop.permute.xlu0 %2681
      %v2683 = vsel %vm835, %v2680, 0
      %v2685 = vsel %vm835, %v2682, 0
      %2687 = vmatprep.subr.mxu0 0.0
      %2688 = vmatpush1.xpose.msra.mxu0 %v2685
      %2689 = vmatprep.subr.mxu0 0.0
      %2690 = vmatpush1.xpose.msra.mxu0 0.0
      %2691 = vmatprep.subr.mxu0 0.0
      %2692 = vmatpush1.xpose.msra.mxu0 0.0
      %2693 = vmatprep.subr.mxu0 0.0
      %2694 = vmatpush1.xpose.msra.mxu0 0.0
      %2695 = vmatprep.subr.mxu0 0.0
      %2696 = vmatpush1.xpose.msra.mxu0 0.0
      %2697 = vmatprep.subr.mxu0 0.0
      %2698 = vmatpush1.xpose.msra.mxu0 0.0
      %2699 = vmatprep.subr.mxu0 0.0
      %2700 = vmatpush1.xpose.msra.mxu0 0.0
      %2701 = vmatprep.subr.mxu0 0.0
      %2702 = vmatpush1.xpose.msra.mxu0 0.0
      %2703 = vmatprep.subr.mxu0 0.0
      %2704 = vmatpush1.xpose.msra.mxu0 0.0
      %2705 = vmatprep.subr.mxu0 0.0
      %2706 = vmatpush1.xpose.msra.mxu0 0.0
      %2707 = vmatprep.subr.mxu0 0.0
      %2708 = vmatpush1.xpose.msra.mxu0 0.0
      %2709 = vmatprep.subr.mxu0 0.0
      %2710 = vmatpush1.xpose.msra.mxu0 0.0
      %2711 = vmatprep.subr.mxu0 0.0
      %2712 = vmatpush1.xpose.msra.mxu0 0.0
      %2713 = vmatprep.subr.mxu0 0.0
      %2714 = vmatpush1.xpose.msra.mxu0 0.0
      %2715 = vmatprep.subr.mxu0 0.0
      %2716 = vmatpush1.xpose.msra.mxu0 0.0
      %2717 = vmatprep.subr.mxu0 0.0
      %2718 = vmatpush1.xpose.msra.mxu0 0.0
      %2719 = vmatprep.subr.mxu0 0.0
      %2720 = vmatpush1.xpose.msra.mxu0 0.0
      %2721 = vmatprep.subr.mxu0 0.0
      %2722 = vmatpush1.xpose.msra.mxu0 0.0
      %2723 = vmatprep.subr.mxu0 0.0
      %2724 = vmatpush1.xpose.msra.mxu0 0.0
      %2725 = vmatprep.subr.mxu0 0.0
      %2726 = vmatpush1.xpose.msra.mxu0 0.0
      %2727 = vmatprep.subr.mxu0 0.0
      %2728 = vmatpush1.xpose.msra.mxu0 0.0
      %2729 = vmatprep.subr.mxu0 0.0
      %2730 = vmatpush1.xpose.msra.mxu0 0.0
      %2731 = vmatprep.subr.mxu0 0.0
      %2732 = vmatpush1.xpose.msra.mxu0 0.0
      %2733 = vmatprep.subr.mxu0 0.0
      %2734 = vmatpush1.xpose.msra.mxu0 0.0
      %2735 = vmatprep.subr.mxu0 0.0
      %2736 = vmatpush1.xpose.msra.mxu0 0.0
      %2737 = vmatprep.subr.mxu0 0.0
      %2738 = vmatpush1.xpose.msra.mxu0 0.0
      %2739 = vmatprep.subr.mxu0 0.0
      %2740 = vmatpush1.xpose.msra.mxu0 0.0
      %2741 = vmatprep.subr.mxu0 0.0
      %2742 = vmatpush1.xpose.msra.mxu0 0.0
      %2743 = vmatprep.subr.mxu0 0.0
      %2744 = vmatpush1.xpose.msra.mxu0 0.0
      %2745 = vmatprep.subr.mxu0 0.0
      %2746 = vmatpush1.xpose.msra.mxu0 0.0
      %2747 = vmatprep.subr.mxu0 0.0
      %2748 = vmatpush1.xpose.msra.mxu0 0.0
      %2749 = vmatprep.subr.mxu0 0.0
      %2750 = vmatpush1.xpose.msra.mxu0 0.0
      %2751 = vmatprep.mubr.f32.mxu0 0.0
      %2752 = vmatmul.mubr.f32.gmra.mrb[0].mxu0 %v2683
      %v2753 = vpop.f32.mrb[0].mxu0
      %v2754 = vadd.f32 0.0, %v2753
      %v2755 = vpop.f32.mrb[0].mxu0
      %2756 = vdwg.mxu0
      %v2757 = vmul.f32 %v2754, 0.25
      %v2758 = vsel %vm2126, %v2757, -inf
      %2759 = vmax.xlane.f32.xlu0 %v2758
      %v2760 = vpop.xlane.xlu0 %2759
      %v2761 = vsub.f32 %v2757, %v2760
      %v2762 = vmul.f32 %v2761, 1.442695
      %v2763 = vpow.pop %v2762
      %v2764 = vsel %vm2126, %v2763, 0.0
      %2765 = vadd.xlane.f32.xlu0 %v2764
      %v2766 = vpop.xlane.xlu0 %2765
      %v2767 = vrcp.pop %v2766
      %v2768 = vmul.f32 %v2763, %v2767
      %v2769 = vadd.f32 %v2678, %v2768
      %v2770 = vmul.f32 %v2769, 0.25
      %s2771 = scalar_lea.vmem %s620, 4
      %2772 = vst.msk [vmem:[%s2771] sm:$0xf] %vm2126, %v2770
      %v2774 = vsel %vm1886, %v1868, 0
      %v2777 = vsel %vm1886, %v1869, 0
      %2779 = vmatprep.subr.mxu0 0.0
      %2780 = vmatpush1.msra.mxu0 %v1870
      %2781 = vmatprep.subr.mxu0 0.0
      %2782 = vmatpush1.msra.mxu0 %v1871
      %2783 = vmatprep.subr.mxu0 0.0
      %2784 = vmatpush1.msra.mxu0 %v1872
      %2785 = vmatprep.subr.mxu0 0.0
      %2786 = vmatpush1.msra.mxu0 %v1873
      %2787 = vmatprep.subr.mxu0 0.0
      %2788 = vmatpush1.msra.mxu0 0.0
      %2789 = vmatprep.subr.mxu0 0.0
      %2790 = vmatpush1.msra.mxu0 0.0
      %2791 = vmatprep.subr.mxu0 0.0
      %2792 = vmatpush1.msra.mxu0 0.0
      %2793 = vmatprep.subr.mxu0 0.0
      %2794 = vmatpush1.msra.mxu0 0.0
      %2795 = vmatprep.subr.mxu0 0.0
      %2796 = vmatpush1.msra.mxu0 0.0
      %2797 = vmatprep.subr.mxu0 0.0
      %2798 = vmatpush1.msra.mxu0 0.0
      %2799 = vmatprep.subr.mxu0 0.0
      %2800 = vmatpush1.msra.mxu0 0.0
      %2801 = vmatprep.subr.mxu0 0.0
      %2802 = vmatpush1.msra.mxu0 0.0
      %2803 = vmatprep.subr.mxu0 0.0
      %2804 = vmatpush1.msra.mxu0 0.0
      %2805 = vmatprep.subr.mxu0 0.0
      %2806 = vmatpush1.msra.mxu0 0.0
      %2807 = vmatprep.subr.mxu0 0.0
      %2808 = vmatpush1.msra.mxu0 0.0
      %2809 = vmatprep.subr.mxu0 0.0
      %2810 = vmatpush1.msra.mxu0 0.0
      %2811 = vmatprep.subr.mxu0 0.0
      %2812 = vmatpush1.msra.mxu0 0.0
      %2813 = vmatprep.subr.mxu0 0.0
      %2814 = vmatpush1.msra.mxu0 0.0
      %2815 = vmatprep.subr.mxu0 0.0
      %2816 = vmatpush1.msra.mxu0 0.0
      %2817 = vmatprep.subr.mxu0 0.0
      %2818 = vmatpush1.msra.mxu0 0.0
      %2819 = vmatprep.subr.mxu0 0.0
      %2820 = vmatpush1.msra.mxu0 0.0
      %2821 = vmatprep.subr.mxu0 0.0
      %2822 = vmatpush1.msra.mxu0 0.0
      %2823 = vmatprep.subr.mxu0 0.0
      %2824 = vmatpush1.msra.mxu0 0.0
      %2825 = vmatprep.subr.mxu0 0.0
      %2826 = vmatpush1.msra.mxu0 0.0
      %2827 = vmatprep.subr.mxu0 0.0
      %2828 = vmatpush1.msra.mxu0 0.0
      %2829 = vmatprep.subr.mxu0 0.0
      %2830 = vmatpush1.msra.mxu0 0.0
      %2831 = vmatprep.subr.mxu0 0.0
      %2832 = vmatpush1.msra.mxu0 0.0
      %2833 = vmatprep.subr.mxu0 0.0
      %2834 = vmatpush1.msra.mxu0 0.0
      %2835 = vmatprep.subr.mxu0 0.0
      %2836 = vmatpush1.msra.mxu0 0.0
      %2837 = vmatprep.subr.mxu0 0.0
      %2838 = vmatpush1.msra.mxu0 0.0
      %2839 = vmatprep.subr.mxu0 0.0
      %2840 = vmatpush1.msra.mxu0 0.0
      %2841 = vmatprep.subr.mxu0 0.0
      %2842 = vmatpush1.msra.mxu0 0.0
      %2843 = vmatprep.mubr.f32.mxu0 0.0
      %2844 = vmatmul.mubr.f32.gmra.mrb[0].mxu0 %v2774
      %v2845 = vpop.f32.mrb[0].mxu0
      %v2846 = vadd.f32 %v1884, %v2845
      %v2847 = vpop.f32.mrb[0].mxu0
      %2848 = vmatprep.mubr.f32.mxu0 0.0
      %2849 = vmatmul.mubr.f32.gmra.mrb[0].mxu0 %v2777
      %v2850 = vpop.f32.mrb[0].mxu0
      %v2851 = vadd.f32 %v1884, %v2850
      %v2852 = vpop.f32.mrb[0].mxu0
      %2853 = vdwg.mxu0
      %2854 = vmatprep.subr.mxu0 0.0
      %2855 = vmatpush1.msra.mxu0 %v1875
      %2856 = vmatprep.subr.mxu0 0.0
      %2857 = vmatpush1.msra.mxu0 %v1876
      %2858 = vmatprep.subr.mxu0 0.0
      %2859 = vmatpush1.msra.mxu0 %v1877
      %2860 = vmatprep.subr.mxu0 0.0
      %2861 = vmatpush1.msra.mxu0 %v1878
      %2862 = vmatprep.subr.mxu0 0.0
      %2863 = vmatpush1.msra.mxu0 0.0
      %2864 = vmatprep.subr.mxu0 0.0
      %2865 = vmatpush1.msra.mxu0 0.0
      %2866 = vmatprep.subr.mxu0 0.0
      %2867 = vmatpush1.msra.mxu0 0.0
      %2868 = vmatprep.subr.mxu0 0.0
      %2869 = vmatpush1.msra.mxu0 0.0
      %2870 = vmatprep.subr.mxu0 0.0
      %2871 = vmatpush1.msra.mxu0 0.0
      %2872 = vmatprep.subr.mxu0 0.0
      %2873 = vmatpush1.msra.mxu0 0.0
      %2874 = vmatprep.subr.mxu0 0.0
      %2875 = vmatpush1.msra.mxu0 0.0
      %2876 = vmatprep.subr.mxu0 0.0
      %2877 = vmatpush1.msra.mxu0 0.0
      %2878 = vmatprep.subr.mxu0 0.0
      %2879 = vmatpush1.msra.mxu0 0.0
      %2880 = vmatprep.subr.mxu0 0.0
      %2881 = vmatpush1.msra.mxu0 0.0
      %2882 = vmatprep.subr.mxu0 0.0
      %2883 = vmatpush1.msra.mxu0 0.0
      %2884 = vmatprep.subr.mxu0 0.0
      %2885 = vmatpush1.msra.mxu0 0.0
      %2886 = vmatprep.subr.mxu0 0.0
      %2887 = vmatpush1.msra.mxu0 0.0
      %2888 = vmatprep.subr.mxu0 0.0
      %2889 = vmatpush1.msra.mxu0 0.0
      %2890 = vmatprep.subr.mxu0 0.0
      %2891 = vmatpush1.msra.mxu0 0.0
      %2892 = vmatprep.subr.mxu0 0.0
      %2893 = vmatpush1.msra.mxu0 0.0
      %2894 = vmatprep.subr.mxu0 0.0
      %2895 = vmatpush1.msra.mxu0 0.0
      %2896 = vmatprep.subr.mxu0 0.0
      %2897 = vmatpush1.msra.mxu0 0.0
      %2898 = vmatprep.subr.mxu0 0.0
      %2899 = vmatpush1.msra.mxu0 0.0
      %2900 = vmatprep.subr.mxu0 0.0
      %2901 = vmatpush1.msra.mxu0 0.0
      %2902 = vmatprep.subr.mxu0 0.0
      %2903 = vmatpush1.msra.mxu0 0.0
      %2904 = vmatprep.subr.mxu0 0.0
      %2905 = vmatpush1.msra.mxu0 0.0
      %2906 = vmatprep.subr.mxu0 0.0
      %2907 = vmatpush1.msra.mxu0 0.0
      %2908 = vmatprep.subr.mxu0 0.0
      %2909 = vmatpush1.msra.mxu0 0.0
      %2910 = vmatprep.subr.mxu0 0.0
      %2911 = vmatpush1.msra.mxu0 0.0
      %2912 = vmatprep.subr.mxu0 0.0
      %2913 = vmatpush1.msra.mxu0 0.0
      %2914 = vmatprep.subr.mxu0 0.0
      %2915 = vmatpush1.msra.mxu0 0.0
      %2916 = vmatprep.subr.mxu0 0.0
      %2917 = vmatpush1.msra.mxu0 0.0
      %2918 = vmatprep.mubr.f32.mxu0 0.0
      %2919 = vmatmul.mubr.f32.gmra.mrb[0].mxu0 %v2774
      %v2920 = vpop.f32.mrb[0].mxu0
      %v2921 = vadd.f32 %v1972, %v2920
      %v2922 = vpop.f32.mrb[0].mxu0
      %2923 = vmatprep.mubr.f32.mxu0 0.0
      %2924 = vmatmul.mubr.f32.gmra.mrb[0].mxu0 %v2777
      %v2925 = vpop.f32.mrb[0].mxu0
      %v2926 = vadd.f32 %v1972, %v2925
      %v2927 = vpop.f32.mrb[0].mxu0
      %2928 = vdwg.mxu0
      %v2930 = vsel %vm835, %v2846, 0
      %v2933 = vsel %vm835, %v2921, 0
      %2935 = vmatprep.subr.mxu0 0.0
      %2936 = vmatpush1.xpose.msra.mxu0 %v2933
      %2937 = vmatprep.subr.mxu0 0.0
      %2938 = vmatpush1.xpose.msra.mxu0 0.0
      %2939 = vmatprep.subr.mxu0 0.0
      %2940 = vmatpush1.xpose.msra.mxu0 0.0
      %2941 = vmatprep.subr.mxu0 0.0
      %2942 = vmatpush1.xpose.msra.mxu0 0.0
      %2943 = vmatprep.subr.mxu0 0.0
      %2944 = vmatpush1.xpose.msra.mxu0 0.0
      %2945 = vmatprep.subr.mxu0 0.0
      %2946 = vmatpush1.xpose.msra.mxu0 0.0
      %2947 = vmatprep.subr.mxu0 0.0
      %2948 = vmatpush1.xpose.msra.mxu0 0.0
      %2949 = vmatprep.subr.mxu0 0.0
      %2950 = vmatpush1.xpose.msra.mxu0 0.0
      %2951 = vmatprep.subr.mxu0 0.0
      %2952 = vmatpush1.xpose.msra.mxu0 0.0
      %2953 = vmatprep.subr.mxu0 0.0
      %2954 = vmatpush1.xpose.msra.mxu0 0.0
      %2955 = vmatprep.subr.mxu0 0.0
      %2956 = vmatpush1.xpose.msra.mxu0 0.0
      %2957 = vmatprep.subr.mxu0 0.0
      %2958 = vmatpush1.xpose.msra.mxu0 0.0
      %2959 = vmatprep.subr.mxu0 0.0
      %2960 = vmatpush1.xpose.msra.mxu0 0.0
      %2961 = vmatprep.subr.mxu0 0.0
      %2962 = vmatpush1.xpose.msra.mxu0 0.0
      %2963 = vmatprep.subr.mxu0 0.0
      %2964 = vmatpush1.xpose.msra.mxu0 0.0
      %2965 = vmatprep.subr.mxu0 0.0
      %2966 = vmatpush1.xpose.msra.mxu0 0.0
      %2967 = vmatprep.subr.mxu0 0.0
      %2968 = vmatpush1.xpose.msra.mxu0 0.0
      %2969 = vmatprep.subr.mxu0 0.0
      %2970 = vmatpush1.xpose.msra.mxu0 0.0
      %2971 = vmatprep.subr.mxu0 0.0
      %2972 = vmatpush1.xpose.msra.mxu0 0.0
      %2973 = vmatprep.subr.mxu0 0.0
      %2974 = vmatpush1.xpose.msra.mxu0 0.0
      %2975 = vmatprep.subr.mxu0 0.0
      %2976 = vmatpush1.xpose.msra.mxu0 0.0
      %2977 = vmatprep.subr.mxu0 0.0
      %2978 = vmatpush1.xpose.msra.mxu0 0.0
      %2979 = vmatprep.subr.mxu0 0.0
      %2980 = vmatpush1.xpose.msra.mxu0 0.0
      %2981 = vmatprep.subr.mxu0 0.0
      %2982 = vmatpush1.xpose.msra.mxu0 0.0
      %2983 = vmatprep.subr.mxu0 0.0
      %2984 = vmatpush1.xpose.msra.mxu0 0.0
      %2985 = vmatprep.subr.mxu0 0.0
      %2986 = vmatpush1.xpose.msra.mxu0 0.0
      %2987 = vmatprep.subr.mxu0 0.0
      %2988 = vmatpush1.xpose.msra.mxu0 0.0
      %2989 = vmatprep.subr.mxu0 0.0
      %2990 = vmatpush1.xpose.msra.mxu0 0.0
      %2991 = vmatprep.subr.mxu0 0.0
      %2992 = vmatpush1.xpose.msra.mxu0 0.0
      %2993 = vmatprep.subr.mxu0 0.0
      %2994 = vmatpush1.xpose.msra.mxu0 0.0
      %2995 = vmatprep.subr.mxu0 0.0
      %2996 = vmatpush1.xpose.msra.mxu0 0.0
      %2997 = vmatprep.subr.mxu0 0.0
      %2998 = vmatpush1.xpose.msra.mxu0 0.0
      %2999 = vmatprep.mubr.f32.mxu0 0.0
      %3000 = vmatmul.mubr.f32.gmra.mrb[0].mxu0 %v2930
      %v3001 = vpop.f32.mrb[0].mxu0
      %v3002 = vadd.f32 0.0, %v3001
      %v3003 = vpop.f32.mrb[0].mxu0
      %3004 = vdwg.mxu0
      %v3005 = vmul.f32 %v3002, 0.25
      %v3006 = vsel %vm2126, %v3005, -inf
      %3007 = vmax.xlane.f32.xlu0 %v3006
      %v3008 = vpop.xlane.xlu0 %3007
      %v3009 = vsub.f32 %v3005, %v3008
      %v3010 = vmul.f32 %v3009, 1.442695
      %v3011 = vpow.pop %v3010
      %v3012 = vsel %vm2126, %v3011, 0.0
      %3013 = vadd.xlane.f32.xlu0 %v3012
      %v3014 = vpop.xlane.xlu0 %3013
      %v3015 = vrcp.pop %v3014
      %v3016 = vmul.f32 %v3011, %v3015
      %v3017 = vrot.slane %v2846, 4
      %v3018 = vrot.slane %v2921, 4
      %v3019 = vsel %vm835, %v3017, 0
      %v3021 = vsel %vm835, %v3018, 0
      %3023 = vmatprep.subr.mxu0 0.0
      %3024 = vmatpush1.xpose.msra.mxu0 %v3021
      %3025 = vmatprep.subr.mxu0 0.0
      %3026 = vmatpush1.xpose.msra.mxu0 0.0
      %3027 = vmatprep.subr.mxu0 0.0
      %3028 = vmatpush1.xpose.msra.mxu0 0.0
      %3029 = vmatprep.subr.mxu0 0.0
      %3030 = vmatpush1.xpose.msra.mxu0 0.0
      %3031 = vmatprep.subr.mxu0 0.0
      %3032 = vmatpush1.xpose.msra.mxu0 0.0
      %3033 = vmatprep.subr.mxu0 0.0
      %3034 = vmatpush1.xpose.msra.mxu0 0.0
      %3035 = vmatprep.subr.mxu0 0.0
      %3036 = vmatpush1.xpose.msra.mxu0 0.0
      %3037 = vmatprep.subr.mxu0 0.0
      %3038 = vmatpush1.xpose.msra.mxu0 0.0
      %3039 = vmatprep.subr.mxu0 0.0
      %3040 = vmatpush1.xpose.msra.mxu0 0.0
      %3041 = vmatprep.subr.mxu0 0.0
      %3042 = vmatpush1.xpose.msra.mxu0 0.0
      %3043 = vmatprep.subr.mxu0 0.0
      %3044 = vmatpush1.xpose.msra.mxu0 0.0
      %3045 = vmatprep.subr.mxu0 0.0
      %3046 = vmatpush1.xpose.msra.mxu0 0.0
      %3047 = vmatprep.subr.mxu0 0.0
      %3048 = vmatpush1.xpose.msra.mxu0 0.0
      %3049 = vmatprep.subr.mxu0 0.0
      %3050 = vmatpush1.xpose.msra.mxu0 0.0
      %3051 = vmatprep.subr.mxu0 0.0
      %3052 = vmatpush1.xpose.msra.mxu0 0.0
      %3053 = vmatprep.subr.mxu0 0.0
      %3054 = vmatpush1.xpose.msra.mxu0 0.0
      %3055 = vmatprep.subr.mxu0 0.0
      %3056 = vmatpush1.xpose.msra.mxu0 0.0
      %3057 = vmatprep.subr.mxu0 0.0
      %3058 = vmatpush1.xpose.msra.mxu0 0.0
      %3059 = vmatprep.subr.mxu0 0.0
      %3060 = vmatpush1.xpose.msra.mxu0 0.0
      %3061 = vmatprep.subr.mxu0 0.0
      %3062 = vmatpush1.xpose.msra.mxu0 0.0
      %3063 = vmatprep.subr.mxu0 0.0
      %3064 = vmatpush1.xpose.msra.mxu0 0.0
      %3065 = vmatprep.subr.mxu0 0.0
      %3066 = vmatpush1.xpose.msra.mxu0 0.0
      %3067 = vmatprep.subr.mxu0 0.0
      %3068 = vmatpush1.xpose.msra.mxu0 0.0
      %3069 = vmatprep.subr.mxu0 0.0
      %3070 = vmatpush1.xpose.msra.mxu0 0.0
      %3071 = vmatprep.subr.mxu0 0.0
      %3072 = vmatpush1.xpose.msra.mxu0 0.0
      %3073 = vmatprep.subr.mxu0 0.0
      %3074 = vmatpush1.xpose.msra.mxu0 0.0
      %3075 = vmatprep.subr.mxu0 0.0
      %3076 = vmatpush1.xpose.msra.mxu0 0.0
      %3077 = vmatprep.subr.mxu0 0.0
      %3078 = vmatpush1.xpose.msra.mxu0 0.0
      %3079 = vmatprep.subr.mxu0 0.0
      %3080 = vmatpush1.xpose.msra.mxu0 0.0
      %3081 = vmatprep.subr.mxu0 0.0
      %3082 = vmatpush1.xpose.msra.mxu0 0.0
      %3083 = vmatprep.subr.mxu0 0.0
      %3084 = vmatpush1.xpose.msra.mxu0 0.0
      %3085 = vmatprep.subr.mxu0 0.0
      %3086 = vmatpush1.xpose.msra.mxu0 0.0
      %3087 = vmatprep.mubr.f32.mxu0 0.0
      %3088 = vmatmul.mubr.f32.gmra.mrb[0].mxu0 %v3019
      %v3089 = vpop.f32.mrb[0].mxu0
      %v3090 = vadd.f32 0.0, %v3089
      %v3091 = vpop.f32.mrb[0].mxu0
      %3092 = vdwg.mxu0
      %v3093 = vmul.f32 %v3090, 0.25
      %v3094 = vsel %vm2126, %v3093, -inf
      %3095 = vmax.xlane.f32.xlu0 %v3094
      %v3096 = vpop.xlane.xlu0 %3095
      %v3097 = vsub.f32 %v3093, %v3096
      %v3098 = vmul.f32 %v3097, 1.442695
      %v3099 = vpow.pop %v3098
      %v3100 = vsel %vm2126, %v3099, 0.0
      %3101 = vadd.xlane.f32.xlu0 %v3100
      %v3102 = vpop.xlane.xlu0 %3101
      %v3103 = vrcp.pop %v3102
      %v3104 = vmul.f32 %v3099, %v3103
      %v3105 = vadd.f32 %v3016, %v3104
      %v3107 = vsel %vm835, %v2851, 0
      %v3110 = vsel %vm835, %v2926, 0
      %3112 = vmatprep.subr.mxu0 0.0
      %3113 = vmatpush1.xpose.msra.mxu0 %v3110
      %3114 = vmatprep.subr.mxu0 0.0
      %3115 = vmatpush1.xpose.msra.mxu0 0.0
      %3116 = vmatprep.subr.mxu0 0.0
      %3117 = vmatpush1.xpose.msra.mxu0 0.0
      %3118 = vmatprep.subr.mxu0 0.0
      %3119 = vmatpush1.xpose.msra.mxu0 0.0
      %3120 = vmatprep.subr.mxu0 0.0
      %3121 = vmatpush1.xpose.msra.mxu0 0.0
      %3122 = vmatprep.subr.mxu0 0.0
      %3123 = vmatpush1.xpose.msra.mxu0 0.0
      %3124 = vmatprep.subr.mxu0 0.0
      %3125 = vmatpush1.xpose.msra.mxu0 0.0
      %3126 = vmatprep.subr.mxu0 0.0
      %3127 = vmatpush1.xpose.msra.mxu0 0.0
      %3128 = vmatprep.subr.mxu0 0.0
      %3129 = vmatpush1.xpose.msra.mxu0 0.0
      %3130 = vmatprep.subr.mxu0 0.0
      %3131 = vmatpush1.xpose.msra.mxu0 0.0
      %3132 = vmatprep.subr.mxu0 0.0
      %3133 = vmatpush1.xpose.msra.mxu0 0.0
      %3134 = vmatprep.subr.mxu0 0.0
      %3135 = vmatpush1.xpose.msra.mxu0 0.0
      %3136 = vmatprep.subr.mxu0 0.0
      %3137 = vmatpush1.xpose.msra.mxu0 0.0
      %3138 = vmatprep.subr.mxu0 0.0
      %3139 = vmatpush1.xpose.msra.mxu0 0.0
      %3140 = vmatprep.subr.mxu0 0.0
      %3141 = vmatpush1.xpose.msra.mxu0 0.0
      %3142 = vmatprep.subr.mxu0 0.0
      %3143 = vmatpush1.xpose.msra.mxu0 0.0
      %3144 = vmatprep.subr.mxu0 0.0
      %3145 = vmatpush1.xpose.msra.mxu0 0.0
      %3146 = vmatprep.subr.mxu0 0.0
      %3147 = vmatpush1.xpose.msra.mxu0 0.0
      %3148 = vmatprep.subr.mxu0 0.0
      %3149 = vmatpush1.xpose.msra.mxu0 0.0
      %3150 = vmatprep.subr.mxu0 0.0
      %3151 = vmatpush1.xpose.msra.mxu0 0.0
      %3152 = vmatprep.subr.mxu0 0.0
      %3153 = vmatpush1.xpose.msra.mxu0 0.0
      %3154 = vmatprep.subr.mxu0 0.0
      %3155 = vmatpush1.xpose.msra.mxu0 0.0
      %3156 = vmatprep.subr.mxu0 0.0
      %3157 = vmatpush1.xpose.msra.mxu0 0.0
      %3158 = vmatprep.subr.mxu0 0.0
      %3159 = vmatpush1.xpose.msra.mxu0 0.0
      %3160 = vmatprep.subr.mxu0 0.0
      %3161 = vmatpush1.xpose.msra.mxu0 0.0
      %3162 = vmatprep.subr.mxu0 0.0
      %3163 = vmatpush1.xpose.msra.mxu0 0.0
      %3164 = vmatprep.subr.mxu0 0.0
      %3165 = vmatpush1.xpose.msra.mxu0 0.0
      %3166 = vmatprep.subr.mxu0 0.0
      %3167 = vmatpush1.xpose.msra.mxu0 0.0
      %3168 = vmatprep.subr.mxu0 0.0
      %3169 = vmatpush1.xpose.msra.mxu0 0.0
      %3170 = vmatprep.subr.mxu0 0.0
      %3171 = vmatpush1.xpose.msra.mxu0 0.0
      %3172 = vmatprep.subr.mxu0 0.0
      %3173 = vmatpush1.xpose.msra.mxu0 0.0
      %3174 = vmatprep.subr.mxu0 0.0
      %3175 = vmatpush1.xpose.msra.mxu0 0.0
      %3176 = vmatprep.mubr.f32.mxu0 0.0
      %3177 = vmatmul.mubr.f32.gmra.mrb[0].mxu0 %v3107
      %v3178 = vpop.f32.mrb[0].mxu0
      %v3179 = vadd.f32 0.0, %v3178
      %v3180 = vpop.f32.mrb[0].mxu0
      %3181 = vdwg.mxu0
      %v3182 = vmul.f32 %v3179, 0.25
      %v3183 = vsel %vm2126, %v3182, -inf
      %3184 = vmax.xlane.f32.xlu0 %v3183
      %v3185 = vpop.xlane.xlu0 %3184
      %v3186 = vsub.f32 %v3182, %v3185
      %v3187 = vmul.f32 %v3186, 1.442695
      %v3188 = vpow.pop %v3187
      %v3189 = vsel %vm2126, %v3188, 0.0
      %3190 = vadd.xlane.f32.xlu0 %v3189
      %v3191 = vpop.xlane.xlu0 %3190
      %v3192 = vrcp.pop %v3191
      %v3193 = vmul.f32 %v3188, %v3192
      %v3194 = vadd.f32 %v3105, %v3193
      %v3195 = vrot.slane %v2851, 4
      %v3196 = vrot.slane %v2926, 4
      %v3197 = vsel %vm835, %v3195, 0
      %v3199 = vsel %vm835, %v3196, 0
      %3201 = vmatprep.subr.mxu0 0.0
      %3202 = vmatpush1.xpose.msra.mxu0 %v3199
      %3203 = vmatprep.subr.mxu0 0.0
      %3204 = vmatpush1.xpose.msra.mxu0 0.0
      %3205 = vmatprep.subr.mxu0 0.0
      %3206 = vmatpush1.xpose.msra.mxu0 0.0
      %3207 = vmatprep.subr.mxu0 0.0
      %3208 = vmatpush1.xpose.msra.mxu0 0.0
      %3209 = vmatprep.subr.mxu0 0.0
      %3210 = vmatpush1.xpose.msra.mxu0 0.0
      %3211 = vmatprep.subr.mxu0 0.0
      %3212 = vmatpush1.xpose.msra.mxu0 0.0
      %3213 = vmatprep.subr.mxu0 0.0
      %3214 = vmatpush1.xpose.msra.mxu0 0.0
      %3215 = vmatprep.subr.mxu0 0.0
      %3216 = vmatpush1.xpose.msra.mxu0 0.0
      %3217 = vmatprep.subr.mxu0 0.0
      %3218 = vmatpush1.xpose.msra.mxu0 0.0
      %3219 = vmatprep.subr.mxu0 0.0
      %3220 = vmatpush1.xpose.msra.mxu0 0.0
      %3221 = vmatprep.subr.mxu0 0.0
      %3222 = vmatpush1.xpose.msra.mxu0 0.0
      %3223 = vmatprep.subr.mxu0 0.0
      %3224 = vmatpush1.xpose.msra.mxu0 0.0
      %3225 = vmatprep.subr.mxu0 0.0
      %3226 = vmatpush1.xpose.msra.mxu0 0.0
      %3227 = vmatprep.subr.mxu0 0.0
      %3228 = vmatpush1.xpose.msra.mxu0 0.0
      %3229 = vmatprep.subr.mxu0 0.0
      %3230 = vmatpush1.xpose.msra.mxu0 0.0
      %3231 = vmatprep.subr.mxu0 0.0
      %3232 = vmatpush1.xpose.msra.mxu0 0.0
      %3233 = vmatprep.subr.mxu0 0.0
      %3234 = vmatpush1.xpose.msra.mxu0 0.0
      %3235 = vmatprep.subr.mxu0 0.0
      %3236 = vmatpush1.xpose.msra.mxu0 0.0
      %3237 = vmatprep.subr.mxu0 0.0
      %3238 = vmatpush1.xpose.msra.mxu0 0.0
      %3239 = vmatprep.subr.mxu0 0.0
      %3240 = vmatpush1.xpose.msra.mxu0 0.0
      %3241 = vmatprep.subr.mxu0 0.0
      %3242 = vmatpush1.xpose.msra.mxu0 0.0
      %3243 = vmatprep.subr.mxu0 0.0
      %3244 = vmatpush1.xpose.msra.mxu0 0.0
      %3245 = vmatprep.subr.mxu0 0.0
      %3246 = vmatpush1.xpose.msra.mxu0 0.0
      %3247 = vmatprep.subr.mxu0 0.0
      %3248 = vmatpush1.xpose.msra.mxu0 0.0
      %3249 = vmatprep.subr.mxu0 0.0
      %3250 = vmatpush1.xpose.msra.mxu0 0.0
      %3251 = vmatprep.subr.mxu0 0.0
      %3252 = vmatpush1.xpose.msra.mxu0 0.0
      %3253 = vmatprep.subr.mxu0 0.0
      %3254 = vmatpush1.xpose.msra.mxu0 0.0
      %3255 = vmatprep.subr.mxu0 0.0
      %3256 = vmatpush1.xpose.msra.mxu0 0.0
      %3257 = vmatprep.subr.mxu0 0.0
      %3258 = vmatpush1.xpose.msra.mxu0 0.0
      %3259 = vmatprep.subr.mxu0 0.0
      %3260 = vmatpush1.xpose.msra.mxu0 0.0
      %3261 = vmatprep.subr.mxu0 0.0
      %3262 = vmatpush1.xpose.msra.mxu0 0.0
      %3263 = vmatprep.subr.mxu0 0.0
      %3264 = vmatpush1.xpose.msra.mxu0 0.0
      %3265 = vmatprep.mubr.f32.mxu0 0.0
      %3266 = vmatmul.mubr.f32.gmra.mrb[0].mxu0 %v3197
      %v3267 = vpop.f32.mrb[0].mxu0
      %v3268 = vadd.f32 0.0, %v3267
      %v3269 = vpop.f32.mrb[0].mxu0
      %3270 = vdwg.mxu0
      %v3271 = vmul.f32 %v3268, 0.25
      %v3272 = vsel %vm2126, %v3271, -inf
      %3273 = vmax.xlane.f32.xlu0 %v3272
      %v3274 = vpop.xlane.xlu0 %3273
      %v3275 = vsub.f32 %v3271, %v3274
      %v3276 = vmul.f32 %v3275, 1.442695
      %v3277 = vpow.pop %v3276
      %v3278 = vsel %vm2126, %v3277, 0.0
      %3279 = vadd.xlane.f32.xlu0 %v3278
      %v3280 = vpop.xlane.xlu0 %3279
      %v3281 = vrcp.pop %v3280
      %v3282 = vmul.f32 %v3277, %v3281
      %v3283 = vadd.f32 %v3194, %v3282
      %v3284 = vmul.f32 %v3283, 0.25
      %3285 = vst.msk [vmem:[%s625] sm:$0xf] %vm2126, %v3284
      %3286 = vrot.lane.b32.xlu0 %v2846, 112
      %v3287 = vpop.permute.xlu0 %3286
      %3288 = vrot.lane.b32.xlu0 %v2921, 112
      %v3289 = vpop.permute.xlu0 %3288
      %v3290 = vsel %vm835, %v3287, 0
      %v3292 = vsel %vm835, %v3289, 0
      %3294 = vmatprep.subr.mxu0 0.0
      %3295 = vmatpush1.xpose.msra.mxu0 %v3292
      %3296 = vmatprep.subr.mxu0 0.0
      %3297 = vmatpush1.xpose.msra.mxu0 0.0
      %3298 = vmatprep.subr.mxu0 0.0
      %3299 = vmatpush1.xpose.msra.mxu0 0.0
      %3300 = vmatprep.subr.mxu0 0.0
      %3301 = vmatpush1.xpose.msra.mxu0 0.0
      %3302 = vmatprep.subr.mxu0 0.0
      %3303 = vmatpush1.xpose.msra.mxu0 0.0
      %3304 = vmatprep.subr.mxu0 0.0
      %3305 = vmatpush1.xpose.msra.mxu0 0.0
      %3306 = vmatprep.subr.mxu0 0.0
      %3307 = vmatpush1.xpose.msra.mxu0 0.0
      %3308 = vmatprep.subr.mxu0 0.0
      %3309 = vmatpush1.xpose.msra.mxu0 0.0
      %3310 = vmatprep.subr.mxu0 0.0
      %3311 = vmatpush1.xpose.msra.mxu0 0.0
      %3312 = vmatprep.subr.mxu0 0.0
      %3313 = vmatpush1.xpose.msra.mxu0 0.0
      %3314 = vmatprep.subr.mxu0 0.0
      %3315 = vmatpush1.xpose.msra.mxu0 0.0
      %3316 = vmatprep.subr.mxu0 0.0
      %3317 = vmatpush1.xpose.msra.mxu0 0.0
      %3318 = vmatprep.subr.mxu0 0.0
      %3319 = vmatpush1.xpose.msra.mxu0 0.0
      %3320 = vmatprep.subr.mxu0 0.0
      %3321 = vmatpush1.xpose.msra.mxu0 0.0
      %3322 = vmatprep.subr.mxu0 0.0
      %3323 = vmatpush1.xpose.msra.mxu0 0.0
      %3324 = vmatprep.subr.mxu0 0.0
      %3325 = vmatpush1.xpose.msra.mxu0 0.0
      %3326 = vmatprep.subr.mxu0 0.0
      %3327 = vmatpush1.xpose.msra.mxu0 0.0
      %3328 = vmatprep.subr.mxu0 0.0
      %3329 = vmatpush1.xpose.msra.mxu0 0.0
      %3330 = vmatprep.subr.mxu0 0.0
      %3331 = vmatpush1.xpose.msra.mxu0 0.0
      %3332 = vmatprep.subr.mxu0 0.0
      %3333 = vmatpush1.xpose.msra.mxu0 0.0
      %3334 = vmatprep.subr.mxu0 0.0
      %3335 = vmatpush1.xpose.msra.mxu0 0.0
      %3336 = vmatprep.subr.mxu0 0.0
      %3337 = vmatpush1.xpose.msra.mxu0 0.0
      %3338 = vmatprep.subr.mxu0 0.0
      %3339 = vmatpush1.xpose.msra.mxu0 0.0
      %3340 = vmatprep.subr.mxu0 0.0
      %3341 = vmatpush1.xpose.msra.mxu0 0.0
      %3342 = vmatprep.subr.mxu0 0.0
      %3343 = vmatpush1.xpose.msra.mxu0 0.0
      %3344 = vmatprep.subr.mxu0 0.0
      %3345 = vmatpush1.xpose.msra.mxu0 0.0
      %3346 = vmatprep.subr.mxu0 0.0
      %3347 = vmatpush1.xpose.msra.mxu0 0.0
      %3348 = vmatprep.subr.mxu0 0.0
      %3349 = vmatpush1.xpose.msra.mxu0 0.0
      %3350 = vmatprep.subr.mxu0 0.0
      %3351 = vmatpush1.xpose.msra.mxu0 0.0
      %3352 = vmatprep.subr.mxu0 0.0
      %3353 = vmatpush1.xpose.msra.mxu0 0.0
      %3354 = vmatprep.subr.mxu0 0.0
      %3355 = vmatpush1.xpose.msra.mxu0 0.0
      %3356 = vmatprep.subr.mxu0 0.0
      %3357 = vmatpush1.xpose.msra.mxu0 0.0
      %3358 = vmatprep.mubr.f32.mxu0 0.0
      %3359 = vmatmul.mubr.f32.gmra.mrb[0].mxu0 %v3290
      %v3360 = vpop.f32.mrb[0].mxu0
      %v3361 = vadd.f32 0.0, %v3360
      %v3362 = vpop.f32.mrb[0].mxu0
      %3363 = vdwg.mxu0
      %v3364 = vmul.f32 %v3361, 0.25
      %v3365 = vsel %vm2126, %v3364, -inf
      %3366 = vmax.xlane.f32.xlu0 %v3365
      %v3367 = vpop.xlane.xlu0 %3366
      %v3368 = vsub.f32 %v3364, %v3367
      %v3369 = vmul.f32 %v3368, 1.442695
      %v3370 = vpow.pop %v3369
      %v3371 = vsel %vm2126, %v3370, 0.0
      %3372 = vadd.xlane.f32.xlu0 %v3371
      %v3373 = vpop.xlane.xlu0 %3372
      %v3374 = vrcp.pop %v3373
      %v3375 = vmul.f32 %v3370, %v3374
      %3376 = vrot.lane.b32.xlu0 %v3017, 112
      %v3377 = vpop.permute.xlu0 %3376
      %3378 = vrot.lane.b32.xlu0 %v3018, 112
      %v3379 = vpop.permute.xlu0 %3378
      %v3380 = vsel %vm835, %v3377, 0
      %v3382 = vsel %vm835, %v3379, 0
      %3384 = vmatprep.subr.mxu0 0.0
      %3385 = vmatpush1.xpose.msra.mxu0 %v3382
      %3386 = vmatprep.subr.mxu0 0.0
      %3387 = vmatpush1.xpose.msra.mxu0 0.0
      %3388 = vmatprep.subr.mxu0 0.0
      %3389 = vmatpush1.xpose.msra.mxu0 0.0
      %3390 = vmatprep.subr.mxu0 0.0
      %3391 = vmatpush1.xpose.msra.mxu0 0.0
      %3392 = vmatprep.subr.mxu0 0.0
      %3393 = vmatpush1.xpose.msra.mxu0 0.0
      %3394 = vmatprep.subr.mxu0 0.0
      %3395 = vmatpush1.xpose.msra.mxu0 0.0
      %3396 = vmatprep.subr.mxu0 0.0
      %3397 = vmatpush1.xpose.msra.mxu0 0.0
      %3398 = vmatprep.subr.mxu0 0.0
      %3399 = vmatpush1.xpose.msra.mxu0 0.0
      %3400 = vmatprep.subr.mxu0 0.0
      %3401 = vmatpush1.xpose.msra.mxu0 0.0
      %3402 = vmatprep.subr.mxu0 0.0
      %3403 = vmatpush1.xpose.msra.mxu0 0.0
      %3404 = vmatprep.subr.mxu0 0.0
      %3405 = vmatpush1.xpose.msra.mxu0 0.0
      %3406 = vmatprep.subr.mxu0 0.0
      %3407 = vmatpush1.xpose.msra.mxu0 0.0
      %3408 = vmatprep.subr.mxu0 0.0
      %3409 = vmatpush1.xpose.msra.mxu0 0.0
      %3410 = vmatprep.subr.mxu0 0.0
      %3411 = vmatpush1.xpose.msra.mxu0 0.0
      %3412 = vmatprep.subr.mxu0 0.0
      %3413 = vmatpush1.xpose.msra.mxu0 0.0
      %3414 = vmatprep.subr.mxu0 0.0
      %3415 = vmatpush1.xpose.msra.mxu0 0.0
      %3416 = vmatprep.subr.mxu0 0.0
      %3417 = vmatpush1.xpose.msra.mxu0 0.0
      %3418 = vmatprep.subr.mxu0 0.0
      %3419 = vmatpush1.xpose.msra.mxu0 0.0
      %3420 = vmatprep.subr.mxu0 0.0
      %3421 = vmatpush1.xpose.msra.mxu0 0.0
      %3422 = vmatprep.subr.mxu0 0.0
      %3423 = vmatpush1.xpose.msra.mxu0 0.0
      %3424 = vmatprep.subr.mxu0 0.0
      %3425 = vmatpush1.xpose.msra.mxu0 0.0
      %3426 = vmatprep.subr.mxu0 0.0
      %3427 = vmatpush1.xpose.msra.mxu0 0.0
      %3428 = vmatprep.subr.mxu0 0.0
      %3429 = vmatpush1.xpose.msra.mxu0 0.0
      %3430 = vmatprep.subr.mxu0 0.0
      %3431 = vmatpush1.xpose.msra.mxu0 0.0
      %3432 = vmatprep.subr.mxu0 0.0
      %3433 = vmatpush1.xpose.msra.mxu0 0.0
      %3434 = vmatprep.subr.mxu0 0.0
      %3435 = vmatpush1.xpose.msra.mxu0 0.0
      %3436 = vmatprep.subr.mxu0 0.0
      %3437 = vmatpush1.xpose.msra.mxu0 0.0
      %3438 = vmatprep.subr.mxu0 0.0
      %3439 = vmatpush1.xpose.msra.mxu0 0.0
      %3440 = vmatprep.subr.mxu0 0.0
      %3441 = vmatpush1.xpose.msra.mxu0 0.0
      %3442 = vmatprep.subr.mxu0 0.0
      %3443 = vmatpush1.xpose.msra.mxu0 0.0
      %3444 = vmatprep.subr.mxu0 0.0
      %3445 = vmatpush1.xpose.msra.mxu0 0.0
      %3446 = vmatprep.subr.mxu0 0.0
      %3447 = vmatpush1.xpose.msra.mxu0 0.0
      %3448 = vmatprep.mubr.f32.mxu0 0.0
      %3449 = vmatmul.mubr.f32.gmra.mrb[0].mxu0 %v3380
      %v3450 = vpop.f32.mrb[0].mxu0
      %v3451 = vadd.f32 0.0, %v3450
      %v3452 = vpop.f32.mrb[0].mxu0
      %3453 = vdwg.mxu0
      %v3454 = vmul.f32 %v3451, 0.25
      %v3455 = vsel %vm2126, %v3454, -inf
      %3456 = vmax.xlane.f32.xlu0 %v3455
      %v3457 = vpop.xlane.xlu0 %3456
      %v3458 = vsub.f32 %v3454, %v3457
      %v3459 = vmul.f32 %v3458, 1.442695
      %v3460 = vpow.pop %v3459
      %v3461 = vsel %vm2126, %v3460, 0.0
      %3462 = vadd.xlane.f32.xlu0 %v3461
      %v3463 = vpop.xlane.xlu0 %3462
      %v3464 = vrcp.pop %v3463
      %v3465 = vmul.f32 %v3460, %v3464
      %v3466 = vadd.f32 %v3375, %v3465
      %3467 = vrot.lane.b32.xlu0 %v2851, 112
      %v3468 = vpop.permute.xlu0 %3467
      %3469 = vrot.lane.b32.xlu0 %v2926, 112
      %v3470 = vpop.permute.xlu0 %3469
      %v3471 = vsel %vm835, %v3468, 0
      %v3473 = vsel %vm835, %v3470, 0
      %3475 = vmatprep.subr.mxu0 0.0
      %3476 = vmatpush1.xpose.msra.mxu0 %v3473
      %3477 = vmatprep.subr.mxu0 0.0
      %3478 = vmatpush1.xpose.msra.mxu0 0.0
      %3479 = vmatprep.subr.mxu0 0.0
      %3480 = vmatpush1.xpose.msra.mxu0 0.0
      %3481 = vmatprep.subr.mxu0 0.0
      %3482 = vmatpush1.xpose.msra.mxu0 0.0
      %3483 = vmatprep.subr.mxu0 0.0
      %3484 = vmatpush1.xpose.msra.mxu0 0.0
      %3485 = vmatprep.subr.mxu0 0.0
      %3486 = vmatpush1.xpose.msra.mxu0 0.0
      %3487 = vmatprep.subr.mxu0 0.0
      %3488 = vmatpush1.xpose.msra.mxu0 0.0
      %3489 = vmatprep.subr.mxu0 0.0
      %3490 = vmatpush1.xpose.msra.mxu0 0.0
      %3491 = vmatprep.subr.mxu0 0.0
      %3492 = vmatpush1.xpose.msra.mxu0 0.0
      %3493 = vmatprep.subr.mxu0 0.0
      %3494 = vmatpush1.xpose.msra.mxu0 0.0
      %3495 = vmatprep.subr.mxu0 0.0
      %3496 = vmatpush1.xpose.msra.mxu0 0.0
      %3497 = vmatprep.subr.mxu0 0.0
      %3498 = vmatpush1.xpose.msra.mxu0 0.0
      %3499 = vmatprep.subr.mxu0 0.0
      %3500 = vmatpush1.xpose.msra.mxu0 0.0
      %3501 = vmatprep.subr.mxu0 0.0
      %3502 = vmatpush1.xpose.msra.mxu0 0.0
      %3503 = vmatprep.subr.mxu0 0.0
      %3504 = vmatpush1.xpose.msra.mxu0 0.0
      %3505 = vmatprep.subr.mxu0 0.0
      %3506 = vmatpush1.xpose.msra.mxu0 0.0
      %3507 = vmatprep.subr.mxu0 0.0
      %3508 = vmatpush1.xpose.msra.mxu0 0.0
      %3509 = vmatprep.subr.mxu0 0.0
      %3510 = vmatpush1.xpose.msra.mxu0 0.0
      %3511 = vmatprep.subr.mxu0 0.0
      %3512 = vmatpush1.xpose.msra.mxu0 0.0
      %3513 = vmatprep.subr.mxu0 0.0
      %3514 = vmatpush1.xpose.msra.mxu0 0.0
      %3515 = vmatprep.subr.mxu0 0.0
      %3516 = vmatpush1.xpose.msra.mxu0 0.0
      %3517 = vmatprep.subr.mxu0 0.0
      %3518 = vmatpush1.xpose.msra.mxu0 0.0
      %3519 = vmatprep.subr.mxu0 0.0
      %3520 = vmatpush1.xpose.msra.mxu0 0.0
      %3521 = vmatprep.subr.mxu0 0.0
      %3522 = vmatpush1.xpose.msra.mxu0 0.0
      %3523 = vmatprep.subr.mxu0 0.0
      %3524 = vmatpush1.xpose.msra.mxu0 0.0
      %3525 = vmatprep.subr.mxu0 0.0
      %3526 = vmatpush1.xpose.msra.mxu0 0.0
      %3527 = vmatprep.subr.mxu0 0.0
      %3528 = vmatpush1.xpose.msra.mxu0 0.0
      %3529 = vmatprep.subr.mxu0 0.0
      %3530 = vmatpush1.xpose.msra.mxu0 0.0
      %3531 = vmatprep.subr.mxu0 0.0
      %3532 = vmatpush1.xpose.msra.mxu0 0.0
      %3533 = vmatprep.subr.mxu0 0.0
      %3534 = vmatpush1.xpose.msra.mxu0 0.0
      %3535 = vmatprep.subr.mxu0 0.0
      %3536 = vmatpush1.xpose.msra.mxu0 0.0
      %3537 = vmatprep.subr.mxu0 0.0
      %3538 = vmatpush1.xpose.msra.mxu0 0.0
      %3539 = vmatprep.mubr.f32.mxu0 0.0
      %3540 = vmatmul.mubr.f32.gmra.mrb[0].mxu0 %v3471
      %v3541 = vpop.f32.mrb[0].mxu0
      %v3542 = vadd.f32 0.0, %v3541
      %v3543 = vpop.f32.mrb[0].mxu0
      %3544 = vdwg.mxu0
      %v3545 = vmul.f32 %v3542, 0.25
      %v3546 = vsel %vm2126, %v3545, -inf
      %3547 = vmax.xlane.f32.xlu0 %v3546
      %v3548 = vpop.xlane.xlu0 %3547
      %v3549 = vsub.f32 %v3545, %v3548
      %v3550 = vmul.f32 %v3549, 1.442695
      %v3551 = vpow.pop %v3550
      %v3552 = vsel %vm2126, %v3551, 0.0
      %3553 = vadd.xlane.f32.xlu0 %v3552
      %v3554 = vpop.xlane.xlu0 %3553
      %v3555 = vrcp.pop %v3554
      %v3556 = vmul.f32 %v3551, %v3555
      %v3557 = vadd.f32 %v3466, %v3556
      %3558 = vrot.lane.b32.xlu0 %v3195, 112
      %v3559 = vpop.permute.xlu0 %3558
      %3560 = vrot.lane.b32.xlu0 %v3196, 112
      %v3561 = vpop.permute.xlu0 %3560
      %v3562 = vsel %vm835, %v3559, 0
      %v3564 = vsel %vm835, %v3561, 0
      %3566 = vmatprep.subr.mxu0 0.0
      %3567 = vmatpush1.xpose.msra.mxu0 %v3564
      %3568 = vmatprep.subr.mxu0 0.0
      %3569 = vmatpush1.xpose.msra.mxu0 0.0
      %3570 = vmatprep.subr.mxu0 0.0
      %3571 = vmatpush1.xpose.msra.mxu0 0.0
      %3572 = vmatprep.subr.mxu0 0.0
      %3573 = vmatpush1.xpose.msra.mxu0 0.0
      %3574 = vmatprep.subr.mxu0 0.0
      %3575 = vmatpush1.xpose.msra.mxu0 0.0
      %3576 = vmatprep.subr.mxu0 0.0
      %3577 = vmatpush1.xpose.msra.mxu0 0.0
      %3578 = vmatprep.subr.mxu0 0.0
      %3579 = vmatpush1.xpose.msra.mxu0 0.0
      %3580 = vmatprep.subr.mxu0 0.0
      %3581 = vmatpush1.xpose.msra.mxu0 0.0
      %3582 = vmatprep.subr.mxu0 0.0
      %3583 = vmatpush1.xpose.msra.mxu0 0.0
      %3584 = vmatprep.subr.mxu0 0.0
      %3585 = vmatpush1.xpose.msra.mxu0 0.0
      %3586 = vmatprep.subr.mxu0 0.0
      %3587 = vmatpush1.xpose.msra.mxu0 0.0
      %3588 = vmatprep.subr.mxu0 0.0
      %3589 = vmatpush1.xpose.msra.mxu0 0.0
      %3590 = vmatprep.subr.mxu0 0.0
      %3591 = vmatpush1.xpose.msra.mxu0 0.0
      %3592 = vmatprep.subr.mxu0 0.0
      %3593 = vmatpush1.xpose.msra.mxu0 0.0
      %3594 = vmatprep.subr.mxu0 0.0
      %3595 = vmatpush1.xpose.msra.mxu0 0.0
      %3596 = vmatprep.subr.mxu0 0.0
      %3597 = vmatpush1.xpose.msra.mxu0 0.0
      %3598 = vmatprep.subr.mxu0 0.0
      %3599 = vmatpush1.xpose.msra.mxu0 0.0
      %3600 = vmatprep.subr.mxu0 0.0
      %3601 = vmatpush1.xpose.msra.mxu0 0.0
      %3602 = vmatprep.subr.mxu0 0.0
      %3603 = vmatpush1.xpose.msra.mxu0 0.0
      %3604 = vmatprep.subr.mxu0 0.0
      %3605 = vmatpush1.xpose.msra.mxu0 0.0
      %3606 = vmatprep.subr.mxu0 0.0
      %3607 = vmatpush1.xpose.msra.mxu0 0.0
      %3608 = vmatprep.subr.mxu0 0.0
      %3609 = vmatpush1.xpose.msra.mxu0 0.0
      %3610 = vmatprep.subr.mxu0 0.0
      %3611 = vmatpush1.xpose.msra.mxu0 0.0
      %3612 = vmatprep.subr.mxu0 0.0
      %3613 = vmatpush1.xpose.msra.mxu0 0.0
      %3614 = vmatprep.subr.mxu0 0.0
      %3615 = vmatpush1.xpose.msra.mxu0 0.0
      %3616 = vmatprep.subr.mxu0 0.0
      %3617 = vmatpush1.xpose.msra.mxu0 0.0
      %3618 = vmatprep.subr.mxu0 0.0
      %3619 = vmatpush1.xpose.msra.mxu0 0.0
      %3620 = vmatprep.subr.mxu0 0.0
      %3621 = vmatpush1.xpose.msra.mxu0 0.0
      %3622 = vmatprep.subr.mxu0 0.0
      %3623 = vmatpush1.xpose.msra.mxu0 0.0
      %3624 = vmatprep.subr.mxu0 0.0
      %3625 = vmatpush1.xpose.msra.mxu0 0.0
      %3626 = vmatprep.subr.mxu0 0.0
      %3627 = vmatpush1.xpose.msra.mxu0 0.0
      %3628 = vmatprep.subr.mxu0 0.0
      %3629 = vmatpush1.xpose.msra.mxu0 0.0
      %3630 = vmatprep.mubr.f32.mxu0 0.0
      %3631 = vmatmul.mubr.f32.gmra.mrb[0].mxu0 %v3562
      %v3632 = vpop.f32.mrb[0].mxu0
      %v3633 = vadd.f32 0.0, %v3632
      %v3634 = vpop.f32.mrb[0].mxu0
      %3635 = vdwg.mxu0
      %v3636 = vmul.f32 %v3633, 0.25
      %v3637 = vsel %vm2126, %v3636, -inf
      %3638 = vmax.xlane.f32.xlu0 %v3637
      %v3639 = vpop.xlane.xlu0 %3638
      %v3640 = vsub.f32 %v3636, %v3639
      %v3641 = vmul.f32 %v3640, 1.442695
      %v3642 = vpow.pop %v3641
      %v3643 = vsel %vm2126, %v3642, 0.0
      %3644 = vadd.xlane.f32.xlu0 %v3643
      %v3645 = vpop.xlane.xlu0 %3644
      %v3646 = vrcp.pop %v3645
      %v3647 = vmul.f32 %v3642, %v3646
      %v3648 = vadd.f32 %v3557, %v3647
      %v3649 = vmul.f32 %v3648, 0.25
      %s3650 = scalar_lea.vmem %s625, 4
      %3651 = vst.msk [vmem:[%s3650] sm:$0xf] %vm2126, %v3649
      %p3652 = scmp.lt.s32.totalorder %s30, 1
      %s3653 = scalar_select %p3652, %s30, 1
      %s3654 = smul.addr %s3653, 2
      %s3655 = smul.addr %s3654, 4
      %s3656 = scalar_lea.vmem %s17, %s3655
      %p3657 = scmp.lt.s32.totalorder %s30, 1
      %s3658 = scalar_select %p3657, %s30, 1
      %s3659 = smul.addr %s3658, 2
      %s3660 = smul.addr %s3659, 4
      %s3661 = scalar_lea.vmem %s18, %s3660
      // Predicated region
      $region89: #{dcdetector_forward.3} parent=87 // pred_check
        %p3662 = pneg %p420
      $region90: #{dcdetector_forward.3} parent=87 // pred_check_branch
        %3664 = sbr.rel (%p3662) target = $region92
      $region91: #{dcdetector_forward.3} parent=87 // pred_region
        _
      $region92: #{dcdetector_forward.3} parent=87 // pred_fallthru
        _
      // Predicated region
      $region93: #{dcdetector_forward.3} parent=87 // pred_check
        %p3665 = pneg %p446
      $region94: #{dcdetector_forward.3} parent=87 // pred_check_branch
        %3667 = sbr.rel (%p3665) target = $region96
      $region95: #{dcdetector_forward.3} parent=87 // pred_region
        _
      $region96: #{dcdetector_forward.3} parent=87 // pred_fallthru
        _
    $region88: #{dcdetector_forward.3} parent=5 // pred_fallthru
      _
    %p3668 = scmp.le.s32.totalorder 2, %s25
    // Predicated region
    $region97: #{dcdetector_forward.3} parent=5 // pred_check
      %p3669 = pneg %p3668
    $region98: #{dcdetector_forward.3} parent=5 // pred_check_branch
      %3671 = sbr.rel (%p3669) target = $region100
    $region99: #{dcdetector_forward.3} parent=5 // pred_region
      %s3672 = ssub.s32 %s25, 2
      // Predicated region
      $region101: #{dcdetector_forward.3} parent=99 // pred_check
        %p3673 = pneg %p426
      $region102: #{dcdetector_forward.3} parent=99 // pred_check_branch
        %3675 = sbr.rel (%p3673) target = $region104
      $region103: #{dcdetector_forward.3} parent=99 // pred_region
        %p3676 = scmp.lt.s32.totalorder %s31, 1
        %s3677 = scalar_select %p3676, %s31, 1
        %s3678 = smul.addr %s3677, 2
        %s3679 = smul.addr %s3678, 4
        %s3680 = scalar_lea.vmem %s17, %s3679
      $region104: #{dcdetector_forward.3} parent=99 // pred_fallthru
        _
      // Predicated region
      $region105: #{dcdetector_forward.3} parent=99 // pred_check
        %p3681 = pneg %p452
      $region106: #{dcdetector_forward.3} parent=99 // pred_check_branch
        %3683 = sbr.rel (%p3681) target = $region108
      $region107: #{dcdetector_forward.3} parent=99 // pred_region
        %p3684 = scmp.lt.s32.totalorder %s31, 1
        %s3685 = scalar_select %p3684, %s31, 1
        %s3686 = smul.addr %s3685, 2
        %s3687 = smul.addr %s3686, 4
        %s3688 = scalar_lea.vmem %s18, %s3687
      $region108: #{dcdetector_forward.3} parent=99 // pred_fallthru
        _
    $region100: #{dcdetector_forward.3} parent=5 // pred_fallthru
      _
  $region6: #{dcdetector_forward.3} parent=0 // loop_footer
    %s29 = sadd.s32 1, %s25
  $region7: #{dcdetector_forward.3} parent=0 // loop_footer_branch
    %24 = sbr.rel target = $region3
  $region8: #{dcdetector_forward.3} parent=0 // loop_exit
    _

</llo_original>
